<compile_context>
chip_gen: v5e
topology: v5e:2x2
jax: 0.10.0
libtpu: 0.0.40
codegen_flags: <defaults>
</compile_context>

<pallas_src>
import functools

import jax
import jax.numpy as jnp
import numpy as np
from jax.experimental import pallas as pl
from jax.experimental.pallas import tpu as pltpu

_OFF = 8  # sublane-aligned offset where real data starts inside padded scratch
_HIGH = jax.lax.Precision.HIGHEST


# ----------------------------------------------------------------------------
# Fully fused forward kernel (single invocation, everything VMEM-resident).
# ----------------------------------------------------------------------------
def _conv_taps(p_ref, w_ref, B, Lc, K, Cin):
    """'same' conv as K tap matmuls accumulated in f32.  p_ref holds the
    activations at sublane offset _OFF inside a zero-haloed scratch; w_ref is
    (K*Cin, Cout) with row index k*Cin + c."""
    start = _OFF - (K - 1) // 2
    acc = None
    for k in range(K):
        tap = p_ref[:, start + k:start + k + Lc, :].reshape(B * Lc, Cin)
        part = jnp.dot(tap, w_ref[k * Cin:(k + 1) * Cin, :],
                       preferred_element_type=jnp.float32, precision=_HIGH)
        acc = part if acc is None else acc + part
    return acc                                              # (B*Lc, Cout)


def _fused_forward_kernel(x_ref, w1_ref, b1_ref, w2_ref, b2_ref, w3_ref,
                          b3_ref, wf_ref, bf_ref, wh_ref, bh_ref,
                          out_ref, p2_ref, p3_ref, *, B, L):
    # x_ref  : (B*L, 14)  conv1 im2col, built in the wrapper
    # w*_ref : (K*Cin, Cout) conv weights ; b*_ref : (1, Cout)
    # wf_ref : (L4*128, 256) fc1 weight, rows pre-permuted to channels-last
    # wh_ref : (256, 128) heads, zero-padded to 128 lanes ; bh_ref : (1, 128)
    # out_ref: (B, 128) fused lane-dense logits
    # p*_ref : zero-haloed activation scratch (data starts at sublane _OFF)
    L2, L3, L4 = L // 2, L // 4, L // 8

    def relu_pool(acc, b_ref, rows, cout):
        a = jnp.maximum(acc + b_ref[...], 0.0)              # bias + ReLU
        # MaxPool1d(2): pairwise max; batch boundaries preserved (rows even).
        return jnp.max(a.reshape(rows // 2, 2, cout), axis=1)

    # --- conv1 (k7, p3): im2col precomputed -> single matmul + ReLU + pool ---
    a = jnp.dot(x_ref[...], w1_ref[...],
                preferred_element_type=jnp.float32, precision=_HIGH)
    a = relu_pool(a, b1_ref, B * L, 32)                     # (B*L2, 32)

    # --- conv2 (k5, p2) + ReLU + pool ---------------------------------------
    zero32 = jnp.zeros((B, _OFF, 32), jnp.float32)
    p2_ref[:, :_OFF, :] = zero32                            # halo-only zeroing
    p2_ref[:, _OFF + L2:, :] = zero32
    p2_ref[:, _OFF:_OFF + L2, :] = a.reshape(B, L2, 32)     # one aligned slab
    a = _conv_taps(p2_ref, w2_ref, B, L2, 5, 32)
    a = relu_pool(a, b2_ref, B * L2, 64)                    # (B*L3, 64)

    # --- conv3 (k3, p1) + ReLU + pool ---------------------------------------
    zero64 = jnp.zeros((B, _OFF, 64), jnp.float32)
    p3_ref[:, :_OFF, :] = zero64
    p3_ref[:, _OFF + L3:, :] = zero64
    p3_ref[:, _OFF:_OFF + L3, :] = a.reshape(B, L3, 64)
    a = _conv_taps(p3_ref, w3_ref, B, L3, 3, 64)
    a = relu_pool(a, b3_ref, B * L3, 128)                   # (B*L4, 128)

    # --- flatten (channels-last; PyTorch's channel-major order folded into
    #     wf at pack time), dropout == identity at eval, fc1 + ReLU ----------
    feat = a.reshape(B, L4 * 128)
    h = jnp.dot(feat, wf_ref[...],
                preferred_element_type=jnp.float32, precision=_HIGH)
    h = jnp.maximum(h + bf_ref[...], 0.0)                   # (B, 256)

    # --- all three heads as ONE lane-dense 128-wide matmul + store ----------
    out_ref[...] = jnp.dot(h, wh_ref[...],
                           preferred_element_type=jnp.float32,
                           precision=_HIGH) + bh_ref[...]


def _multi_task_cnn_pallas(cols, pk, *, B, L):
    vmem = pl.BlockSpec(memory_space=pltpu.MemorySpace.VMEM)
    kernel = functools.partial(_fused_forward_kernel, B=B, L=L)
    return pl.pallas_call(
        kernel,
        out_shape=jax.ShapeDtypeStruct((B, 128), jnp.float32),
        in_specs=[vmem] * 11,
        out_specs=vmem,
        scratch_shapes=[
            pltpu.VMEM((B, L // 2 + 2 * _OFF, 32), jnp.float32),  # conv2 in
            pltpu.VMEM((B, L // 4 + 2 * _OFF, 64), jnp.float32),  # conv3 in
        ],
    )(cols, pk["w1"], pk["b1"], pk["w2"], pk["b2"], pk["w3"], pk["b3"],
      pk["wf"], pk["bf"], pk["wh"], pk["bh"])


def _im2col_conv1(x_blc, K=7):
    """(B, L, 2) channels-last -> (B*L, K*2) im2col for conv1 ('same', pad 3).
    One tiny XLA op in the wrapper instead of misaligned tap reads in-kernel."""
    B, L, Cin = x_blc.shape
    pad = (K - 1) // 2
    xp = jnp.pad(x_blc, ((0, 0), (pad, pad), (0, 0)))
    cols = jnp.concatenate([xp[:, k:k + L, :] for k in range(K)], axis=-1)
    return cols.reshape(B * L, K * Cin)


def multi_task_cnn_forward(x_ncl, packed_params, *, num_mod_classes,
                           num_jam_types):
    """x_ncl: (B, 2, L) float32 (PyTorch NCL). Returns (mod, jam, jam_type)."""
    B, cin, L = x_ncl.shape
    n_total = num_mod_classes + 2 + num_jam_types
    assert cin == 2 and L % 8 == 0, "expect 2 input channels and L % 8 == 0"
    assert n_total <= 128, "fused head output must fit one 128-lane slab"
    x = jnp.transpose(x_ncl, (0, 2, 1)).astype(jnp.float32)  # -> (B, L, 2)
    cols = _im2col_conv1(x)                                   # (B*L, 14)
    logits = _multi_task_cnn_pallas(cols, packed_params, B=B, L=L)
    mod = logits[:, :num_mod_classes]
    jam = logits[:, num_mod_classes:num_mod_classes + 2]
    jam_type = logits[:, num_mod_classes + 2:n_total]
    return mod, jam, jam_type


# ----------------------------------------------------------------------------
# Parameter init (PyTorch layout) + one-time packing into kernel layout.
# ----------------------------------------------------------------------------
def init_params(key, num_mod_classes, num_jam_types, input_length):
    """PyTorch-layout params: conv (Cout, Cin, K), linear (out, in)."""
    assert input_length % 8 == 0, "input_length must be divisible by 8"
    ks = jax.random.split(key, 14)

    def uni(k, shape, fan_in):
        bound = 1.0 / jnp.sqrt(jnp.float32(fan_in))
        return jax.random.uniform(k, shape, jnp.float32, -bound, bound)

    flat = 128 * (input_length // 8)
    return {
        "conv1_w": uni(ks[0], (32, 2, 7), 2 * 7),
        "conv1_b": uni(ks[1], (32,), 2 * 7),
        "conv2_w": uni(ks[2], (64, 32, 5), 32 * 5),
        "conv2_b": uni(ks[3], (64,), 32 * 5),
        "conv3_w": uni(ks[4], (128, 64, 3), 64 * 3),
        "conv3_b": uni(ks[5], (128,), 64 * 3),
        "fc1_w": uni(ks[6], (256, flat), flat),
        "fc1_b": uni(ks[7], (256,), flat),
        "mod_w": uni(ks[8], (num_mod_classes, 256), 256),
        "mod_b": uni(ks[9], (num_mod_classes,), 256),
        "jam_w": uni(ks[10], (2, 256), 256),
        "jam_b": uni(ks[11], (2,), 256),
        "jamtype_w": uni(ks[12], (num_jam_types, 256), 256),
        "jamtype_b": uni(ks[13], (num_jam_types,), 256),
    }


def pack_params(p, input_length):
    """One-time re-layout of PyTorch-style params into kernel layout."""
    out_len = input_length // 8

    def conv_w(w):  # (Cout, Cin, K) -> (K*Cin, Cout); row index = k*Cin + c
        cout = w.shape[0]
        return jnp.transpose(w, (2, 1, 0)).reshape(-1, cout)

    # fc1: PyTorch weight (256, 128*out_len) consumes a channel-major flatten
    # (row c*out_len + l).  The kernel feat is channels-last (row l*128 + c),
    # so permute the rows once here -> zero runtime relayout cost.
    wf = jnp.transpose(p["fc1_w"], (1, 0))                    # (flat, 256)
    wf = wf.reshape(128, out_len, 256).transpose(1, 0, 2).reshape(-1, 256)

    # All three heads fused into one lane-dense matmul, zero-padded to 128
    # output columns so the kernel's final store is unmasked and single-DMA.
    n_total = p["mod_w"].shape[0] + 2 + p["jamtype_w"].shape[0]
    wh = jnp.concatenate([p["mod_w"].T, p["jam_w"].T, p["jamtype_w"].T], axis=1)
    wh = jnp.pad(wh, ((0, 0), (0, 128 - n_total)))
    bh = jnp.concatenate([p["mod_b"], p["jam_b"], p["jamtype_b"]])
    bh = jnp.pad(bh, (0, 128 - n_total)).reshape(1, -1)

    return {
        "w1": conv_w(p["conv1_w"]), "b1": p["conv1_b"].reshape(1, -1),
        "w2": conv_w(p["conv2_w"]), "b2": p["conv2_b"].reshape(1, -1),
        "w3": conv_w(p["conv3_w"]), "b3": p["conv3_b"].reshape(1, -1),
        "wf": wf, "bf": p["fc1_b"].reshape(1, -1),
        "wh": wh, "bh": bh,
    }


# ----------------------------------------------------------------------------
# Pure-JAX reference (mirrors the PyTorch module) for a correctness check.
# ----------------------------------------------------------------------------
def _reference_forward(x_ncl, p):
    def conv(x, w, b, pad):
        y = jax.lax.conv_general_dilated(
            x, w, window_strides=(1,), padding=[(pad, pad)],
            dimension_numbers=("NCH", "OIH", "NCH"), precision=_HIGH)
        return jnp.maximum(y + b[None, :, None], 0.0)

    def pool(x):  # MaxPool1d(2)
        B, C, L = x.shape
        return jnp.max(x.reshape(B, C, L // 2, 2), axis=-1)

    h = pool(conv(x_ncl, p["conv1_w"], p["conv1_b"], 3))
    h = pool(conv(h, p["conv2_w"], p["conv2_b"], 2))
    h = pool(conv(h, p["conv3_w"], p["conv3_b"], 1))
    feat = h.reshape(h.shape[0], -1)                          # channel-major
    feat = jnp.maximum(
        jnp.dot(feat, p["fc1_w"].T, precision=_HIGH) + p["fc1_b"], 0.0)
    mod = jnp.dot(feat, p["mod_w"].T, precision=_HIGH) + p["mod_b"]
    jam = jnp.dot(feat, p["jam_w"].T, precision=_HIGH) + p["jam_b"]
    jt = jnp.dot(feat, p["jamtype_w"].T, precision=_HIGH) + p["jamtype_b"]
    return mod, jam, jt


if __name__ == "__main__":
    B, L = 2, 64
    NUM_MOD, NUM_JAM_TYPES = 8, 4

    key = jax.random.PRNGKey(0)
    k_x, k_p = jax.random.split(key)
    x = jax.random.normal(k_x, (B, 2, L), jnp.float32)        # PyTorch NCL input

    params = init_params(k_p, NUM_MOD, NUM_JAM_TYPES, input_length=L)
    packed = pack_params(params, input_length=L)              # one-time re-layout

    fwd = jax.jit(functools.partial(multi_task_cnn_forward,
                                    num_mod_classes=NUM_MOD,
                                    num_jam_types=NUM_JAM_TYPES))
    mod, jam, jam_type = fwd(x, packed)
    jax.block_until_ready((mod, jam, jam_type))

    assert mod.shape == (B, NUM_MOD)
    assert jam.shape == (B, 2)
    assert jam_type.shape == (B, NUM_JAM_TYPES)

    # Correctness vs. pure-JAX reference of the PyTorch module.
    r_mod, r_jam, r_jt = _reference_forward(x, params)
    np.testing.assert_allclose(np.asarray(mod), np.asarray(r_mod),
                               rtol=2e-3, atol=2e-3)
    np.testing.assert_allclose(np.asarray(jam), np.asarray(r_jam),
                               rtol=2e-3, atol=2e-3)
    np.testing.assert_allclose(np.asarray(jam_type), np.asarray(r_jt),
                               rtol=2e-3, atol=2e-3)

    print("KERNEL_OK")
</pallas_src>

<mosaic_0001>
module attributes {stable_mosaic.version = 11 : i64} {
  func.func @_fused_forward_kernel(%arg0: memref<128x14xf32, #tpu.memory_space<vmem>>, %arg1: memref<14x32xf32, #tpu.memory_space<vmem>>, %arg2: memref<1x32xf32, #tpu.memory_space<vmem>>, %arg3: memref<160x64xf32, #tpu.memory_space<vmem>>, %arg4: memref<1x64xf32, #tpu.memory_space<vmem>>, %arg5: memref<192x128xf32, #tpu.memory_space<vmem>>, %arg6: memref<1x128xf32, #tpu.memory_space<vmem>>, %arg7: memref<1024x256xf32, #tpu.memory_space<vmem>>, %arg8: memref<1x256xf32, #tpu.memory_space<vmem>>, %arg9: memref<256x128xf32, #tpu.memory_space<vmem>>, %arg10: memref<1x128xf32, #tpu.memory_space<vmem>>, %arg11: memref<2x128xf32, #tpu.memory_space<vmem>>, %arg12: memref<2x48x32xf32, #tpu.memory_space<vmem>>, %arg13: memref<2x32x64xf32, #tpu.memory_space<vmem>>) attributes {dimension_semantics = [], scalar_prefetch = 0 : i64, scratch_operands = 2 : i64, tpu.core_type = #tpu.core_type<tc>} {
    %c0 = arith.constant 0 : index
    %c0_0 = arith.constant 0 : index
    %0 = vector.load %arg0[%c0, %c0_0] : memref<128x14xf32, #tpu.memory_space<vmem>>, vector<128x14xf32>
    %c0_1 = arith.constant 0 : index
    %c0_2 = arith.constant 0 : index
    %1 = vector.load %arg1[%c0_1, %c0_2] : memref<14x32xf32, #tpu.memory_space<vmem>>, vector<14x32xf32>
    %cst = arith.constant dense<0.000000e+00> : vector<128x32xf32>
    %2 = tpu.matmul %0, %1, %cst {dimension_numbers = #tpu.dot_dimension_numbers<[1], [0], [0], [1], [0, 0, 1, 1], [], []>, precision = #tpu.contract_precision<fp32>} : vector<128x14xf32>, vector<14x32xf32>, vector<128x32xf32> -> vector<128x32xf32>
    %c0_3 = arith.constant 0 : index
    %c0_4 = arith.constant 0 : index
    %3 = vector.load %arg2[%c0_3, %c0_4] : memref<1x32xf32, #tpu.memory_space<vmem>>, vector<1x32xf32>
    %4 = vector.broadcast %3 : vector<1x32xf32> to vector<128x32xf32>
    %5 = arith.addf %2, %4 : vector<128x32xf32>
    %cst_5 = arith.constant 0.000000e+00 : f32
    %6 = vector.broadcast %cst_5 : f32 to vector<128x32xf32>
    %7 = arith.maximumf %5, %6 : vector<128x32xf32>
    %8 = vector.shape_cast %7 : vector<128x32xf32> to vector<64x2x32xf32>
    %cst_6 = arith.constant dense<0xFF800000> : vector<64x32xf32>
    %9 = vector.multi_reduction <maximumf>, %8, %cst_6 [1] : vector<64x2x32xf32> to vector<64x32xf32>
    %cst_7 = arith.constant 0.000000e+00 : f32
    %10 = vector.broadcast %cst_7 : f32 to vector<2x8x32xf32>
    %c0_8 = arith.constant 0 : index
    %c0_9 = arith.constant 0 : index
    %c0_10 = arith.constant 0 : index
    %11 = vector.load %arg12[%c0_8, %c0_9, %c0_10] : memref<2x48x32xf32, #tpu.memory_space<vmem>>, vector<2x8x32xf32>
    tpu.vector_store %arg12[%c0_8, %c0_9, %c0_10], %10 {strides = array<i32>} : memref<2x48x32xf32, #tpu.memory_space<vmem>>, vector<2x8x32xf32>,
    %c0_11 = arith.constant 0 : index
    %c40 = arith.constant 40 : index
    %c0_12 = arith.constant 0 : index
    %12 = vector.load %arg12[%c0_11, %c40, %c0_12] : memref<2x48x32xf32, #tpu.memory_space<vmem>>, vector<2x8x32xf32>
    tpu.vector_store %arg12[%c0_11, %c40, %c0_12], %10 {strides = array<i32>} : memref<2x48x32xf32, #tpu.memory_space<vmem>>, vector<2x8x32xf32>,
    %13 = vector.shape_cast %9 : vector<64x32xf32> to vector<2x32x32xf32>
    %c0_13 = arith.constant 0 : index
    %c8 = arith.constant 8 : index
    %c0_14 = arith.constant 0 : index
    %14 = vector.load %arg12[%c0_13, %c8, %c0_14] : memref<2x48x32xf32, #tpu.memory_space<vmem>>, vector<2x32x32xf32>
    tpu.vector_store %arg12[%c0_13, %c8, %c0_14], %13 {strides = array<i32>} : memref<2x48x32xf32, #tpu.memory_space<vmem>>, vector<2x32x32xf32>,
    %c0_15 = arith.constant 0 : index
    %c6 = arith.constant 6 : index
    %c0_16 = arith.constant 0 : index
    %15 = vector.load %arg12[%c0_15, %c6, %c0_16] : memref<2x48x32xf32, #tpu.memory_space<vmem>>, vector<2x32x32xf32>
    %16 = vector.shape_cast %15 : vector<2x32x32xf32> to vector<64x32xf32>
    %c0_17 = arith.constant 0 : index
    %c0_18 = arith.constant 0 : index
    %17 = vector.load %arg3[%c0_17, %c0_18] : memref<160x64xf32, #tpu.memory_space<vmem>>, vector<32x64xf32>
    %cst_19 = arith.constant dense<0.000000e+00> : vector<64x64xf32>
    %18 = tpu.matmul %16, %17, %cst_19 {dimension_numbers = #tpu.dot_dimension_numbers<[1], [0], [0], [1], [0, 0, 1, 1], [], []>, precision = #tpu.contract_precision<fp32>} : vector<64x32xf32>, vector<32x64xf32>, vector<64x64xf32> -> vector<64x64xf32>
    %c0_20 = arith.constant 0 : index
    %c7 = arith.constant 7 : index
    %c0_21 = arith.constant 0 : index
    %19 = vector.load %arg12[%c0_20, %c7, %c0_21] : memref<2x48x32xf32, #tpu.memory_space<vmem>>, vector<2x32x32xf32>
    %20 = vector.shape_cast %19 : vector<2x32x32xf32> to vector<64x32xf32>
    %c32 = arith.constant 32 : index
    %c0_22 = arith.constant 0 : index
    %21 = vector.load %arg3[%c32, %c0_22] : memref<160x64xf32, #tpu.memory_space<vmem>>, vector<32x64xf32>
    %cst_23 = arith.constant dense<0.000000e+00> : vector<64x64xf32>
    %22 = tpu.matmul %20, %21, %cst_23 {dimension_numbers = #tpu.dot_dimension_numbers<[1], [0], [0], [1], [0, 0, 1, 1], [], []>, precision = #tpu.contract_precision<fp32>} : vector<64x32xf32>, vector<32x64xf32>, vector<64x64xf32> -> vector<64x64xf32>
    %23 = arith.addf %18, %22 : vector<64x64xf32>
    %c0_24 = arith.constant 0 : index
    %c8_25 = arith.constant 8 : index
    %c0_26 = arith.constant 0 : index
    %24 = vector.load %arg12[%c0_24, %c8_25, %c0_26] : memref<2x48x32xf32, #tpu.memory_space<vmem>>, vector<2x32x32xf32>
    %25 = vector.shape_cast %24 : vector<2x32x32xf32> to vector<64x32xf32>
    %c64 = arith.constant 64 : index
    %c0_27 = arith.constant 0 : index
    %26 = vector.load %arg3[%c64, %c0_27] : memref<160x64xf32, #tpu.memory_space<vmem>>, vector<32x64xf32>
    %cst_28 = arith.constant dense<0.000000e+00> : vector<64x64xf32>
    %27 = tpu.matmul %25, %26, %cst_28 {dimension_numbers = #tpu.dot_dimension_numbers<[1], [0], [0], [1], [0, 0, 1, 1], [], []>, precision = #tpu.contract_precision<fp32>} : vector<64x32xf32>, vector<32x64xf32>, vector<64x64xf32> -> vector<64x64xf32>
    %28 = arith.addf %23, %27 : vector<64x64xf32>
    %c0_29 = arith.constant 0 : index
    %c9 = arith.constant 9 : index
    %c0_30 = arith.constant 0 : index
    %29 = vector.load %arg12[%c0_29, %c9, %c0_30] : memref<2x48x32xf32, #tpu.memory_space<vmem>>, vector<2x32x32xf32>
    %30 = vector.shape_cast %29 : vector<2x32x32xf32> to vector<64x32xf32>
    %c96 = arith.constant 96 : index
    %c0_31 = arith.constant 0 : index
    %31 = vector.load %arg3[%c96, %c0_31] : memref<160x64xf32, #tpu.memory_space<vmem>>, vector<32x64xf32>
    %cst_32 = arith.constant dense<0.000000e+00> : vector<64x64xf32>
    %32 = tpu.matmul %30, %31, %cst_32 {dimension_numbers = #tpu.dot_dimension_numbers<[1], [0], [0], [1], [0, 0, 1, 1], [], []>, precision = #tpu.contract_precision<fp32>} : vector<64x32xf32>, vector<32x64xf32>, vector<64x64xf32> -> vector<64x64xf32>
    %33 = arith.addf %28, %32 : vector<64x64xf32>
    %c0_33 = arith.constant 0 : index
    %c10 = arith.constant 10 : index
    %c0_34 = arith.constant 0 : index
    %34 = vector.load %arg12[%c0_33, %c10, %c0_34] : memref<2x48x32xf32, #tpu.memory_space<vmem>>, vector<2x32x32xf32>
    %35 = vector.shape_cast %34 : vector<2x32x32xf32> to vector<64x32xf32>
    %c128 = arith.constant 128 : index
    %c0_35 = arith.constant 0 : index
    %36 = vector.load %arg3[%c128, %c0_35] : memref<160x64xf32, #tpu.memory_space<vmem>>, vector<32x64xf32>
    %cst_36 = arith.constant dense<0.000000e+00> : vector<64x64xf32>
    %37 = tpu.matmul %35, %36, %cst_36 {dimension_numbers = #tpu.dot_dimension_numbers<[1], [0], [0], [1], [0, 0, 1, 1], [], []>, precision = #tpu.contract_precision<fp32>} : vector<64x32xf32>, vector<32x64xf32>, vector<64x64xf32> -> vector<64x64xf32>
    %38 = arith.addf %33, %37 : vector<64x64xf32>
    %c0_37 = arith.constant 0 : index
    %c0_38 = arith.constant 0 : index
    %39 = vector.load %arg4[%c0_37, %c0_38] : memref<1x64xf32, #tpu.memory_space<vmem>>, vector<1x64xf32>
    %40 = vector.broadcast %39 : vector<1x64xf32> to vector<64x64xf32>
    %41 = arith.addf %38, %40 : vector<64x64xf32>
    %cst_39 = arith.constant 0.000000e+00 : f32
    %42 = vector.broadcast %cst_39 : f32 to vector<64x64xf32>
    %43 = arith.maximumf %41, %42 : vector<64x64xf32>
    %44 = vector.shape_cast %43 : vector<64x64xf32> to vector<32x2x64xf32>
    %cst_40 = arith.constant dense<0xFF800000> : vector<32x64xf32>
    %45 = vector.multi_reduction <maximumf>, %44, %cst_40 [1] : vector<32x2x64xf32> to vector<32x64xf32>
    %cst_41 = arith.constant 0.000000e+00 : f32
    %46 = vector.broadcast %cst_41 : f32 to vector<2x8x64xf32>
    %c0_42 = arith.constant 0 : index
    %c0_43 = arith.constant 0 : index
    %c0_44 = arith.constant 0 : index
    %47 = vector.load %arg13[%c0_42, %c0_43, %c0_44] : memref<2x32x64xf32, #tpu.memory_space<vmem>>, vector<2x8x64xf32>
    tpu.vector_store %arg13[%c0_42, %c0_43, %c0_44], %46 {strides = array<i32>} : memref<2x32x64xf32, #tpu.memory_space<vmem>>, vector<2x8x64xf32>,
    %c0_45 = arith.constant 0 : index
    %c24 = arith.constant 24 : index
    %c0_46 = arith.constant 0 : index
    %48 = vector.load %arg13[%c0_45, %c24, %c0_46] : memref<2x32x64xf32, #tpu.memory_space<vmem>>, vector<2x8x64xf32>
    tpu.vector_store %arg13[%c0_45, %c24, %c0_46], %46 {strides = array<i32>} : memref<2x32x64xf32, #tpu.memory_space<vmem>>, vector<2x8x64xf32>,
    %49 = vector.shape_cast %45 : vector<32x64xf32> to vector<2x16x64xf32>
    %c0_47 = arith.constant 0 : index
    %c8_48 = arith.constant 8 : index
    %c0_49 = arith.constant 0 : index
    %50 = vector.load %arg13[%c0_47, %c8_48, %c0_49] : memref<2x32x64xf32, #tpu.memory_space<vmem>>, vector<2x16x64xf32>
    tpu.vector_store %arg13[%c0_47, %c8_48, %c0_49], %49 {strides = array<i32>} : memref<2x32x64xf32, #tpu.memory_space<vmem>>, vector<2x16x64xf32>,
    %c0_50 = arith.constant 0 : index
    %c7_51 = arith.constant 7 : index
    %c0_52 = arith.constant 0 : index
    %51 = vector.load %arg13[%c0_50, %c7_51, %c0_52] : memref<2x32x64xf32, #tpu.memory_space<vmem>>, vector<2x16x64xf32>
    %52 = vector.shape_cast %51 : vector<2x16x64xf32> to vector<32x64xf32>
    %c0_53 = arith.constant 0 : index
    %c0_54 = arith.constant 0 : index
    %53 = vector.load %arg5[%c0_53, %c0_54] : memref<192x128xf32, #tpu.memory_space<vmem>>, vector<64x128xf32>
    %cst_55 = arith.constant dense<0.000000e+00> : vector<32x128xf32>
    %54 = tpu.matmul %52, %53, %cst_55 {dimension_numbers = #tpu.dot_dimension_numbers<[1], [0], [0], [1], [0, 0, 1, 1], [], []>, precision = #tpu.contract_precision<fp32>} : vector<32x64xf32>, vector<64x128xf32>, vector<32x128xf32> -> vector<32x128xf32>
    %c0_56 = arith.constant 0 : index
    %c8_57 = arith.constant 8 : index
    %c0_58 = arith.constant 0 : index
    %55 = vector.load %arg13[%c0_56, %c8_57, %c0_58] : memref<2x32x64xf32, #tpu.memory_space<vmem>>, vector<2x16x64xf32>
    %56 = vector.shape_cast %55 : vector<2x16x64xf32> to vector<32x64xf32>
    %c64_59 = arith.constant 64 : index
    %c0_60 = arith.constant 0 : index
    %57 = vector.load %arg5[%c64_59, %c0_60] : memref<192x128xf32, #tpu.memory_space<vmem>>, vector<64x128xf32>
    %cst_61 = arith.constant dense<0.000000e+00> : vector<32x128xf32>
    %58 = tpu.matmul %56, %57, %cst_61 {dimension_numbers = #tpu.dot_dimension_numbers<[1], [0], [0], [1], [0, 0, 1, 1], [], []>, precision = #tpu.contract_precision<fp32>} : vector<32x64xf32>, vector<64x128xf32>, vector<32x128xf32> -> vector<32x128xf32>
    %59 = arith.addf %54, %58 : vector<32x128xf32>
    %c0_62 = arith.constant 0 : index
    %c9_63 = arith.constant 9 : index
    %c0_64 = arith.constant 0 : index
    %60 = vector.load %arg13[%c0_62, %c9_63, %c0_64] : memref<2x32x64xf32, #tpu.memory_space<vmem>>, vector<2x16x64xf32>
    %61 = vector.shape_cast %60 : vector<2x16x64xf32> to vector<32x64xf32>
    %c128_65 = arith.constant 128 : index
    %c0_66 = arith.constant 0 : index
    %62 = vector.load %arg5[%c128_65, %c0_66] : memref<192x128xf32, #tpu.memory_space<vmem>>, vector<64x128xf32>
    %cst_67 = arith.constant dense<0.000000e+00> : vector<32x128xf32>
    %63 = tpu.matmul %61, %62, %cst_67 {dimension_numbers = #tpu.dot_dimension_numbers<[1], [0], [0], [1], [0, 0, 1, 1], [], []>, precision = #tpu.contract_precision<fp32>} : vector<32x64xf32>, vector<64x128xf32>, vector<32x128xf32> -> vector<32x128xf32>
    %64 = arith.addf %59, %63 : vector<32x128xf32>
    %c0_68 = arith.constant 0 : index
    %c0_69 = arith.constant 0 : index
    %65 = vector.load %arg6[%c0_68, %c0_69] : memref<1x128xf32, #tpu.memory_space<vmem>>, vector<1x128xf32>
    %66 = vector.broadcast %65 : vector<1x128xf32> to vector<32x128xf32>
    %67 = arith.addf %64, %66 : vector<32x128xf32>
    %cst_70 = arith.constant 0.000000e+00 : f32
    %68 = vector.broadcast %cst_70 : f32 to vector<32x128xf32>
    %69 = arith.maximumf %67, %68 : vector<32x128xf32>
    %70 = vector.shape_cast %69 : vector<32x128xf32> to vector<16x2x128xf32>
    %cst_71 = arith.constant dense<0xFF800000> : vector<16x128xf32>
    %71 = vector.multi_reduction <maximumf>, %70, %cst_71 [1] : vector<16x2x128xf32> to vector<16x128xf32>
    %72 = vector.shape_cast %71 : vector<16x128xf32> to vector<2x1024xf32>
    %c0_72 = arith.constant 0 : index
    %c0_73 = arith.constant 0 : index
    %73 = vector.load %arg7[%c0_72, %c0_73] : memref<1024x256xf32, #tpu.memory_space<vmem>>, vector<1024x256xf32>
    %cst_74 = arith.constant dense<0.000000e+00> : vector<2x256xf32>
    %74 = tpu.matmul %72, %73, %cst_74 {dimension_numbers = #tpu.dot_dimension_numbers<[1], [0], [0], [1], [0, 0, 1, 1], [], []>, precision = #tpu.contract_precision<fp32>} : vector<2x1024xf32>, vector<1024x256xf32>, vector<2x256xf32> -> vector<2x256xf32>
    %c0_75 = arith.constant 0 : index
    %c0_76 = arith.constant 0 : index
    %75 = vector.load %arg8[%c0_75, %c0_76] : memref<1x256xf32, #tpu.memory_space<vmem>>, vector<1x256xf32>
    %76 = vector.broadcast %75 : vector<1x256xf32> to vector<2x256xf32>
    %77 = arith.addf %74, %76 : vector<2x256xf32>
    %cst_77 = arith.constant 0.000000e+00 : f32
    %78 = vector.broadcast %cst_77 : f32 to vector<2x256xf32>
    %79 = arith.maximumf %77, %78 : vector<2x256xf32>
    %c0_78 = arith.constant 0 : index
    %c0_79 = arith.constant 0 : index
    %80 = vector.load %arg9[%c0_78, %c0_79] : memref<256x128xf32, #tpu.memory_space<vmem>>, vector<256x128xf32>
    %cst_80 = arith.constant dense<0.000000e+00> : vector<2x128xf32>
    %81 = tpu.matmul %79, %80, %cst_80 {dimension_numbers = #tpu.dot_dimension_numbers<[1], [0], [0], [1], [0, 0, 1, 1], [], []>, precision = #tpu.contract_precision<fp32>} : vector<2x256xf32>, vector<256x128xf32>, vector<2x128xf32> -> vector<2x128xf32>
    %c0_81 = arith.constant 0 : index
    %c0_82 = arith.constant 0 : index
    %82 = vector.load %arg10[%c0_81, %c0_82] : memref<1x128xf32, #tpu.memory_space<vmem>>, vector<1x128xf32>
    %83 = vector.broadcast %82 : vector<1x128xf32> to vector<2x128xf32>
    %84 = arith.addf %81, %83 : vector<2x128xf32>
    %c0_83 = arith.constant 0 : index
    %c0_84 = arith.constant 0 : index
    %85 = vector.load %arg11[%c0_83, %c0_84] : memref<2x128xf32, #tpu.memory_space<vmem>>, vector<2x128xf32>
    tpu.vector_store %arg11[%c0_83, %c0_84], %84 {strides = array<i32>} : memref<2x128xf32, #tpu.memory_space<vmem>>, vector<2x128xf32>,
    return
  }
}

</mosaic_0001>

<llo_original>
// kernel: multi_task_cnn_forward.1
$region0: #{multi_task_cnn_forward.1}
  #allocation0 [shape = 'u32[]', space=smem, size = 0x4, offset = 0x4, fixed_abs, tag = 'smem constant byte address 0x4 - core index']
  #allocation1 [shape = 'u32[72,128]{1,0:T(1,128)}', space=vmem, size = 0x9000, scoped, tag = 'internal scratch']
  #allocation2 [shape = 'f32[2,48,32]{2,1,0:T(8,128)}', space=vmem, size = 0xc000, scoped, tag = 'scratch operand']
  #allocation3 [shape = 'f32[2,32,64]{2,1,0:T(8,128)}', space=vmem, size = 0x8000, scoped, tag = 'scratch operand']
  %s0 = inlined_call_operand.vmem [shape: f32[128,14], index: 0, kind: input, shape index: {}]
  %s1 = inlined_call_operand.vmem [shape: f32[14,32], index: 1, kind: input, shape index: {}]
  %s2 = inlined_call_operand.vmem [shape: f32[1,32], index: 2, kind: input, shape index: {}]
  %s3 = inlined_call_operand.vmem [shape: f32[160,64], index: 3, kind: input, shape index: {}]
  %s4 = inlined_call_operand.vmem [shape: f32[1,64], index: 4, kind: input, shape index: {}]
  %s5 = inlined_call_operand.hbm [shape: f32[192,128], index: 5, kind: input, shape index: {}]
  %s6 = inlined_call_operand.vmem [shape: f32[1,128], index: 6, kind: input, shape index: {}]
  %s7 = inlined_call_operand.hbm [shape: f32[1024,256], index: 7, kind: input, shape index: {}]
  %s8 = inlined_call_operand.vmem [shape: f32[1,256], index: 8, kind: input, shape index: {}]
  %s9 = inlined_call_operand.vmem [shape: f32[256,128], index: 9, kind: input, shape index: {}]
  %s10 = inlined_call_operand.vmem [shape: f32[1,128], index: 10, kind: input, shape index: {}]
  %s11 = inlined_call_operand.vmem [shape: f32[2,128], index: 11, kind: output, shape index: {}]
  %s12 = sld [smem:[#allocation0]]
  $region62: #{multi_task_cnn_forward.1} parent=0
    _
  %s14 = ssub.s32 1, %s12
  %s15 = scalar_select 0, %s14, %s12
  $region1: #{multi_task_cnn_forward.1} parent=0
    #allocation4 [shape = 'u8[98304]{0}', space=vmem, size = 0x18000, scoped, tag = 'input window, operand 5, single buffered']
    #allocation5 [shape = 's32[1]{0}', space=sflag, size = 0x4, scoped, tag = 'scoped memory for multi_task_cnn_forward.1']
    #allocation6 [shape = 'u8[1048576]{0}', space=vmem, size = 0x100000, scoped, tag = 'input window, operand 7, single buffered']
    #allocation7 [shape = 's32[1]{0}', space=sflag, size = 0x4, scoped, tag = 'scoped memory for multi_task_cnn_forward.1']
    %16 = vsyncpa [#allocation5], 0
    %17 = vsyncpa [#allocation7], 0
    // Predicated region
    $region2: #{multi_task_cnn_forward.1} parent=1 // pred_check
      _
    $region3: #{multi_task_cnn_forward.1} parent=1 // pred_check_branch
      %19 = sbr.rel (0) target = $region5
    $region4: #{multi_task_cnn_forward.1} parent=1 // pred_region
      _
    $region5: #{multi_task_cnn_forward.1} parent=1 // pred_fallthru
      _
    // Predicated region
    $region6: #{multi_task_cnn_forward.1} parent=1 // pred_check
      _
    $region7: #{multi_task_cnn_forward.1} parent=1 // pred_check_branch
      %21 = sbr.rel (0) target = $region9
    $region8: #{multi_task_cnn_forward.1} parent=1 // pred_region
      _
    $region9: #{multi_task_cnn_forward.1} parent=1 // pred_fallthru
      _
    // Predicated region
    $region10: #{multi_task_cnn_forward.1} parent=1 // pred_check
      _
    $region11: #{multi_task_cnn_forward.1} parent=1 // pred_check_branch
      %23 = sbr.rel (0) target = $region13
    $region12: #{multi_task_cnn_forward.1} parent=1 // pred_region
      _
    $region13: #{multi_task_cnn_forward.1} parent=1 // pred_fallthru
      _
    // Predicated region
    $region14: #{multi_task_cnn_forward.1} parent=1 // pred_check
      _
    $region15: #{multi_task_cnn_forward.1} parent=1 // pred_check_branch
      %25 = sbr.rel (0) target = $region17
    $region16: #{multi_task_cnn_forward.1} parent=1 // pred_region
      _
    $region17: #{multi_task_cnn_forward.1} parent=1 // pred_fallthru
      _
    // Predicated region
    $region18: #{multi_task_cnn_forward.1} parent=1 // pred_check
      _
    $region19: #{multi_task_cnn_forward.1} parent=1 // pred_check_branch
      %27 = sbr.rel (0) target = $region21
    $region20: #{multi_task_cnn_forward.1} parent=1 // pred_region
      _
    $region21: #{multi_task_cnn_forward.1} parent=1 // pred_fallthru
      _
    // Predicated region
    $region22: #{multi_task_cnn_forward.1} parent=1 // pred_check
      _
    $region23: #{multi_task_cnn_forward.1} parent=1 // pred_check_branch
      %29 = sbr.rel (0) target = $region25
    $region24: #{multi_task_cnn_forward.1} parent=1 // pred_region
      %31 = vsyncadd [#allocation5], 0
      %s32 = sshll.u32 %s5, 4
      %s33 = int_to_ptr.hbm [resolvable:$true] %s32
      %s34 = sshll.u32 [#allocation4], 4
      %s35 = int_to_ptr.vmem [resolvable:$true] %s34
      %40 = dma.hbm_to_vmem [thread:$0]  %s33, 3072, %s35, [#allocation5], 128, 128, 8
    $region25: #{multi_task_cnn_forward.1} parent=1 // pred_fallthru
      _
    // Predicated region
    $region26: #{multi_task_cnn_forward.1} parent=1 // pred_check
      _
    $region27: #{multi_task_cnn_forward.1} parent=1 // pred_check_branch
      %42 = sbr.rel (0) target = $region29
    $region28: #{multi_task_cnn_forward.1} parent=1 // pred_region
      _
    $region29: #{multi_task_cnn_forward.1} parent=1 // pred_fallthru
      _
    // Predicated region
    $region30: #{multi_task_cnn_forward.1} parent=1 // pred_check
      _
    $region31: #{multi_task_cnn_forward.1} parent=1 // pred_check_branch
      %44 = sbr.rel (0) target = $region33
    $region32: #{multi_task_cnn_forward.1} parent=1 // pred_region
      %46 = vsyncadd [#allocation7], 0
      %s47 = sshll.u32 %s7, 4
      %s48 = int_to_ptr.hbm [resolvable:$true] %s47
      %s49 = sshll.u32 [#allocation6], 4
      %s50 = int_to_ptr.vmem [resolvable:$true] %s49
      %55 = dma.hbm_to_vmem [thread:$0]  %s48, 32768, %s50, [#allocation7], 256, 256, 16
    $region33: #{multi_task_cnn_forward.1} parent=1 // pred_fallthru
      _
    // Predicated region
    $region34: #{multi_task_cnn_forward.1} parent=1 // pred_check
      _
    $region35: #{multi_task_cnn_forward.1} parent=1 // pred_check_branch
      %57 = sbr.rel (0) target = $region37
    $region36: #{multi_task_cnn_forward.1} parent=1 // pred_region
      _
    $region37: #{multi_task_cnn_forward.1} parent=1 // pred_fallthru
      _
    // Predicated region
    $region38: #{multi_task_cnn_forward.1} parent=1 // pred_check
      _
    $region39: #{multi_task_cnn_forward.1} parent=1 // pred_check_branch
      %59 = sbr.rel (0) target = $region41
    $region40: #{multi_task_cnn_forward.1} parent=1 // pred_region
      _
    $region41: #{multi_task_cnn_forward.1} parent=1 // pred_fallthru
      _
    // Predicated region
    $region42: #{multi_task_cnn_forward.1} parent=1 // pred_check
      _
    $region43: #{multi_task_cnn_forward.1} parent=1 // pred_check_branch
      %61 = sbr.rel (0) target = $region45
    $region44: #{multi_task_cnn_forward.1} parent=1 // pred_region
      _
    $region45: #{multi_task_cnn_forward.1} parent=1 // pred_fallthru
      _
    // Predicated region
    $region46: #{multi_task_cnn_forward.1} parent=1 // pred_check
      _
    $region47: #{multi_task_cnn_forward.1} parent=1 // pred_check_branch
      %63 = sbr.rel (0) target = $region49
    $region48: #{multi_task_cnn_forward.1} parent=1 // pred_region
      %65 = dma.done [#allocation5], 3072
    $region49: #{multi_task_cnn_forward.1} parent=1 // pred_fallthru
      _
    // Predicated region
    $region50: #{multi_task_cnn_forward.1} parent=1 // pred_check
      _
    $region51: #{multi_task_cnn_forward.1} parent=1 // pred_check_branch
      %67 = sbr.rel (0) target = $region53
    $region52: #{multi_task_cnn_forward.1} parent=1 // pred_region
      %69 = dma.done [#allocation7], 32768
    $region53: #{multi_task_cnn_forward.1} parent=1 // pred_fallthru
      _
    %v70 = vld [vmem:[%s0] sm:$0xff]
    %v71 = vld [vmem:[%s0 + $0x8] sm:$0xff]
    %v72 = vld [vmem:[%s0 + $0x10] sm:$0xff]
    %v73 = vld [vmem:[%s0 + $0x18] sm:$0xff]
    %v74 = vld [vmem:[%s0 + $0x20] sm:$0xff]
    %v75 = vld [vmem:[%s0 + $0x28] sm:$0xff]
    %v76 = vld [vmem:[%s0 + $0x30] sm:$0xff]
    %v77 = vld [vmem:[%s0 + $0x38] sm:$0xff]
    %v78 = vld [vmem:[%s0 + $0x40] sm:$0xff]
    %v79 = vld [vmem:[%s0 + $0x48] sm:$0xff]
    %v80 = vld [vmem:[%s0 + $0x50] sm:$0xff]
    %v81 = vld [vmem:[%s0 + $0x58] sm:$0xff]
    %v82 = vld [vmem:[%s0 + $0x60] sm:$0xff]
    %v83 = vld [vmem:[%s0 + $0x68] sm:$0xff]
    %v84 = vld [vmem:[%s0 + $0x70] sm:$0xff]
    %v85 = vld [vmem:[%s0 + $0x78] sm:$0xff]
    %v86 = vld [vmem:[%s1] sm:$0xff]
    %v87 = vld [vmem:[%s1 + $0x8] sm:$0x3f]
    %v88 = vld [vmem:[%s2] sm:$0x1]
    %v90 = vperm.slane %v88, 0
    %vm92 = vcmask 113664
    %v94 = vsel %vm92, %v70, 0
    %v97 = vsel %vm92, %v71, 0
    %v100 = vsel %vm92, %v72, 0
    %v103 = vsel %vm92, %v73, 0
    %v106 = vsel %vm92, %v74, 0
    %v109 = vsel %vm92, %v75, 0
    %v112 = vsel %vm92, %v76, 0
    %v115 = vsel %vm92, %v77, 0
    %v118 = vsel %vm92, %v78, 0
    %v121 = vsel %vm92, %v79, 0
    %v124 = vsel %vm92, %v80, 0
    %v127 = vsel %vm92, %v81, 0
    %v130 = vsel %vm92, %v82, 0
    %v133 = vsel %vm92, %v83, 0
    %v136 = vsel %vm92, %v84, 0
    %v139 = vsel %vm92, %v85, 0
    %vm141 = vcmask 1045504
    %v143 = vsel %vm141, %v87, 0
    %145 = vmatpush.msra.mxu0 0.0
    %146 = vmatpush.msra.mxu0 0.0
    %147 = vmatpush.msra.mxu0 0.0
    %148 = vmatpush.msra.mxu0 0.0
    %149 = vmatpush.msra.mxu0 0.0
    %150 = vmatpush.msra.mxu0 0.0
    %151 = vmatpush.msra.mxu0 0.0
    %152 = vmatpush.msra.mxu0 0.0
    %153 = vmatpush.msra.mxu0 0.0
    %154 = vmatpush.msra.mxu0 0.0
    %155 = vmatpush.msra.mxu0 0.0
    %156 = vmatpush.msra.mxu0 0.0
    %157 = vmatpush.msra.mxu0 0.0
    %158 = vmatpush.msra.mxu0 0.0
    %v159 = vand.u32 %v143, 4294901760
    %160 = vmatpush.msra.mxu0 %v159
    %v161 = vand.u32 %v86, 4294901760
    %162 = vmatpush.msra.mxu0 %v161
    %v163 = vand.u32 %v94, 4294901760
    %v164 = vsub.f32 %v94, %v163
    %v165 = vand.u32 %v164, 4294901760
    %v166 = vsub.f32 %v164, %v165
    %v167 = vand.u32 %v166, 4294901760
    %168 = vmatmul.f32.gmra.mxu0 %v167
    %v169 = vpop.f32.mrf.mxu0
    %v170 = vadd.f32 %v90, %v169
    %v171 = vand.u32 %v97, 4294901760
    %v172 = vsub.f32 %v97, %v171
    %v173 = vand.u32 %v172, 4294901760
    %v174 = vsub.f32 %v172, %v173
    %v175 = vand.u32 %v174, 4294901760
    %176 = vmatmul.f32.gmra.mxu0 %v175
    %v177 = vpop.f32.mrf.mxu0
    %v178 = vadd.f32 %v90, %v177
    %v179 = vand.u32 %v100, 4294901760
    %v180 = vsub.f32 %v100, %v179
    %v181 = vand.u32 %v180, 4294901760
    %v182 = vsub.f32 %v180, %v181
    %v183 = vand.u32 %v182, 4294901760
    %184 = vmatmul.f32.gmra.mxu0 %v183
    %v185 = vpop.f32.mrf.mxu0
    %v186 = vadd.f32 %v90, %v185
    %v187 = vand.u32 %v103, 4294901760
    %v188 = vsub.f32 %v103, %v187
    %v189 = vand.u32 %v188, 4294901760
    %v190 = vsub.f32 %v188, %v189
    %v191 = vand.u32 %v190, 4294901760
    %192 = vmatmul.f32.gmra.mxu0 %v191
    %v193 = vpop.f32.mrf.mxu0
    %v194 = vadd.f32 %v90, %v193
    %v195 = vand.u32 %v106, 4294901760
    %v196 = vsub.f32 %v106, %v195
    %v197 = vand.u32 %v196, 4294901760
    %v198 = vsub.f32 %v196, %v197
    %v199 = vand.u32 %v198, 4294901760
    %200 = vmatmul.f32.gmra.mxu0 %v199
    %v201 = vpop.f32.mrf.mxu0
    %v202 = vadd.f32 %v90, %v201
    %v203 = vand.u32 %v109, 4294901760
    %v204 = vsub.f32 %v109, %v203
    %v205 = vand.u32 %v204, 4294901760
    %v206 = vsub.f32 %v204, %v205
    %v207 = vand.u32 %v206, 4294901760
    %208 = vmatmul.f32.gmra.mxu0 %v207
    %v209 = vpop.f32.mrf.mxu0
    %v210 = vadd.f32 %v90, %v209
    %v211 = vand.u32 %v112, 4294901760
    %v212 = vsub.f32 %v112, %v211
    %v213 = vand.u32 %v212, 4294901760
    %v214 = vsub.f32 %v212, %v213
    %v215 = vand.u32 %v214, 4294901760
    %216 = vmatmul.f32.gmra.mxu0 %v215
    %v217 = vpop.f32.mrf.mxu0
    %v218 = vadd.f32 %v90, %v217
    %v219 = vand.u32 %v115, 4294901760
    %v220 = vsub.f32 %v115, %v219
    %v221 = vand.u32 %v220, 4294901760
    %v222 = vsub.f32 %v220, %v221
    %v223 = vand.u32 %v222, 4294901760
    %224 = vmatmul.f32.gmra.mxu0 %v223
    %v225 = vpop.f32.mrf.mxu0
    %v226 = vadd.f32 %v90, %v225
    %v227 = vand.u32 %v118, 4294901760
    %v228 = vsub.f32 %v118, %v227
    %v229 = vand.u32 %v228, 4294901760
    %v230 = vsub.f32 %v228, %v229
    %v231 = vand.u32 %v230, 4294901760
    %232 = vmatmul.f32.gmra.mxu0 %v231
    %v233 = vpop.f32.mrf.mxu0
    %v234 = vadd.f32 %v90, %v233
    %v235 = vand.u32 %v121, 4294901760
    %v236 = vsub.f32 %v121, %v235
    %v237 = vand.u32 %v236, 4294901760
    %v238 = vsub.f32 %v236, %v237
    %v239 = vand.u32 %v238, 4294901760
    %240 = vmatmul.f32.gmra.mxu0 %v239
    %v241 = vpop.f32.mrf.mxu0
    %v242 = vadd.f32 %v90, %v241
    %v243 = vand.u32 %v124, 4294901760
    %v244 = vsub.f32 %v124, %v243
    %v245 = vand.u32 %v244, 4294901760
    %v246 = vsub.f32 %v244, %v245
    %v247 = vand.u32 %v246, 4294901760
    %248 = vmatmul.f32.gmra.mxu0 %v247
    %v249 = vpop.f32.mrf.mxu0
    %v250 = vadd.f32 %v90, %v249
    %v251 = vand.u32 %v127, 4294901760
    %v252 = vsub.f32 %v127, %v251
    %v253 = vand.u32 %v252, 4294901760
    %v254 = vsub.f32 %v252, %v253
    %v255 = vand.u32 %v254, 4294901760
    %256 = vmatmul.f32.gmra.mxu0 %v255
    %v257 = vpop.f32.mrf.mxu0
    %v258 = vadd.f32 %v90, %v257
    %v259 = vand.u32 %v130, 4294901760
    %v260 = vsub.f32 %v130, %v259
    %v261 = vand.u32 %v260, 4294901760
    %v262 = vsub.f32 %v260, %v261
    %v263 = vand.u32 %v262, 4294901760
    %264 = vmatmul.f32.gmra.mxu0 %v263
    %v265 = vpop.f32.mrf.mxu0
    %v266 = vadd.f32 %v90, %v265
    %v267 = vand.u32 %v133, 4294901760
    %v268 = vsub.f32 %v133, %v267
    %v269 = vand.u32 %v268, 4294901760
    %v270 = vsub.f32 %v268, %v269
    %v271 = vand.u32 %v270, 4294901760
    %272 = vmatmul.f32.gmra.mxu0 %v271
    %v273 = vpop.f32.mrf.mxu0
    %v274 = vadd.f32 %v90, %v273
    %v275 = vand.u32 %v136, 4294901760
    %v276 = vsub.f32 %v136, %v275
    %v277 = vand.u32 %v276, 4294901760
    %v278 = vsub.f32 %v276, %v277
    %v279 = vand.u32 %v278, 4294901760
    %280 = vmatmul.f32.gmra.mxu0 %v279
    %v281 = vpop.f32.mrf.mxu0
    %v282 = vadd.f32 %v90, %v281
    %v283 = vand.u32 %v139, 4294901760
    %v284 = vsub.f32 %v139, %v283
    %v285 = vand.u32 %v284, 4294901760
    %v286 = vsub.f32 %v284, %v285
    %v287 = vand.u32 %v286, 4294901760
    %288 = vmatmul.f32.gmra.mxu0 %v287
    %v289 = vpop.f32.mrf.mxu0
    %v290 = vadd.f32 %v90, %v289
    %291 = vdwg.mxu0
    %292 = vmatpush.msra.mxu0 0.0
    %293 = vmatpush.msra.mxu0 0.0
    %294 = vmatpush.msra.mxu0 0.0
    %295 = vmatpush.msra.mxu0 0.0
    %296 = vmatpush.msra.mxu0 0.0
    %297 = vmatpush.msra.mxu0 0.0
    %298 = vmatpush.msra.mxu0 0.0
    %299 = vmatpush.msra.mxu0 0.0
    %300 = vmatpush.msra.mxu0 0.0
    %301 = vmatpush.msra.mxu0 0.0
    %302 = vmatpush.msra.mxu0 0.0
    %303 = vmatpush.msra.mxu0 0.0
    %304 = vmatpush.msra.mxu0 0.0
    %305 = vmatpush.msra.mxu0 0.0
    %v306 = vand.u32 %v143, 4294901760
    %v307 = vsub.f32 %v143, %v306
    %v308 = vand.u32 %v307, 4294901760
    %v309 = vsub.f32 %v307, %v308
    %v310 = vand.u32 %v309, 4294901760
    %311 = vmatpush.msra.mxu0 %v310
    %v312 = vand.u32 %v86, 4294901760
    %v313 = vsub.f32 %v86, %v312
    %v314 = vand.u32 %v313, 4294901760
    %v315 = vsub.f32 %v313, %v314
    %v316 = vand.u32 %v315, 4294901760
    %317 = vmatpush.msra.mxu0 %v316
    %v318 = vand.u32 %v94, 4294901760
    %319 = vmatmul.f32.gmra.mxu0 %v318
    %v320 = vpop.f32.mrf.mxu0
    %v321 = vadd.f32 %v170, %v320
    %v322 = vand.u32 %v97, 4294901760
    %323 = vmatmul.f32.gmra.mxu0 %v322
    %v324 = vpop.f32.mrf.mxu0
    %v325 = vadd.f32 %v178, %v324
    %v326 = vand.u32 %v100, 4294901760
    %327 = vmatmul.f32.gmra.mxu0 %v326
    %v328 = vpop.f32.mrf.mxu0
    %v329 = vadd.f32 %v186, %v328
    %v330 = vand.u32 %v103, 4294901760
    %331 = vmatmul.f32.gmra.mxu0 %v330
    %v332 = vpop.f32.mrf.mxu0
    %v333 = vadd.f32 %v194, %v332
    %v334 = vand.u32 %v106, 4294901760
    %335 = vmatmul.f32.gmra.mxu0 %v334
    %v336 = vpop.f32.mrf.mxu0
    %v337 = vadd.f32 %v202, %v336
    %v338 = vand.u32 %v109, 4294901760
    %339 = vmatmul.f32.gmra.mxu0 %v338
    %v340 = vpop.f32.mrf.mxu0
    %v341 = vadd.f32 %v210, %v340
    %v342 = vand.u32 %v112, 4294901760
    %343 = vmatmul.f32.gmra.mxu0 %v342
    %v344 = vpop.f32.mrf.mxu0
    %v345 = vadd.f32 %v218, %v344
    %v346 = vand.u32 %v115, 4294901760
    %347 = vmatmul.f32.gmra.mxu0 %v346
    %v348 = vpop.f32.mrf.mxu0
    %v349 = vadd.f32 %v226, %v348
    %v350 = vand.u32 %v118, 4294901760
    %351 = vmatmul.f32.gmra.mxu0 %v350
    %v352 = vpop.f32.mrf.mxu0
    %v353 = vadd.f32 %v234, %v352
    %v354 = vand.u32 %v121, 4294901760
    %355 = vmatmul.f32.gmra.mxu0 %v354
    %v356 = vpop.f32.mrf.mxu0
    %v357 = vadd.f32 %v242, %v356
    %v358 = vand.u32 %v124, 4294901760
    %359 = vmatmul.f32.gmra.mxu0 %v358
    %v360 = vpop.f32.mrf.mxu0
    %v361 = vadd.f32 %v250, %v360
    %v362 = vand.u32 %v127, 4294901760
    %363 = vmatmul.f32.gmra.mxu0 %v362
    %v364 = vpop.f32.mrf.mxu0
    %v365 = vadd.f32 %v258, %v364
    %v366 = vand.u32 %v130, 4294901760
    %367 = vmatmul.f32.gmra.mxu0 %v366
    %v368 = vpop.f32.mrf.mxu0
    %v369 = vadd.f32 %v266, %v368
    %v370 = vand.u32 %v133, 4294901760
    %371 = vmatmul.f32.gmra.mxu0 %v370
    %v372 = vpop.f32.mrf.mxu0
    %v373 = vadd.f32 %v274, %v372
    %v374 = vand.u32 %v136, 4294901760
    %375 = vmatmul.f32.gmra.mxu0 %v374
    %v376 = vpop.f32.mrf.mxu0
    %v377 = vadd.f32 %v282, %v376
    %v378 = vand.u32 %v139, 4294901760
    %379 = vmatmul.f32.gmra.mxu0 %v378
    %v380 = vpop.f32.mrf.mxu0
    %v381 = vadd.f32 %v290, %v380
    %382 = vdwg.mxu0
    %383 = vmatpush.msra.mxu0 0.0
    %384 = vmatpush.msra.mxu0 0.0
    %385 = vmatpush.msra.mxu0 0.0
    %386 = vmatpush.msra.mxu0 0.0
    %387 = vmatpush.msra.mxu0 0.0
    %388 = vmatpush.msra.mxu0 0.0
    %389 = vmatpush.msra.mxu0 0.0
    %390 = vmatpush.msra.mxu0 0.0
    %391 = vmatpush.msra.mxu0 0.0
    %392 = vmatpush.msra.mxu0 0.0
    %393 = vmatpush.msra.mxu0 0.0
    %394 = vmatpush.msra.mxu0 0.0
    %395 = vmatpush.msra.mxu0 0.0
    %396 = vmatpush.msra.mxu0 0.0
    %v397 = vand.u32 %v143, 4294901760
    %v398 = vsub.f32 %v143, %v397
    %399 = vmatpush.msra.mxu0 %v398
    %v400 = vand.u32 %v86, 4294901760
    %v401 = vsub.f32 %v86, %v400
    %402 = vmatpush.msra.mxu0 %v401
    %v403 = vand.u32 %v94, 4294901760
    %v404 = vsub.f32 %v94, %v403
    %405 = vmatmul.f32.gmra.mxu0 %v404
    %v406 = vpop.f32.mrf.mxu0
    %v407 = vadd.f32 %v321, %v406
    %v408 = vand.u32 %v97, 4294901760
    %v409 = vsub.f32 %v97, %v408
    %410 = vmatmul.f32.gmra.mxu0 %v409
    %v411 = vpop.f32.mrf.mxu0
    %v412 = vadd.f32 %v325, %v411
    %v413 = vand.u32 %v100, 4294901760
    %v414 = vsub.f32 %v100, %v413
    %415 = vmatmul.f32.gmra.mxu0 %v414
    %v416 = vpop.f32.mrf.mxu0
    %v417 = vadd.f32 %v329, %v416
    %v418 = vand.u32 %v103, 4294901760
    %v419 = vsub.f32 %v103, %v418
    %420 = vmatmul.f32.gmra.mxu0 %v419
    %v421 = vpop.f32.mrf.mxu0
    %v422 = vadd.f32 %v333, %v421
    %v423 = vand.u32 %v106, 4294901760
    %v424 = vsub.f32 %v106, %v423
    %425 = vmatmul.f32.gmra.mxu0 %v424
    %v426 = vpop.f32.mrf.mxu0
    %v427 = vadd.f32 %v337, %v426
    %v428 = vand.u32 %v109, 4294901760
    %v429 = vsub.f32 %v109, %v428
    %430 = vmatmul.f32.gmra.mxu0 %v429
    %v431 = vpop.f32.mrf.mxu0
    %v432 = vadd.f32 %v341, %v431
    %v433 = vand.u32 %v112, 4294901760
    %v434 = vsub.f32 %v112, %v433
    %435 = vmatmul.f32.gmra.mxu0 %v434
    %v436 = vpop.f32.mrf.mxu0
    %v437 = vadd.f32 %v345, %v436
    %v438 = vand.u32 %v115, 4294901760
    %v439 = vsub.f32 %v115, %v438
    %440 = vmatmul.f32.gmra.mxu0 %v439
    %v441 = vpop.f32.mrf.mxu0
    %v442 = vadd.f32 %v349, %v441
    %v443 = vand.u32 %v118, 4294901760
    %v444 = vsub.f32 %v118, %v443
    %445 = vmatmul.f32.gmra.mxu0 %v444
    %v446 = vpop.f32.mrf.mxu0
    %v447 = vadd.f32 %v353, %v446
    %v448 = vand.u32 %v121, 4294901760
    %v449 = vsub.f32 %v121, %v448
    %450 = vmatmul.f32.gmra.mxu0 %v449
    %v451 = vpop.f32.mrf.mxu0
    %v452 = vadd.f32 %v357, %v451
    %v453 = vand.u32 %v124, 4294901760
    %v454 = vsub.f32 %v124, %v453
    %455 = vmatmul.f32.gmra.mxu0 %v454
    %v456 = vpop.f32.mrf.mxu0
    %v457 = vadd.f32 %v361, %v456
    %v458 = vand.u32 %v127, 4294901760
    %v459 = vsub.f32 %v127, %v458
    %460 = vmatmul.f32.gmra.mxu0 %v459
    %v461 = vpop.f32.mrf.mxu0
    %v462 = vadd.f32 %v365, %v461
    %v463 = vand.u32 %v130, 4294901760
    %v464 = vsub.f32 %v130, %v463
    %465 = vmatmul.f32.gmra.mxu0 %v464
    %v466 = vpop.f32.mrf.mxu0
    %v467 = vadd.f32 %v369, %v466
    %v468 = vand.u32 %v133, 4294901760
    %v469 = vsub.f32 %v133, %v468
    %470 = vmatmul.f32.gmra.mxu0 %v469
    %v471 = vpop.f32.mrf.mxu0
    %v472 = vadd.f32 %v373, %v471
    %v473 = vand.u32 %v136, 4294901760
    %v474 = vsub.f32 %v136, %v473
    %475 = vmatmul.f32.gmra.mxu0 %v474
    %v476 = vpop.f32.mrf.mxu0
    %v477 = vadd.f32 %v377, %v476
    %v478 = vand.u32 %v139, 4294901760
    %v479 = vsub.f32 %v139, %v478
    %480 = vmatmul.f32.gmra.mxu0 %v479
    %v481 = vpop.f32.mrf.mxu0
    %v482 = vadd.f32 %v381, %v481
    %483 = vdwg.mxu0
    %484 = vmatpush.msra.mxu0 0.0
    %485 = vmatpush.msra.mxu0 0.0
    %486 = vmatpush.msra.mxu0 0.0
    %487 = vmatpush.msra.mxu0 0.0
    %488 = vmatpush.msra.mxu0 0.0
    %489 = vmatpush.msra.mxu0 0.0
    %490 = vmatpush.msra.mxu0 0.0
    %491 = vmatpush.msra.mxu0 0.0
    %492 = vmatpush.msra.mxu0 0.0
    %493 = vmatpush.msra.mxu0 0.0
    %494 = vmatpush.msra.mxu0 0.0
    %495 = vmatpush.msra.mxu0 0.0
    %496 = vmatpush.msra.mxu0 0.0
    %497 = vmatpush.msra.mxu0 0.0
    %v498 = vand.u32 %v143, 4294901760
    %499 = vmatpush.msra.mxu0 %v498
    %v500 = vand.u32 %v86, 4294901760
    %501 = vmatpush.msra.mxu0 %v500
    %v502 = vand.u32 %v94, 4294901760
    %v503 = vsub.f32 %v94, %v502
    %v504 = vand.u32 %v503, 4294901760
    %505 = vmatmul.f32.gmra.mxu0 %v504
    %v506 = vpop.f32.mrf.mxu0
    %v507 = vadd.f32 %v407, %v506
    %v508 = vand.u32 %v97, 4294901760
    %v509 = vsub.f32 %v97, %v508
    %v510 = vand.u32 %v509, 4294901760
    %511 = vmatmul.f32.gmra.mxu0 %v510
    %v512 = vpop.f32.mrf.mxu0
    %v513 = vadd.f32 %v412, %v512
    %v514 = vand.u32 %v100, 4294901760
    %v515 = vsub.f32 %v100, %v514
    %v516 = vand.u32 %v515, 4294901760
    %517 = vmatmul.f32.gmra.mxu0 %v516
    %v518 = vpop.f32.mrf.mxu0
    %v519 = vadd.f32 %v417, %v518
    %v520 = vand.u32 %v103, 4294901760
    %v521 = vsub.f32 %v103, %v520
    %v522 = vand.u32 %v521, 4294901760
    %523 = vmatmul.f32.gmra.mxu0 %v522
    %v524 = vpop.f32.mrf.mxu0
    %v525 = vadd.f32 %v422, %v524
    %v526 = vand.u32 %v106, 4294901760
    %v527 = vsub.f32 %v106, %v526
    %v528 = vand.u32 %v527, 4294901760
    %529 = vmatmul.f32.gmra.mxu0 %v528
    %v530 = vpop.f32.mrf.mxu0
    %v531 = vadd.f32 %v427, %v530
    %v532 = vand.u32 %v109, 4294901760
    %v533 = vsub.f32 %v109, %v532
    %v534 = vand.u32 %v533, 4294901760
    %535 = vmatmul.f32.gmra.mxu0 %v534
    %v536 = vpop.f32.mrf.mxu0
    %v537 = vadd.f32 %v432, %v536
    %v538 = vand.u32 %v112, 4294901760
    %v539 = vsub.f32 %v112, %v538
    %v540 = vand.u32 %v539, 4294901760
    %541 = vmatmul.f32.gmra.mxu0 %v540
    %v542 = vpop.f32.mrf.mxu0
    %v543 = vadd.f32 %v437, %v542
    %v544 = vand.u32 %v115, 4294901760
    %v545 = vsub.f32 %v115, %v544
    %v546 = vand.u32 %v545, 4294901760
    %547 = vmatmul.f32.gmra.mxu0 %v546
    %v548 = vpop.f32.mrf.mxu0
    %v549 = vadd.f32 %v442, %v548
    %v550 = vand.u32 %v118, 4294901760
    %v551 = vsub.f32 %v118, %v550
    %v552 = vand.u32 %v551, 4294901760
    %553 = vmatmul.f32.gmra.mxu0 %v552
    %v554 = vpop.f32.mrf.mxu0
    %v555 = vadd.f32 %v447, %v554
    %v556 = vand.u32 %v121, 4294901760
    %v557 = vsub.f32 %v121, %v556
    %v558 = vand.u32 %v557, 4294901760
    %559 = vmatmul.f32.gmra.mxu0 %v558
    %v560 = vpop.f32.mrf.mxu0
    %v561 = vadd.f32 %v452, %v560
    %v562 = vand.u32 %v124, 4294901760
    %v563 = vsub.f32 %v124, %v562
    %v564 = vand.u32 %v563, 4294901760
    %565 = vmatmul.f32.gmra.mxu0 %v564
    %v566 = vpop.f32.mrf.mxu0
    %v567 = vadd.f32 %v457, %v566
    %v568 = vand.u32 %v127, 4294901760
    %v569 = vsub.f32 %v127, %v568
    %v570 = vand.u32 %v569, 4294901760
    %571 = vmatmul.f32.gmra.mxu0 %v570
    %v572 = vpop.f32.mrf.mxu0
    %v573 = vadd.f32 %v462, %v572
    %v574 = vand.u32 %v130, 4294901760
    %v575 = vsub.f32 %v130, %v574
    %v576 = vand.u32 %v575, 4294901760
    %577 = vmatmul.f32.gmra.mxu0 %v576
    %v578 = vpop.f32.mrf.mxu0
    %v579 = vadd.f32 %v467, %v578
    %v580 = vand.u32 %v133, 4294901760
    %v581 = vsub.f32 %v133, %v580
    %v582 = vand.u32 %v581, 4294901760
    %583 = vmatmul.f32.gmra.mxu0 %v582
    %v584 = vpop.f32.mrf.mxu0
    %v585 = vadd.f32 %v472, %v584
    %v586 = vand.u32 %v136, 4294901760
    %v587 = vsub.f32 %v136, %v586
    %v588 = vand.u32 %v587, 4294901760
    %589 = vmatmul.f32.gmra.mxu0 %v588
    %v590 = vpop.f32.mrf.mxu0
    %v591 = vadd.f32 %v477, %v590
    %v592 = vand.u32 %v139, 4294901760
    %v593 = vsub.f32 %v139, %v592
    %v594 = vand.u32 %v593, 4294901760
    %595 = vmatmul.f32.gmra.mxu0 %v594
    %v596 = vpop.f32.mrf.mxu0
    %v597 = vadd.f32 %v482, %v596
    %598 = vdwg.mxu0
    %599 = vmatpush.msra.mxu0 0.0
    %600 = vmatpush.msra.mxu0 0.0
    %601 = vmatpush.msra.mxu0 0.0
    %602 = vmatpush.msra.mxu0 0.0
    %603 = vmatpush.msra.mxu0 0.0
    %604 = vmatpush.msra.mxu0 0.0
    %605 = vmatpush.msra.mxu0 0.0
    %606 = vmatpush.msra.mxu0 0.0
    %607 = vmatpush.msra.mxu0 0.0
    %608 = vmatpush.msra.mxu0 0.0
    %609 = vmatpush.msra.mxu0 0.0
    %610 = vmatpush.msra.mxu0 0.0
    %611 = vmatpush.msra.mxu0 0.0
    %612 = vmatpush.msra.mxu0 0.0
    %v613 = vand.u32 %v143, 4294901760
    %v614 = vsub.f32 %v143, %v613
    %v615 = vand.u32 %v614, 4294901760
    %616 = vmatpush.msra.mxu0 %v615
    %v617 = vand.u32 %v86, 4294901760
    %v618 = vsub.f32 %v86, %v617
    %v619 = vand.u32 %v618, 4294901760
    %620 = vmatpush.msra.mxu0 %v619
    %v621 = vand.u32 %v94, 4294901760
    %622 = vmatmul.f32.gmra.mxu0 %v621
    %v623 = vpop.f32.mrf.mxu0
    %v624 = vadd.f32 %v507, %v623
    %v625 = vand.u32 %v97, 4294901760
    %626 = vmatmul.f32.gmra.mxu0 %v625
    %v627 = vpop.f32.mrf.mxu0
    %v628 = vadd.f32 %v513, %v627
    %v629 = vand.u32 %v100, 4294901760
    %630 = vmatmul.f32.gmra.mxu0 %v629
    %v631 = vpop.f32.mrf.mxu0
    %v632 = vadd.f32 %v519, %v631
    %v633 = vand.u32 %v103, 4294901760
    %634 = vmatmul.f32.gmra.mxu0 %v633
    %v635 = vpop.f32.mrf.mxu0
    %v636 = vadd.f32 %v525, %v635
    %v637 = vand.u32 %v106, 4294901760
    %638 = vmatmul.f32.gmra.mxu0 %v637
    %v639 = vpop.f32.mrf.mxu0
    %v640 = vadd.f32 %v531, %v639
    %v641 = vand.u32 %v109, 4294901760
    %642 = vmatmul.f32.gmra.mxu0 %v641
    %v643 = vpop.f32.mrf.mxu0
    %v644 = vadd.f32 %v537, %v643
    %v645 = vand.u32 %v112, 4294901760
    %646 = vmatmul.f32.gmra.mxu0 %v645
    %v647 = vpop.f32.mrf.mxu0
    %v648 = vadd.f32 %v543, %v647
    %v649 = vand.u32 %v115, 4294901760
    %650 = vmatmul.f32.gmra.mxu0 %v649
    %v651 = vpop.f32.mrf.mxu0
    %v652 = vadd.f32 %v549, %v651
    %v653 = vand.u32 %v118, 4294901760
    %654 = vmatmul.f32.gmra.mxu0 %v653
    %v655 = vpop.f32.mrf.mxu0
    %v656 = vadd.f32 %v555, %v655
    %v657 = vand.u32 %v121, 4294901760
    %658 = vmatmul.f32.gmra.mxu0 %v657
    %v659 = vpop.f32.mrf.mxu0
    %v660 = vadd.f32 %v561, %v659
    %v661 = vand.u32 %v124, 4294901760
    %662 = vmatmul.f32.gmra.mxu0 %v661
    %v663 = vpop.f32.mrf.mxu0
    %v664 = vadd.f32 %v567, %v663
    %v665 = vand.u32 %v127, 4294901760
    %666 = vmatmul.f32.gmra.mxu0 %v665
    %v667 = vpop.f32.mrf.mxu0
    %v668 = vadd.f32 %v573, %v667
    %v669 = vand.u32 %v130, 4294901760
    %670 = vmatmul.f32.gmra.mxu0 %v669
    %v671 = vpop.f32.mrf.mxu0
    %v672 = vadd.f32 %v579, %v671
    %v673 = vand.u32 %v133, 4294901760
    %674 = vmatmul.f32.gmra.mxu0 %v673
    %v675 = vpop.f32.mrf.mxu0
    %v676 = vadd.f32 %v585, %v675
    %v677 = vand.u32 %v136, 4294901760
    %678 = vmatmul.f32.gmra.mxu0 %v677
    %v679 = vpop.f32.mrf.mxu0
    %v680 = vadd.f32 %v591, %v679
    %v681 = vand.u32 %v139, 4294901760
    %682 = vmatmul.f32.gmra.mxu0 %v681
    %v683 = vpop.f32.mrf.mxu0
    %v684 = vadd.f32 %v597, %v683
    %685 = vdwg.mxu0
    %686 = vmatpush.msra.mxu0 0.0
    %687 = vmatpush.msra.mxu0 0.0
    %688 = vmatpush.msra.mxu0 0.0
    %689 = vmatpush.msra.mxu0 0.0
    %690 = vmatpush.msra.mxu0 0.0
    %691 = vmatpush.msra.mxu0 0.0
    %692 = vmatpush.msra.mxu0 0.0
    %693 = vmatpush.msra.mxu0 0.0
    %694 = vmatpush.msra.mxu0 0.0
    %695 = vmatpush.msra.mxu0 0.0
    %696 = vmatpush.msra.mxu0 0.0
    %697 = vmatpush.msra.mxu0 0.0
    %698 = vmatpush.msra.mxu0 0.0
    %699 = vmatpush.msra.mxu0 0.0
    %v700 = vand.u32 %v143, 4294901760
    %701 = vmatpush.msra.mxu0 %v700
    %v702 = vand.u32 %v86, 4294901760
    %703 = vmatpush.msra.mxu0 %v702
    %v704 = vand.u32 %v94, 4294901760
    %705 = vmatmul.f32.gmra.mxu0 %v704
    %v706 = vpop.f32.mrf.mxu0
    %v707 = vadd.f32 %v624, %v706
    %v708 = vand.u32 %v97, 4294901760
    %709 = vmatmul.f32.gmra.mxu0 %v708
    %v710 = vpop.f32.mrf.mxu0
    %v711 = vadd.f32 %v628, %v710
    %v712 = vand.u32 %v100, 4294901760
    %713 = vmatmul.f32.gmra.mxu0 %v712
    %v714 = vpop.f32.mrf.mxu0
    %v715 = vadd.f32 %v632, %v714
    %v716 = vand.u32 %v103, 4294901760
    %717 = vmatmul.f32.gmra.mxu0 %v716
    %v718 = vpop.f32.mrf.mxu0
    %v719 = vadd.f32 %v636, %v718
    %v720 = vand.u32 %v106, 4294901760
    %721 = vmatmul.f32.gmra.mxu0 %v720
    %v722 = vpop.f32.mrf.mxu0
    %v723 = vadd.f32 %v640, %v722
    %v724 = vand.u32 %v109, 4294901760
    %725 = vmatmul.f32.gmra.mxu0 %v724
    %v726 = vpop.f32.mrf.mxu0
    %v727 = vadd.f32 %v644, %v726
    %v728 = vand.u32 %v112, 4294901760
    %729 = vmatmul.f32.gmra.mxu0 %v728
    %v730 = vpop.f32.mrf.mxu0
    %v731 = vadd.f32 %v648, %v730
    %v732 = vand.u32 %v115, 4294901760
    %733 = vmatmul.f32.gmra.mxu0 %v732
    %v734 = vpop.f32.mrf.mxu0
    %v735 = vadd.f32 %v652, %v734
    %v736 = vand.u32 %v118, 4294901760
    %737 = vmatmul.f32.gmra.mxu0 %v736
    %v738 = vpop.f32.mrf.mxu0
    %v739 = vadd.f32 %v656, %v738
    %v740 = vand.u32 %v121, 4294901760
    %741 = vmatmul.f32.gmra.mxu0 %v740
    %v742 = vpop.f32.mrf.mxu0
    %v743 = vadd.f32 %v660, %v742
    %v744 = vand.u32 %v124, 4294901760
    %745 = vmatmul.f32.gmra.mxu0 %v744
    %v746 = vpop.f32.mrf.mxu0
    %v747 = vadd.f32 %v664, %v746
    %v748 = vand.u32 %v127, 4294901760
    %749 = vmatmul.f32.gmra.mxu0 %v748
    %v750 = vpop.f32.mrf.mxu0
    %v751 = vadd.f32 %v668, %v750
    %v752 = vand.u32 %v130, 4294901760
    %753 = vmatmul.f32.gmra.mxu0 %v752
    %v754 = vpop.f32.mrf.mxu0
    %v755 = vadd.f32 %v672, %v754
    %v756 = vand.u32 %v133, 4294901760
    %757 = vmatmul.f32.gmra.mxu0 %v756
    %v758 = vpop.f32.mrf.mxu0
    %v759 = vadd.f32 %v676, %v758
    %v760 = vand.u32 %v136, 4294901760
    %761 = vmatmul.f32.gmra.mxu0 %v760
    %v762 = vpop.f32.mrf.mxu0
    %v763 = vadd.f32 %v680, %v762
    %v764 = vand.u32 %v139, 4294901760
    %765 = vmatmul.f32.gmra.mxu0 %v764
    %v766 = vpop.f32.mrf.mxu0
    %v767 = vadd.f32 %v684, %v766
    %768 = vdwg.mxu0
    %v769 = vmax.f32 %v707, 0.0
    %v770 = vmax.f32 %v711, 0.0
    %v771 = vmax.f32 %v715, 0.0
    %v772 = vmax.f32 %v719, 0.0
    %v773 = vmax.f32 %v723, 0.0
    %v774 = vmax.f32 %v727, 0.0
    %v775 = vmax.f32 %v731, 0.0
    %v776 = vmax.f32 %v735, 0.0
    %v777 = vmax.f32 %v739, 0.0
    %v778 = vmax.f32 %v743, 0.0
    %v779 = vmax.f32 %v747, 0.0
    %v780 = vmax.f32 %v751, 0.0
    %v781 = vmax.f32 %v755, 0.0
    %v782 = vmax.f32 %v759, 0.0
    %v783 = vmax.f32 %v763, 0.0
    %v784 = vmax.f32 %v767, 0.0
    %v801 = vrot.slane %v769, 2
    %v802 = vrot.slane %v769, 4
    %v803 = vrot.slane %v769, 6
    %v804 = vrot.slane %v770, 2
    %v805 = vrot.slane %v770, 4
    %v806 = vrot.slane %v770, 6
    %v807 = vrot.slane %v771, 2
    %v808 = vrot.slane %v771, 4
    %v809 = vrot.slane %v771, 6
    %v810 = vrot.slane %v772, 2
    %v811 = vrot.slane %v772, 4
    %v812 = vrot.slane %v772, 6
    %v813 = vrot.slane %v773, 2
    %v814 = vrot.slane %v773, 4
    %v815 = vrot.slane %v773, 6
    %v816 = vrot.slane %v774, 2
    %v817 = vrot.slane %v774, 4
    %v818 = vrot.slane %v774, 6
    %v819 = vrot.slane %v775, 2
    %v820 = vrot.slane %v775, 4
    %v821 = vrot.slane %v775, 6
    %v822 = vrot.slane %v776, 2
    %v823 = vrot.slane %v776, 4
    %v824 = vrot.slane %v776, 6
    %v825 = vrot.slane %v777, 2
    %v826 = vrot.slane %v777, 4
    %v827 = vrot.slane %v777, 6
    %v828 = vrot.slane %v778, 2
    %v829 = vrot.slane %v778, 4
    %v830 = vrot.slane %v778, 6
    %v831 = vrot.slane %v779, 2
    %v832 = vrot.slane %v779, 4
    %v833 = vrot.slane %v779, 6
    %v834 = vrot.slane %v780, 2
    %v835 = vrot.slane %v780, 4
    %v836 = vrot.slane %v780, 6
    %v837 = vrot.slane %v781, 2
    %v838 = vrot.slane %v781, 4
    %v839 = vrot.slane %v781, 6
    %v840 = vrot.slane %v782, 2
    %v841 = vrot.slane %v782, 4
    %v842 = vrot.slane %v782, 6
    %v843 = vrot.slane %v783, 2
    %v844 = vrot.slane %v783, 4
    %v845 = vrot.slane %v783, 6
    %v846 = vrot.slane %v784, 2
    %v847 = vrot.slane %v784, 4
    %v848 = vrot.slane %v784, 6
    %vm897 = vcmask 254976
    %v898 = vsel %vm897, %v769, -inf
    %v899 = vrot.slane %v898, 4
    %v900 = vmax.f32 %v898, %v899
    %v901 = vrot.slane %v900, 2
    %v902 = vmax.f32 %v900, %v901
    %v903 = vrot.slane %v902, 1
    %v904 = vmax.f32 %v902, %v903
    %v905 = vsel %vm897, %v801, -inf
    %v906 = vrot.slane %v905, 4
    %v907 = vmax.f32 %v905, %v906
    %v908 = vrot.slane %v907, 2
    %v909 = vmax.f32 %v907, %v908
    %v910 = vrot.slane %v909, 1
    %v911 = vmax.f32 %v909, %v910
    %v912 = vsel %vm897, %v802, -inf
    %v913 = vrot.slane %v912, 4
    %v914 = vmax.f32 %v912, %v913
    %v915 = vrot.slane %v914, 2
    %v916 = vmax.f32 %v914, %v915
    %v917 = vrot.slane %v916, 1
    %v918 = vmax.f32 %v916, %v917
    %v919 = vsel %vm897, %v803, -inf
    %v920 = vrot.slane %v919, 4
    %v921 = vmax.f32 %v919, %v920
    %v922 = vrot.slane %v921, 2
    %v923 = vmax.f32 %v921, %v922
    %v924 = vrot.slane %v923, 1
    %v925 = vmax.f32 %v923, %v924
    %v926 = vsel %vm897, %v770, -inf
    %v927 = vrot.slane %v926, 4
    %v928 = vmax.f32 %v926, %v927
    %v929 = vrot.slane %v928, 2
    %v930 = vmax.f32 %v928, %v929
    %v931 = vrot.slane %v930, 1
    %v932 = vmax.f32 %v930, %v931
    %v933 = vsel %vm897, %v804, -inf
    %v934 = vrot.slane %v933, 4
    %v935 = vmax.f32 %v933, %v934
    %v936 = vrot.slane %v935, 2
    %v937 = vmax.f32 %v935, %v936
    %v938 = vrot.slane %v937, 1
    %v939 = vmax.f32 %v937, %v938
    %v940 = vsel %vm897, %v805, -inf
    %v941 = vrot.slane %v940, 4
    %v942 = vmax.f32 %v940, %v941
    %v943 = vrot.slane %v942, 2
    %v944 = vmax.f32 %v942, %v943
    %v945 = vrot.slane %v944, 1
    %v946 = vmax.f32 %v944, %v945
    %v947 = vsel %vm897, %v806, -inf
    %v948 = vrot.slane %v947, 4
    %v949 = vmax.f32 %v947, %v948
    %v950 = vrot.slane %v949, 2
    %v951 = vmax.f32 %v949, %v950
    %v952 = vrot.slane %v951, 1
    %v953 = vmax.f32 %v951, %v952
    %v954 = vsel %vm897, %v771, -inf
    %v955 = vrot.slane %v954, 4
    %v956 = vmax.f32 %v954, %v955
    %v957 = vrot.slane %v956, 2
    %v958 = vmax.f32 %v956, %v957
    %v959 = vrot.slane %v958, 1
    %v960 = vmax.f32 %v958, %v959
    %v961 = vsel %vm897, %v807, -inf
    %v962 = vrot.slane %v961, 4
    %v963 = vmax.f32 %v961, %v962
    %v964 = vrot.slane %v963, 2
    %v965 = vmax.f32 %v963, %v964
    %v966 = vrot.slane %v965, 1
    %v967 = vmax.f32 %v965, %v966
    %v968 = vsel %vm897, %v808, -inf
    %v969 = vrot.slane %v968, 4
    %v970 = vmax.f32 %v968, %v969
    %v971 = vrot.slane %v970, 2
    %v972 = vmax.f32 %v970, %v971
    %v973 = vrot.slane %v972, 1
    %v974 = vmax.f32 %v972, %v973
    %v975 = vsel %vm897, %v809, -inf
    %v976 = vrot.slane %v975, 4
    %v977 = vmax.f32 %v975, %v976
    %v978 = vrot.slane %v977, 2
    %v979 = vmax.f32 %v977, %v978
    %v980 = vrot.slane %v979, 1
    %v981 = vmax.f32 %v979, %v980
    %v982 = vsel %vm897, %v772, -inf
    %v983 = vrot.slane %v982, 4
    %v984 = vmax.f32 %v982, %v983
    %v985 = vrot.slane %v984, 2
    %v986 = vmax.f32 %v984, %v985
    %v987 = vrot.slane %v986, 1
    %v988 = vmax.f32 %v986, %v987
    %v989 = vsel %vm897, %v810, -inf
    %v990 = vrot.slane %v989, 4
    %v991 = vmax.f32 %v989, %v990
    %v992 = vrot.slane %v991, 2
    %v993 = vmax.f32 %v991, %v992
    %v994 = vrot.slane %v993, 1
    %v995 = vmax.f32 %v993, %v994
    %v996 = vsel %vm897, %v811, -inf
    %v997 = vrot.slane %v996, 4
    %v998 = vmax.f32 %v996, %v997
    %v999 = vrot.slane %v998, 2
    %v1000 = vmax.f32 %v998, %v999
    %v1001 = vrot.slane %v1000, 1
    %v1002 = vmax.f32 %v1000, %v1001
    %v1003 = vsel %vm897, %v812, -inf
    %v1004 = vrot.slane %v1003, 4
    %v1005 = vmax.f32 %v1003, %v1004
    %v1006 = vrot.slane %v1005, 2
    %v1007 = vmax.f32 %v1005, %v1006
    %v1008 = vrot.slane %v1007, 1
    %v1009 = vmax.f32 %v1007, %v1008
    %v1010 = vsel %vm897, %v773, -inf
    %v1011 = vrot.slane %v1010, 4
    %v1012 = vmax.f32 %v1010, %v1011
    %v1013 = vrot.slane %v1012, 2
    %v1014 = vmax.f32 %v1012, %v1013
    %v1015 = vrot.slane %v1014, 1
    %v1016 = vmax.f32 %v1014, %v1015
    %v1017 = vsel %vm897, %v813, -inf
    %v1018 = vrot.slane %v1017, 4
    %v1019 = vmax.f32 %v1017, %v1018
    %v1020 = vrot.slane %v1019, 2
    %v1021 = vmax.f32 %v1019, %v1020
    %v1022 = vrot.slane %v1021, 1
    %v1023 = vmax.f32 %v1021, %v1022
    %v1024 = vsel %vm897, %v814, -inf
    %v1025 = vrot.slane %v1024, 4
    %v1026 = vmax.f32 %v1024, %v1025
    %v1027 = vrot.slane %v1026, 2
    %v1028 = vmax.f32 %v1026, %v1027
    %v1029 = vrot.slane %v1028, 1
    %v1030 = vmax.f32 %v1028, %v1029
    %v1031 = vsel %vm897, %v815, -inf
    %v1032 = vrot.slane %v1031, 4
    %v1033 = vmax.f32 %v1031, %v1032
    %v1034 = vrot.slane %v1033, 2
    %v1035 = vmax.f32 %v1033, %v1034
    %v1036 = vrot.slane %v1035, 1
    %v1037 = vmax.f32 %v1035, %v1036
    %v1038 = vsel %vm897, %v774, -inf
    %v1039 = vrot.slane %v1038, 4
    %v1040 = vmax.f32 %v1038, %v1039
    %v1041 = vrot.slane %v1040, 2
    %v1042 = vmax.f32 %v1040, %v1041
    %v1043 = vrot.slane %v1042, 1
    %v1044 = vmax.f32 %v1042, %v1043
    %v1045 = vsel %vm897, %v816, -inf
    %v1046 = vrot.slane %v1045, 4
    %v1047 = vmax.f32 %v1045, %v1046
    %v1048 = vrot.slane %v1047, 2
    %v1049 = vmax.f32 %v1047, %v1048
    %v1050 = vrot.slane %v1049, 1
    %v1051 = vmax.f32 %v1049, %v1050
    %v1052 = vsel %vm897, %v817, -inf
    %v1053 = vrot.slane %v1052, 4
    %v1054 = vmax.f32 %v1052, %v1053
    %v1055 = vrot.slane %v1054, 2
    %v1056 = vmax.f32 %v1054, %v1055
    %v1057 = vrot.slane %v1056, 1
    %v1058 = vmax.f32 %v1056, %v1057
    %v1059 = vsel %vm897, %v818, -inf
    %v1060 = vrot.slane %v1059, 4
    %v1061 = vmax.f32 %v1059, %v1060
    %v1062 = vrot.slane %v1061, 2
    %v1063 = vmax.f32 %v1061, %v1062
    %v1064 = vrot.slane %v1063, 1
    %v1065 = vmax.f32 %v1063, %v1064
    %v1066 = vsel %vm897, %v775, -inf
    %v1067 = vrot.slane %v1066, 4
    %v1068 = vmax.f32 %v1066, %v1067
    %v1069 = vrot.slane %v1068, 2
    %v1070 = vmax.f32 %v1068, %v1069
    %v1071 = vrot.slane %v1070, 1
    %v1072 = vmax.f32 %v1070, %v1071
    %v1073 = vsel %vm897, %v819, -inf
    %v1074 = vrot.slane %v1073, 4
    %v1075 = vmax.f32 %v1073, %v1074
    %v1076 = vrot.slane %v1075, 2
    %v1077 = vmax.f32 %v1075, %v1076
    %v1078 = vrot.slane %v1077, 1
    %v1079 = vmax.f32 %v1077, %v1078
    %v1080 = vsel %vm897, %v820, -inf
    %v1081 = vrot.slane %v1080, 4
    %v1082 = vmax.f32 %v1080, %v1081
    %v1083 = vrot.slane %v1082, 2
    %v1084 = vmax.f32 %v1082, %v1083
    %v1085 = vrot.slane %v1084, 1
    %v1086 = vmax.f32 %v1084, %v1085
    %v1087 = vsel %vm897, %v821, -inf
    %v1088 = vrot.slane %v1087, 4
    %v1089 = vmax.f32 %v1087, %v1088
    %v1090 = vrot.slane %v1089, 2
    %v1091 = vmax.f32 %v1089, %v1090
    %v1092 = vrot.slane %v1091, 1
    %v1093 = vmax.f32 %v1091, %v1092
    %v1094 = vsel %vm897, %v776, -inf
    %v1095 = vrot.slane %v1094, 4
    %v1096 = vmax.f32 %v1094, %v1095
    %v1097 = vrot.slane %v1096, 2
    %v1098 = vmax.f32 %v1096, %v1097
    %v1099 = vrot.slane %v1098, 1
    %v1100 = vmax.f32 %v1098, %v1099
    %v1101 = vsel %vm897, %v822, -inf
    %v1102 = vrot.slane %v1101, 4
    %v1103 = vmax.f32 %v1101, %v1102
    %v1104 = vrot.slane %v1103, 2
    %v1105 = vmax.f32 %v1103, %v1104
    %v1106 = vrot.slane %v1105, 1
    %v1107 = vmax.f32 %v1105, %v1106
    %v1108 = vsel %vm897, %v823, -inf
    %v1109 = vrot.slane %v1108, 4
    %v1110 = vmax.f32 %v1108, %v1109
    %v1111 = vrot.slane %v1110, 2
    %v1112 = vmax.f32 %v1110, %v1111
    %v1113 = vrot.slane %v1112, 1
    %v1114 = vmax.f32 %v1112, %v1113
    %v1115 = vsel %vm897, %v824, -inf
    %v1116 = vrot.slane %v1115, 4
    %v1117 = vmax.f32 %v1115, %v1116
    %v1118 = vrot.slane %v1117, 2
    %v1119 = vmax.f32 %v1117, %v1118
    %v1120 = vrot.slane %v1119, 1
    %v1121 = vmax.f32 %v1119, %v1120
    %v1122 = vsel %vm897, %v777, -inf
    %v1123 = vrot.slane %v1122, 4
    %v1124 = vmax.f32 %v1122, %v1123
    %v1125 = vrot.slane %v1124, 2
    %v1126 = vmax.f32 %v1124, %v1125
    %v1127 = vrot.slane %v1126, 1
    %v1128 = vmax.f32 %v1126, %v1127
    %v1129 = vsel %vm897, %v825, -inf
    %v1130 = vrot.slane %v1129, 4
    %v1131 = vmax.f32 %v1129, %v1130
    %v1132 = vrot.slane %v1131, 2
    %v1133 = vmax.f32 %v1131, %v1132
    %v1134 = vrot.slane %v1133, 1
    %v1135 = vmax.f32 %v1133, %v1134
    %v1136 = vsel %vm897, %v826, -inf
    %v1137 = vrot.slane %v1136, 4
    %v1138 = vmax.f32 %v1136, %v1137
    %v1139 = vrot.slane %v1138, 2
    %v1140 = vmax.f32 %v1138, %v1139
    %v1141 = vrot.slane %v1140, 1
    %v1142 = vmax.f32 %v1140, %v1141
    %v1143 = vsel %vm897, %v827, -inf
    %v1144 = vrot.slane %v1143, 4
    %v1145 = vmax.f32 %v1143, %v1144
    %v1146 = vrot.slane %v1145, 2
    %v1147 = vmax.f32 %v1145, %v1146
    %v1148 = vrot.slane %v1147, 1
    %v1149 = vmax.f32 %v1147, %v1148
    %v1150 = vsel %vm897, %v778, -inf
    %v1151 = vrot.slane %v1150, 4
    %v1152 = vmax.f32 %v1150, %v1151
    %v1153 = vrot.slane %v1152, 2
    %v1154 = vmax.f32 %v1152, %v1153
    %v1155 = vrot.slane %v1154, 1
    %v1156 = vmax.f32 %v1154, %v1155
    %v1157 = vsel %vm897, %v828, -inf
    %v1158 = vrot.slane %v1157, 4
    %v1159 = vmax.f32 %v1157, %v1158
    %v1160 = vrot.slane %v1159, 2
    %v1161 = vmax.f32 %v1159, %v1160
    %v1162 = vrot.slane %v1161, 1
    %v1163 = vmax.f32 %v1161, %v1162
    %v1164 = vsel %vm897, %v829, -inf
    %v1165 = vrot.slane %v1164, 4
    %v1166 = vmax.f32 %v1164, %v1165
    %v1167 = vrot.slane %v1166, 2
    %v1168 = vmax.f32 %v1166, %v1167
    %v1169 = vrot.slane %v1168, 1
    %v1170 = vmax.f32 %v1168, %v1169
    %v1171 = vsel %vm897, %v830, -inf
    %v1172 = vrot.slane %v1171, 4
    %v1173 = vmax.f32 %v1171, %v1172
    %v1174 = vrot.slane %v1173, 2
    %v1175 = vmax.f32 %v1173, %v1174
    %v1176 = vrot.slane %v1175, 1
    %v1177 = vmax.f32 %v1175, %v1176
    %v1178 = vsel %vm897, %v779, -inf
    %v1179 = vrot.slane %v1178, 4
    %v1180 = vmax.f32 %v1178, %v1179
    %v1181 = vrot.slane %v1180, 2
    %v1182 = vmax.f32 %v1180, %v1181
    %v1183 = vrot.slane %v1182, 1
    %v1184 = vmax.f32 %v1182, %v1183
    %v1185 = vsel %vm897, %v831, -inf
    %v1186 = vrot.slane %v1185, 4
    %v1187 = vmax.f32 %v1185, %v1186
    %v1188 = vrot.slane %v1187, 2
    %v1189 = vmax.f32 %v1187, %v1188
    %v1190 = vrot.slane %v1189, 1
    %v1191 = vmax.f32 %v1189, %v1190
    %v1192 = vsel %vm897, %v832, -inf
    %v1193 = vrot.slane %v1192, 4
    %v1194 = vmax.f32 %v1192, %v1193
    %v1195 = vrot.slane %v1194, 2
    %v1196 = vmax.f32 %v1194, %v1195
    %v1197 = vrot.slane %v1196, 1
    %v1198 = vmax.f32 %v1196, %v1197
    %v1199 = vsel %vm897, %v833, -inf
    %v1200 = vrot.slane %v1199, 4
    %v1201 = vmax.f32 %v1199, %v1200
    %v1202 = vrot.slane %v1201, 2
    %v1203 = vmax.f32 %v1201, %v1202
    %v1204 = vrot.slane %v1203, 1
    %v1205 = vmax.f32 %v1203, %v1204
    %v1206 = vsel %vm897, %v780, -inf
    %v1207 = vrot.slane %v1206, 4
    %v1208 = vmax.f32 %v1206, %v1207
    %v1209 = vrot.slane %v1208, 2
    %v1210 = vmax.f32 %v1208, %v1209
    %v1211 = vrot.slane %v1210, 1
    %v1212 = vmax.f32 %v1210, %v1211
    %v1213 = vsel %vm897, %v834, -inf
    %v1214 = vrot.slane %v1213, 4
    %v1215 = vmax.f32 %v1213, %v1214
    %v1216 = vrot.slane %v1215, 2
    %v1217 = vmax.f32 %v1215, %v1216
    %v1218 = vrot.slane %v1217, 1
    %v1219 = vmax.f32 %v1217, %v1218
    %v1220 = vsel %vm897, %v835, -inf
    %v1221 = vrot.slane %v1220, 4
    %v1222 = vmax.f32 %v1220, %v1221
    %v1223 = vrot.slane %v1222, 2
    %v1224 = vmax.f32 %v1222, %v1223
    %v1225 = vrot.slane %v1224, 1
    %v1226 = vmax.f32 %v1224, %v1225
    %v1227 = vsel %vm897, %v836, -inf
    %v1228 = vrot.slane %v1227, 4
    %v1229 = vmax.f32 %v1227, %v1228
    %v1230 = vrot.slane %v1229, 2
    %v1231 = vmax.f32 %v1229, %v1230
    %v1232 = vrot.slane %v1231, 1
    %v1233 = vmax.f32 %v1231, %v1232
    %v1234 = vsel %vm897, %v781, -inf
    %v1235 = vrot.slane %v1234, 4
    %v1236 = vmax.f32 %v1234, %v1235
    %v1237 = vrot.slane %v1236, 2
    %v1238 = vmax.f32 %v1236, %v1237
    %v1239 = vrot.slane %v1238, 1
    %v1240 = vmax.f32 %v1238, %v1239
    %v1241 = vsel %vm897, %v837, -inf
    %v1242 = vrot.slane %v1241, 4
    %v1243 = vmax.f32 %v1241, %v1242
    %v1244 = vrot.slane %v1243, 2
    %v1245 = vmax.f32 %v1243, %v1244
    %v1246 = vrot.slane %v1245, 1
    %v1247 = vmax.f32 %v1245, %v1246
    %v1248 = vsel %vm897, %v838, -inf
    %v1249 = vrot.slane %v1248, 4
    %v1250 = vmax.f32 %v1248, %v1249
    %v1251 = vrot.slane %v1250, 2
    %v1252 = vmax.f32 %v1250, %v1251
    %v1253 = vrot.slane %v1252, 1
    %v1254 = vmax.f32 %v1252, %v1253
    %v1255 = vsel %vm897, %v839, -inf
    %v1256 = vrot.slane %v1255, 4
    %v1257 = vmax.f32 %v1255, %v1256
    %v1258 = vrot.slane %v1257, 2
    %v1259 = vmax.f32 %v1257, %v1258
    %v1260 = vrot.slane %v1259, 1
    %v1261 = vmax.f32 %v1259, %v1260
    %v1262 = vsel %vm897, %v782, -inf
    %v1263 = vrot.slane %v1262, 4
    %v1264 = vmax.f32 %v1262, %v1263
    %v1265 = vrot.slane %v1264, 2
    %v1266 = vmax.f32 %v1264, %v1265
    %v1267 = vrot.slane %v1266, 1
    %v1268 = vmax.f32 %v1266, %v1267
    %v1269 = vsel %vm897, %v840, -inf
    %v1270 = vrot.slane %v1269, 4
    %v1271 = vmax.f32 %v1269, %v1270
    %v1272 = vrot.slane %v1271, 2
    %v1273 = vmax.f32 %v1271, %v1272
    %v1274 = vrot.slane %v1273, 1
    %v1275 = vmax.f32 %v1273, %v1274
    %v1276 = vsel %vm897, %v841, -inf
    %v1277 = vrot.slane %v1276, 4
    %v1278 = vmax.f32 %v1276, %v1277
    %v1279 = vrot.slane %v1278, 2
    %v1280 = vmax.f32 %v1278, %v1279
    %v1281 = vrot.slane %v1280, 1
    %v1282 = vmax.f32 %v1280, %v1281
    %v1283 = vsel %vm897, %v842, -inf
    %v1284 = vrot.slane %v1283, 4
    %v1285 = vmax.f32 %v1283, %v1284
    %v1286 = vrot.slane %v1285, 2
    %v1287 = vmax.f32 %v1285, %v1286
    %v1288 = vrot.slane %v1287, 1
    %v1289 = vmax.f32 %v1287, %v1288
    %v1290 = vsel %vm897, %v783, -inf
    %v1291 = vrot.slane %v1290, 4
    %v1292 = vmax.f32 %v1290, %v1291
    %v1293 = vrot.slane %v1292, 2
    %v1294 = vmax.f32 %v1292, %v1293
    %v1295 = vrot.slane %v1294, 1
    %v1296 = vmax.f32 %v1294, %v1295
    %v1297 = vsel %vm897, %v843, -inf
    %v1298 = vrot.slane %v1297, 4
    %v1299 = vmax.f32 %v1297, %v1298
    %v1300 = vrot.slane %v1299, 2
    %v1301 = vmax.f32 %v1299, %v1300
    %v1302 = vrot.slane %v1301, 1
    %v1303 = vmax.f32 %v1301, %v1302
    %v1304 = vsel %vm897, %v844, -inf
    %v1305 = vrot.slane %v1304, 4
    %v1306 = vmax.f32 %v1304, %v1305
    %v1307 = vrot.slane %v1306, 2
    %v1308 = vmax.f32 %v1306, %v1307
    %v1309 = vrot.slane %v1308, 1
    %v1310 = vmax.f32 %v1308, %v1309
    %v1311 = vsel %vm897, %v845, -inf
    %v1312 = vrot.slane %v1311, 4
    %v1313 = vmax.f32 %v1311, %v1312
    %v1314 = vrot.slane %v1313, 2
    %v1315 = vmax.f32 %v1313, %v1314
    %v1316 = vrot.slane %v1315, 1
    %v1317 = vmax.f32 %v1315, %v1316
    %v1318 = vsel %vm897, %v784, -inf
    %v1319 = vrot.slane %v1318, 4
    %v1320 = vmax.f32 %v1318, %v1319
    %v1321 = vrot.slane %v1320, 2
    %v1322 = vmax.f32 %v1320, %v1321
    %v1323 = vrot.slane %v1322, 1
    %v1324 = vmax.f32 %v1322, %v1323
    %v1325 = vsel %vm897, %v846, -inf
    %v1326 = vrot.slane %v1325, 4
    %v1327 = vmax.f32 %v1325, %v1326
    %v1328 = vrot.slane %v1327, 2
    %v1329 = vmax.f32 %v1327, %v1328
    %v1330 = vrot.slane %v1329, 1
    %v1331 = vmax.f32 %v1329, %v1330
    %v1332 = vsel %vm897, %v847, -inf
    %v1333 = vrot.slane %v1332, 4
    %v1334 = vmax.f32 %v1332, %v1333
    %v1335 = vrot.slane %v1334, 2
    %v1336 = vmax.f32 %v1334, %v1335
    %v1337 = vrot.slane %v1336, 1
    %v1338 = vmax.f32 %v1336, %v1337
    %v1339 = vsel %vm897, %v848, -inf
    %v1340 = vrot.slane %v1339, 4
    %v1341 = vmax.f32 %v1339, %v1340
    %v1342 = vrot.slane %v1341, 2
    %v1343 = vmax.f32 %v1341, %v1342
    %v1344 = vrot.slane %v1343, 1
    %v1345 = vmax.f32 %v1343, %v1344
    %vm1346 = vcmask 261120
    %1347 = vst.msk [vmem:[#allocation2] sm:$0xff] %vm1346, 0.0
    %1348 = vst.msk [vmem:[#allocation2 + $0x30] sm:$0xff] %vm1346, 0.0
    %1349 = vst.msk [vmem:[#allocation2 + $0x28] sm:$0xff] %vm1346, 0.0
    %1350 = vst.msk [vmem:[#allocation2 + $0x58] sm:$0xff] %vm1346, 0.0
    %vm1415 = vcmask 1041409
    %v1416 = vsel %vm1415, %v911, %v904
    %vm1417 = vcmask 1042434
    %v1418 = vsel %vm1417, %v918, %v1416
    %vm1419 = vcmask 1043459
    %v1420 = vsel %vm1419, %v925, %v1418
    %vm1421 = vcmask 1044484
    %v1422 = vsel %vm1421, %v932, %v1420
    %vm1423 = vcmask 1045509
    %v1424 = vsel %vm1423, %v939, %v1422
    %vm1425 = vcmask 1046534
    %v1426 = vsel %vm1425, %v946, %v1424
    %vm1427 = vcmask 1047559
    %v1428 = vsel %vm1427, %v953, %v1426
    %v1429 = vsel %vm1415, %v967, %v960
    %v1430 = vsel %vm1417, %v974, %v1429
    %v1431 = vsel %vm1419, %v981, %v1430
    %v1432 = vsel %vm1421, %v988, %v1431
    %v1433 = vsel %vm1423, %v995, %v1432
    %v1434 = vsel %vm1425, %v1002, %v1433
    %v1435 = vsel %vm1427, %v1009, %v1434
    %v1436 = vsel %vm1415, %v1023, %v1016
    %v1437 = vsel %vm1417, %v1030, %v1436
    %v1438 = vsel %vm1419, %v1037, %v1437
    %v1439 = vsel %vm1421, %v1044, %v1438
    %v1440 = vsel %vm1423, %v1051, %v1439
    %v1441 = vsel %vm1425, %v1058, %v1440
    %v1442 = vsel %vm1427, %v1065, %v1441
    %v1443 = vsel %vm1415, %v1079, %v1072
    %v1444 = vsel %vm1417, %v1086, %v1443
    %v1445 = vsel %vm1419, %v1093, %v1444
    %v1446 = vsel %vm1421, %v1100, %v1445
    %v1447 = vsel %vm1423, %v1107, %v1446
    %v1448 = vsel %vm1425, %v1114, %v1447
    %v1449 = vsel %vm1427, %v1121, %v1448
    %v1450 = vsel %vm1415, %v1135, %v1128
    %v1451 = vsel %vm1417, %v1142, %v1450
    %v1452 = vsel %vm1419, %v1149, %v1451
    %v1453 = vsel %vm1421, %v1156, %v1452
    %v1454 = vsel %vm1423, %v1163, %v1453
    %v1455 = vsel %vm1425, %v1170, %v1454
    %v1456 = vsel %vm1427, %v1177, %v1455
    %v1457 = vsel %vm1415, %v1191, %v1184
    %v1458 = vsel %vm1417, %v1198, %v1457
    %v1459 = vsel %vm1419, %v1205, %v1458
    %v1460 = vsel %vm1421, %v1212, %v1459
    %v1461 = vsel %vm1423, %v1219, %v1460
    %v1462 = vsel %vm1425, %v1226, %v1461
    %v1463 = vsel %vm1427, %v1233, %v1462
    %v1464 = vsel %vm1415, %v1247, %v1240
    %v1465 = vsel %vm1417, %v1254, %v1464
    %v1466 = vsel %vm1419, %v1261, %v1465
    %v1467 = vsel %vm1421, %v1268, %v1466
    %v1468 = vsel %vm1423, %v1275, %v1467
    %v1469 = vsel %vm1425, %v1282, %v1468
    %v1470 = vsel %vm1427, %v1289, %v1469
    %v1471 = vsel %vm1415, %v1303, %v1296
    %v1472 = vsel %vm1417, %v1310, %v1471
    %v1473 = vsel %vm1419, %v1317, %v1472
    %v1474 = vsel %vm1421, %v1324, %v1473
    %v1475 = vsel %vm1423, %v1331, %v1474
    %v1476 = vsel %vm1425, %v1338, %v1475
    %v1477 = vsel %vm1427, %v1345, %v1476
    %1486 = vst.msk [vmem:[#allocation2 + $0x8] sm:$0xff] %vm1346, %v1428
    %1487 = vst.msk [vmem:[#allocation2 + $0x10] sm:$0xff] %vm1346, %v1435
    %1488 = vst.msk [vmem:[#allocation2 + $0x18] sm:$0xff] %vm1346, %v1442
    %1489 = vst.msk [vmem:[#allocation2 + $0x20] sm:$0xff] %vm1346, %v1449
    %1490 = vst.msk [vmem:[#allocation2 + $0x38] sm:$0xff] %vm1346, %v1456
    %1491 = vst.msk [vmem:[#allocation2 + $0x40] sm:$0xff] %vm1346, %v1463
    %1492 = vst.msk [vmem:[#allocation2 + $0x48] sm:$0xff] %vm1346, %v1470
    %1493 = vst.msk [vmem:[#allocation2 + $0x50] sm:$0xff] %vm1346, %v1477
    %v1494 = vld [vmem:[#allocation2 + $0x6] sm:$0xff]
    %v1495 = vld [vmem:[#allocation2 + $0xe] sm:$0xff]
    %v1496 = vld [vmem:[#allocation2 + $0x16] sm:$0xff]
    %v1497 = vld [vmem:[#allocation2 + $0x1e] sm:$0xff]
    %v1498 = vld [vmem:[#allocation2 + $0x36] sm:$0xff]
    %v1499 = vld [vmem:[#allocation2 + $0x3e] sm:$0xff]
    %v1500 = vld [vmem:[#allocation2 + $0x46] sm:$0xff]
    %v1501 = vld [vmem:[#allocation2 + $0x4e] sm:$0xff]
    %v1502 = vld [vmem:[%s3] sm:$0xff]
    %v1503 = vld [vmem:[%s3 + $0x8] sm:$0xff]
    %v1504 = vld [vmem:[%s3 + $0x10] sm:$0xff]
    %v1505 = vld [vmem:[%s3 + $0x18] sm:$0xff]
    %v1506 = vld [vmem:[#allocation2 + $0x7] sm:$0xff]
    %v1507 = vld [vmem:[#allocation2 + $0xf] sm:$0xff]
    %v1508 = vld [vmem:[#allocation2 + $0x17] sm:$0xff]
    %v1509 = vld [vmem:[#allocation2 + $0x1f] sm:$0xff]
    %v1510 = vld [vmem:[#allocation2 + $0x37] sm:$0xff]
    %v1511 = vld [vmem:[#allocation2 + $0x3f] sm:$0xff]
    %v1512 = vld [vmem:[#allocation2 + $0x47] sm:$0xff]
    %v1513 = vld [vmem:[#allocation2 + $0x4f] sm:$0xff]
    %v1514 = vld [vmem:[%s3 + $0x20] sm:$0xff]
    %v1515 = vld [vmem:[%s3 + $0x28] sm:$0xff]
    %v1516 = vld [vmem:[%s3 + $0x30] sm:$0xff]
    %v1517 = vld [vmem:[%s3 + $0x38] sm:$0xff]
    %v1519 = vsel %vm1346, %v1506, 0
    %v1522 = vsel %vm1346, %v1507, 0
    %v1525 = vsel %vm1346, %v1508, 0
    %v1528 = vsel %vm1346, %v1509, 0
    %v1531 = vsel %vm1346, %v1510, 0
    %v1534 = vsel %vm1346, %v1511, 0
    %v1537 = vsel %vm1346, %v1512, 0
    %v1540 = vsel %vm1346, %v1513, 0
    %1542 = vmatpush.msra.mxu0 0.0
    %1543 = vmatpush.msra.mxu0 0.0
    %1544 = vmatpush.msra.mxu0 0.0
    %1545 = vmatpush.msra.mxu0 0.0
    %1546 = vmatpush.msra.mxu0 0.0
    %1547 = vmatpush.msra.mxu0 0.0
    %1548 = vmatpush.msra.mxu0 0.0
    %1549 = vmatpush.msra.mxu0 0.0
    %1550 = vmatpush.msra.mxu0 0.0
    %1551 = vmatpush.msra.mxu0 0.0
    %1552 = vmatpush.msra.mxu0 0.0
    %1553 = vmatpush.msra.mxu0 0.0
    %v1554 = vand.u32 %v1517, 4294901760
    %1555 = vmatpush.msra.mxu0 %v1554
    %v1556 = vand.u32 %v1516, 4294901760
    %1557 = vmatpush.msra.mxu0 %v1556
    %v1558 = vand.u32 %v1515, 4294901760
    %1559 = vmatpush.msra.mxu0 %v1558
    %v1560 = vand.u32 %v1514, 4294901760
    %1561 = vmatpush.msra.mxu0 %v1560
    %v1562 = vand.u32 %v1519, 4294901760
    %v1563 = vsub.f32 %v1519, %v1562
    %v1564 = vand.u32 %v1563, 4294901760
    %v1565 = vsub.f32 %v1563, %v1564
    %v1566 = vand.u32 %v1565, 4294901760
    %1567 = vmatmul.f32.gmra.mxu0 %v1566
    %v1568 = vpop.f32.mrf.mxu0
    %v1569 = vadd.f32 0.0, %v1568
    %v1570 = vand.u32 %v1522, 4294901760
    %v1571 = vsub.f32 %v1522, %v1570
    %v1572 = vand.u32 %v1571, 4294901760
    %v1573 = vsub.f32 %v1571, %v1572
    %v1574 = vand.u32 %v1573, 4294901760
    %1575 = vmatmul.f32.gmra.mxu0 %v1574
    %v1576 = vpop.f32.mrf.mxu0
    %v1577 = vadd.f32 0.0, %v1576
    %v1578 = vand.u32 %v1525, 4294901760
    %v1579 = vsub.f32 %v1525, %v1578
    %v1580 = vand.u32 %v1579, 4294901760
    %v1581 = vsub.f32 %v1579, %v1580
    %v1582 = vand.u32 %v1581, 4294901760
    %1583 = vmatmul.f32.gmra.mxu0 %v1582
    %v1584 = vpop.f32.mrf.mxu0
    %v1585 = vadd.f32 0.0, %v1584
    %v1586 = vand.u32 %v1528, 4294901760
    %v1587 = vsub.f32 %v1528, %v1586
    %v1588 = vand.u32 %v1587, 4294901760
    %v1589 = vsub.f32 %v1587, %v1588
    %v1590 = vand.u32 %v1589, 4294901760
    %1591 = vmatmul.f32.gmra.mxu0 %v1590
    %v1592 = vpop.f32.mrf.mxu0
    %v1593 = vadd.f32 0.0, %v1592
    %v1594 = vand.u32 %v1531, 4294901760
    %v1595 = vsub.f32 %v1531, %v1594
    %v1596 = vand.u32 %v1595, 4294901760
    %v1597 = vsub.f32 %v1595, %v1596
    %v1598 = vand.u32 %v1597, 4294901760
    %1599 = vmatmul.f32.gmra.mxu0 %v1598
    %v1600 = vpop.f32.mrf.mxu0
    %v1601 = vadd.f32 0.0, %v1600
    %v1602 = vand.u32 %v1534, 4294901760
    %v1603 = vsub.f32 %v1534, %v1602
    %v1604 = vand.u32 %v1603, 4294901760
    %v1605 = vsub.f32 %v1603, %v1604
    %v1606 = vand.u32 %v1605, 4294901760
    %1607 = vmatmul.f32.gmra.mxu0 %v1606
    %v1608 = vpop.f32.mrf.mxu0
    %v1609 = vadd.f32 0.0, %v1608
    %v1610 = vand.u32 %v1537, 4294901760
    %v1611 = vsub.f32 %v1537, %v1610
    %v1612 = vand.u32 %v1611, 4294901760
    %v1613 = vsub.f32 %v1611, %v1612
    %v1614 = vand.u32 %v1613, 4294901760
    %1615 = vmatmul.f32.gmra.mxu0 %v1614
    %v1616 = vpop.f32.mrf.mxu0
    %v1617 = vadd.f32 0.0, %v1616
    %v1618 = vand.u32 %v1540, 4294901760
    %v1619 = vsub.f32 %v1540, %v1618
    %v1620 = vand.u32 %v1619, 4294901760
    %v1621 = vsub.f32 %v1619, %v1620
    %v1622 = vand.u32 %v1621, 4294901760
    %1623 = vmatmul.f32.gmra.mxu0 %v1622
    %v1624 = vpop.f32.mrf.mxu0
    %v1625 = vadd.f32 0.0, %v1624
    %1626 = vdwg.mxu0
    %1627 = vmatpush.msra.mxu0 0.0
    %1628 = vmatpush.msra.mxu0 0.0
    %1629 = vmatpush.msra.mxu0 0.0
    %1630 = vmatpush.msra.mxu0 0.0
    %1631 = vmatpush.msra.mxu0 0.0
    %1632 = vmatpush.msra.mxu0 0.0
    %1633 = vmatpush.msra.mxu0 0.0
    %1634 = vmatpush.msra.mxu0 0.0
    %1635 = vmatpush.msra.mxu0 0.0
    %1636 = vmatpush.msra.mxu0 0.0
    %1637 = vmatpush.msra.mxu0 0.0
    %1638 = vmatpush.msra.mxu0 0.0
    %v1639 = vand.u32 %v1517, 4294901760
    %v1640 = vsub.f32 %v1517, %v1639
    %v1641 = vand.u32 %v1640, 4294901760
    %v1642 = vsub.f32 %v1640, %v1641
    %v1643 = vand.u32 %v1642, 4294901760
    %1644 = vmatpush.msra.mxu0 %v1643
    %v1645 = vand.u32 %v1516, 4294901760
    %v1646 = vsub.f32 %v1516, %v1645
    %v1647 = vand.u32 %v1646, 4294901760
    %v1648 = vsub.f32 %v1646, %v1647
    %v1649 = vand.u32 %v1648, 4294901760
    %1650 = vmatpush.msra.mxu0 %v1649
    %v1651 = vand.u32 %v1515, 4294901760
    %v1652 = vsub.f32 %v1515, %v1651
    %v1653 = vand.u32 %v1652, 4294901760
    %v1654 = vsub.f32 %v1652, %v1653
    %v1655 = vand.u32 %v1654, 4294901760
    %1656 = vmatpush.msra.mxu0 %v1655
    %v1657 = vand.u32 %v1514, 4294901760
    %v1658 = vsub.f32 %v1514, %v1657
    %v1659 = vand.u32 %v1658, 4294901760
    %v1660 = vsub.f32 %v1658, %v1659
    %v1661 = vand.u32 %v1660, 4294901760
    %1662 = vmatpush.msra.mxu0 %v1661
    %v1663 = vand.u32 %v1519, 4294901760
    %1664 = vmatmul.f32.gmra.mxu0 %v1663
    %v1665 = vpop.f32.mrf.mxu0
    %v1666 = vadd.f32 %v1569, %v1665
    %v1667 = vand.u32 %v1522, 4294901760
    %1668 = vmatmul.f32.gmra.mxu0 %v1667
    %v1669 = vpop.f32.mrf.mxu0
    %v1670 = vadd.f32 %v1577, %v1669
    %v1671 = vand.u32 %v1525, 4294901760
    %1672 = vmatmul.f32.gmra.mxu0 %v1671
    %v1673 = vpop.f32.mrf.mxu0
    %v1674 = vadd.f32 %v1585, %v1673
    %v1675 = vand.u32 %v1528, 4294901760
    %1676 = vmatmul.f32.gmra.mxu0 %v1675
    %v1677 = vpop.f32.mrf.mxu0
    %v1678 = vadd.f32 %v1593, %v1677
    %v1679 = vand.u32 %v1531, 4294901760
    %1680 = vmatmul.f32.gmra.mxu0 %v1679
    %v1681 = vpop.f32.mrf.mxu0
    %v1682 = vadd.f32 %v1601, %v1681
    %v1683 = vand.u32 %v1534, 4294901760
    %1684 = vmatmul.f32.gmra.mxu0 %v1683
    %v1685 = vpop.f32.mrf.mxu0
    %v1686 = vadd.f32 %v1609, %v1685
    %v1687 = vand.u32 %v1537, 4294901760
    %1688 = vmatmul.f32.gmra.mxu0 %v1687
    %v1689 = vpop.f32.mrf.mxu0
    %v1690 = vadd.f32 %v1617, %v1689
    %v1691 = vand.u32 %v1540, 4294901760
    %1692 = vmatmul.f32.gmra.mxu0 %v1691
    %v1693 = vpop.f32.mrf.mxu0
    %v1694 = vadd.f32 %v1625, %v1693
    %1695 = vdwg.mxu0
    %1696 = vmatpush.msra.mxu0 0.0
    %1697 = vmatpush.msra.mxu0 0.0
    %1698 = vmatpush.msra.mxu0 0.0
    %1699 = vmatpush.msra.mxu0 0.0
    %1700 = vmatpush.msra.mxu0 0.0
    %1701 = vmatpush.msra.mxu0 0.0
    %1702 = vmatpush.msra.mxu0 0.0
    %1703 = vmatpush.msra.mxu0 0.0
    %1704 = vmatpush.msra.mxu0 0.0
    %1705 = vmatpush.msra.mxu0 0.0
    %1706 = vmatpush.msra.mxu0 0.0
    %1707 = vmatpush.msra.mxu0 0.0
    %v1708 = vand.u32 %v1517, 4294901760
    %v1709 = vsub.f32 %v1517, %v1708
    %1710 = vmatpush.msra.mxu0 %v1709
    %v1711 = vand.u32 %v1516, 4294901760
    %v1712 = vsub.f32 %v1516, %v1711
    %1713 = vmatpush.msra.mxu0 %v1712
    %v1714 = vand.u32 %v1515, 4294901760
    %v1715 = vsub.f32 %v1515, %v1714
    %1716 = vmatpush.msra.mxu0 %v1715
    %v1717 = vand.u32 %v1514, 4294901760
    %v1718 = vsub.f32 %v1514, %v1717
    %1719 = vmatpush.msra.mxu0 %v1718
    %v1720 = vand.u32 %v1519, 4294901760
    %v1721 = vsub.f32 %v1519, %v1720
    %1722 = vmatmul.f32.gmra.mxu0 %v1721
    %v1723 = vpop.f32.mrf.mxu0
    %v1724 = vadd.f32 %v1666, %v1723
    %v1725 = vand.u32 %v1522, 4294901760
    %v1726 = vsub.f32 %v1522, %v1725
    %1727 = vmatmul.f32.gmra.mxu0 %v1726
    %v1728 = vpop.f32.mrf.mxu0
    %v1729 = vadd.f32 %v1670, %v1728
    %v1730 = vand.u32 %v1525, 4294901760
    %v1731 = vsub.f32 %v1525, %v1730
    %1732 = vmatmul.f32.gmra.mxu0 %v1731
    %v1733 = vpop.f32.mrf.mxu0
    %v1734 = vadd.f32 %v1674, %v1733
    %v1735 = vand.u32 %v1528, 4294901760
    %v1736 = vsub.f32 %v1528, %v1735
    %1737 = vmatmul.f32.gmra.mxu0 %v1736
    %v1738 = vpop.f32.mrf.mxu0
    %v1739 = vadd.f32 %v1678, %v1738
    %v1740 = vand.u32 %v1531, 4294901760
    %v1741 = vsub.f32 %v1531, %v1740
    %1742 = vmatmul.f32.gmra.mxu0 %v1741
    %v1743 = vpop.f32.mrf.mxu0
    %v1744 = vadd.f32 %v1682, %v1743
    %v1745 = vand.u32 %v1534, 4294901760
    %v1746 = vsub.f32 %v1534, %v1745
    %1747 = vmatmul.f32.gmra.mxu0 %v1746
    %v1748 = vpop.f32.mrf.mxu0
    %v1749 = vadd.f32 %v1686, %v1748
    %v1750 = vand.u32 %v1537, 4294901760
    %v1751 = vsub.f32 %v1537, %v1750
    %1752 = vmatmul.f32.gmra.mxu0 %v1751
    %v1753 = vpop.f32.mrf.mxu0
    %v1754 = vadd.f32 %v1690, %v1753
    %v1755 = vand.u32 %v1540, 4294901760
    %v1756 = vsub.f32 %v1540, %v1755
    %1757 = vmatmul.f32.gmra.mxu0 %v1756
    %v1758 = vpop.f32.mrf.mxu0
    %v1759 = vadd.f32 %v1694, %v1758
    %1760 = vdwg.mxu0
    %1761 = vmatpush.msra.mxu0 0.0
    %1762 = vmatpush.msra.mxu0 0.0
    %1763 = vmatpush.msra.mxu0 0.0
    %1764 = vmatpush.msra.mxu0 0.0
    %1765 = vmatpush.msra.mxu0 0.0
    %1766 = vmatpush.msra.mxu0 0.0
    %1767 = vmatpush.msra.mxu0 0.0
    %1768 = vmatpush.msra.mxu0 0.0
    %1769 = vmatpush.msra.mxu0 0.0
    %1770 = vmatpush.msra.mxu0 0.0
    %1771 = vmatpush.msra.mxu0 0.0
    %1772 = vmatpush.msra.mxu0 0.0
    %v1773 = vand.u32 %v1517, 4294901760
    %1774 = vmatpush.msra.mxu0 %v1773
    %v1775 = vand.u32 %v1516, 4294901760
    %1776 = vmatpush.msra.mxu0 %v1775
    %v1777 = vand.u32 %v1515, 4294901760
    %1778 = vmatpush.msra.mxu0 %v1777
    %v1779 = vand.u32 %v1514, 4294901760
    %1780 = vmatpush.msra.mxu0 %v1779
    %v1781 = vand.u32 %v1519, 4294901760
    %v1782 = vsub.f32 %v1519, %v1781
    %v1783 = vand.u32 %v1782, 4294901760
    %1784 = vmatmul.f32.gmra.mxu0 %v1783
    %v1785 = vpop.f32.mrf.mxu0
    %v1786 = vadd.f32 %v1724, %v1785
    %v1787 = vand.u32 %v1522, 4294901760
    %v1788 = vsub.f32 %v1522, %v1787
    %v1789 = vand.u32 %v1788, 4294901760
    %1790 = vmatmul.f32.gmra.mxu0 %v1789
    %v1791 = vpop.f32.mrf.mxu0
    %v1792 = vadd.f32 %v1729, %v1791
    %v1793 = vand.u32 %v1525, 4294901760
    %v1794 = vsub.f32 %v1525, %v1793
    %v1795 = vand.u32 %v1794, 4294901760
    %1796 = vmatmul.f32.gmra.mxu0 %v1795
    %v1797 = vpop.f32.mrf.mxu0
    %v1798 = vadd.f32 %v1734, %v1797
    %v1799 = vand.u32 %v1528, 4294901760
    %v1800 = vsub.f32 %v1528, %v1799
    %v1801 = vand.u32 %v1800, 4294901760
    %1802 = vmatmul.f32.gmra.mxu0 %v1801
    %v1803 = vpop.f32.mrf.mxu0
    %v1804 = vadd.f32 %v1739, %v1803
    %v1805 = vand.u32 %v1531, 4294901760
    %v1806 = vsub.f32 %v1531, %v1805
    %v1807 = vand.u32 %v1806, 4294901760
    %1808 = vmatmul.f32.gmra.mxu0 %v1807
    %v1809 = vpop.f32.mrf.mxu0
    %v1810 = vadd.f32 %v1744, %v1809
    %v1811 = vand.u32 %v1534, 4294901760
    %v1812 = vsub.f32 %v1534, %v1811
    %v1813 = vand.u32 %v1812, 4294901760
    %1814 = vmatmul.f32.gmra.mxu0 %v1813
    %v1815 = vpop.f32.mrf.mxu0
    %v1816 = vadd.f32 %v1749, %v1815
    %v1817 = vand.u32 %v1537, 4294901760
    %v1818 = vsub.f32 %v1537, %v1817
    %v1819 = vand.u32 %v1818, 4294901760
    %1820 = vmatmul.f32.gmra.mxu0 %v1819
    %v1821 = vpop.f32.mrf.mxu0
    %v1822 = vadd.f32 %v1754, %v1821
    %v1823 = vand.u32 %v1540, 4294901760
    %v1824 = vsub.f32 %v1540, %v1823
    %v1825 = vand.u32 %v1824, 4294901760
    %1826 = vmatmul.f32.gmra.mxu0 %v1825
    %v1827 = vpop.f32.mrf.mxu0
    %v1828 = vadd.f32 %v1759, %v1827
    %1829 = vdwg.mxu0
    %1830 = vmatpush.msra.mxu0 0.0
    %1831 = vmatpush.msra.mxu0 0.0
    %1832 = vmatpush.msra.mxu0 0.0
    %1833 = vmatpush.msra.mxu0 0.0
    %1834 = vmatpush.msra.mxu0 0.0
    %1835 = vmatpush.msra.mxu0 0.0
    %1836 = vmatpush.msra.mxu0 0.0
    %1837 = vmatpush.msra.mxu0 0.0
    %1838 = vmatpush.msra.mxu0 0.0
    %1839 = vmatpush.msra.mxu0 0.0
    %1840 = vmatpush.msra.mxu0 0.0
    %1841 = vmatpush.msra.mxu0 0.0
    %v1842 = vand.u32 %v1517, 4294901760
    %v1843 = vsub.f32 %v1517, %v1842
    %v1844 = vand.u32 %v1843, 4294901760
    %1845 = vmatpush.msra.mxu0 %v1844
    %v1846 = vand.u32 %v1516, 4294901760
    %v1847 = vsub.f32 %v1516, %v1846
    %v1848 = vand.u32 %v1847, 4294901760
    %1849 = vmatpush.msra.mxu0 %v1848
    %v1850 = vand.u32 %v1515, 4294901760
    %v1851 = vsub.f32 %v1515, %v1850
    %v1852 = vand.u32 %v1851, 4294901760
    %1853 = vmatpush.msra.mxu0 %v1852
    %v1854 = vand.u32 %v1514, 4294901760
    %v1855 = vsub.f32 %v1514, %v1854
    %v1856 = vand.u32 %v1855, 4294901760
    %1857 = vmatpush.msra.mxu0 %v1856
    %v1858 = vand.u32 %v1519, 4294901760
    %1859 = vmatmul.f32.gmra.mxu0 %v1858
    %v1860 = vpop.f32.mrf.mxu0
    %v1861 = vadd.f32 %v1786, %v1860
    %v1862 = vand.u32 %v1522, 4294901760
    %1863 = vmatmul.f32.gmra.mxu0 %v1862
    %v1864 = vpop.f32.mrf.mxu0
    %v1865 = vadd.f32 %v1792, %v1864
    %v1866 = vand.u32 %v1525, 4294901760
    %1867 = vmatmul.f32.gmra.mxu0 %v1866
    %v1868 = vpop.f32.mrf.mxu0
    %v1869 = vadd.f32 %v1798, %v1868
    %v1870 = vand.u32 %v1528, 4294901760
    %1871 = vmatmul.f32.gmra.mxu0 %v1870
    %v1872 = vpop.f32.mrf.mxu0
    %v1873 = vadd.f32 %v1804, %v1872
    %v1874 = vand.u32 %v1531, 4294901760
    %1875 = vmatmul.f32.gmra.mxu0 %v1874
    %v1876 = vpop.f32.mrf.mxu0
    %v1877 = vadd.f32 %v1810, %v1876
    %v1878 = vand.u32 %v1534, 4294901760
    %1879 = vmatmul.f32.gmra.mxu0 %v1878
    %v1880 = vpop.f32.mrf.mxu0
    %v1881 = vadd.f32 %v1816, %v1880
    %v1882 = vand.u32 %v1537, 4294901760
    %1883 = vmatmul.f32.gmra.mxu0 %v1882
    %v1884 = vpop.f32.mrf.mxu0
    %v1885 = vadd.f32 %v1822, %v1884
    %v1886 = vand.u32 %v1540, 4294901760
    %1887 = vmatmul.f32.gmra.mxu0 %v1886
    %v1888 = vpop.f32.mrf.mxu0
    %v1889 = vadd.f32 %v1828, %v1888
    %1890 = vdwg.mxu0
    %1891 = vmatpush.msra.mxu0 0.0
    %1892 = vmatpush.msra.mxu0 0.0
    %1893 = vmatpush.msra.mxu0 0.0
    %1894 = vmatpush.msra.mxu0 0.0
    %1895 = vmatpush.msra.mxu0 0.0
    %1896 = vmatpush.msra.mxu0 0.0
    %1897 = vmatpush.msra.mxu0 0.0
    %1898 = vmatpush.msra.mxu0 0.0
    %1899 = vmatpush.msra.mxu0 0.0
    %1900 = vmatpush.msra.mxu0 0.0
    %1901 = vmatpush.msra.mxu0 0.0
    %1902 = vmatpush.msra.mxu0 0.0
    %v1903 = vand.u32 %v1517, 4294901760
    %1904 = vmatpush.msra.mxu0 %v1903
    %v1905 = vand.u32 %v1516, 4294901760
    %1906 = vmatpush.msra.mxu0 %v1905
    %v1907 = vand.u32 %v1515, 4294901760
    %1908 = vmatpush.msra.mxu0 %v1907
    %v1909 = vand.u32 %v1514, 4294901760
    %1910 = vmatpush.msra.mxu0 %v1909
    %v1911 = vand.u32 %v1519, 4294901760
    %1912 = vmatmul.f32.gmra.mxu0 %v1911
    %v1913 = vpop.f32.mrf.mxu0
    %v1914 = vadd.f32 %v1861, %v1913
    %v1915 = vand.u32 %v1522, 4294901760
    %1916 = vmatmul.f32.gmra.mxu0 %v1915
    %v1917 = vpop.f32.mrf.mxu0
    %v1918 = vadd.f32 %v1865, %v1917
    %v1919 = vand.u32 %v1525, 4294901760
    %1920 = vmatmul.f32.gmra.mxu0 %v1919
    %v1921 = vpop.f32.mrf.mxu0
    %v1922 = vadd.f32 %v1869, %v1921
    %v1923 = vand.u32 %v1528, 4294901760
    %1924 = vmatmul.f32.gmra.mxu0 %v1923
    %v1925 = vpop.f32.mrf.mxu0
    %v1926 = vadd.f32 %v1873, %v1925
    %v1927 = vand.u32 %v1531, 4294901760
    %1928 = vmatmul.f32.gmra.mxu0 %v1927
    %v1929 = vpop.f32.mrf.mxu0
    %v1930 = vadd.f32 %v1877, %v1929
    %v1931 = vand.u32 %v1534, 4294901760
    %1932 = vmatmul.f32.gmra.mxu0 %v1931
    %v1933 = vpop.f32.mrf.mxu0
    %v1934 = vadd.f32 %v1881, %v1933
    %v1935 = vand.u32 %v1537, 4294901760
    %1936 = vmatmul.f32.gmra.mxu0 %v1935
    %v1937 = vpop.f32.mrf.mxu0
    %v1938 = vadd.f32 %v1885, %v1937
    %v1939 = vand.u32 %v1540, 4294901760
    %1940 = vmatmul.f32.gmra.mxu0 %v1939
    %v1941 = vpop.f32.mrf.mxu0
    %v1942 = vadd.f32 %v1889, %v1941
    %1943 = vdwg.mxu0
    %v1945 = vsel %vm1346, %v1494, 0
    %v1948 = vsel %vm1346, %v1495, 0
    %v1951 = vsel %vm1346, %v1496, 0
    %v1954 = vsel %vm1346, %v1497, 0
    %v1957 = vsel %vm1346, %v1498, 0
    %v1960 = vsel %vm1346, %v1499, 0
    %v1963 = vsel %vm1346, %v1500, 0
    %v1966 = vsel %vm1346, %v1501, 0
    %1968 = vmatpush.msra.mxu0 0.0
    %1969 = vmatpush.msra.mxu0 0.0
    %1970 = vmatpush.msra.mxu0 0.0
    %1971 = vmatpush.msra.mxu0 0.0
    %1972 = vmatpush.msra.mxu0 0.0
    %1973 = vmatpush.msra.mxu0 0.0
    %1974 = vmatpush.msra.mxu0 0.0
    %1975 = vmatpush.msra.mxu0 0.0
    %1976 = vmatpush.msra.mxu0 0.0
    %1977 = vmatpush.msra.mxu0 0.0
    %1978 = vmatpush.msra.mxu0 0.0
    %1979 = vmatpush.msra.mxu0 0.0
    %v1980 = vand.u32 %v1505, 4294901760
    %1981 = vmatpush.msra.mxu0 %v1980
    %v1982 = vand.u32 %v1504, 4294901760
    %1983 = vmatpush.msra.mxu0 %v1982
    %v1984 = vand.u32 %v1503, 4294901760
    %1985 = vmatpush.msra.mxu0 %v1984
    %v1986 = vand.u32 %v1502, 4294901760
    %1987 = vmatpush.msra.mxu0 %v1986
    %v1988 = vand.u32 %v1945, 4294901760
    %v1989 = vsub.f32 %v1945, %v1988
    %v1990 = vand.u32 %v1989, 4294901760
    %v1991 = vsub.f32 %v1989, %v1990
    %v1992 = vand.u32 %v1991, 4294901760
    %1993 = vmatmul.f32.gmra.mxu0 %v1992
    %v1994 = vpop.f32.mrf.mxu0
    %v1995 = vadd.f32 %v1914, %v1994
    %v1996 = vand.u32 %v1948, 4294901760
    %v1997 = vsub.f32 %v1948, %v1996
    %v1998 = vand.u32 %v1997, 4294901760
    %v1999 = vsub.f32 %v1997, %v1998
    %v2000 = vand.u32 %v1999, 4294901760
    %2001 = vmatmul.f32.gmra.mxu0 %v2000
    %v2002 = vpop.f32.mrf.mxu0
    %v2003 = vadd.f32 %v1918, %v2002
    %v2004 = vand.u32 %v1951, 4294901760
    %v2005 = vsub.f32 %v1951, %v2004
    %v2006 = vand.u32 %v2005, 4294901760
    %v2007 = vsub.f32 %v2005, %v2006
    %v2008 = vand.u32 %v2007, 4294901760
    %2009 = vmatmul.f32.gmra.mxu0 %v2008
    %v2010 = vpop.f32.mrf.mxu0
    %v2011 = vadd.f32 %v1922, %v2010
    %v2012 = vand.u32 %v1954, 4294901760
    %v2013 = vsub.f32 %v1954, %v2012
    %v2014 = vand.u32 %v2013, 4294901760
    %v2015 = vsub.f32 %v2013, %v2014
    %v2016 = vand.u32 %v2015, 4294901760
    %2017 = vmatmul.f32.gmra.mxu0 %v2016
    %v2018 = vpop.f32.mrf.mxu0
    %v2019 = vadd.f32 %v1926, %v2018
    %v2020 = vand.u32 %v1957, 4294901760
    %v2021 = vsub.f32 %v1957, %v2020
    %v2022 = vand.u32 %v2021, 4294901760
    %v2023 = vsub.f32 %v2021, %v2022
    %v2024 = vand.u32 %v2023, 4294901760
    %2025 = vmatmul.f32.gmra.mxu0 %v2024
    %v2026 = vpop.f32.mrf.mxu0
    %v2027 = vadd.f32 %v1930, %v2026
    %v2028 = vand.u32 %v1960, 4294901760
    %v2029 = vsub.f32 %v1960, %v2028
    %v2030 = vand.u32 %v2029, 4294901760
    %v2031 = vsub.f32 %v2029, %v2030
    %v2032 = vand.u32 %v2031, 4294901760
    %2033 = vmatmul.f32.gmra.mxu0 %v2032
    %v2034 = vpop.f32.mrf.mxu0
    %v2035 = vadd.f32 %v1934, %v2034
    %v2036 = vand.u32 %v1963, 4294901760
    %v2037 = vsub.f32 %v1963, %v2036
    %v2038 = vand.u32 %v2037, 4294901760
    %v2039 = vsub.f32 %v2037, %v2038
    %v2040 = vand.u32 %v2039, 4294901760
    %2041 = vmatmul.f32.gmra.mxu0 %v2040
    %v2042 = vpop.f32.mrf.mxu0
    %v2043 = vadd.f32 %v1938, %v2042
    %v2044 = vand.u32 %v1966, 4294901760
    %v2045 = vsub.f32 %v1966, %v2044
    %v2046 = vand.u32 %v2045, 4294901760
    %v2047 = vsub.f32 %v2045, %v2046
    %v2048 = vand.u32 %v2047, 4294901760
    %2049 = vmatmul.f32.gmra.mxu0 %v2048
    %v2050 = vpop.f32.mrf.mxu0
    %v2051 = vadd.f32 %v1942, %v2050
    %2052 = vdwg.mxu0
    %2053 = vmatpush.msra.mxu0 0.0
    %2054 = vmatpush.msra.mxu0 0.0
    %2055 = vmatpush.msra.mxu0 0.0
    %2056 = vmatpush.msra.mxu0 0.0
    %2057 = vmatpush.msra.mxu0 0.0
    %2058 = vmatpush.msra.mxu0 0.0
    %2059 = vmatpush.msra.mxu0 0.0
    %2060 = vmatpush.msra.mxu0 0.0
    %2061 = vmatpush.msra.mxu0 0.0
    %2062 = vmatpush.msra.mxu0 0.0
    %2063 = vmatpush.msra.mxu0 0.0
    %2064 = vmatpush.msra.mxu0 0.0
    %v2065 = vand.u32 %v1505, 4294901760
    %v2066 = vsub.f32 %v1505, %v2065
    %v2067 = vand.u32 %v2066, 4294901760
    %v2068 = vsub.f32 %v2066, %v2067
    %v2069 = vand.u32 %v2068, 4294901760
    %2070 = vmatpush.msra.mxu0 %v2069
    %v2071 = vand.u32 %v1504, 4294901760
    %v2072 = vsub.f32 %v1504, %v2071
    %v2073 = vand.u32 %v2072, 4294901760
    %v2074 = vsub.f32 %v2072, %v2073
    %v2075 = vand.u32 %v2074, 4294901760
    %2076 = vmatpush.msra.mxu0 %v2075
    %v2077 = vand.u32 %v1503, 4294901760
    %v2078 = vsub.f32 %v1503, %v2077
    %v2079 = vand.u32 %v2078, 4294901760
    %v2080 = vsub.f32 %v2078, %v2079
    %v2081 = vand.u32 %v2080, 4294901760
    %2082 = vmatpush.msra.mxu0 %v2081
    %v2083 = vand.u32 %v1502, 4294901760
    %v2084 = vsub.f32 %v1502, %v2083
    %v2085 = vand.u32 %v2084, 4294901760
    %v2086 = vsub.f32 %v2084, %v2085
    %v2087 = vand.u32 %v2086, 4294901760
    %2088 = vmatpush.msra.mxu0 %v2087
    %v2089 = vand.u32 %v1945, 4294901760
    %2090 = vmatmul.f32.gmra.mxu0 %v2089
    %v2091 = vpop.f32.mrf.mxu0
    %v2092 = vadd.f32 %v1995, %v2091
    %v2093 = vand.u32 %v1948, 4294901760
    %2094 = vmatmul.f32.gmra.mxu0 %v2093
    %v2095 = vpop.f32.mrf.mxu0
    %v2096 = vadd.f32 %v2003, %v2095
    %v2097 = vand.u32 %v1951, 4294901760
    %2098 = vmatmul.f32.gmra.mxu0 %v2097
    %v2099 = vpop.f32.mrf.mxu0
    %v2100 = vadd.f32 %v2011, %v2099
    %v2101 = vand.u32 %v1954, 4294901760
    %2102 = vmatmul.f32.gmra.mxu0 %v2101
    %v2103 = vpop.f32.mrf.mxu0
    %v2104 = vadd.f32 %v2019, %v2103
    %v2105 = vand.u32 %v1957, 4294901760
    %2106 = vmatmul.f32.gmra.mxu0 %v2105
    %v2107 = vpop.f32.mrf.mxu0
    %v2108 = vadd.f32 %v2027, %v2107
    %v2109 = vand.u32 %v1960, 4294901760
    %2110 = vmatmul.f32.gmra.mxu0 %v2109
    %v2111 = vpop.f32.mrf.mxu0
    %v2112 = vadd.f32 %v2035, %v2111
    %v2113 = vand.u32 %v1963, 4294901760
    %2114 = vmatmul.f32.gmra.mxu0 %v2113
    %v2115 = vpop.f32.mrf.mxu0
    %v2116 = vadd.f32 %v2043, %v2115
    %v2117 = vand.u32 %v1966, 4294901760
    %2118 = vmatmul.f32.gmra.mxu0 %v2117
    %v2119 = vpop.f32.mrf.mxu0
    %v2120 = vadd.f32 %v2051, %v2119
    %2121 = vdwg.mxu0
    %2122 = vmatpush.msra.mxu0 0.0
    %2123 = vmatpush.msra.mxu0 0.0
    %2124 = vmatpush.msra.mxu0 0.0
    %2125 = vmatpush.msra.mxu0 0.0
    %2126 = vmatpush.msra.mxu0 0.0
    %2127 = vmatpush.msra.mxu0 0.0
    %2128 = vmatpush.msra.mxu0 0.0
    %2129 = vmatpush.msra.mxu0 0.0
    %2130 = vmatpush.msra.mxu0 0.0
    %2131 = vmatpush.msra.mxu0 0.0
    %2132 = vmatpush.msra.mxu0 0.0
    %2133 = vmatpush.msra.mxu0 0.0
    %v2134 = vand.u32 %v1505, 4294901760
    %v2135 = vsub.f32 %v1505, %v2134
    %2136 = vmatpush.msra.mxu0 %v2135
    %v2137 = vand.u32 %v1504, 4294901760
    %v2138 = vsub.f32 %v1504, %v2137
    %2139 = vmatpush.msra.mxu0 %v2138
    %v2140 = vand.u32 %v1503, 4294901760
    %v2141 = vsub.f32 %v1503, %v2140
    %2142 = vmatpush.msra.mxu0 %v2141
    %v2143 = vand.u32 %v1502, 4294901760
    %v2144 = vsub.f32 %v1502, %v2143
    %2145 = vmatpush.msra.mxu0 %v2144
    %v2146 = vand.u32 %v1945, 4294901760
    %v2147 = vsub.f32 %v1945, %v2146
    %2148 = vmatmul.f32.gmra.mxu0 %v2147
    %v2149 = vpop.f32.mrf.mxu0
    %v2150 = vadd.f32 %v2092, %v2149
    %v2151 = vand.u32 %v1948, 4294901760
    %v2152 = vsub.f32 %v1948, %v2151
    %2153 = vmatmul.f32.gmra.mxu0 %v2152
    %v2154 = vpop.f32.mrf.mxu0
    %v2155 = vadd.f32 %v2096, %v2154
    %v2156 = vand.u32 %v1951, 4294901760
    %v2157 = vsub.f32 %v1951, %v2156
    %2158 = vmatmul.f32.gmra.mxu0 %v2157
    %v2159 = vpop.f32.mrf.mxu0
    %v2160 = vadd.f32 %v2100, %v2159
    %v2161 = vand.u32 %v1954, 4294901760
    %v2162 = vsub.f32 %v1954, %v2161
    %2163 = vmatmul.f32.gmra.mxu0 %v2162
    %v2164 = vpop.f32.mrf.mxu0
    %v2165 = vadd.f32 %v2104, %v2164
    %v2166 = vand.u32 %v1957, 4294901760
    %v2167 = vsub.f32 %v1957, %v2166
    %2168 = vmatmul.f32.gmra.mxu0 %v2167
    %v2169 = vpop.f32.mrf.mxu0
    %v2170 = vadd.f32 %v2108, %v2169
    %v2171 = vand.u32 %v1960, 4294901760
    %v2172 = vsub.f32 %v1960, %v2171
    %2173 = vmatmul.f32.gmra.mxu0 %v2172
    %v2174 = vpop.f32.mrf.mxu0
    %v2175 = vadd.f32 %v2112, %v2174
    %v2176 = vand.u32 %v1963, 4294901760
    %v2177 = vsub.f32 %v1963, %v2176
    %2178 = vmatmul.f32.gmra.mxu0 %v2177
    %v2179 = vpop.f32.mrf.mxu0
    %v2180 = vadd.f32 %v2116, %v2179
    %v2181 = vand.u32 %v1966, 4294901760
    %v2182 = vsub.f32 %v1966, %v2181
    %2183 = vmatmul.f32.gmra.mxu0 %v2182
    %v2184 = vpop.f32.mrf.mxu0
    %v2185 = vadd.f32 %v2120, %v2184
    %2186 = vdwg.mxu0
    %2187 = vmatpush.msra.mxu0 0.0
    %2188 = vmatpush.msra.mxu0 0.0
    %2189 = vmatpush.msra.mxu0 0.0
    %2190 = vmatpush.msra.mxu0 0.0
    %2191 = vmatpush.msra.mxu0 0.0
    %2192 = vmatpush.msra.mxu0 0.0
    %2193 = vmatpush.msra.mxu0 0.0
    %2194 = vmatpush.msra.mxu0 0.0
    %2195 = vmatpush.msra.mxu0 0.0
    %2196 = vmatpush.msra.mxu0 0.0
    %2197 = vmatpush.msra.mxu0 0.0
    %2198 = vmatpush.msra.mxu0 0.0
    %v2199 = vand.u32 %v1505, 4294901760
    %2200 = vmatpush.msra.mxu0 %v2199
    %v2201 = vand.u32 %v1504, 4294901760
    %2202 = vmatpush.msra.mxu0 %v2201
    %v2203 = vand.u32 %v1503, 4294901760
    %2204 = vmatpush.msra.mxu0 %v2203
    %v2205 = vand.u32 %v1502, 4294901760
    %2206 = vmatpush.msra.mxu0 %v2205
    %v2207 = vand.u32 %v1945, 4294901760
    %v2208 = vsub.f32 %v1945, %v2207
    %v2209 = vand.u32 %v2208, 4294901760
    %2210 = vmatmul.f32.gmra.mxu0 %v2209
    %v2211 = vpop.f32.mrf.mxu0
    %v2212 = vadd.f32 %v2150, %v2211
    %v2213 = vand.u32 %v1948, 4294901760
    %v2214 = vsub.f32 %v1948, %v2213
    %v2215 = vand.u32 %v2214, 4294901760
    %2216 = vmatmul.f32.gmra.mxu0 %v2215
    %v2217 = vpop.f32.mrf.mxu0
    %v2218 = vadd.f32 %v2155, %v2217
    %v2219 = vand.u32 %v1951, 4294901760
    %v2220 = vsub.f32 %v1951, %v2219
    %v2221 = vand.u32 %v2220, 4294901760
    %2222 = vmatmul.f32.gmra.mxu0 %v2221
    %v2223 = vpop.f32.mrf.mxu0
    %v2224 = vadd.f32 %v2160, %v2223
    %v2225 = vand.u32 %v1954, 4294901760
    %v2226 = vsub.f32 %v1954, %v2225
    %v2227 = vand.u32 %v2226, 4294901760
    %2228 = vmatmul.f32.gmra.mxu0 %v2227
    %v2229 = vpop.f32.mrf.mxu0
    %v2230 = vadd.f32 %v2165, %v2229
    %v2231 = vand.u32 %v1957, 4294901760
    %v2232 = vsub.f32 %v1957, %v2231
    %v2233 = vand.u32 %v2232, 4294901760
    %2234 = vmatmul.f32.gmra.mxu0 %v2233
    %v2235 = vpop.f32.mrf.mxu0
    %v2236 = vadd.f32 %v2170, %v2235
    %v2237 = vand.u32 %v1960, 4294901760
    %v2238 = vsub.f32 %v1960, %v2237
    %v2239 = vand.u32 %v2238, 4294901760
    %2240 = vmatmul.f32.gmra.mxu0 %v2239
    %v2241 = vpop.f32.mrf.mxu0
    %v2242 = vadd.f32 %v2175, %v2241
    %v2243 = vand.u32 %v1963, 4294901760
    %v2244 = vsub.f32 %v1963, %v2243
    %v2245 = vand.u32 %v2244, 4294901760
    %2246 = vmatmul.f32.gmra.mxu0 %v2245
    %v2247 = vpop.f32.mrf.mxu0
    %v2248 = vadd.f32 %v2180, %v2247
    %v2249 = vand.u32 %v1966, 4294901760
    %v2250 = vsub.f32 %v1966, %v2249
    %v2251 = vand.u32 %v2250, 4294901760
    %2252 = vmatmul.f32.gmra.mxu0 %v2251
    %v2253 = vpop.f32.mrf.mxu0
    %v2254 = vadd.f32 %v2185, %v2253
    %2255 = vdwg.mxu0
    %2256 = vmatpush.msra.mxu0 0.0
    %2257 = vmatpush.msra.mxu0 0.0
    %2258 = vmatpush.msra.mxu0 0.0
    %2259 = vmatpush.msra.mxu0 0.0
    %2260 = vmatpush.msra.mxu0 0.0
    %2261 = vmatpush.msra.mxu0 0.0
    %2262 = vmatpush.msra.mxu0 0.0
    %2263 = vmatpush.msra.mxu0 0.0
    %2264 = vmatpush.msra.mxu0 0.0
    %2265 = vmatpush.msra.mxu0 0.0
    %2266 = vmatpush.msra.mxu0 0.0
    %2267 = vmatpush.msra.mxu0 0.0
    %v2268 = vand.u32 %v1505, 4294901760
    %v2269 = vsub.f32 %v1505, %v2268
    %v2270 = vand.u32 %v2269, 4294901760
    %2271 = vmatpush.msra.mxu0 %v2270
    %v2272 = vand.u32 %v1504, 4294901760
    %v2273 = vsub.f32 %v1504, %v2272
    %v2274 = vand.u32 %v2273, 4294901760
    %2275 = vmatpush.msra.mxu0 %v2274
    %v2276 = vand.u32 %v1503, 4294901760
    %v2277 = vsub.f32 %v1503, %v2276
    %v2278 = vand.u32 %v2277, 4294901760
    %2279 = vmatpush.msra.mxu0 %v2278
    %v2280 = vand.u32 %v1502, 4294901760
    %v2281 = vsub.f32 %v1502, %v2280
    %v2282 = vand.u32 %v2281, 4294901760
    %2283 = vmatpush.msra.mxu0 %v2282
    %v2284 = vand.u32 %v1945, 4294901760
    %2285 = vmatmul.f32.gmra.mxu0 %v2284
    %v2286 = vpop.f32.mrf.mxu0
    %v2287 = vadd.f32 %v2212, %v2286
    %v2288 = vand.u32 %v1948, 4294901760
    %2289 = vmatmul.f32.gmra.mxu0 %v2288
    %v2290 = vpop.f32.mrf.mxu0
    %v2291 = vadd.f32 %v2218, %v2290
    %v2292 = vand.u32 %v1951, 4294901760
    %2293 = vmatmul.f32.gmra.mxu0 %v2292
    %v2294 = vpop.f32.mrf.mxu0
    %v2295 = vadd.f32 %v2224, %v2294
    %v2296 = vand.u32 %v1954, 4294901760
    %2297 = vmatmul.f32.gmra.mxu0 %v2296
    %v2298 = vpop.f32.mrf.mxu0
    %v2299 = vadd.f32 %v2230, %v2298
    %v2300 = vand.u32 %v1957, 4294901760
    %2301 = vmatmul.f32.gmra.mxu0 %v2300
    %v2302 = vpop.f32.mrf.mxu0
    %v2303 = vadd.f32 %v2236, %v2302
    %v2304 = vand.u32 %v1960, 4294901760
    %2305 = vmatmul.f32.gmra.mxu0 %v2304
    %v2306 = vpop.f32.mrf.mxu0
    %v2307 = vadd.f32 %v2242, %v2306
    %v2308 = vand.u32 %v1963, 4294901760
    %2309 = vmatmul.f32.gmra.mxu0 %v2308
    %v2310 = vpop.f32.mrf.mxu0
    %v2311 = vadd.f32 %v2248, %v2310
    %v2312 = vand.u32 %v1966, 4294901760
    %2313 = vmatmul.f32.gmra.mxu0 %v2312
    %v2314 = vpop.f32.mrf.mxu0
    %v2315 = vadd.f32 %v2254, %v2314
    %2316 = vdwg.mxu0
    %2317 = vmatpush.msra.mxu0 0.0
    %2318 = vmatpush.msra.mxu0 0.0
    %2319 = vmatpush.msra.mxu0 0.0
    %2320 = vmatpush.msra.mxu0 0.0
    %2321 = vmatpush.msra.mxu0 0.0
    %2322 = vmatpush.msra.mxu0 0.0
    %2323 = vmatpush.msra.mxu0 0.0
    %2324 = vmatpush.msra.mxu0 0.0
    %2325 = vmatpush.msra.mxu0 0.0
    %2326 = vmatpush.msra.mxu0 0.0
    %2327 = vmatpush.msra.mxu0 0.0
    %2328 = vmatpush.msra.mxu0 0.0
    %v2329 = vand.u32 %v1505, 4294901760
    %2330 = vmatpush.msra.mxu0 %v2329
    %v2331 = vand.u32 %v1504, 4294901760
    %2332 = vmatpush.msra.mxu0 %v2331
    %v2333 = vand.u32 %v1503, 4294901760
    %2334 = vmatpush.msra.mxu0 %v2333
    %v2335 = vand.u32 %v1502, 4294901760
    %2336 = vmatpush.msra.mxu0 %v2335
    %v2337 = vand.u32 %v1945, 4294901760
    %2338 = vmatmul.f32.gmra.mxu0 %v2337
    %v2339 = vpop.f32.mrf.mxu0
    %v2340 = vadd.f32 %v2287, %v2339
    %v2341 = vand.u32 %v1948, 4294901760
    %2342 = vmatmul.f32.gmra.mxu0 %v2341
    %v2343 = vpop.f32.mrf.mxu0
    %v2344 = vadd.f32 %v2291, %v2343
    %v2345 = vand.u32 %v1951, 4294901760
    %2346 = vmatmul.f32.gmra.mxu0 %v2345
    %v2347 = vpop.f32.mrf.mxu0
    %v2348 = vadd.f32 %v2295, %v2347
    %v2349 = vand.u32 %v1954, 4294901760
    %2350 = vmatmul.f32.gmra.mxu0 %v2349
    %v2351 = vpop.f32.mrf.mxu0
    %v2352 = vadd.f32 %v2299, %v2351
    %v2353 = vand.u32 %v1957, 4294901760
    %2354 = vmatmul.f32.gmra.mxu0 %v2353
    %v2355 = vpop.f32.mrf.mxu0
    %v2356 = vadd.f32 %v2303, %v2355
    %v2357 = vand.u32 %v1960, 4294901760
    %2358 = vmatmul.f32.gmra.mxu0 %v2357
    %v2359 = vpop.f32.mrf.mxu0
    %v2360 = vadd.f32 %v2307, %v2359
    %v2361 = vand.u32 %v1963, 4294901760
    %2362 = vmatmul.f32.gmra.mxu0 %v2361
    %v2363 = vpop.f32.mrf.mxu0
    %v2364 = vadd.f32 %v2311, %v2363
    %v2365 = vand.u32 %v1966, 4294901760
    %2366 = vmatmul.f32.gmra.mxu0 %v2365
    %v2367 = vpop.f32.mrf.mxu0
    %v2368 = vadd.f32 %v2315, %v2367
    %2369 = vdwg.mxu0
    %v2370 = vld [vmem:[#allocation2 + $0x8] sm:$0xff]
    %v2371 = vld [vmem:[#allocation2 + $0x10] sm:$0xff]
    %v2372 = vld [vmem:[#allocation2 + $0x18] sm:$0xff]
    %v2373 = vld [vmem:[#allocation2 + $0x20] sm:$0xff]
    %v2374 = vld [vmem:[#allocation2 + $0x38] sm:$0xff]
    %v2375 = vld [vmem:[#allocation2 + $0x40] sm:$0xff]
    %v2376 = vld [vmem:[#allocation2 + $0x48] sm:$0xff]
    %v2377 = vld [vmem:[#allocation2 + $0x50] sm:$0xff]
    %v2378 = vld [vmem:[%s3 + $0x40] sm:$0xff]
    %v2379 = vld [vmem:[%s3 + $0x48] sm:$0xff]
    %v2380 = vld [vmem:[%s3 + $0x50] sm:$0xff]
    %v2381 = vld [vmem:[%s3 + $0x58] sm:$0xff]
    %v2383 = vsel %vm1346, %v2370, 0
    %v2386 = vsel %vm1346, %v2371, 0
    %v2389 = vsel %vm1346, %v2372, 0
    %v2392 = vsel %vm1346, %v2373, 0
    %v2395 = vsel %vm1346, %v2374, 0
    %v2398 = vsel %vm1346, %v2375, 0
    %v2401 = vsel %vm1346, %v2376, 0
    %v2404 = vsel %vm1346, %v2377, 0
    %2406 = vmatpush.msra.mxu0 0.0
    %2407 = vmatpush.msra.mxu0 0.0
    %2408 = vmatpush.msra.mxu0 0.0
    %2409 = vmatpush.msra.mxu0 0.0
    %2410 = vmatpush.msra.mxu0 0.0
    %2411 = vmatpush.msra.mxu0 0.0
    %2412 = vmatpush.msra.mxu0 0.0
    %2413 = vmatpush.msra.mxu0 0.0
    %2414 = vmatpush.msra.mxu0 0.0
    %2415 = vmatpush.msra.mxu0 0.0
    %2416 = vmatpush.msra.mxu0 0.0
    %2417 = vmatpush.msra.mxu0 0.0
    %v2418 = vand.u32 %v2381, 4294901760
    %2419 = vmatpush.msra.mxu0 %v2418
    %v2420 = vand.u32 %v2380, 4294901760
    %2421 = vmatpush.msra.mxu0 %v2420
    %v2422 = vand.u32 %v2379, 4294901760
    %2423 = vmatpush.msra.mxu0 %v2422
    %v2424 = vand.u32 %v2378, 4294901760
    %2425 = vmatpush.msra.mxu0 %v2424
    %v2426 = vand.u32 %v2383, 4294901760
    %v2427 = vsub.f32 %v2383, %v2426
    %v2428 = vand.u32 %v2427, 4294901760
    %v2429 = vsub.f32 %v2427, %v2428
    %v2430 = vand.u32 %v2429, 4294901760
    %2431 = vmatmul.f32.gmra.mxu0 %v2430
    %v2432 = vpop.f32.mrf.mxu0
    %v2433 = vadd.f32 0.0, %v2432
    %v2434 = vand.u32 %v2386, 4294901760
    %v2435 = vsub.f32 %v2386, %v2434
    %v2436 = vand.u32 %v2435, 4294901760
    %v2437 = vsub.f32 %v2435, %v2436
    %v2438 = vand.u32 %v2437, 4294901760
    %2439 = vmatmul.f32.gmra.mxu0 %v2438
    %v2440 = vpop.f32.mrf.mxu0
    %v2441 = vadd.f32 0.0, %v2440
    %v2442 = vand.u32 %v2389, 4294901760
    %v2443 = vsub.f32 %v2389, %v2442
    %v2444 = vand.u32 %v2443, 4294901760
    %v2445 = vsub.f32 %v2443, %v2444
    %v2446 = vand.u32 %v2445, 4294901760
    %2447 = vmatmul.f32.gmra.mxu0 %v2446
    %v2448 = vpop.f32.mrf.mxu0
    %v2449 = vadd.f32 0.0, %v2448
    %v2450 = vand.u32 %v2392, 4294901760
    %v2451 = vsub.f32 %v2392, %v2450
    %v2452 = vand.u32 %v2451, 4294901760
    %v2453 = vsub.f32 %v2451, %v2452
    %v2454 = vand.u32 %v2453, 4294901760
    %2455 = vmatmul.f32.gmra.mxu0 %v2454
    %v2456 = vpop.f32.mrf.mxu0
    %v2457 = vadd.f32 0.0, %v2456
    %v2458 = vand.u32 %v2395, 4294901760
    %v2459 = vsub.f32 %v2395, %v2458
    %v2460 = vand.u32 %v2459, 4294901760
    %v2461 = vsub.f32 %v2459, %v2460
    %v2462 = vand.u32 %v2461, 4294901760
    %2463 = vmatmul.f32.gmra.mxu0 %v2462
    %v2464 = vpop.f32.mrf.mxu0
    %v2465 = vadd.f32 0.0, %v2464
    %v2466 = vand.u32 %v2398, 4294901760
    %v2467 = vsub.f32 %v2398, %v2466
    %v2468 = vand.u32 %v2467, 4294901760
    %v2469 = vsub.f32 %v2467, %v2468
    %v2470 = vand.u32 %v2469, 4294901760
    %2471 = vmatmul.f32.gmra.mxu0 %v2470
    %v2472 = vpop.f32.mrf.mxu0
    %v2473 = vadd.f32 0.0, %v2472
    %v2474 = vand.u32 %v2401, 4294901760
    %v2475 = vsub.f32 %v2401, %v2474
    %v2476 = vand.u32 %v2475, 4294901760
    %v2477 = vsub.f32 %v2475, %v2476
    %v2478 = vand.u32 %v2477, 4294901760
    %2479 = vmatmul.f32.gmra.mxu0 %v2478
    %v2480 = vpop.f32.mrf.mxu0
    %v2481 = vadd.f32 0.0, %v2480
    %v2482 = vand.u32 %v2404, 4294901760
    %v2483 = vsub.f32 %v2404, %v2482
    %v2484 = vand.u32 %v2483, 4294901760
    %v2485 = vsub.f32 %v2483, %v2484
    %v2486 = vand.u32 %v2485, 4294901760
    %2487 = vmatmul.f32.gmra.mxu0 %v2486
    %v2488 = vpop.f32.mrf.mxu0
    %v2489 = vadd.f32 0.0, %v2488
    %2490 = vdwg.mxu0
    %2491 = vmatpush.msra.mxu0 0.0
    %2492 = vmatpush.msra.mxu0 0.0
    %2493 = vmatpush.msra.mxu0 0.0
    %2494 = vmatpush.msra.mxu0 0.0
    %2495 = vmatpush.msra.mxu0 0.0
    %2496 = vmatpush.msra.mxu0 0.0
    %2497 = vmatpush.msra.mxu0 0.0
    %2498 = vmatpush.msra.mxu0 0.0
    %2499 = vmatpush.msra.mxu0 0.0
    %2500 = vmatpush.msra.mxu0 0.0
    %2501 = vmatpush.msra.mxu0 0.0
    %2502 = vmatpush.msra.mxu0 0.0
    %v2503 = vand.u32 %v2381, 4294901760
    %v2504 = vsub.f32 %v2381, %v2503
    %v2505 = vand.u32 %v2504, 4294901760
    %v2506 = vsub.f32 %v2504, %v2505
    %v2507 = vand.u32 %v2506, 4294901760
    %2508 = vmatpush.msra.mxu0 %v2507
    %v2509 = vand.u32 %v2380, 4294901760
    %v2510 = vsub.f32 %v2380, %v2509
    %v2511 = vand.u32 %v2510, 4294901760
    %v2512 = vsub.f32 %v2510, %v2511
    %v2513 = vand.u32 %v2512, 4294901760
    %2514 = vmatpush.msra.mxu0 %v2513
    %v2515 = vand.u32 %v2379, 4294901760
    %v2516 = vsub.f32 %v2379, %v2515
    %v2517 = vand.u32 %v2516, 4294901760
    %v2518 = vsub.f32 %v2516, %v2517
    %v2519 = vand.u32 %v2518, 4294901760
    %2520 = vmatpush.msra.mxu0 %v2519
    %v2521 = vand.u32 %v2378, 4294901760
    %v2522 = vsub.f32 %v2378, %v2521
    %v2523 = vand.u32 %v2522, 4294901760
    %v2524 = vsub.f32 %v2522, %v2523
    %v2525 = vand.u32 %v2524, 4294901760
    %2526 = vmatpush.msra.mxu0 %v2525
    %v2527 = vand.u32 %v2383, 4294901760
    %2528 = vmatmul.f32.gmra.mxu0 %v2527
    %v2529 = vpop.f32.mrf.mxu0
    %v2530 = vadd.f32 %v2433, %v2529
    %v2531 = vand.u32 %v2386, 4294901760
    %2532 = vmatmul.f32.gmra.mxu0 %v2531
    %v2533 = vpop.f32.mrf.mxu0
    %v2534 = vadd.f32 %v2441, %v2533
    %v2535 = vand.u32 %v2389, 4294901760
    %2536 = vmatmul.f32.gmra.mxu0 %v2535
    %v2537 = vpop.f32.mrf.mxu0
    %v2538 = vadd.f32 %v2449, %v2537
    %v2539 = vand.u32 %v2392, 4294901760
    %2540 = vmatmul.f32.gmra.mxu0 %v2539
    %v2541 = vpop.f32.mrf.mxu0
    %v2542 = vadd.f32 %v2457, %v2541
    %v2543 = vand.u32 %v2395, 4294901760
    %2544 = vmatmul.f32.gmra.mxu0 %v2543
    %v2545 = vpop.f32.mrf.mxu0
    %v2546 = vadd.f32 %v2465, %v2545
    %v2547 = vand.u32 %v2398, 4294901760
    %2548 = vmatmul.f32.gmra.mxu0 %v2547
    %v2549 = vpop.f32.mrf.mxu0
    %v2550 = vadd.f32 %v2473, %v2549
    %v2551 = vand.u32 %v2401, 4294901760
    %2552 = vmatmul.f32.gmra.mxu0 %v2551
    %v2553 = vpop.f32.mrf.mxu0
    %v2554 = vadd.f32 %v2481, %v2553
    %v2555 = vand.u32 %v2404, 4294901760
    %2556 = vmatmul.f32.gmra.mxu0 %v2555
    %v2557 = vpop.f32.mrf.mxu0
    %v2558 = vadd.f32 %v2489, %v2557
    %2559 = vdwg.mxu0
    %2560 = vmatpush.msra.mxu0 0.0
    %2561 = vmatpush.msra.mxu0 0.0
    %2562 = vmatpush.msra.mxu0 0.0
    %2563 = vmatpush.msra.mxu0 0.0
    %2564 = vmatpush.msra.mxu0 0.0
    %2565 = vmatpush.msra.mxu0 0.0
    %2566 = vmatpush.msra.mxu0 0.0
    %2567 = vmatpush.msra.mxu0 0.0
    %2568 = vmatpush.msra.mxu0 0.0
    %2569 = vmatpush.msra.mxu0 0.0
    %2570 = vmatpush.msra.mxu0 0.0
    %2571 = vmatpush.msra.mxu0 0.0
    %v2572 = vand.u32 %v2381, 4294901760
    %v2573 = vsub.f32 %v2381, %v2572
    %2574 = vmatpush.msra.mxu0 %v2573
    %v2575 = vand.u32 %v2380, 4294901760
    %v2576 = vsub.f32 %v2380, %v2575
    %2577 = vmatpush.msra.mxu0 %v2576
    %v2578 = vand.u32 %v2379, 4294901760
    %v2579 = vsub.f32 %v2379, %v2578
    %2580 = vmatpush.msra.mxu0 %v2579
    %v2581 = vand.u32 %v2378, 4294901760
    %v2582 = vsub.f32 %v2378, %v2581
    %2583 = vmatpush.msra.mxu0 %v2582
    %v2584 = vand.u32 %v2383, 4294901760
    %v2585 = vsub.f32 %v2383, %v2584
    %2586 = vmatmul.f32.gmra.mxu0 %v2585
    %v2587 = vpop.f32.mrf.mxu0
    %v2588 = vadd.f32 %v2530, %v2587
    %v2589 = vand.u32 %v2386, 4294901760
    %v2590 = vsub.f32 %v2386, %v2589
    %2591 = vmatmul.f32.gmra.mxu0 %v2590
    %v2592 = vpop.f32.mrf.mxu0
    %v2593 = vadd.f32 %v2534, %v2592
    %v2594 = vand.u32 %v2389, 4294901760
    %v2595 = vsub.f32 %v2389, %v2594
    %2596 = vmatmul.f32.gmra.mxu0 %v2595
    %v2597 = vpop.f32.mrf.mxu0
    %v2598 = vadd.f32 %v2538, %v2597
    %v2599 = vand.u32 %v2392, 4294901760
    %v2600 = vsub.f32 %v2392, %v2599
    %2601 = vmatmul.f32.gmra.mxu0 %v2600
    %v2602 = vpop.f32.mrf.mxu0
    %v2603 = vadd.f32 %v2542, %v2602
    %v2604 = vand.u32 %v2395, 4294901760
    %v2605 = vsub.f32 %v2395, %v2604
    %2606 = vmatmul.f32.gmra.mxu0 %v2605
    %v2607 = vpop.f32.mrf.mxu0
    %v2608 = vadd.f32 %v2546, %v2607
    %v2609 = vand.u32 %v2398, 4294901760
    %v2610 = vsub.f32 %v2398, %v2609
    %2611 = vmatmul.f32.gmra.mxu0 %v2610
    %v2612 = vpop.f32.mrf.mxu0
    %v2613 = vadd.f32 %v2550, %v2612
    %v2614 = vand.u32 %v2401, 4294901760
    %v2615 = vsub.f32 %v2401, %v2614
    %2616 = vmatmul.f32.gmra.mxu0 %v2615
    %v2617 = vpop.f32.mrf.mxu0
    %v2618 = vadd.f32 %v2554, %v2617
    %v2619 = vand.u32 %v2404, 4294901760
    %v2620 = vsub.f32 %v2404, %v2619
    %2621 = vmatmul.f32.gmra.mxu0 %v2620
    %v2622 = vpop.f32.mrf.mxu0
    %v2623 = vadd.f32 %v2558, %v2622
    %2624 = vdwg.mxu0
    %2625 = vmatpush.msra.mxu0 0.0
    %2626 = vmatpush.msra.mxu0 0.0
    %2627 = vmatpush.msra.mxu0 0.0
    %2628 = vmatpush.msra.mxu0 0.0
    %2629 = vmatpush.msra.mxu0 0.0
    %2630 = vmatpush.msra.mxu0 0.0
    %2631 = vmatpush.msra.mxu0 0.0
    %2632 = vmatpush.msra.mxu0 0.0
    %2633 = vmatpush.msra.mxu0 0.0
    %2634 = vmatpush.msra.mxu0 0.0
    %2635 = vmatpush.msra.mxu0 0.0
    %2636 = vmatpush.msra.mxu0 0.0
    %v2637 = vand.u32 %v2381, 4294901760
    %2638 = vmatpush.msra.mxu0 %v2637
    %v2639 = vand.u32 %v2380, 4294901760
    %2640 = vmatpush.msra.mxu0 %v2639
    %v2641 = vand.u32 %v2379, 4294901760
    %2642 = vmatpush.msra.mxu0 %v2641
    %v2643 = vand.u32 %v2378, 4294901760
    %2644 = vmatpush.msra.mxu0 %v2643
    %v2645 = vand.u32 %v2383, 4294901760
    %v2646 = vsub.f32 %v2383, %v2645
    %v2647 = vand.u32 %v2646, 4294901760
    %2648 = vmatmul.f32.gmra.mxu0 %v2647
    %v2649 = vpop.f32.mrf.mxu0
    %v2650 = vadd.f32 %v2588, %v2649
    %v2651 = vand.u32 %v2386, 4294901760
    %v2652 = vsub.f32 %v2386, %v2651
    %v2653 = vand.u32 %v2652, 4294901760
    %2654 = vmatmul.f32.gmra.mxu0 %v2653
    %v2655 = vpop.f32.mrf.mxu0
    %v2656 = vadd.f32 %v2593, %v2655
    %v2657 = vand.u32 %v2389, 4294901760
    %v2658 = vsub.f32 %v2389, %v2657
    %v2659 = vand.u32 %v2658, 4294901760
    %2660 = vmatmul.f32.gmra.mxu0 %v2659
    %v2661 = vpop.f32.mrf.mxu0
    %v2662 = vadd.f32 %v2598, %v2661
    %v2663 = vand.u32 %v2392, 4294901760
    %v2664 = vsub.f32 %v2392, %v2663
    %v2665 = vand.u32 %v2664, 4294901760
    %2666 = vmatmul.f32.gmra.mxu0 %v2665
    %v2667 = vpop.f32.mrf.mxu0
    %v2668 = vadd.f32 %v2603, %v2667
    %v2669 = vand.u32 %v2395, 4294901760
    %v2670 = vsub.f32 %v2395, %v2669
    %v2671 = vand.u32 %v2670, 4294901760
    %2672 = vmatmul.f32.gmra.mxu0 %v2671
    %v2673 = vpop.f32.mrf.mxu0
    %v2674 = vadd.f32 %v2608, %v2673
    %v2675 = vand.u32 %v2398, 4294901760
    %v2676 = vsub.f32 %v2398, %v2675
    %v2677 = vand.u32 %v2676, 4294901760
    %2678 = vmatmul.f32.gmra.mxu0 %v2677
    %v2679 = vpop.f32.mrf.mxu0
    %v2680 = vadd.f32 %v2613, %v2679
    %v2681 = vand.u32 %v2401, 4294901760
    %v2682 = vsub.f32 %v2401, %v2681
    %v2683 = vand.u32 %v2682, 4294901760
    %2684 = vmatmul.f32.gmra.mxu0 %v2683
    %v2685 = vpop.f32.mrf.mxu0
    %v2686 = vadd.f32 %v2618, %v2685
    %v2687 = vand.u32 %v2404, 4294901760
    %v2688 = vsub.f32 %v2404, %v2687
    %v2689 = vand.u32 %v2688, 4294901760
    %2690 = vmatmul.f32.gmra.mxu0 %v2689
    %v2691 = vpop.f32.mrf.mxu0
    %v2692 = vadd.f32 %v2623, %v2691
    %2693 = vdwg.mxu0
    %2694 = vmatpush.msra.mxu0 0.0
    %2695 = vmatpush.msra.mxu0 0.0
    %2696 = vmatpush.msra.mxu0 0.0
    %2697 = vmatpush.msra.mxu0 0.0
    %2698 = vmatpush.msra.mxu0 0.0
    %2699 = vmatpush.msra.mxu0 0.0
    %2700 = vmatpush.msra.mxu0 0.0
    %2701 = vmatpush.msra.mxu0 0.0
    %2702 = vmatpush.msra.mxu0 0.0
    %2703 = vmatpush.msra.mxu0 0.0
    %2704 = vmatpush.msra.mxu0 0.0
    %2705 = vmatpush.msra.mxu0 0.0
    %v2706 = vand.u32 %v2381, 4294901760
    %v2707 = vsub.f32 %v2381, %v2706
    %v2708 = vand.u32 %v2707, 4294901760
    %2709 = vmatpush.msra.mxu0 %v2708
    %v2710 = vand.u32 %v2380, 4294901760
    %v2711 = vsub.f32 %v2380, %v2710
    %v2712 = vand.u32 %v2711, 4294901760
    %2713 = vmatpush.msra.mxu0 %v2712
    %v2714 = vand.u32 %v2379, 4294901760
    %v2715 = vsub.f32 %v2379, %v2714
    %v2716 = vand.u32 %v2715, 4294901760
    %2717 = vmatpush.msra.mxu0 %v2716
    %v2718 = vand.u32 %v2378, 4294901760
    %v2719 = vsub.f32 %v2378, %v2718
    %v2720 = vand.u32 %v2719, 4294901760
    %2721 = vmatpush.msra.mxu0 %v2720
    %v2722 = vand.u32 %v2383, 4294901760
    %2723 = vmatmul.f32.gmra.mxu0 %v2722
    %v2724 = vpop.f32.mrf.mxu0
    %v2725 = vadd.f32 %v2650, %v2724
    %v2726 = vand.u32 %v2386, 4294901760
    %2727 = vmatmul.f32.gmra.mxu0 %v2726
    %v2728 = vpop.f32.mrf.mxu0
    %v2729 = vadd.f32 %v2656, %v2728
    %v2730 = vand.u32 %v2389, 4294901760
    %2731 = vmatmul.f32.gmra.mxu0 %v2730
    %v2732 = vpop.f32.mrf.mxu0
    %v2733 = vadd.f32 %v2662, %v2732
    %v2734 = vand.u32 %v2392, 4294901760
    %2735 = vmatmul.f32.gmra.mxu0 %v2734
    %v2736 = vpop.f32.mrf.mxu0
    %v2737 = vadd.f32 %v2668, %v2736
    %v2738 = vand.u32 %v2395, 4294901760
    %2739 = vmatmul.f32.gmra.mxu0 %v2738
    %v2740 = vpop.f32.mrf.mxu0
    %v2741 = vadd.f32 %v2674, %v2740
    %v2742 = vand.u32 %v2398, 4294901760
    %2743 = vmatmul.f32.gmra.mxu0 %v2742
    %v2744 = vpop.f32.mrf.mxu0
    %v2745 = vadd.f32 %v2680, %v2744
    %v2746 = vand.u32 %v2401, 4294901760
    %2747 = vmatmul.f32.gmra.mxu0 %v2746
    %v2748 = vpop.f32.mrf.mxu0
    %v2749 = vadd.f32 %v2686, %v2748
    %v2750 = vand.u32 %v2404, 4294901760
    %2751 = vmatmul.f32.gmra.mxu0 %v2750
    %v2752 = vpop.f32.mrf.mxu0
    %v2753 = vadd.f32 %v2692, %v2752
    %2754 = vdwg.mxu0
    %2755 = vmatpush.msra.mxu0 0.0
    %2756 = vmatpush.msra.mxu0 0.0
    %2757 = vmatpush.msra.mxu0 0.0
    %2758 = vmatpush.msra.mxu0 0.0
    %2759 = vmatpush.msra.mxu0 0.0
    %2760 = vmatpush.msra.mxu0 0.0
    %2761 = vmatpush.msra.mxu0 0.0
    %2762 = vmatpush.msra.mxu0 0.0
    %2763 = vmatpush.msra.mxu0 0.0
    %2764 = vmatpush.msra.mxu0 0.0
    %2765 = vmatpush.msra.mxu0 0.0
    %2766 = vmatpush.msra.mxu0 0.0
    %v2767 = vand.u32 %v2381, 4294901760
    %2768 = vmatpush.msra.mxu0 %v2767
    %v2769 = vand.u32 %v2380, 4294901760
    %2770 = vmatpush.msra.mxu0 %v2769
    %v2771 = vand.u32 %v2379, 4294901760
    %2772 = vmatpush.msra.mxu0 %v2771
    %v2773 = vand.u32 %v2378, 4294901760
    %2774 = vmatpush.msra.mxu0 %v2773
    %v2775 = vand.u32 %v2383, 4294901760
    %2776 = vmatmul.f32.gmra.mxu0 %v2775
    %v2777 = vpop.f32.mrf.mxu0
    %v2778 = vadd.f32 %v2725, %v2777
    %v2779 = vand.u32 %v2386, 4294901760
    %2780 = vmatmul.f32.gmra.mxu0 %v2779
    %v2781 = vpop.f32.mrf.mxu0
    %v2782 = vadd.f32 %v2729, %v2781
    %v2783 = vand.u32 %v2389, 4294901760
    %2784 = vmatmul.f32.gmra.mxu0 %v2783
    %v2785 = vpop.f32.mrf.mxu0
    %v2786 = vadd.f32 %v2733, %v2785
    %v2787 = vand.u32 %v2392, 4294901760
    %2788 = vmatmul.f32.gmra.mxu0 %v2787
    %v2789 = vpop.f32.mrf.mxu0
    %v2790 = vadd.f32 %v2737, %v2789
    %v2791 = vand.u32 %v2395, 4294901760
    %2792 = vmatmul.f32.gmra.mxu0 %v2791
    %v2793 = vpop.f32.mrf.mxu0
    %v2794 = vadd.f32 %v2741, %v2793
    %v2795 = vand.u32 %v2398, 4294901760
    %2796 = vmatmul.f32.gmra.mxu0 %v2795
    %v2797 = vpop.f32.mrf.mxu0
    %v2798 = vadd.f32 %v2745, %v2797
    %v2799 = vand.u32 %v2401, 4294901760
    %2800 = vmatmul.f32.gmra.mxu0 %v2799
    %v2801 = vpop.f32.mrf.mxu0
    %v2802 = vadd.f32 %v2749, %v2801
    %v2803 = vand.u32 %v2404, 4294901760
    %2804 = vmatmul.f32.gmra.mxu0 %v2803
    %v2805 = vpop.f32.mrf.mxu0
    %v2806 = vadd.f32 %v2753, %v2805
    %2807 = vdwg.mxu0
    %v2808 = vadd.f32 %v2340, %v2778
    %v2809 = vadd.f32 %v2344, %v2782
    %v2810 = vadd.f32 %v2348, %v2786
    %v2811 = vadd.f32 %v2352, %v2790
    %v2812 = vadd.f32 %v2356, %v2794
    %v2813 = vadd.f32 %v2360, %v2798
    %v2814 = vadd.f32 %v2364, %v2802
    %v2815 = vadd.f32 %v2368, %v2806
    %v2816 = vld [vmem:[#allocation2 + $0x9] sm:$0xff]
    %v2817 = vld [vmem:[#allocation2 + $0x11] sm:$0xff]
    %v2818 = vld [vmem:[#allocation2 + $0x19] sm:$0xff]
    %v2819 = vld [vmem:[#allocation2 + $0x21] sm:$0xff]
    %v2820 = vld [vmem:[#allocation2 + $0x39] sm:$0xff]
    %v2821 = vld [vmem:[#allocation2 + $0x41] sm:$0xff]
    %v2822 = vld [vmem:[#allocation2 + $0x49] sm:$0xff]
    %v2823 = vld [vmem:[#allocation2 + $0x51] sm:$0xff]
    %v2824 = vld [vmem:[%s3 + $0x60] sm:$0xff]
    %v2825 = vld [vmem:[%s3 + $0x68] sm:$0xff]
    %v2826 = vld [vmem:[%s3 + $0x70] sm:$0xff]
    %v2827 = vld [vmem:[%s3 + $0x78] sm:$0xff]
    %v2829 = vsel %vm1346, %v2816, 0
    %v2832 = vsel %vm1346, %v2817, 0
    %v2835 = vsel %vm1346, %v2818, 0
    %v2838 = vsel %vm1346, %v2819, 0
    %v2841 = vsel %vm1346, %v2820, 0
    %v2844 = vsel %vm1346, %v2821, 0
    %v2847 = vsel %vm1346, %v2822, 0
    %v2850 = vsel %vm1346, %v2823, 0
    %2852 = vmatpush.msra.mxu0 0.0
    %2853 = vmatpush.msra.mxu0 0.0
    %2854 = vmatpush.msra.mxu0 0.0
    %2855 = vmatpush.msra.mxu0 0.0
    %2856 = vmatpush.msra.mxu0 0.0
    %2857 = vmatpush.msra.mxu0 0.0
    %2858 = vmatpush.msra.mxu0 0.0
    %2859 = vmatpush.msra.mxu0 0.0
    %2860 = vmatpush.msra.mxu0 0.0
    %2861 = vmatpush.msra.mxu0 0.0
    %2862 = vmatpush.msra.mxu0 0.0
    %2863 = vmatpush.msra.mxu0 0.0
    %v2864 = vand.u32 %v2827, 4294901760
    %2865 = vmatpush.msra.mxu0 %v2864
    %v2866 = vand.u32 %v2826, 4294901760
    %2867 = vmatpush.msra.mxu0 %v2866
    %v2868 = vand.u32 %v2825, 4294901760
    %2869 = vmatpush.msra.mxu0 %v2868
    %v2870 = vand.u32 %v2824, 4294901760
    %2871 = vmatpush.msra.mxu0 %v2870
    %v2872 = vand.u32 %v2829, 4294901760
    %v2873 = vsub.f32 %v2829, %v2872
    %v2874 = vand.u32 %v2873, 4294901760
    %v2875 = vsub.f32 %v2873, %v2874
    %v2876 = vand.u32 %v2875, 4294901760
    %2877 = vmatmul.f32.gmra.mxu0 %v2876
    %v2878 = vpop.f32.mrf.mxu0
    %v2879 = vadd.f32 0.0, %v2878
    %v2880 = vand.u32 %v2832, 4294901760
    %v2881 = vsub.f32 %v2832, %v2880
    %v2882 = vand.u32 %v2881, 4294901760
    %v2883 = vsub.f32 %v2881, %v2882
    %v2884 = vand.u32 %v2883, 4294901760
    %2885 = vmatmul.f32.gmra.mxu0 %v2884
    %v2886 = vpop.f32.mrf.mxu0
    %v2887 = vadd.f32 0.0, %v2886
    %v2888 = vand.u32 %v2835, 4294901760
    %v2889 = vsub.f32 %v2835, %v2888
    %v2890 = vand.u32 %v2889, 4294901760
    %v2891 = vsub.f32 %v2889, %v2890
    %v2892 = vand.u32 %v2891, 4294901760
    %2893 = vmatmul.f32.gmra.mxu0 %v2892
    %v2894 = vpop.f32.mrf.mxu0
    %v2895 = vadd.f32 0.0, %v2894
    %v2896 = vand.u32 %v2838, 4294901760
    %v2897 = vsub.f32 %v2838, %v2896
    %v2898 = vand.u32 %v2897, 4294901760
    %v2899 = vsub.f32 %v2897, %v2898
    %v2900 = vand.u32 %v2899, 4294901760
    %2901 = vmatmul.f32.gmra.mxu0 %v2900
    %v2902 = vpop.f32.mrf.mxu0
    %v2903 = vadd.f32 0.0, %v2902
    %v2904 = vand.u32 %v2841, 4294901760
    %v2905 = vsub.f32 %v2841, %v2904
    %v2906 = vand.u32 %v2905, 4294901760
    %v2907 = vsub.f32 %v2905, %v2906
    %v2908 = vand.u32 %v2907, 4294901760
    %2909 = vmatmul.f32.gmra.mxu0 %v2908
    %v2910 = vpop.f32.mrf.mxu0
    %v2911 = vadd.f32 0.0, %v2910
    %v2912 = vand.u32 %v2844, 4294901760
    %v2913 = vsub.f32 %v2844, %v2912
    %v2914 = vand.u32 %v2913, 4294901760
    %v2915 = vsub.f32 %v2913, %v2914
    %v2916 = vand.u32 %v2915, 4294901760
    %2917 = vmatmul.f32.gmra.mxu0 %v2916
    %v2918 = vpop.f32.mrf.mxu0
    %v2919 = vadd.f32 0.0, %v2918
    %v2920 = vand.u32 %v2847, 4294901760
    %v2921 = vsub.f32 %v2847, %v2920
    %v2922 = vand.u32 %v2921, 4294901760
    %v2923 = vsub.f32 %v2921, %v2922
    %v2924 = vand.u32 %v2923, 4294901760
    %2925 = vmatmul.f32.gmra.mxu0 %v2924
    %v2926 = vpop.f32.mrf.mxu0
    %v2927 = vadd.f32 0.0, %v2926
    %v2928 = vand.u32 %v2850, 4294901760
    %v2929 = vsub.f32 %v2850, %v2928
    %v2930 = vand.u32 %v2929, 4294901760
    %v2931 = vsub.f32 %v2929, %v2930
    %v2932 = vand.u32 %v2931, 4294901760
    %2933 = vmatmul.f32.gmra.mxu0 %v2932
    %v2934 = vpop.f32.mrf.mxu0
    %v2935 = vadd.f32 0.0, %v2934
    %2936 = vdwg.mxu0
    %2937 = vmatpush.msra.mxu0 0.0
    %2938 = vmatpush.msra.mxu0 0.0
    %2939 = vmatpush.msra.mxu0 0.0
    %2940 = vmatpush.msra.mxu0 0.0
    %2941 = vmatpush.msra.mxu0 0.0
    %2942 = vmatpush.msra.mxu0 0.0
    %2943 = vmatpush.msra.mxu0 0.0
    %2944 = vmatpush.msra.mxu0 0.0
    %2945 = vmatpush.msra.mxu0 0.0
    %2946 = vmatpush.msra.mxu0 0.0
    %2947 = vmatpush.msra.mxu0 0.0
    %2948 = vmatpush.msra.mxu0 0.0
    %v2949 = vand.u32 %v2827, 4294901760
    %v2950 = vsub.f32 %v2827, %v2949
    %v2951 = vand.u32 %v2950, 4294901760
    %v2952 = vsub.f32 %v2950, %v2951
    %v2953 = vand.u32 %v2952, 4294901760
    %2954 = vmatpush.msra.mxu0 %v2953
    %v2955 = vand.u32 %v2826, 4294901760
    %v2956 = vsub.f32 %v2826, %v2955
    %v2957 = vand.u32 %v2956, 4294901760
    %v2958 = vsub.f32 %v2956, %v2957
    %v2959 = vand.u32 %v2958, 4294901760
    %2960 = vmatpush.msra.mxu0 %v2959
    %v2961 = vand.u32 %v2825, 4294901760
    %v2962 = vsub.f32 %v2825, %v2961
    %v2963 = vand.u32 %v2962, 4294901760
    %v2964 = vsub.f32 %v2962, %v2963
    %v2965 = vand.u32 %v2964, 4294901760
    %2966 = vmatpush.msra.mxu0 %v2965
    %v2967 = vand.u32 %v2824, 4294901760
    %v2968 = vsub.f32 %v2824, %v2967
    %v2969 = vand.u32 %v2968, 4294901760
    %v2970 = vsub.f32 %v2968, %v2969
    %v2971 = vand.u32 %v2970, 4294901760
    %2972 = vmatpush.msra.mxu0 %v2971
    %v2973 = vand.u32 %v2829, 4294901760
    %2974 = vmatmul.f32.gmra.mxu0 %v2973
    %v2975 = vpop.f32.mrf.mxu0
    %v2976 = vadd.f32 %v2879, %v2975
    %v2977 = vand.u32 %v2832, 4294901760
    %2978 = vmatmul.f32.gmra.mxu0 %v2977
    %v2979 = vpop.f32.mrf.mxu0
    %v2980 = vadd.f32 %v2887, %v2979
    %v2981 = vand.u32 %v2835, 4294901760
    %2982 = vmatmul.f32.gmra.mxu0 %v2981
    %v2983 = vpop.f32.mrf.mxu0
    %v2984 = vadd.f32 %v2895, %v2983
    %v2985 = vand.u32 %v2838, 4294901760
    %2986 = vmatmul.f32.gmra.mxu0 %v2985
    %v2987 = vpop.f32.mrf.mxu0
    %v2988 = vadd.f32 %v2903, %v2987
    %v2989 = vand.u32 %v2841, 4294901760
    %2990 = vmatmul.f32.gmra.mxu0 %v2989
    %v2991 = vpop.f32.mrf.mxu0
    %v2992 = vadd.f32 %v2911, %v2991
    %v2993 = vand.u32 %v2844, 4294901760
    %2994 = vmatmul.f32.gmra.mxu0 %v2993
    %v2995 = vpop.f32.mrf.mxu0
    %v2996 = vadd.f32 %v2919, %v2995
    %v2997 = vand.u32 %v2847, 4294901760
    %2998 = vmatmul.f32.gmra.mxu0 %v2997
    %v2999 = vpop.f32.mrf.mxu0
    %v3000 = vadd.f32 %v2927, %v2999
    %v3001 = vand.u32 %v2850, 4294901760
    %3002 = vmatmul.f32.gmra.mxu0 %v3001
    %v3003 = vpop.f32.mrf.mxu0
    %v3004 = vadd.f32 %v2935, %v3003
    %3005 = vdwg.mxu0
    %3006 = vmatpush.msra.mxu0 0.0
    %3007 = vmatpush.msra.mxu0 0.0
    %3008 = vmatpush.msra.mxu0 0.0
    %3009 = vmatpush.msra.mxu0 0.0
    %3010 = vmatpush.msra.mxu0 0.0
    %3011 = vmatpush.msra.mxu0 0.0
    %3012 = vmatpush.msra.mxu0 0.0
    %3013 = vmatpush.msra.mxu0 0.0
    %3014 = vmatpush.msra.mxu0 0.0
    %3015 = vmatpush.msra.mxu0 0.0
    %3016 = vmatpush.msra.mxu0 0.0
    %3017 = vmatpush.msra.mxu0 0.0
    %v3018 = vand.u32 %v2827, 4294901760
    %v3019 = vsub.f32 %v2827, %v3018
    %3020 = vmatpush.msra.mxu0 %v3019
    %v3021 = vand.u32 %v2826, 4294901760
    %v3022 = vsub.f32 %v2826, %v3021
    %3023 = vmatpush.msra.mxu0 %v3022
    %v3024 = vand.u32 %v2825, 4294901760
    %v3025 = vsub.f32 %v2825, %v3024
    %3026 = vmatpush.msra.mxu0 %v3025
    %v3027 = vand.u32 %v2824, 4294901760
    %v3028 = vsub.f32 %v2824, %v3027
    %3029 = vmatpush.msra.mxu0 %v3028
    %v3030 = vand.u32 %v2829, 4294901760
    %v3031 = vsub.f32 %v2829, %v3030
    %3032 = vmatmul.f32.gmra.mxu0 %v3031
    %v3033 = vpop.f32.mrf.mxu0
    %v3034 = vadd.f32 %v2976, %v3033
    %v3035 = vand.u32 %v2832, 4294901760
    %v3036 = vsub.f32 %v2832, %v3035
    %3037 = vmatmul.f32.gmra.mxu0 %v3036
    %v3038 = vpop.f32.mrf.mxu0
    %v3039 = vadd.f32 %v2980, %v3038
    %v3040 = vand.u32 %v2835, 4294901760
    %v3041 = vsub.f32 %v2835, %v3040
    %3042 = vmatmul.f32.gmra.mxu0 %v3041
    %v3043 = vpop.f32.mrf.mxu0
    %v3044 = vadd.f32 %v2984, %v3043
    %v3045 = vand.u32 %v2838, 4294901760
    %v3046 = vsub.f32 %v2838, %v3045
    %3047 = vmatmul.f32.gmra.mxu0 %v3046
    %v3048 = vpop.f32.mrf.mxu0
    %v3049 = vadd.f32 %v2988, %v3048
    %v3050 = vand.u32 %v2841, 4294901760
    %v3051 = vsub.f32 %v2841, %v3050
    %3052 = vmatmul.f32.gmra.mxu0 %v3051
    %v3053 = vpop.f32.mrf.mxu0
    %v3054 = vadd.f32 %v2992, %v3053
    %v3055 = vand.u32 %v2844, 4294901760
    %v3056 = vsub.f32 %v2844, %v3055
    %3057 = vmatmul.f32.gmra.mxu0 %v3056
    %v3058 = vpop.f32.mrf.mxu0
    %v3059 = vadd.f32 %v2996, %v3058
    %v3060 = vand.u32 %v2847, 4294901760
    %v3061 = vsub.f32 %v2847, %v3060
    %3062 = vmatmul.f32.gmra.mxu0 %v3061
    %v3063 = vpop.f32.mrf.mxu0
    %v3064 = vadd.f32 %v3000, %v3063
    %v3065 = vand.u32 %v2850, 4294901760
    %v3066 = vsub.f32 %v2850, %v3065
    %3067 = vmatmul.f32.gmra.mxu0 %v3066
    %v3068 = vpop.f32.mrf.mxu0
    %v3069 = vadd.f32 %v3004, %v3068
    %3070 = vdwg.mxu0
    %3071 = vmatpush.msra.mxu0 0.0
    %3072 = vmatpush.msra.mxu0 0.0
    %3073 = vmatpush.msra.mxu0 0.0
    %3074 = vmatpush.msra.mxu0 0.0
    %3075 = vmatpush.msra.mxu0 0.0
    %3076 = vmatpush.msra.mxu0 0.0
    %3077 = vmatpush.msra.mxu0 0.0
    %3078 = vmatpush.msra.mxu0 0.0
    %3079 = vmatpush.msra.mxu0 0.0
    %3080 = vmatpush.msra.mxu0 0.0
    %3081 = vmatpush.msra.mxu0 0.0
    %3082 = vmatpush.msra.mxu0 0.0
    %v3083 = vand.u32 %v2827, 4294901760
    %3084 = vmatpush.msra.mxu0 %v3083
    %v3085 = vand.u32 %v2826, 4294901760
    %3086 = vmatpush.msra.mxu0 %v3085
    %v3087 = vand.u32 %v2825, 4294901760
    %3088 = vmatpush.msra.mxu0 %v3087
    %v3089 = vand.u32 %v2824, 4294901760
    %3090 = vmatpush.msra.mxu0 %v3089
    %v3091 = vand.u32 %v2829, 4294901760
    %v3092 = vsub.f32 %v2829, %v3091
    %v3093 = vand.u32 %v3092, 4294901760
    %3094 = vmatmul.f32.gmra.mxu0 %v3093
    %v3095 = vpop.f32.mrf.mxu0
    %v3096 = vadd.f32 %v3034, %v3095
    %v3097 = vand.u32 %v2832, 4294901760
    %v3098 = vsub.f32 %v2832, %v3097
    %v3099 = vand.u32 %v3098, 4294901760
    %3100 = vmatmul.f32.gmra.mxu0 %v3099
    %v3101 = vpop.f32.mrf.mxu0
    %v3102 = vadd.f32 %v3039, %v3101
    %v3103 = vand.u32 %v2835, 4294901760
    %v3104 = vsub.f32 %v2835, %v3103
    %v3105 = vand.u32 %v3104, 4294901760
    %3106 = vmatmul.f32.gmra.mxu0 %v3105
    %v3107 = vpop.f32.mrf.mxu0
    %v3108 = vadd.f32 %v3044, %v3107
    %v3109 = vand.u32 %v2838, 4294901760
    %v3110 = vsub.f32 %v2838, %v3109
    %v3111 = vand.u32 %v3110, 4294901760
    %3112 = vmatmul.f32.gmra.mxu0 %v3111
    %v3113 = vpop.f32.mrf.mxu0
    %v3114 = vadd.f32 %v3049, %v3113
    %v3115 = vand.u32 %v2841, 4294901760
    %v3116 = vsub.f32 %v2841, %v3115
    %v3117 = vand.u32 %v3116, 4294901760
    %3118 = vmatmul.f32.gmra.mxu0 %v3117
    %v3119 = vpop.f32.mrf.mxu0
    %v3120 = vadd.f32 %v3054, %v3119
    %v3121 = vand.u32 %v2844, 4294901760
    %v3122 = vsub.f32 %v2844, %v3121
    %v3123 = vand.u32 %v3122, 4294901760
    %3124 = vmatmul.f32.gmra.mxu0 %v3123
    %v3125 = vpop.f32.mrf.mxu0
    %v3126 = vadd.f32 %v3059, %v3125
    %v3127 = vand.u32 %v2847, 4294901760
    %v3128 = vsub.f32 %v2847, %v3127
    %v3129 = vand.u32 %v3128, 4294901760
    %3130 = vmatmul.f32.gmra.mxu0 %v3129
    %v3131 = vpop.f32.mrf.mxu0
    %v3132 = vadd.f32 %v3064, %v3131
    %v3133 = vand.u32 %v2850, 4294901760
    %v3134 = vsub.f32 %v2850, %v3133
    %v3135 = vand.u32 %v3134, 4294901760
    %3136 = vmatmul.f32.gmra.mxu0 %v3135
    %v3137 = vpop.f32.mrf.mxu0
    %v3138 = vadd.f32 %v3069, %v3137
    %3139 = vdwg.mxu0
    %3140 = vmatpush.msra.mxu0 0.0
    %3141 = vmatpush.msra.mxu0 0.0
    %3142 = vmatpush.msra.mxu0 0.0
    %3143 = vmatpush.msra.mxu0 0.0
    %3144 = vmatpush.msra.mxu0 0.0
    %3145 = vmatpush.msra.mxu0 0.0
    %3146 = vmatpush.msra.mxu0 0.0
    %3147 = vmatpush.msra.mxu0 0.0
    %3148 = vmatpush.msra.mxu0 0.0
    %3149 = vmatpush.msra.mxu0 0.0
    %3150 = vmatpush.msra.mxu0 0.0
    %3151 = vmatpush.msra.mxu0 0.0
    %v3152 = vand.u32 %v2827, 4294901760
    %v3153 = vsub.f32 %v2827, %v3152
    %v3154 = vand.u32 %v3153, 4294901760
    %3155 = vmatpush.msra.mxu0 %v3154
    %v3156 = vand.u32 %v2826, 4294901760
    %v3157 = vsub.f32 %v2826, %v3156
    %v3158 = vand.u32 %v3157, 4294901760
    %3159 = vmatpush.msra.mxu0 %v3158
    %v3160 = vand.u32 %v2825, 4294901760
    %v3161 = vsub.f32 %v2825, %v3160
    %v3162 = vand.u32 %v3161, 4294901760
    %3163 = vmatpush.msra.mxu0 %v3162
    %v3164 = vand.u32 %v2824, 4294901760
    %v3165 = vsub.f32 %v2824, %v3164
    %v3166 = vand.u32 %v3165, 4294901760
    %3167 = vmatpush.msra.mxu0 %v3166
    %v3168 = vand.u32 %v2829, 4294901760
    %3169 = vmatmul.f32.gmra.mxu0 %v3168
    %v3170 = vpop.f32.mrf.mxu0
    %v3171 = vadd.f32 %v3096, %v3170
    %v3172 = vand.u32 %v2832, 4294901760
    %3173 = vmatmul.f32.gmra.mxu0 %v3172
    %v3174 = vpop.f32.mrf.mxu0
    %v3175 = vadd.f32 %v3102, %v3174
    %v3176 = vand.u32 %v2835, 4294901760
    %3177 = vmatmul.f32.gmra.mxu0 %v3176
    %v3178 = vpop.f32.mrf.mxu0
    %v3179 = vadd.f32 %v3108, %v3178
    %v3180 = vand.u32 %v2838, 4294901760
    %3181 = vmatmul.f32.gmra.mxu0 %v3180
    %v3182 = vpop.f32.mrf.mxu0
    %v3183 = vadd.f32 %v3114, %v3182
    %v3184 = vand.u32 %v2841, 4294901760
    %3185 = vmatmul.f32.gmra.mxu0 %v3184
    %v3186 = vpop.f32.mrf.mxu0
    %v3187 = vadd.f32 %v3120, %v3186
    %v3188 = vand.u32 %v2844, 4294901760
    %3189 = vmatmul.f32.gmra.mxu0 %v3188
    %v3190 = vpop.f32.mrf.mxu0
    %v3191 = vadd.f32 %v3126, %v3190
    %v3192 = vand.u32 %v2847, 4294901760
    %3193 = vmatmul.f32.gmra.mxu0 %v3192
    %v3194 = vpop.f32.mrf.mxu0
    %v3195 = vadd.f32 %v3132, %v3194
    %v3196 = vand.u32 %v2850, 4294901760
    %3197 = vmatmul.f32.gmra.mxu0 %v3196
    %v3198 = vpop.f32.mrf.mxu0
    %v3199 = vadd.f32 %v3138, %v3198
    %3200 = vdwg.mxu0
    %3201 = vmatpush.msra.mxu0 0.0
    %3202 = vmatpush.msra.mxu0 0.0
    %3203 = vmatpush.msra.mxu0 0.0
    %3204 = vmatpush.msra.mxu0 0.0
    %3205 = vmatpush.msra.mxu0 0.0
    %3206 = vmatpush.msra.mxu0 0.0
    %3207 = vmatpush.msra.mxu0 0.0
    %3208 = vmatpush.msra.mxu0 0.0
    %3209 = vmatpush.msra.mxu0 0.0
    %3210 = vmatpush.msra.mxu0 0.0
    %3211 = vmatpush.msra.mxu0 0.0
    %3212 = vmatpush.msra.mxu0 0.0
    %v3213 = vand.u32 %v2827, 4294901760
    %3214 = vmatpush.msra.mxu0 %v3213
    %v3215 = vand.u32 %v2826, 4294901760
    %3216 = vmatpush.msra.mxu0 %v3215
    %v3217 = vand.u32 %v2825, 4294901760
    %3218 = vmatpush.msra.mxu0 %v3217
    %v3219 = vand.u32 %v2824, 4294901760
    %3220 = vmatpush.msra.mxu0 %v3219
    %v3221 = vand.u32 %v2829, 4294901760
    %3222 = vmatmul.f32.gmra.mxu0 %v3221
    %v3223 = vpop.f32.mrf.mxu0
    %v3224 = vadd.f32 %v3171, %v3223
    %v3225 = vand.u32 %v2832, 4294901760
    %3226 = vmatmul.f32.gmra.mxu0 %v3225
    %v3227 = vpop.f32.mrf.mxu0
    %v3228 = vadd.f32 %v3175, %v3227
    %v3229 = vand.u32 %v2835, 4294901760
    %3230 = vmatmul.f32.gmra.mxu0 %v3229
    %v3231 = vpop.f32.mrf.mxu0
    %v3232 = vadd.f32 %v3179, %v3231
    %v3233 = vand.u32 %v2838, 4294901760
    %3234 = vmatmul.f32.gmra.mxu0 %v3233
    %v3235 = vpop.f32.mrf.mxu0
    %v3236 = vadd.f32 %v3183, %v3235
    %v3237 = vand.u32 %v2841, 4294901760
    %3238 = vmatmul.f32.gmra.mxu0 %v3237
    %v3239 = vpop.f32.mrf.mxu0
    %v3240 = vadd.f32 %v3187, %v3239
    %v3241 = vand.u32 %v2844, 4294901760
    %3242 = vmatmul.f32.gmra.mxu0 %v3241
    %v3243 = vpop.f32.mrf.mxu0
    %v3244 = vadd.f32 %v3191, %v3243
    %v3245 = vand.u32 %v2847, 4294901760
    %3246 = vmatmul.f32.gmra.mxu0 %v3245
    %v3247 = vpop.f32.mrf.mxu0
    %v3248 = vadd.f32 %v3195, %v3247
    %v3249 = vand.u32 %v2850, 4294901760
    %3250 = vmatmul.f32.gmra.mxu0 %v3249
    %v3251 = vpop.f32.mrf.mxu0
    %v3252 = vadd.f32 %v3199, %v3251
    %3253 = vdwg.mxu0
    %v3254 = vadd.f32 %v2808, %v3224
    %v3255 = vadd.f32 %v2809, %v3228
    %v3256 = vadd.f32 %v2810, %v3232
    %v3257 = vadd.f32 %v2811, %v3236
    %v3258 = vadd.f32 %v2812, %v3240
    %v3259 = vadd.f32 %v2813, %v3244
    %v3260 = vadd.f32 %v2814, %v3248
    %v3261 = vadd.f32 %v2815, %v3252
    %v3262 = vld [vmem:[#allocation2 + $0xa] sm:$0xff]
    %v3263 = vld [vmem:[#allocation2 + $0x12] sm:$0xff]
    %v3264 = vld [vmem:[#allocation2 + $0x1a] sm:$0xff]
    %v3265 = vld [vmem:[#allocation2 + $0x22] sm:$0xff]
    %v3266 = vld [vmem:[#allocation2 + $0x3a] sm:$0xff]
    %v3267 = vld [vmem:[#allocation2 + $0x42] sm:$0xff]
    %v3268 = vld [vmem:[#allocation2 + $0x4a] sm:$0xff]
    %v3269 = vld [vmem:[#allocation2 + $0x52] sm:$0xff]
    %v3270 = vld [vmem:[%s3 + $0x80] sm:$0xff]
    %v3271 = vld [vmem:[%s3 + $0x88] sm:$0xff]
    %v3272 = vld [vmem:[%s3 + $0x90] sm:$0xff]
    %v3273 = vld [vmem:[%s3 + $0x98] sm:$0xff]
    %v3275 = vsel %vm1346, %v3262, 0
    %v3278 = vsel %vm1346, %v3263, 0
    %v3281 = vsel %vm1346, %v3264, 0
    %v3284 = vsel %vm1346, %v3265, 0
    %v3287 = vsel %vm1346, %v3266, 0
    %v3290 = vsel %vm1346, %v3267, 0
    %v3293 = vsel %vm1346, %v3268, 0
    %v3296 = vsel %vm1346, %v3269, 0
    %3298 = vmatpush.msra.mxu0 0.0
    %3299 = vmatpush.msra.mxu0 0.0
    %3300 = vmatpush.msra.mxu0 0.0
    %3301 = vmatpush.msra.mxu0 0.0
    %3302 = vmatpush.msra.mxu0 0.0
    %3303 = vmatpush.msra.mxu0 0.0
    %3304 = vmatpush.msra.mxu0 0.0
    %3305 = vmatpush.msra.mxu0 0.0
    %3306 = vmatpush.msra.mxu0 0.0
    %3307 = vmatpush.msra.mxu0 0.0
    %3308 = vmatpush.msra.mxu0 0.0
    %3309 = vmatpush.msra.mxu0 0.0
    %v3310 = vand.u32 %v3273, 4294901760
    %3311 = vmatpush.msra.mxu0 %v3310
    %v3312 = vand.u32 %v3272, 4294901760
    %3313 = vmatpush.msra.mxu0 %v3312
    %v3314 = vand.u32 %v3271, 4294901760
    %3315 = vmatpush.msra.mxu0 %v3314
    %v3316 = vand.u32 %v3270, 4294901760
    %3317 = vmatpush.msra.mxu0 %v3316
    %v3318 = vand.u32 %v3275, 4294901760
    %v3319 = vsub.f32 %v3275, %v3318
    %v3320 = vand.u32 %v3319, 4294901760
    %v3321 = vsub.f32 %v3319, %v3320
    %v3322 = vand.u32 %v3321, 4294901760
    %3323 = vmatmul.f32.gmra.mxu0 %v3322
    %v3324 = vpop.f32.mrf.mxu0
    %v3325 = vadd.f32 0.0, %v3324
    %v3326 = vand.u32 %v3278, 4294901760
    %v3327 = vsub.f32 %v3278, %v3326
    %v3328 = vand.u32 %v3327, 4294901760
    %v3329 = vsub.f32 %v3327, %v3328
    %v3330 = vand.u32 %v3329, 4294901760
    %3331 = vmatmul.f32.gmra.mxu0 %v3330
    %v3332 = vpop.f32.mrf.mxu0
    %v3333 = vadd.f32 0.0, %v3332
    %v3334 = vand.u32 %v3281, 4294901760
    %v3335 = vsub.f32 %v3281, %v3334
    %v3336 = vand.u32 %v3335, 4294901760
    %v3337 = vsub.f32 %v3335, %v3336
    %v3338 = vand.u32 %v3337, 4294901760
    %3339 = vmatmul.f32.gmra.mxu0 %v3338
    %v3340 = vpop.f32.mrf.mxu0
    %v3341 = vadd.f32 0.0, %v3340
    %v3342 = vand.u32 %v3284, 4294901760
    %v3343 = vsub.f32 %v3284, %v3342
    %v3344 = vand.u32 %v3343, 4294901760
    %v3345 = vsub.f32 %v3343, %v3344
    %v3346 = vand.u32 %v3345, 4294901760
    %3347 = vmatmul.f32.gmra.mxu0 %v3346
    %v3348 = vpop.f32.mrf.mxu0
    %v3349 = vadd.f32 0.0, %v3348
    %v3350 = vand.u32 %v3287, 4294901760
    %v3351 = vsub.f32 %v3287, %v3350
    %v3352 = vand.u32 %v3351, 4294901760
    %v3353 = vsub.f32 %v3351, %v3352
    %v3354 = vand.u32 %v3353, 4294901760
    %3355 = vmatmul.f32.gmra.mxu0 %v3354
    %v3356 = vpop.f32.mrf.mxu0
    %v3357 = vadd.f32 0.0, %v3356
    %v3358 = vand.u32 %v3290, 4294901760
    %v3359 = vsub.f32 %v3290, %v3358
    %v3360 = vand.u32 %v3359, 4294901760
    %v3361 = vsub.f32 %v3359, %v3360
    %v3362 = vand.u32 %v3361, 4294901760
    %3363 = vmatmul.f32.gmra.mxu0 %v3362
    %v3364 = vpop.f32.mrf.mxu0
    %v3365 = vadd.f32 0.0, %v3364
    %v3366 = vand.u32 %v3293, 4294901760
    %v3367 = vsub.f32 %v3293, %v3366
    %v3368 = vand.u32 %v3367, 4294901760
    %v3369 = vsub.f32 %v3367, %v3368
    %v3370 = vand.u32 %v3369, 4294901760
    %3371 = vmatmul.f32.gmra.mxu0 %v3370
    %v3372 = vpop.f32.mrf.mxu0
    %v3373 = vadd.f32 0.0, %v3372
    %v3374 = vand.u32 %v3296, 4294901760
    %v3375 = vsub.f32 %v3296, %v3374
    %v3376 = vand.u32 %v3375, 4294901760
    %v3377 = vsub.f32 %v3375, %v3376
    %v3378 = vand.u32 %v3377, 4294901760
    %3379 = vmatmul.f32.gmra.mxu0 %v3378
    %v3380 = vpop.f32.mrf.mxu0
    %v3381 = vadd.f32 0.0, %v3380
    %3382 = vdwg.mxu0
    %3383 = vmatpush.msra.mxu0 0.0
    %3384 = vmatpush.msra.mxu0 0.0
    %3385 = vmatpush.msra.mxu0 0.0
    %3386 = vmatpush.msra.mxu0 0.0
    %3387 = vmatpush.msra.mxu0 0.0
    %3388 = vmatpush.msra.mxu0 0.0
    %3389 = vmatpush.msra.mxu0 0.0
    %3390 = vmatpush.msra.mxu0 0.0
    %3391 = vmatpush.msra.mxu0 0.0
    %3392 = vmatpush.msra.mxu0 0.0
    %3393 = vmatpush.msra.mxu0 0.0
    %3394 = vmatpush.msra.mxu0 0.0
    %v3395 = vand.u32 %v3273, 4294901760
    %v3396 = vsub.f32 %v3273, %v3395
    %v3397 = vand.u32 %v3396, 4294901760
    %v3398 = vsub.f32 %v3396, %v3397
    %v3399 = vand.u32 %v3398, 4294901760
    %3400 = vmatpush.msra.mxu0 %v3399
    %v3401 = vand.u32 %v3272, 4294901760
    %v3402 = vsub.f32 %v3272, %v3401
    %v3403 = vand.u32 %v3402, 4294901760
    %v3404 = vsub.f32 %v3402, %v3403
    %v3405 = vand.u32 %v3404, 4294901760
    %3406 = vmatpush.msra.mxu0 %v3405
    %v3407 = vand.u32 %v3271, 4294901760
    %v3408 = vsub.f32 %v3271, %v3407
    %v3409 = vand.u32 %v3408, 4294901760
    %v3410 = vsub.f32 %v3408, %v3409
    %v3411 = vand.u32 %v3410, 4294901760
    %3412 = vmatpush.msra.mxu0 %v3411
    %v3413 = vand.u32 %v3270, 4294901760
    %v3414 = vsub.f32 %v3270, %v3413
    %v3415 = vand.u32 %v3414, 4294901760
    %v3416 = vsub.f32 %v3414, %v3415
    %v3417 = vand.u32 %v3416, 4294901760
    %3418 = vmatpush.msra.mxu0 %v3417
    %v3419 = vand.u32 %v3275, 4294901760
    %3420 = vmatmul.f32.gmra.mxu0 %v3419
    %v3421 = vpop.f32.mrf.mxu0
    %v3422 = vadd.f32 %v3325, %v3421
    %v3423 = vand.u32 %v3278, 4294901760
    %3424 = vmatmul.f32.gmra.mxu0 %v3423
    %v3425 = vpop.f32.mrf.mxu0
    %v3426 = vadd.f32 %v3333, %v3425
    %v3427 = vand.u32 %v3281, 4294901760
    %3428 = vmatmul.f32.gmra.mxu0 %v3427
    %v3429 = vpop.f32.mrf.mxu0
    %v3430 = vadd.f32 %v3341, %v3429
    %v3431 = vand.u32 %v3284, 4294901760
    %3432 = vmatmul.f32.gmra.mxu0 %v3431
    %v3433 = vpop.f32.mrf.mxu0
    %v3434 = vadd.f32 %v3349, %v3433
    %v3435 = vand.u32 %v3287, 4294901760
    %3436 = vmatmul.f32.gmra.mxu0 %v3435
    %v3437 = vpop.f32.mrf.mxu0
    %v3438 = vadd.f32 %v3357, %v3437
    %v3439 = vand.u32 %v3290, 4294901760
    %3440 = vmatmul.f32.gmra.mxu0 %v3439
    %v3441 = vpop.f32.mrf.mxu0
    %v3442 = vadd.f32 %v3365, %v3441
    %v3443 = vand.u32 %v3293, 4294901760
    %3444 = vmatmul.f32.gmra.mxu0 %v3443
    %v3445 = vpop.f32.mrf.mxu0
    %v3446 = vadd.f32 %v3373, %v3445
    %v3447 = vand.u32 %v3296, 4294901760
    %3448 = vmatmul.f32.gmra.mxu0 %v3447
    %v3449 = vpop.f32.mrf.mxu0
    %v3450 = vadd.f32 %v3381, %v3449
    %3451 = vdwg.mxu0
    %3452 = vmatpush.msra.mxu0 0.0
    %3453 = vmatpush.msra.mxu0 0.0
    %3454 = vmatpush.msra.mxu0 0.0
    %3455 = vmatpush.msra.mxu0 0.0
    %3456 = vmatpush.msra.mxu0 0.0
    %3457 = vmatpush.msra.mxu0 0.0
    %3458 = vmatpush.msra.mxu0 0.0
    %3459 = vmatpush.msra.mxu0 0.0
    %3460 = vmatpush.msra.mxu0 0.0
    %3461 = vmatpush.msra.mxu0 0.0
    %3462 = vmatpush.msra.mxu0 0.0
    %3463 = vmatpush.msra.mxu0 0.0
    %v3464 = vand.u32 %v3273, 4294901760
    %v3465 = vsub.f32 %v3273, %v3464
    %3466 = vmatpush.msra.mxu0 %v3465
    %v3467 = vand.u32 %v3272, 4294901760
    %v3468 = vsub.f32 %v3272, %v3467
    %3469 = vmatpush.msra.mxu0 %v3468
    %v3470 = vand.u32 %v3271, 4294901760
    %v3471 = vsub.f32 %v3271, %v3470
    %3472 = vmatpush.msra.mxu0 %v3471
    %v3473 = vand.u32 %v3270, 4294901760
    %v3474 = vsub.f32 %v3270, %v3473
    %3475 = vmatpush.msra.mxu0 %v3474
    %v3476 = vand.u32 %v3275, 4294901760
    %v3477 = vsub.f32 %v3275, %v3476
    %3478 = vmatmul.f32.gmra.mxu0 %v3477
    %v3479 = vpop.f32.mrf.mxu0
    %v3480 = vadd.f32 %v3422, %v3479
    %v3481 = vand.u32 %v3278, 4294901760
    %v3482 = vsub.f32 %v3278, %v3481
    %3483 = vmatmul.f32.gmra.mxu0 %v3482
    %v3484 = vpop.f32.mrf.mxu0
    %v3485 = vadd.f32 %v3426, %v3484
    %v3486 = vand.u32 %v3281, 4294901760
    %v3487 = vsub.f32 %v3281, %v3486
    %3488 = vmatmul.f32.gmra.mxu0 %v3487
    %v3489 = vpop.f32.mrf.mxu0
    %v3490 = vadd.f32 %v3430, %v3489
    %v3491 = vand.u32 %v3284, 4294901760
    %v3492 = vsub.f32 %v3284, %v3491
    %3493 = vmatmul.f32.gmra.mxu0 %v3492
    %v3494 = vpop.f32.mrf.mxu0
    %v3495 = vadd.f32 %v3434, %v3494
    %v3496 = vand.u32 %v3287, 4294901760
    %v3497 = vsub.f32 %v3287, %v3496
    %3498 = vmatmul.f32.gmra.mxu0 %v3497
    %v3499 = vpop.f32.mrf.mxu0
    %v3500 = vadd.f32 %v3438, %v3499
    %v3501 = vand.u32 %v3290, 4294901760
    %v3502 = vsub.f32 %v3290, %v3501
    %3503 = vmatmul.f32.gmra.mxu0 %v3502
    %v3504 = vpop.f32.mrf.mxu0
    %v3505 = vadd.f32 %v3442, %v3504
    %v3506 = vand.u32 %v3293, 4294901760
    %v3507 = vsub.f32 %v3293, %v3506
    %3508 = vmatmul.f32.gmra.mxu0 %v3507
    %v3509 = vpop.f32.mrf.mxu0
    %v3510 = vadd.f32 %v3446, %v3509
    %v3511 = vand.u32 %v3296, 4294901760
    %v3512 = vsub.f32 %v3296, %v3511
    %3513 = vmatmul.f32.gmra.mxu0 %v3512
    %v3514 = vpop.f32.mrf.mxu0
    %v3515 = vadd.f32 %v3450, %v3514
    %3516 = vdwg.mxu0
    %3517 = vmatpush.msra.mxu0 0.0
    %3518 = vmatpush.msra.mxu0 0.0
    %3519 = vmatpush.msra.mxu0 0.0
    %3520 = vmatpush.msra.mxu0 0.0
    %3521 = vmatpush.msra.mxu0 0.0
    %3522 = vmatpush.msra.mxu0 0.0
    %3523 = vmatpush.msra.mxu0 0.0
    %3524 = vmatpush.msra.mxu0 0.0
    %3525 = vmatpush.msra.mxu0 0.0
    %3526 = vmatpush.msra.mxu0 0.0
    %3527 = vmatpush.msra.mxu0 0.0
    %3528 = vmatpush.msra.mxu0 0.0
    %v3529 = vand.u32 %v3273, 4294901760
    %3530 = vmatpush.msra.mxu0 %v3529
    %v3531 = vand.u32 %v3272, 4294901760
    %3532 = vmatpush.msra.mxu0 %v3531
    %v3533 = vand.u32 %v3271, 4294901760
    %3534 = vmatpush.msra.mxu0 %v3533
    %v3535 = vand.u32 %v3270, 4294901760
    %3536 = vmatpush.msra.mxu0 %v3535
    %v3537 = vand.u32 %v3275, 4294901760
    %v3538 = vsub.f32 %v3275, %v3537
    %v3539 = vand.u32 %v3538, 4294901760
    %3540 = vmatmul.f32.gmra.mxu0 %v3539
    %v3541 = vpop.f32.mrf.mxu0
    %v3542 = vadd.f32 %v3480, %v3541
    %v3543 = vand.u32 %v3278, 4294901760
    %v3544 = vsub.f32 %v3278, %v3543
    %v3545 = vand.u32 %v3544, 4294901760
    %3546 = vmatmul.f32.gmra.mxu0 %v3545
    %v3547 = vpop.f32.mrf.mxu0
    %v3548 = vadd.f32 %v3485, %v3547
    %v3549 = vand.u32 %v3281, 4294901760
    %v3550 = vsub.f32 %v3281, %v3549
    %v3551 = vand.u32 %v3550, 4294901760
    %3552 = vmatmul.f32.gmra.mxu0 %v3551
    %v3553 = vpop.f32.mrf.mxu0
    %v3554 = vadd.f32 %v3490, %v3553
    %v3555 = vand.u32 %v3284, 4294901760
    %v3556 = vsub.f32 %v3284, %v3555
    %v3557 = vand.u32 %v3556, 4294901760
    %3558 = vmatmul.f32.gmra.mxu0 %v3557
    %v3559 = vpop.f32.mrf.mxu0
    %v3560 = vadd.f32 %v3495, %v3559
    %v3561 = vand.u32 %v3287, 4294901760
    %v3562 = vsub.f32 %v3287, %v3561
    %v3563 = vand.u32 %v3562, 4294901760
    %3564 = vmatmul.f32.gmra.mxu0 %v3563
    %v3565 = vpop.f32.mrf.mxu0
    %v3566 = vadd.f32 %v3500, %v3565
    %v3567 = vand.u32 %v3290, 4294901760
    %v3568 = vsub.f32 %v3290, %v3567
    %v3569 = vand.u32 %v3568, 4294901760
    %3570 = vmatmul.f32.gmra.mxu0 %v3569
    %v3571 = vpop.f32.mrf.mxu0
    %v3572 = vadd.f32 %v3505, %v3571
    %v3573 = vand.u32 %v3293, 4294901760
    %v3574 = vsub.f32 %v3293, %v3573
    %v3575 = vand.u32 %v3574, 4294901760
    %3576 = vmatmul.f32.gmra.mxu0 %v3575
    %v3577 = vpop.f32.mrf.mxu0
    %v3578 = vadd.f32 %v3510, %v3577
    %v3579 = vand.u32 %v3296, 4294901760
    %v3580 = vsub.f32 %v3296, %v3579
    %v3581 = vand.u32 %v3580, 4294901760
    %3582 = vmatmul.f32.gmra.mxu0 %v3581
    %v3583 = vpop.f32.mrf.mxu0
    %v3584 = vadd.f32 %v3515, %v3583
    %3585 = vdwg.mxu0
    %3586 = vmatpush.msra.mxu0 0.0
    %3587 = vmatpush.msra.mxu0 0.0
    %3588 = vmatpush.msra.mxu0 0.0
    %3589 = vmatpush.msra.mxu0 0.0
    %3590 = vmatpush.msra.mxu0 0.0
    %3591 = vmatpush.msra.mxu0 0.0
    %3592 = vmatpush.msra.mxu0 0.0
    %3593 = vmatpush.msra.mxu0 0.0
    %3594 = vmatpush.msra.mxu0 0.0
    %3595 = vmatpush.msra.mxu0 0.0
    %3596 = vmatpush.msra.mxu0 0.0
    %3597 = vmatpush.msra.mxu0 0.0
    %v3598 = vand.u32 %v3273, 4294901760
    %v3599 = vsub.f32 %v3273, %v3598
    %v3600 = vand.u32 %v3599, 4294901760
    %3601 = vmatpush.msra.mxu0 %v3600
    %v3602 = vand.u32 %v3272, 4294901760
    %v3603 = vsub.f32 %v3272, %v3602
    %v3604 = vand.u32 %v3603, 4294901760
    %3605 = vmatpush.msra.mxu0 %v3604
    %v3606 = vand.u32 %v3271, 4294901760
    %v3607 = vsub.f32 %v3271, %v3606
    %v3608 = vand.u32 %v3607, 4294901760
    %3609 = vmatpush.msra.mxu0 %v3608
    %v3610 = vand.u32 %v3270, 4294901760
    %v3611 = vsub.f32 %v3270, %v3610
    %v3612 = vand.u32 %v3611, 4294901760
    %3613 = vmatpush.msra.mxu0 %v3612
    %v3614 = vand.u32 %v3275, 4294901760
    %3615 = vmatmul.f32.gmra.mxu0 %v3614
    %v3616 = vpop.f32.mrf.mxu0
    %v3617 = vadd.f32 %v3542, %v3616
    %v3618 = vand.u32 %v3278, 4294901760
    %3619 = vmatmul.f32.gmra.mxu0 %v3618
    %v3620 = vpop.f32.mrf.mxu0
    %v3621 = vadd.f32 %v3548, %v3620
    %v3622 = vand.u32 %v3281, 4294901760
    %3623 = vmatmul.f32.gmra.mxu0 %v3622
    %v3624 = vpop.f32.mrf.mxu0
    %v3625 = vadd.f32 %v3554, %v3624
    %v3626 = vand.u32 %v3284, 4294901760
    %3627 = vmatmul.f32.gmra.mxu0 %v3626
    %v3628 = vpop.f32.mrf.mxu0
    %v3629 = vadd.f32 %v3560, %v3628
    %v3630 = vand.u32 %v3287, 4294901760
    %3631 = vmatmul.f32.gmra.mxu0 %v3630
    %v3632 = vpop.f32.mrf.mxu0
    %v3633 = vadd.f32 %v3566, %v3632
    %v3634 = vand.u32 %v3290, 4294901760
    %3635 = vmatmul.f32.gmra.mxu0 %v3634
    %v3636 = vpop.f32.mrf.mxu0
    %v3637 = vadd.f32 %v3572, %v3636
    %v3638 = vand.u32 %v3293, 4294901760
    %3639 = vmatmul.f32.gmra.mxu0 %v3638
    %v3640 = vpop.f32.mrf.mxu0
    %v3641 = vadd.f32 %v3578, %v3640
    %v3642 = vand.u32 %v3296, 4294901760
    %3643 = vmatmul.f32.gmra.mxu0 %v3642
    %v3644 = vpop.f32.mrf.mxu0
    %v3645 = vadd.f32 %v3584, %v3644
    %3646 = vdwg.mxu0
    %3647 = vmatpush.msra.mxu0 0.0
    %3648 = vmatpush.msra.mxu0 0.0
    %3649 = vmatpush.msra.mxu0 0.0
    %3650 = vmatpush.msra.mxu0 0.0
    %3651 = vmatpush.msra.mxu0 0.0
    %3652 = vmatpush.msra.mxu0 0.0
    %3653 = vmatpush.msra.mxu0 0.0
    %3654 = vmatpush.msra.mxu0 0.0
    %3655 = vmatpush.msra.mxu0 0.0
    %3656 = vmatpush.msra.mxu0 0.0
    %3657 = vmatpush.msra.mxu0 0.0
    %3658 = vmatpush.msra.mxu0 0.0
    %v3659 = vand.u32 %v3273, 4294901760
    %3660 = vmatpush.msra.mxu0 %v3659
    %v3661 = vand.u32 %v3272, 4294901760
    %3662 = vmatpush.msra.mxu0 %v3661
    %v3663 = vand.u32 %v3271, 4294901760
    %3664 = vmatpush.msra.mxu0 %v3663
    %v3665 = vand.u32 %v3270, 4294901760
    %3666 = vmatpush.msra.mxu0 %v3665
    %v3667 = vand.u32 %v3275, 4294901760
    %3668 = vmatmul.f32.gmra.mxu0 %v3667
    %v3669 = vpop.f32.mrf.mxu0
    %v3670 = vadd.f32 %v3617, %v3669
    %v3671 = vand.u32 %v3278, 4294901760
    %3672 = vmatmul.f32.gmra.mxu0 %v3671
    %v3673 = vpop.f32.mrf.mxu0
    %v3674 = vadd.f32 %v3621, %v3673
    %v3675 = vand.u32 %v3281, 4294901760
    %3676 = vmatmul.f32.gmra.mxu0 %v3675
    %v3677 = vpop.f32.mrf.mxu0
    %v3678 = vadd.f32 %v3625, %v3677
    %v3679 = vand.u32 %v3284, 4294901760
    %3680 = vmatmul.f32.gmra.mxu0 %v3679
    %v3681 = vpop.f32.mrf.mxu0
    %v3682 = vadd.f32 %v3629, %v3681
    %v3683 = vand.u32 %v3287, 4294901760
    %3684 = vmatmul.f32.gmra.mxu0 %v3683
    %v3685 = vpop.f32.mrf.mxu0
    %v3686 = vadd.f32 %v3633, %v3685
    %v3687 = vand.u32 %v3290, 4294901760
    %3688 = vmatmul.f32.gmra.mxu0 %v3687
    %v3689 = vpop.f32.mrf.mxu0
    %v3690 = vadd.f32 %v3637, %v3689
    %v3691 = vand.u32 %v3293, 4294901760
    %3692 = vmatmul.f32.gmra.mxu0 %v3691
    %v3693 = vpop.f32.mrf.mxu0
    %v3694 = vadd.f32 %v3641, %v3693
    %v3695 = vand.u32 %v3296, 4294901760
    %3696 = vmatmul.f32.gmra.mxu0 %v3695
    %v3697 = vpop.f32.mrf.mxu0
    %v3698 = vadd.f32 %v3645, %v3697
    %3699 = vdwg.mxu0
    %v3700 = vadd.f32 %v3254, %v3670
    %v3701 = vadd.f32 %v3255, %v3674
    %v3702 = vadd.f32 %v3256, %v3678
    %v3703 = vadd.f32 %v3257, %v3682
    %v3704 = vadd.f32 %v3258, %v3686
    %v3705 = vadd.f32 %v3259, %v3690
    %v3706 = vadd.f32 %v3260, %v3694
    %v3707 = vadd.f32 %v3261, %v3698
    %v3708 = vld [vmem:[%s4] sm:$0x1]
    %v3710 = vperm.slane %v3708, 0
    %v3712 = vadd.f32 %v3700, %v3710
    %v3713 = vadd.f32 %v3701, %v3710
    %v3714 = vadd.f32 %v3702, %v3710
    %v3715 = vadd.f32 %v3703, %v3710
    %v3716 = vadd.f32 %v3704, %v3710
    %v3717 = vadd.f32 %v3705, %v3710
    %v3718 = vadd.f32 %v3706, %v3710
    %v3719 = vadd.f32 %v3707, %v3710
    %v3720 = vmax.f32 %v3712, 0.0
    %v3721 = vmax.f32 %v3713, 0.0
    %v3722 = vmax.f32 %v3714, 0.0
    %v3723 = vmax.f32 %v3715, 0.0
    %v3724 = vmax.f32 %v3716, 0.0
    %v3725 = vmax.f32 %v3717, 0.0
    %v3726 = vmax.f32 %v3718, 0.0
    %v3727 = vmax.f32 %v3719, 0.0
    %v3736 = vrot.slane %v3720, 2
    %v3737 = vrot.slane %v3720, 4
    %v3738 = vrot.slane %v3720, 6
    %v3739 = vrot.slane %v3721, 2
    %v3740 = vrot.slane %v3721, 4
    %v3741 = vrot.slane %v3721, 6
    %v3742 = vrot.slane %v3722, 2
    %v3743 = vrot.slane %v3722, 4
    %v3744 = vrot.slane %v3722, 6
    %v3745 = vrot.slane %v3723, 2
    %v3746 = vrot.slane %v3723, 4
    %v3747 = vrot.slane %v3723, 6
    %v3748 = vrot.slane %v3724, 2
    %v3749 = vrot.slane %v3724, 4
    %v3750 = vrot.slane %v3724, 6
    %v3751 = vrot.slane %v3725, 2
    %v3752 = vrot.slane %v3725, 4
    %v3753 = vrot.slane %v3725, 6
    %v3754 = vrot.slane %v3726, 2
    %v3755 = vrot.slane %v3726, 4
    %v3756 = vrot.slane %v3726, 6
    %v3757 = vrot.slane %v3727, 2
    %v3758 = vrot.slane %v3727, 4
    %v3759 = vrot.slane %v3727, 6
    %vm3784 = vcmask 517120
    %v3785 = vsel %vm3784, %v3720, -inf
    %v3786 = vrot.slane %v3785, 4
    %v3787 = vmax.f32 %v3785, %v3786
    %v3788 = vrot.slane %v3787, 2
    %v3789 = vmax.f32 %v3787, %v3788
    %v3790 = vrot.slane %v3789, 1
    %v3791 = vmax.f32 %v3789, %v3790
    %v3792 = vsel %vm3784, %v3736, -inf
    %v3793 = vrot.slane %v3792, 4
    %v3794 = vmax.f32 %v3792, %v3793
    %v3795 = vrot.slane %v3794, 2
    %v3796 = vmax.f32 %v3794, %v3795
    %v3797 = vrot.slane %v3796, 1
    %v3798 = vmax.f32 %v3796, %v3797
    %v3799 = vsel %vm3784, %v3737, -inf
    %v3800 = vrot.slane %v3799, 4
    %v3801 = vmax.f32 %v3799, %v3800
    %v3802 = vrot.slane %v3801, 2
    %v3803 = vmax.f32 %v3801, %v3802
    %v3804 = vrot.slane %v3803, 1
    %v3805 = vmax.f32 %v3803, %v3804
    %v3806 = vsel %vm3784, %v3738, -inf
    %v3807 = vrot.slane %v3806, 4
    %v3808 = vmax.f32 %v3806, %v3807
    %v3809 = vrot.slane %v3808, 2
    %v3810 = vmax.f32 %v3808, %v3809
    %v3811 = vrot.slane %v3810, 1
    %v3812 = vmax.f32 %v3810, %v3811
    %v3813 = vsel %vm3784, %v3721, -inf
    %v3814 = vrot.slane %v3813, 4
    %v3815 = vmax.f32 %v3813, %v3814
    %v3816 = vrot.slane %v3815, 2
    %v3817 = vmax.f32 %v3815, %v3816
    %v3818 = vrot.slane %v3817, 1
    %v3819 = vmax.f32 %v3817, %v3818
    %v3820 = vsel %vm3784, %v3739, -inf
    %v3821 = vrot.slane %v3820, 4
    %v3822 = vmax.f32 %v3820, %v3821
    %v3823 = vrot.slane %v3822, 2
    %v3824 = vmax.f32 %v3822, %v3823
    %v3825 = vrot.slane %v3824, 1
    %v3826 = vmax.f32 %v3824, %v3825
    %v3827 = vsel %vm3784, %v3740, -inf
    %v3828 = vrot.slane %v3827, 4
    %v3829 = vmax.f32 %v3827, %v3828
    %v3830 = vrot.slane %v3829, 2
    %v3831 = vmax.f32 %v3829, %v3830
    %v3832 = vrot.slane %v3831, 1
    %v3833 = vmax.f32 %v3831, %v3832
    %v3834 = vsel %vm3784, %v3741, -inf
    %v3835 = vrot.slane %v3834, 4
    %v3836 = vmax.f32 %v3834, %v3835
    %v3837 = vrot.slane %v3836, 2
    %v3838 = vmax.f32 %v3836, %v3837
    %v3839 = vrot.slane %v3838, 1
    %v3840 = vmax.f32 %v3838, %v3839
    %v3841 = vsel %vm3784, %v3722, -inf
    %v3842 = vrot.slane %v3841, 4
    %v3843 = vmax.f32 %v3841, %v3842
    %v3844 = vrot.slane %v3843, 2
    %v3845 = vmax.f32 %v3843, %v3844
    %v3846 = vrot.slane %v3845, 1
    %v3847 = vmax.f32 %v3845, %v3846
    %v3848 = vsel %vm3784, %v3742, -inf
    %v3849 = vrot.slane %v3848, 4
    %v3850 = vmax.f32 %v3848, %v3849
    %v3851 = vrot.slane %v3850, 2
    %v3852 = vmax.f32 %v3850, %v3851
    %v3853 = vrot.slane %v3852, 1
    %v3854 = vmax.f32 %v3852, %v3853
    %v3855 = vsel %vm3784, %v3743, -inf
    %v3856 = vrot.slane %v3855, 4
    %v3857 = vmax.f32 %v3855, %v3856
    %v3858 = vrot.slane %v3857, 2
    %v3859 = vmax.f32 %v3857, %v3858
    %v3860 = vrot.slane %v3859, 1
    %v3861 = vmax.f32 %v3859, %v3860
    %v3862 = vsel %vm3784, %v3744, -inf
    %v3863 = vrot.slane %v3862, 4
    %v3864 = vmax.f32 %v3862, %v3863
    %v3865 = vrot.slane %v3864, 2
    %v3866 = vmax.f32 %v3864, %v3865
    %v3867 = vrot.slane %v3866, 1
    %v3868 = vmax.f32 %v3866, %v3867
    %v3869 = vsel %vm3784, %v3723, -inf
    %v3870 = vrot.slane %v3869, 4
    %v3871 = vmax.f32 %v3869, %v3870
    %v3872 = vrot.slane %v3871, 2
    %v3873 = vmax.f32 %v3871, %v3872
    %v3874 = vrot.slane %v3873, 1
    %v3875 = vmax.f32 %v3873, %v3874
    %v3876 = vsel %vm3784, %v3745, -inf
    %v3877 = vrot.slane %v3876, 4
    %v3878 = vmax.f32 %v3876, %v3877
    %v3879 = vrot.slane %v3878, 2
    %v3880 = vmax.f32 %v3878, %v3879
    %v3881 = vrot.slane %v3880, 1
    %v3882 = vmax.f32 %v3880, %v3881
    %v3883 = vsel %vm3784, %v3746, -inf
    %v3884 = vrot.slane %v3883, 4
    %v3885 = vmax.f32 %v3883, %v3884
    %v3886 = vrot.slane %v3885, 2
    %v3887 = vmax.f32 %v3885, %v3886
    %v3888 = vrot.slane %v3887, 1
    %v3889 = vmax.f32 %v3887, %v3888
    %v3890 = vsel %vm3784, %v3747, -inf
    %v3891 = vrot.slane %v3890, 4
    %v3892 = vmax.f32 %v3890, %v3891
    %v3893 = vrot.slane %v3892, 2
    %v3894 = vmax.f32 %v3892, %v3893
    %v3895 = vrot.slane %v3894, 1
    %v3896 = vmax.f32 %v3894, %v3895
    %v3897 = vsel %vm3784, %v3724, -inf
    %v3898 = vrot.slane %v3897, 4
    %v3899 = vmax.f32 %v3897, %v3898
    %v3900 = vrot.slane %v3899, 2
    %v3901 = vmax.f32 %v3899, %v3900
    %v3902 = vrot.slane %v3901, 1
    %v3903 = vmax.f32 %v3901, %v3902
    %v3904 = vsel %vm3784, %v3748, -inf
    %v3905 = vrot.slane %v3904, 4
    %v3906 = vmax.f32 %v3904, %v3905
    %v3907 = vrot.slane %v3906, 2
    %v3908 = vmax.f32 %v3906, %v3907
    %v3909 = vrot.slane %v3908, 1
    %v3910 = vmax.f32 %v3908, %v3909
    %v3911 = vsel %vm3784, %v3749, -inf
    %v3912 = vrot.slane %v3911, 4
    %v3913 = vmax.f32 %v3911, %v3912
    %v3914 = vrot.slane %v3913, 2
    %v3915 = vmax.f32 %v3913, %v3914
    %v3916 = vrot.slane %v3915, 1
    %v3917 = vmax.f32 %v3915, %v3916
    %v3918 = vsel %vm3784, %v3750, -inf
    %v3919 = vrot.slane %v3918, 4
    %v3920 = vmax.f32 %v3918, %v3919
    %v3921 = vrot.slane %v3920, 2
    %v3922 = vmax.f32 %v3920, %v3921
    %v3923 = vrot.slane %v3922, 1
    %v3924 = vmax.f32 %v3922, %v3923
    %v3925 = vsel %vm3784, %v3725, -inf
    %v3926 = vrot.slane %v3925, 4
    %v3927 = vmax.f32 %v3925, %v3926
    %v3928 = vrot.slane %v3927, 2
    %v3929 = vmax.f32 %v3927, %v3928
    %v3930 = vrot.slane %v3929, 1
    %v3931 = vmax.f32 %v3929, %v3930
    %v3932 = vsel %vm3784, %v3751, -inf
    %v3933 = vrot.slane %v3932, 4
    %v3934 = vmax.f32 %v3932, %v3933
    %v3935 = vrot.slane %v3934, 2
    %v3936 = vmax.f32 %v3934, %v3935
    %v3937 = vrot.slane %v3936, 1
    %v3938 = vmax.f32 %v3936, %v3937
    %v3939 = vsel %vm3784, %v3752, -inf
    %v3940 = vrot.slane %v3939, 4
    %v3941 = vmax.f32 %v3939, %v3940
    %v3942 = vrot.slane %v3941, 2
    %v3943 = vmax.f32 %v3941, %v3942
    %v3944 = vrot.slane %v3943, 1
    %v3945 = vmax.f32 %v3943, %v3944
    %v3946 = vsel %vm3784, %v3753, -inf
    %v3947 = vrot.slane %v3946, 4
    %v3948 = vmax.f32 %v3946, %v3947
    %v3949 = vrot.slane %v3948, 2
    %v3950 = vmax.f32 %v3948, %v3949
    %v3951 = vrot.slane %v3950, 1
    %v3952 = vmax.f32 %v3950, %v3951
    %v3953 = vsel %vm3784, %v3726, -inf
    %v3954 = vrot.slane %v3953, 4
    %v3955 = vmax.f32 %v3953, %v3954
    %v3956 = vrot.slane %v3955, 2
    %v3957 = vmax.f32 %v3955, %v3956
    %v3958 = vrot.slane %v3957, 1
    %v3959 = vmax.f32 %v3957, %v3958
    %v3960 = vsel %vm3784, %v3754, -inf
    %v3961 = vrot.slane %v3960, 4
    %v3962 = vmax.f32 %v3960, %v3961
    %v3963 = vrot.slane %v3962, 2
    %v3964 = vmax.f32 %v3962, %v3963
    %v3965 = vrot.slane %v3964, 1
    %v3966 = vmax.f32 %v3964, %v3965
    %v3967 = vsel %vm3784, %v3755, -inf
    %v3968 = vrot.slane %v3967, 4
    %v3969 = vmax.f32 %v3967, %v3968
    %v3970 = vrot.slane %v3969, 2
    %v3971 = vmax.f32 %v3969, %v3970
    %v3972 = vrot.slane %v3971, 1
    %v3973 = vmax.f32 %v3971, %v3972
    %v3974 = vsel %vm3784, %v3756, -inf
    %v3975 = vrot.slane %v3974, 4
    %v3976 = vmax.f32 %v3974, %v3975
    %v3977 = vrot.slane %v3976, 2
    %v3978 = vmax.f32 %v3976, %v3977
    %v3979 = vrot.slane %v3978, 1
    %v3980 = vmax.f32 %v3978, %v3979
    %v3981 = vsel %vm3784, %v3727, -inf
    %v3982 = vrot.slane %v3981, 4
    %v3983 = vmax.f32 %v3981, %v3982
    %v3984 = vrot.slane %v3983, 2
    %v3985 = vmax.f32 %v3983, %v3984
    %v3986 = vrot.slane %v3985, 1
    %v3987 = vmax.f32 %v3985, %v3986
    %v3988 = vsel %vm3784, %v3757, -inf
    %v3989 = vrot.slane %v3988, 4
    %v3990 = vmax.f32 %v3988, %v3989
    %v3991 = vrot.slane %v3990, 2
    %v3992 = vmax.f32 %v3990, %v3991
    %v3993 = vrot.slane %v3992, 1
    %v3994 = vmax.f32 %v3992, %v3993
    %v3995 = vsel %vm3784, %v3758, -inf
    %v3996 = vrot.slane %v3995, 4
    %v3997 = vmax.f32 %v3995, %v3996
    %v3998 = vrot.slane %v3997, 2
    %v3999 = vmax.f32 %v3997, %v3998
    %v4000 = vrot.slane %v3999, 1
    %v4001 = vmax.f32 %v3999, %v4000
    %v4002 = vsel %vm3784, %v3759, -inf
    %v4003 = vrot.slane %v4002, 4
    %v4004 = vmax.f32 %v4002, %v4003
    %v4005 = vrot.slane %v4004, 2
    %v4006 = vmax.f32 %v4004, %v4005
    %v4007 = vrot.slane %v4006, 1
    %v4008 = vmax.f32 %v4006, %v4007
    %vm4009 = vcmask 523264
    %4010 = vst.msk [vmem:[#allocation3] sm:$0xff] %vm4009, 0.0
    %4011 = vst.msk [vmem:[#allocation3 + $0x20] sm:$0xff] %vm4009, 0.0
    %4012 = vst.msk [vmem:[#allocation3 + $0x18] sm:$0xff] %vm4009, 0.0
    %4013 = vst.msk [vmem:[#allocation3 + $0x38] sm:$0xff] %vm4009, 0.0
    %v4046 = vsel %vm1415, %v3798, %v3791
    %v4047 = vsel %vm1417, %v3805, %v4046
    %v4048 = vsel %vm1419, %v3812, %v4047
    %v4049 = vsel %vm1421, %v3819, %v4048
    %v4050 = vsel %vm1423, %v3826, %v4049
    %v4051 = vsel %vm1425, %v3833, %v4050
    %v4052 = vsel %vm1427, %v3840, %v4051
    %v4053 = vsel %vm1415, %v3854, %v3847
    %v4054 = vsel %vm1417, %v3861, %v4053
    %v4055 = vsel %vm1419, %v3868, %v4054
    %v4056 = vsel %vm1421, %v3875, %v4055
    %v4057 = vsel %vm1423, %v3882, %v4056
    %v4058 = vsel %vm1425, %v3889, %v4057
    %v4059 = vsel %vm1427, %v3896, %v4058
    %v4060 = vsel %vm1415, %v3910, %v3903
    %v4061 = vsel %vm1417, %v3917, %v4060
    %v4062 = vsel %vm1419, %v3924, %v4061
    %v4063 = vsel %vm1421, %v3931, %v4062
    %v4064 = vsel %vm1423, %v3938, %v4063
    %v4065 = vsel %vm1425, %v3945, %v4064
    %v4066 = vsel %vm1427, %v3952, %v4065
    %v4067 = vsel %vm1415, %v3966, %v3959
    %v4068 = vsel %vm1417, %v3973, %v4067
    %v4069 = vsel %vm1419, %v3980, %v4068
    %v4070 = vsel %vm1421, %v3987, %v4069
    %v4071 = vsel %vm1423, %v3994, %v4070
    %v4072 = vsel %vm1425, %v4001, %v4071
    %v4073 = vsel %vm1427, %v4008, %v4072
    %4078 = vst.msk [vmem:[#allocation3 + $0x8] sm:$0xff] %vm4009, %v4052
    %4079 = vst.msk [vmem:[#allocation3 + $0x10] sm:$0xff] %vm4009, %v4059
    %4080 = vst.msk [vmem:[#allocation3 + $0x28] sm:$0xff] %vm4009, %v4066
    %4081 = vst.msk [vmem:[#allocation3 + $0x30] sm:$0xff] %vm4009, %v4073
    %v4082 = vld [vmem:[#allocation3 + $0x7] sm:$0xff]
    %v4083 = vld [vmem:[#allocation3 + $0xf] sm:$0xff]
    %v4084 = vld [vmem:[#allocation3 + $0x27] sm:$0xff]
    %v4085 = vld [vmem:[#allocation3 + $0x2f] sm:$0xff]
    %v4086 = vld [vmem:[#allocation4] sm:$0xff]
    %v4087 = vld [vmem:[#allocation4 + $0x8] sm:$0xff]
    %v4088 = vld [vmem:[#allocation4 + $0x10] sm:$0xff]
    %v4089 = vld [vmem:[#allocation4 + $0x18] sm:$0xff]
    %v4090 = vld [vmem:[#allocation4 + $0x20] sm:$0xff]
    %v4091 = vld [vmem:[#allocation4 + $0x28] sm:$0xff]
    %v4092 = vld [vmem:[#allocation4 + $0x30] sm:$0xff]
    %v4093 = vld [vmem:[#allocation4 + $0x38] sm:$0xff]
    %v4094 = vld [vmem:[#allocation3 + $0x8] sm:$0xff]
    %v4095 = vld [vmem:[#allocation3 + $0x10] sm:$0xff]
    %v4096 = vld [vmem:[#allocation3 + $0x28] sm:$0xff]
    %v4097 = vld [vmem:[#allocation3 + $0x30] sm:$0xff]
    %v4098 = vld [vmem:[#allocation4 + $0x40] sm:$0xff]
    %v4099 = vld [vmem:[#allocation4 + $0x48] sm:$0xff]
    %v4100 = vld [vmem:[#allocation4 + $0x50] sm:$0xff]
    %v4101 = vld [vmem:[#allocation4 + $0x58] sm:$0xff]
    %v4102 = vld [vmem:[#allocation4 + $0x60] sm:$0xff]
    %v4103 = vld [vmem:[#allocation4 + $0x68] sm:$0xff]
    %v4104 = vld [vmem:[#allocation4 + $0x70] sm:$0xff]
    %v4105 = vld [vmem:[#allocation4 + $0x78] sm:$0xff]
    %v4107 = vsel %vm4009, %v4094, 0
    %v4110 = vsel %vm4009, %v4095, 0
    %v4113 = vsel %vm4009, %v4096, 0
    %v4116 = vsel %vm4009, %v4097, 0
    %4118 = vmatpush.msra.mxu0 0.0
    %4119 = vmatpush.msra.mxu0 0.0
    %4120 = vmatpush.msra.mxu0 0.0
    %4121 = vmatpush.msra.mxu0 0.0
    %4122 = vmatpush.msra.mxu0 0.0
    %4123 = vmatpush.msra.mxu0 0.0
    %4124 = vmatpush.msra.mxu0 0.0
    %4125 = vmatpush.msra.mxu0 0.0
    %v4126 = vand.u32 %v4105, 4294901760
    %4127 = vmatpush.msra.mxu0 %v4126
    %v4128 = vand.u32 %v4104, 4294901760
    %4129 = vmatpush.msra.mxu0 %v4128
    %v4130 = vand.u32 %v4103, 4294901760
    %4131 = vmatpush.msra.mxu0 %v4130
    %v4132 = vand.u32 %v4102, 4294901760
    %4133 = vmatpush.msra.mxu0 %v4132
    %v4134 = vand.u32 %v4101, 4294901760
    %4135 = vmatpush.msra.mxu0 %v4134
    %v4136 = vand.u32 %v4100, 4294901760
    %4137 = vmatpush.msra.mxu0 %v4136
    %v4138 = vand.u32 %v4099, 4294901760
    %4139 = vmatpush.msra.mxu0 %v4138
    %v4140 = vand.u32 %v4098, 4294901760
    %4141 = vmatpush.msra.mxu0 %v4140
    %v4142 = vand.u32 %v4107, 4294901760
    %v4143 = vsub.f32 %v4107, %v4142
    %v4144 = vand.u32 %v4143, 4294901760
    %v4145 = vsub.f32 %v4143, %v4144
    %v4146 = vand.u32 %v4145, 4294901760
    %4147 = vmatmul.f32.gmra.mxu0 %v4146
    %v4148 = vpop.f32.mrf.mxu0
    %v4149 = vadd.f32 0.0, %v4148
    %v4150 = vand.u32 %v4110, 4294901760
    %v4151 = vsub.f32 %v4110, %v4150
    %v4152 = vand.u32 %v4151, 4294901760
    %v4153 = vsub.f32 %v4151, %v4152
    %v4154 = vand.u32 %v4153, 4294901760
    %4155 = vmatmul.f32.gmra.mxu0 %v4154
    %v4156 = vpop.f32.mrf.mxu0
    %v4157 = vadd.f32 0.0, %v4156
    %v4158 = vand.u32 %v4113, 4294901760
    %v4159 = vsub.f32 %v4113, %v4158
    %v4160 = vand.u32 %v4159, 4294901760
    %v4161 = vsub.f32 %v4159, %v4160
    %v4162 = vand.u32 %v4161, 4294901760
    %4163 = vmatmul.f32.gmra.mxu0 %v4162
    %v4164 = vpop.f32.mrf.mxu0
    %v4165 = vadd.f32 0.0, %v4164
    %v4166 = vand.u32 %v4116, 4294901760
    %v4167 = vsub.f32 %v4116, %v4166
    %v4168 = vand.u32 %v4167, 4294901760
    %v4169 = vsub.f32 %v4167, %v4168
    %v4170 = vand.u32 %v4169, 4294901760
    %4171 = vmatmul.f32.gmra.mxu0 %v4170
    %v4172 = vpop.f32.mrf.mxu0
    %v4173 = vadd.f32 0.0, %v4172
    %4174 = vdwg.mxu0
    %4175 = vmatpush.msra.mxu0 0.0
    %4176 = vmatpush.msra.mxu0 0.0
    %4177 = vmatpush.msra.mxu0 0.0
    %4178 = vmatpush.msra.mxu0 0.0
    %4179 = vmatpush.msra.mxu0 0.0
    %4180 = vmatpush.msra.mxu0 0.0
    %4181 = vmatpush.msra.mxu0 0.0
    %4182 = vmatpush.msra.mxu0 0.0
    %v4183 = vand.u32 %v4105, 4294901760
    %v4184 = vsub.f32 %v4105, %v4183
    %v4185 = vand.u32 %v4184, 4294901760
    %v4186 = vsub.f32 %v4184, %v4185
    %v4187 = vand.u32 %v4186, 4294901760
    %4188 = vmatpush.msra.mxu0 %v4187
    %v4189 = vand.u32 %v4104, 4294901760
    %v4190 = vsub.f32 %v4104, %v4189
    %v4191 = vand.u32 %v4190, 4294901760
    %v4192 = vsub.f32 %v4190, %v4191
    %v4193 = vand.u32 %v4192, 4294901760
    %4194 = vmatpush.msra.mxu0 %v4193
    %v4195 = vand.u32 %v4103, 4294901760
    %v4196 = vsub.f32 %v4103, %v4195
    %v4197 = vand.u32 %v4196, 4294901760
    %v4198 = vsub.f32 %v4196, %v4197
    %v4199 = vand.u32 %v4198, 4294901760
    %4200 = vmatpush.msra.mxu0 %v4199
    %v4201 = vand.u32 %v4102, 4294901760
    %v4202 = vsub.f32 %v4102, %v4201
    %v4203 = vand.u32 %v4202, 4294901760
    %v4204 = vsub.f32 %v4202, %v4203
    %v4205 = vand.u32 %v4204, 4294901760
    %4206 = vmatpush.msra.mxu0 %v4205
    %v4207 = vand.u32 %v4101, 4294901760
    %v4208 = vsub.f32 %v4101, %v4207
    %v4209 = vand.u32 %v4208, 4294901760
    %v4210 = vsub.f32 %v4208, %v4209
    %v4211 = vand.u32 %v4210, 4294901760
    %4212 = vmatpush.msra.mxu0 %v4211
    %v4213 = vand.u32 %v4100, 4294901760
    %v4214 = vsub.f32 %v4100, %v4213
    %v4215 = vand.u32 %v4214, 4294901760
    %v4216 = vsub.f32 %v4214, %v4215
    %v4217 = vand.u32 %v4216, 4294901760
    %4218 = vmatpush.msra.mxu0 %v4217
    %v4219 = vand.u32 %v4099, 4294901760
    %v4220 = vsub.f32 %v4099, %v4219
    %v4221 = vand.u32 %v4220, 4294901760
    %v4222 = vsub.f32 %v4220, %v4221
    %v4223 = vand.u32 %v4222, 4294901760
    %4224 = vmatpush.msra.mxu0 %v4223
    %v4225 = vand.u32 %v4098, 4294901760
    %v4226 = vsub.f32 %v4098, %v4225
    %v4227 = vand.u32 %v4226, 4294901760
    %v4228 = vsub.f32 %v4226, %v4227
    %v4229 = vand.u32 %v4228, 4294901760
    %4230 = vmatpush.msra.mxu0 %v4229
    %v4231 = vand.u32 %v4107, 4294901760
    %4232 = vmatmul.f32.gmra.mxu0 %v4231
    %v4233 = vpop.f32.mrf.mxu0
    %v4234 = vadd.f32 %v4149, %v4233
    %v4235 = vand.u32 %v4110, 4294901760
    %4236 = vmatmul.f32.gmra.mxu0 %v4235
    %v4237 = vpop.f32.mrf.mxu0
    %v4238 = vadd.f32 %v4157, %v4237
    %v4239 = vand.u32 %v4113, 4294901760
    %4240 = vmatmul.f32.gmra.mxu0 %v4239
    %v4241 = vpop.f32.mrf.mxu0
    %v4242 = vadd.f32 %v4165, %v4241
    %v4243 = vand.u32 %v4116, 4294901760
    %4244 = vmatmul.f32.gmra.mxu0 %v4243
    %v4245 = vpop.f32.mrf.mxu0
    %v4246 = vadd.f32 %v4173, %v4245
    %4247 = vdwg.mxu0
    %4248 = vmatpush.msra.mxu0 0.0
    %4249 = vmatpush.msra.mxu0 0.0
    %4250 = vmatpush.msra.mxu0 0.0
    %4251 = vmatpush.msra.mxu0 0.0
    %4252 = vmatpush.msra.mxu0 0.0
    %4253 = vmatpush.msra.mxu0 0.0
    %4254 = vmatpush.msra.mxu0 0.0
    %4255 = vmatpush.msra.mxu0 0.0
    %v4256 = vand.u32 %v4105, 4294901760
    %v4257 = vsub.f32 %v4105, %v4256
    %4258 = vmatpush.msra.mxu0 %v4257
    %v4259 = vand.u32 %v4104, 4294901760
    %v4260 = vsub.f32 %v4104, %v4259
    %4261 = vmatpush.msra.mxu0 %v4260
    %v4262 = vand.u32 %v4103, 4294901760
    %v4263 = vsub.f32 %v4103, %v4262
    %4264 = vmatpush.msra.mxu0 %v4263
    %v4265 = vand.u32 %v4102, 4294901760
    %v4266 = vsub.f32 %v4102, %v4265
    %4267 = vmatpush.msra.mxu0 %v4266
    %v4268 = vand.u32 %v4101, 4294901760
    %v4269 = vsub.f32 %v4101, %v4268
    %4270 = vmatpush.msra.mxu0 %v4269
    %v4271 = vand.u32 %v4100, 4294901760
    %v4272 = vsub.f32 %v4100, %v4271
    %4273 = vmatpush.msra.mxu0 %v4272
    %v4274 = vand.u32 %v4099, 4294901760
    %v4275 = vsub.f32 %v4099, %v4274
    %4276 = vmatpush.msra.mxu0 %v4275
    %v4277 = vand.u32 %v4098, 4294901760
    %v4278 = vsub.f32 %v4098, %v4277
    %4279 = vmatpush.msra.mxu0 %v4278
    %v4280 = vand.u32 %v4107, 4294901760
    %v4281 = vsub.f32 %v4107, %v4280
    %4282 = vmatmul.f32.gmra.mxu0 %v4281
    %v4283 = vpop.f32.mrf.mxu0
    %v4284 = vadd.f32 %v4234, %v4283
    %v4285 = vand.u32 %v4110, 4294901760
    %v4286 = vsub.f32 %v4110, %v4285
    %4287 = vmatmul.f32.gmra.mxu0 %v4286
    %v4288 = vpop.f32.mrf.mxu0
    %v4289 = vadd.f32 %v4238, %v4288
    %v4290 = vand.u32 %v4113, 4294901760
    %v4291 = vsub.f32 %v4113, %v4290
    %4292 = vmatmul.f32.gmra.mxu0 %v4291
    %v4293 = vpop.f32.mrf.mxu0
    %v4294 = vadd.f32 %v4242, %v4293
    %v4295 = vand.u32 %v4116, 4294901760
    %v4296 = vsub.f32 %v4116, %v4295
    %4297 = vmatmul.f32.gmra.mxu0 %v4296
    %v4298 = vpop.f32.mrf.mxu0
    %v4299 = vadd.f32 %v4246, %v4298
    %4300 = vdwg.mxu0
    %4301 = vmatpush.msra.mxu0 0.0
    %4302 = vmatpush.msra.mxu0 0.0
    %4303 = vmatpush.msra.mxu0 0.0
    %4304 = vmatpush.msra.mxu0 0.0
    %4305 = vmatpush.msra.mxu0 0.0
    %4306 = vmatpush.msra.mxu0 0.0
    %4307 = vmatpush.msra.mxu0 0.0
    %4308 = vmatpush.msra.mxu0 0.0
    %v4309 = vand.u32 %v4105, 4294901760
    %4310 = vmatpush.msra.mxu0 %v4309
    %v4311 = vand.u32 %v4104, 4294901760
    %4312 = vmatpush.msra.mxu0 %v4311
    %v4313 = vand.u32 %v4103, 4294901760
    %4314 = vmatpush.msra.mxu0 %v4313
    %v4315 = vand.u32 %v4102, 4294901760
    %4316 = vmatpush.msra.mxu0 %v4315
    %v4317 = vand.u32 %v4101, 4294901760
    %4318 = vmatpush.msra.mxu0 %v4317
    %v4319 = vand.u32 %v4100, 4294901760
    %4320 = vmatpush.msra.mxu0 %v4319
    %v4321 = vand.u32 %v4099, 4294901760
    %4322 = vmatpush.msra.mxu0 %v4321
    %v4323 = vand.u32 %v4098, 4294901760
    %4324 = vmatpush.msra.mxu0 %v4323
    %v4325 = vand.u32 %v4107, 4294901760
    %v4326 = vsub.f32 %v4107, %v4325
    %v4327 = vand.u32 %v4326, 4294901760
    %4328 = vmatmul.f32.gmra.mxu0 %v4327
    %v4329 = vpop.f32.mrf.mxu0
    %v4330 = vadd.f32 %v4284, %v4329
    %v4331 = vand.u32 %v4110, 4294901760
    %v4332 = vsub.f32 %v4110, %v4331
    %v4333 = vand.u32 %v4332, 4294901760
    %4334 = vmatmul.f32.gmra.mxu0 %v4333
    %v4335 = vpop.f32.mrf.mxu0
    %v4336 = vadd.f32 %v4289, %v4335
    %v4337 = vand.u32 %v4113, 4294901760
    %v4338 = vsub.f32 %v4113, %v4337
    %v4339 = vand.u32 %v4338, 4294901760
    %4340 = vmatmul.f32.gmra.mxu0 %v4339
    %v4341 = vpop.f32.mrf.mxu0
    %v4342 = vadd.f32 %v4294, %v4341
    %v4343 = vand.u32 %v4116, 4294901760
    %v4344 = vsub.f32 %v4116, %v4343
    %v4345 = vand.u32 %v4344, 4294901760
    %4346 = vmatmul.f32.gmra.mxu0 %v4345
    %v4347 = vpop.f32.mrf.mxu0
    %v4348 = vadd.f32 %v4299, %v4347
    %4349 = vdwg.mxu0
    %4350 = vmatpush.msra.mxu0 0.0
    %4351 = vmatpush.msra.mxu0 0.0
    %4352 = vmatpush.msra.mxu0 0.0
    %4353 = vmatpush.msra.mxu0 0.0
    %4354 = vmatpush.msra.mxu0 0.0
    %4355 = vmatpush.msra.mxu0 0.0
    %4356 = vmatpush.msra.mxu0 0.0
    %4357 = vmatpush.msra.mxu0 0.0
    %v4358 = vand.u32 %v4105, 4294901760
    %v4359 = vsub.f32 %v4105, %v4358
    %v4360 = vand.u32 %v4359, 4294901760
    %4361 = vmatpush.msra.mxu0 %v4360
    %v4362 = vand.u32 %v4104, 4294901760
    %v4363 = vsub.f32 %v4104, %v4362
    %v4364 = vand.u32 %v4363, 4294901760
    %4365 = vmatpush.msra.mxu0 %v4364
    %v4366 = vand.u32 %v4103, 4294901760
    %v4367 = vsub.f32 %v4103, %v4366
    %v4368 = vand.u32 %v4367, 4294901760
    %4369 = vmatpush.msra.mxu0 %v4368
    %v4370 = vand.u32 %v4102, 4294901760
    %v4371 = vsub.f32 %v4102, %v4370
    %v4372 = vand.u32 %v4371, 4294901760
    %4373 = vmatpush.msra.mxu0 %v4372
    %v4374 = vand.u32 %v4101, 4294901760
    %v4375 = vsub.f32 %v4101, %v4374
    %v4376 = vand.u32 %v4375, 4294901760
    %4377 = vmatpush.msra.mxu0 %v4376
    %v4378 = vand.u32 %v4100, 4294901760
    %v4379 = vsub.f32 %v4100, %v4378
    %v4380 = vand.u32 %v4379, 4294901760
    %4381 = vmatpush.msra.mxu0 %v4380
    %v4382 = vand.u32 %v4099, 4294901760
    %v4383 = vsub.f32 %v4099, %v4382
    %v4384 = vand.u32 %v4383, 4294901760
    %4385 = vmatpush.msra.mxu0 %v4384
    %v4386 = vand.u32 %v4098, 4294901760
    %v4387 = vsub.f32 %v4098, %v4386
    %v4388 = vand.u32 %v4387, 4294901760
    %4389 = vmatpush.msra.mxu0 %v4388
    %v4390 = vand.u32 %v4107, 4294901760
    %4391 = vmatmul.f32.gmra.mxu0 %v4390
    %v4392 = vpop.f32.mrf.mxu0
    %v4393 = vadd.f32 %v4330, %v4392
    %v4394 = vand.u32 %v4110, 4294901760
    %4395 = vmatmul.f32.gmra.mxu0 %v4394
    %v4396 = vpop.f32.mrf.mxu0
    %v4397 = vadd.f32 %v4336, %v4396
    %v4398 = vand.u32 %v4113, 4294901760
    %4399 = vmatmul.f32.gmra.mxu0 %v4398
    %v4400 = vpop.f32.mrf.mxu0
    %v4401 = vadd.f32 %v4342, %v4400
    %v4402 = vand.u32 %v4116, 4294901760
    %4403 = vmatmul.f32.gmra.mxu0 %v4402
    %v4404 = vpop.f32.mrf.mxu0
    %v4405 = vadd.f32 %v4348, %v4404
    %4406 = vdwg.mxu0
    %4407 = vmatpush.msra.mxu0 0.0
    %4408 = vmatpush.msra.mxu0 0.0
    %4409 = vmatpush.msra.mxu0 0.0
    %4410 = vmatpush.msra.mxu0 0.0
    %4411 = vmatpush.msra.mxu0 0.0
    %4412 = vmatpush.msra.mxu0 0.0
    %4413 = vmatpush.msra.mxu0 0.0
    %4414 = vmatpush.msra.mxu0 0.0
    %v4415 = vand.u32 %v4105, 4294901760
    %4416 = vmatpush.msra.mxu0 %v4415
    %v4417 = vand.u32 %v4104, 4294901760
    %4418 = vmatpush.msra.mxu0 %v4417
    %v4419 = vand.u32 %v4103, 4294901760
    %4420 = vmatpush.msra.mxu0 %v4419
    %v4421 = vand.u32 %v4102, 4294901760
    %4422 = vmatpush.msra.mxu0 %v4421
    %v4423 = vand.u32 %v4101, 4294901760
    %4424 = vmatpush.msra.mxu0 %v4423
    %v4425 = vand.u32 %v4100, 4294901760
    %4426 = vmatpush.msra.mxu0 %v4425
    %v4427 = vand.u32 %v4099, 4294901760
    %4428 = vmatpush.msra.mxu0 %v4427
    %v4429 = vand.u32 %v4098, 4294901760
    %4430 = vmatpush.msra.mxu0 %v4429
    %v4431 = vand.u32 %v4107, 4294901760
    %4432 = vmatmul.f32.gmra.mxu0 %v4431
    %v4433 = vpop.f32.mrf.mxu0
    %v4434 = vadd.f32 %v4393, %v4433
    %v4435 = vand.u32 %v4110, 4294901760
    %4436 = vmatmul.f32.gmra.mxu0 %v4435
    %v4437 = vpop.f32.mrf.mxu0
    %v4438 = vadd.f32 %v4397, %v4437
    %v4439 = vand.u32 %v4113, 4294901760
    %4440 = vmatmul.f32.gmra.mxu0 %v4439
    %v4441 = vpop.f32.mrf.mxu0
    %v4442 = vadd.f32 %v4401, %v4441
    %v4443 = vand.u32 %v4116, 4294901760
    %4444 = vmatmul.f32.gmra.mxu0 %v4443
    %v4445 = vpop.f32.mrf.mxu0
    %v4446 = vadd.f32 %v4405, %v4445
    %4447 = vdwg.mxu0
    %v4449 = vsel %vm4009, %v4082, 0
    %v4452 = vsel %vm4009, %v4083, 0
    %v4455 = vsel %vm4009, %v4084, 0
    %v4458 = vsel %vm4009, %v4085, 0
    %4460 = vmatpush.msra.mxu0 0.0
    %4461 = vmatpush.msra.mxu0 0.0
    %4462 = vmatpush.msra.mxu0 0.0
    %4463 = vmatpush.msra.mxu0 0.0
    %4464 = vmatpush.msra.mxu0 0.0
    %4465 = vmatpush.msra.mxu0 0.0
    %4466 = vmatpush.msra.mxu0 0.0
    %4467 = vmatpush.msra.mxu0 0.0
    %v4468 = vand.u32 %v4093, 4294901760
    %4469 = vmatpush.msra.mxu0 %v4468
    %v4470 = vand.u32 %v4092, 4294901760
    %4471 = vmatpush.msra.mxu0 %v4470
    %v4472 = vand.u32 %v4091, 4294901760
    %4473 = vmatpush.msra.mxu0 %v4472
    %v4474 = vand.u32 %v4090, 4294901760
    %4475 = vmatpush.msra.mxu0 %v4474
    %v4476 = vand.u32 %v4089, 4294901760
    %4477 = vmatpush.msra.mxu0 %v4476
    %v4478 = vand.u32 %v4088, 4294901760
    %4479 = vmatpush.msra.mxu0 %v4478
    %v4480 = vand.u32 %v4087, 4294901760
    %4481 = vmatpush.msra.mxu0 %v4480
    %v4482 = vand.u32 %v4086, 4294901760
    %4483 = vmatpush.msra.mxu0 %v4482
    %v4484 = vand.u32 %v4449, 4294901760
    %v4485 = vsub.f32 %v4449, %v4484
    %v4486 = vand.u32 %v4485, 4294901760
    %v4487 = vsub.f32 %v4485, %v4486
    %v4488 = vand.u32 %v4487, 4294901760
    %4489 = vmatmul.f32.gmra.mxu0 %v4488
    %v4490 = vpop.f32.mrf.mxu0
    %v4491 = vadd.f32 %v4434, %v4490
    %v4492 = vand.u32 %v4452, 4294901760
    %v4493 = vsub.f32 %v4452, %v4492
    %v4494 = vand.u32 %v4493, 4294901760
    %v4495 = vsub.f32 %v4493, %v4494
    %v4496 = vand.u32 %v4495, 4294901760
    %4497 = vmatmul.f32.gmra.mxu0 %v4496
    %v4498 = vpop.f32.mrf.mxu0
    %v4499 = vadd.f32 %v4438, %v4498
    %v4500 = vand.u32 %v4455, 4294901760
    %v4501 = vsub.f32 %v4455, %v4500
    %v4502 = vand.u32 %v4501, 4294901760
    %v4503 = vsub.f32 %v4501, %v4502
    %v4504 = vand.u32 %v4503, 4294901760
    %4505 = vmatmul.f32.gmra.mxu0 %v4504
    %v4506 = vpop.f32.mrf.mxu0
    %v4507 = vadd.f32 %v4442, %v4506
    %v4508 = vand.u32 %v4458, 4294901760
    %v4509 = vsub.f32 %v4458, %v4508
    %v4510 = vand.u32 %v4509, 4294901760
    %v4511 = vsub.f32 %v4509, %v4510
    %v4512 = vand.u32 %v4511, 4294901760
    %4513 = vmatmul.f32.gmra.mxu0 %v4512
    %v4514 = vpop.f32.mrf.mxu0
    %v4515 = vadd.f32 %v4446, %v4514
    %4516 = vdwg.mxu0
    %4517 = vmatpush.msra.mxu0 0.0
    %4518 = vmatpush.msra.mxu0 0.0
    %4519 = vmatpush.msra.mxu0 0.0
    %4520 = vmatpush.msra.mxu0 0.0
    %4521 = vmatpush.msra.mxu0 0.0
    %4522 = vmatpush.msra.mxu0 0.0
    %4523 = vmatpush.msra.mxu0 0.0
    %4524 = vmatpush.msra.mxu0 0.0
    %v4525 = vand.u32 %v4093, 4294901760
    %v4526 = vsub.f32 %v4093, %v4525
    %v4527 = vand.u32 %v4526, 4294901760
    %v4528 = vsub.f32 %v4526, %v4527
    %v4529 = vand.u32 %v4528, 4294901760
    %4530 = vmatpush.msra.mxu0 %v4529
    %v4531 = vand.u32 %v4092, 4294901760
    %v4532 = vsub.f32 %v4092, %v4531
    %v4533 = vand.u32 %v4532, 4294901760
    %v4534 = vsub.f32 %v4532, %v4533
    %v4535 = vand.u32 %v4534, 4294901760
    %4536 = vmatpush.msra.mxu0 %v4535
    %v4537 = vand.u32 %v4091, 4294901760
    %v4538 = vsub.f32 %v4091, %v4537
    %v4539 = vand.u32 %v4538, 4294901760
    %v4540 = vsub.f32 %v4538, %v4539
    %v4541 = vand.u32 %v4540, 4294901760
    %4542 = vmatpush.msra.mxu0 %v4541
    %v4543 = vand.u32 %v4090, 4294901760
    %v4544 = vsub.f32 %v4090, %v4543
    %v4545 = vand.u32 %v4544, 4294901760
    %v4546 = vsub.f32 %v4544, %v4545
    %v4547 = vand.u32 %v4546, 4294901760
    %4548 = vmatpush.msra.mxu0 %v4547
    %v4549 = vand.u32 %v4089, 4294901760
    %v4550 = vsub.f32 %v4089, %v4549
    %v4551 = vand.u32 %v4550, 4294901760
    %v4552 = vsub.f32 %v4550, %v4551
    %v4553 = vand.u32 %v4552, 4294901760
    %4554 = vmatpush.msra.mxu0 %v4553
    %v4555 = vand.u32 %v4088, 4294901760
    %v4556 = vsub.f32 %v4088, %v4555
    %v4557 = vand.u32 %v4556, 4294901760
    %v4558 = vsub.f32 %v4556, %v4557
    %v4559 = vand.u32 %v4558, 4294901760
    %4560 = vmatpush.msra.mxu0 %v4559
    %v4561 = vand.u32 %v4087, 4294901760
    %v4562 = vsub.f32 %v4087, %v4561
    %v4563 = vand.u32 %v4562, 4294901760
    %v4564 = vsub.f32 %v4562, %v4563
    %v4565 = vand.u32 %v4564, 4294901760
    %4566 = vmatpush.msra.mxu0 %v4565
    %v4567 = vand.u32 %v4086, 4294901760
    %v4568 = vsub.f32 %v4086, %v4567
    %v4569 = vand.u32 %v4568, 4294901760
    %v4570 = vsub.f32 %v4568, %v4569
    %v4571 = vand.u32 %v4570, 4294901760
    %4572 = vmatpush.msra.mxu0 %v4571
    %v4573 = vand.u32 %v4449, 4294901760
    %4574 = vmatmul.f32.gmra.mxu0 %v4573
    %v4575 = vpop.f32.mrf.mxu0
    %v4576 = vadd.f32 %v4491, %v4575
    %v4577 = vand.u32 %v4452, 4294901760
    %4578 = vmatmul.f32.gmra.mxu0 %v4577
    %v4579 = vpop.f32.mrf.mxu0
    %v4580 = vadd.f32 %v4499, %v4579
    %v4581 = vand.u32 %v4455, 4294901760
    %4582 = vmatmul.f32.gmra.mxu0 %v4581
    %v4583 = vpop.f32.mrf.mxu0
    %v4584 = vadd.f32 %v4507, %v4583
    %v4585 = vand.u32 %v4458, 4294901760
    %4586 = vmatmul.f32.gmra.mxu0 %v4585
    %v4587 = vpop.f32.mrf.mxu0
    %v4588 = vadd.f32 %v4515, %v4587
    %4589 = vdwg.mxu0
    %4590 = vmatpush.msra.mxu0 0.0
    %4591 = vmatpush.msra.mxu0 0.0
    %4592 = vmatpush.msra.mxu0 0.0
    %4593 = vmatpush.msra.mxu0 0.0
    %4594 = vmatpush.msra.mxu0 0.0
    %4595 = vmatpush.msra.mxu0 0.0
    %4596 = vmatpush.msra.mxu0 0.0
    %4597 = vmatpush.msra.mxu0 0.0
    %v4598 = vand.u32 %v4093, 4294901760
    %v4599 = vsub.f32 %v4093, %v4598
    %4600 = vmatpush.msra.mxu0 %v4599
    %v4601 = vand.u32 %v4092, 4294901760
    %v4602 = vsub.f32 %v4092, %v4601
    %4603 = vmatpush.msra.mxu0 %v4602
    %v4604 = vand.u32 %v4091, 4294901760
    %v4605 = vsub.f32 %v4091, %v4604
    %4606 = vmatpush.msra.mxu0 %v4605
    %v4607 = vand.u32 %v4090, 4294901760
    %v4608 = vsub.f32 %v4090, %v4607
    %4609 = vmatpush.msra.mxu0 %v4608
    %v4610 = vand.u32 %v4089, 4294901760
    %v4611 = vsub.f32 %v4089, %v4610
    %4612 = vmatpush.msra.mxu0 %v4611
    %v4613 = vand.u32 %v4088, 4294901760
    %v4614 = vsub.f32 %v4088, %v4613
    %4615 = vmatpush.msra.mxu0 %v4614
    %v4616 = vand.u32 %v4087, 4294901760
    %v4617 = vsub.f32 %v4087, %v4616
    %4618 = vmatpush.msra.mxu0 %v4617
    %v4619 = vand.u32 %v4086, 4294901760
    %v4620 = vsub.f32 %v4086, %v4619
    %4621 = vmatpush.msra.mxu0 %v4620
    %v4622 = vand.u32 %v4449, 4294901760
    %v4623 = vsub.f32 %v4449, %v4622
    %4624 = vmatmul.f32.gmra.mxu0 %v4623
    %v4625 = vpop.f32.mrf.mxu0
    %v4626 = vadd.f32 %v4576, %v4625
    %v4627 = vand.u32 %v4452, 4294901760
    %v4628 = vsub.f32 %v4452, %v4627
    %4629 = vmatmul.f32.gmra.mxu0 %v4628
    %v4630 = vpop.f32.mrf.mxu0
    %v4631 = vadd.f32 %v4580, %v4630
    %v4632 = vand.u32 %v4455, 4294901760
    %v4633 = vsub.f32 %v4455, %v4632
    %4634 = vmatmul.f32.gmra.mxu0 %v4633
    %v4635 = vpop.f32.mrf.mxu0
    %v4636 = vadd.f32 %v4584, %v4635
    %v4637 = vand.u32 %v4458, 4294901760
    %v4638 = vsub.f32 %v4458, %v4637
    %4639 = vmatmul.f32.gmra.mxu0 %v4638
    %v4640 = vpop.f32.mrf.mxu0
    %v4641 = vadd.f32 %v4588, %v4640
    %4642 = vdwg.mxu0
    %4643 = vmatpush.msra.mxu0 0.0
    %4644 = vmatpush.msra.mxu0 0.0
    %4645 = vmatpush.msra.mxu0 0.0
    %4646 = vmatpush.msra.mxu0 0.0
    %4647 = vmatpush.msra.mxu0 0.0
    %4648 = vmatpush.msra.mxu0 0.0
    %4649 = vmatpush.msra.mxu0 0.0
    %4650 = vmatpush.msra.mxu0 0.0
    %v4651 = vand.u32 %v4093, 4294901760
    %4652 = vmatpush.msra.mxu0 %v4651
    %v4653 = vand.u32 %v4092, 4294901760
    %4654 = vmatpush.msra.mxu0 %v4653
    %v4655 = vand.u32 %v4091, 4294901760
    %4656 = vmatpush.msra.mxu0 %v4655
    %v4657 = vand.u32 %v4090, 4294901760
    %4658 = vmatpush.msra.mxu0 %v4657
    %v4659 = vand.u32 %v4089, 4294901760
    %4660 = vmatpush.msra.mxu0 %v4659
    %v4661 = vand.u32 %v4088, 4294901760
    %4662 = vmatpush.msra.mxu0 %v4661
    %v4663 = vand.u32 %v4087, 4294901760
    %4664 = vmatpush.msra.mxu0 %v4663
    %v4665 = vand.u32 %v4086, 4294901760
    %4666 = vmatpush.msra.mxu0 %v4665
    %v4667 = vand.u32 %v4449, 4294901760
    %v4668 = vsub.f32 %v4449, %v4667
    %v4669 = vand.u32 %v4668, 4294901760
    %4670 = vmatmul.f32.gmra.mxu0 %v4669
    %v4671 = vpop.f32.mrf.mxu0
    %v4672 = vadd.f32 %v4626, %v4671
    %v4673 = vand.u32 %v4452, 4294901760
    %v4674 = vsub.f32 %v4452, %v4673
    %v4675 = vand.u32 %v4674, 4294901760
    %4676 = vmatmul.f32.gmra.mxu0 %v4675
    %v4677 = vpop.f32.mrf.mxu0
    %v4678 = vadd.f32 %v4631, %v4677
    %v4679 = vand.u32 %v4455, 4294901760
    %v4680 = vsub.f32 %v4455, %v4679
    %v4681 = vand.u32 %v4680, 4294901760
    %4682 = vmatmul.f32.gmra.mxu0 %v4681
    %v4683 = vpop.f32.mrf.mxu0
    %v4684 = vadd.f32 %v4636, %v4683
    %v4685 = vand.u32 %v4458, 4294901760
    %v4686 = vsub.f32 %v4458, %v4685
    %v4687 = vand.u32 %v4686, 4294901760
    %4688 = vmatmul.f32.gmra.mxu0 %v4687
    %v4689 = vpop.f32.mrf.mxu0
    %v4690 = vadd.f32 %v4641, %v4689
    %4691 = vdwg.mxu0
    %4692 = vmatpush.msra.mxu0 0.0
    %4693 = vmatpush.msra.mxu0 0.0
    %4694 = vmatpush.msra.mxu0 0.0
    %4695 = vmatpush.msra.mxu0 0.0
    %4696 = vmatpush.msra.mxu0 0.0
    %4697 = vmatpush.msra.mxu0 0.0
    %4698 = vmatpush.msra.mxu0 0.0
    %4699 = vmatpush.msra.mxu0 0.0
    %v4700 = vand.u32 %v4093, 4294901760
    %v4701 = vsub.f32 %v4093, %v4700
    %v4702 = vand.u32 %v4701, 4294901760
    %4703 = vmatpush.msra.mxu0 %v4702
    %v4704 = vand.u32 %v4092, 4294901760
    %v4705 = vsub.f32 %v4092, %v4704
    %v4706 = vand.u32 %v4705, 4294901760
    %4707 = vmatpush.msra.mxu0 %v4706
    %v4708 = vand.u32 %v4091, 4294901760
    %v4709 = vsub.f32 %v4091, %v4708
    %v4710 = vand.u32 %v4709, 4294901760
    %4711 = vmatpush.msra.mxu0 %v4710
    %v4712 = vand.u32 %v4090, 4294901760
    %v4713 = vsub.f32 %v4090, %v4712
    %v4714 = vand.u32 %v4713, 4294901760
    %4715 = vmatpush.msra.mxu0 %v4714
    %v4716 = vand.u32 %v4089, 4294901760
    %v4717 = vsub.f32 %v4089, %v4716
    %v4718 = vand.u32 %v4717, 4294901760
    %4719 = vmatpush.msra.mxu0 %v4718
    %v4720 = vand.u32 %v4088, 4294901760
    %v4721 = vsub.f32 %v4088, %v4720
    %v4722 = vand.u32 %v4721, 4294901760
    %4723 = vmatpush.msra.mxu0 %v4722
    %v4724 = vand.u32 %v4087, 4294901760
    %v4725 = vsub.f32 %v4087, %v4724
    %v4726 = vand.u32 %v4725, 4294901760
    %4727 = vmatpush.msra.mxu0 %v4726
    %v4728 = vand.u32 %v4086, 4294901760
    %v4729 = vsub.f32 %v4086, %v4728
    %v4730 = vand.u32 %v4729, 4294901760
    %4731 = vmatpush.msra.mxu0 %v4730
    %v4732 = vand.u32 %v4449, 4294901760
    %4733 = vmatmul.f32.gmra.mxu0 %v4732
    %v4734 = vpop.f32.mrf.mxu0
    %v4735 = vadd.f32 %v4672, %v4734
    %v4736 = vand.u32 %v4452, 4294901760
    %4737 = vmatmul.f32.gmra.mxu0 %v4736
    %v4738 = vpop.f32.mrf.mxu0
    %v4739 = vadd.f32 %v4678, %v4738
    %v4740 = vand.u32 %v4455, 4294901760
    %4741 = vmatmul.f32.gmra.mxu0 %v4740
    %v4742 = vpop.f32.mrf.mxu0
    %v4743 = vadd.f32 %v4684, %v4742
    %v4744 = vand.u32 %v4458, 4294901760
    %4745 = vmatmul.f32.gmra.mxu0 %v4744
    %v4746 = vpop.f32.mrf.mxu0
    %v4747 = vadd.f32 %v4690, %v4746
    %4748 = vdwg.mxu0
    %4749 = vmatpush.msra.mxu0 0.0
    %4750 = vmatpush.msra.mxu0 0.0
    %4751 = vmatpush.msra.mxu0 0.0
    %4752 = vmatpush.msra.mxu0 0.0
    %4753 = vmatpush.msra.mxu0 0.0
    %4754 = vmatpush.msra.mxu0 0.0
    %4755 = vmatpush.msra.mxu0 0.0
    %4756 = vmatpush.msra.mxu0 0.0
    %v4757 = vand.u32 %v4093, 4294901760
    %4758 = vmatpush.msra.mxu0 %v4757
    %v4759 = vand.u32 %v4092, 4294901760
    %4760 = vmatpush.msra.mxu0 %v4759
    %v4761 = vand.u32 %v4091, 4294901760
    %4762 = vmatpush.msra.mxu0 %v4761
    %v4763 = vand.u32 %v4090, 4294901760
    %4764 = vmatpush.msra.mxu0 %v4763
    %v4765 = vand.u32 %v4089, 4294901760
    %4766 = vmatpush.msra.mxu0 %v4765
    %v4767 = vand.u32 %v4088, 4294901760
    %4768 = vmatpush.msra.mxu0 %v4767
    %v4769 = vand.u32 %v4087, 4294901760
    %4770 = vmatpush.msra.mxu0 %v4769
    %v4771 = vand.u32 %v4086, 4294901760
    %4772 = vmatpush.msra.mxu0 %v4771
    %v4773 = vand.u32 %v4449, 4294901760
    %4774 = vmatmul.f32.gmra.mxu0 %v4773
    %v4775 = vpop.f32.mrf.mxu0
    %v4776 = vadd.f32 %v4735, %v4775
    %v4777 = vand.u32 %v4452, 4294901760
    %4778 = vmatmul.f32.gmra.mxu0 %v4777
    %v4779 = vpop.f32.mrf.mxu0
    %v4780 = vadd.f32 %v4739, %v4779
    %v4781 = vand.u32 %v4455, 4294901760
    %4782 = vmatmul.f32.gmra.mxu0 %v4781
    %v4783 = vpop.f32.mrf.mxu0
    %v4784 = vadd.f32 %v4743, %v4783
    %v4785 = vand.u32 %v4458, 4294901760
    %4786 = vmatmul.f32.gmra.mxu0 %v4785
    %v4787 = vpop.f32.mrf.mxu0
    %v4788 = vadd.f32 %v4747, %v4787
    %4789 = vdwg.mxu0
    %v4790 = vld [vmem:[#allocation3 + $0x9] sm:$0xff]
    %v4791 = vld [vmem:[#allocation3 + $0x11] sm:$0xff]
    %v4792 = vld [vmem:[#allocation3 + $0x29] sm:$0xff]
    %v4793 = vld [vmem:[#allocation3 + $0x31] sm:$0xff]
    %v4794 = vld [vmem:[#allocation4 + $0x80] sm:$0xff]
    %v4795 = vld [vmem:[#allocation4 + $0x88] sm:$0xff]
    %v4796 = vld [vmem:[#allocation4 + $0x90] sm:$0xff]
    %v4797 = vld [vmem:[#allocation4 + $0x98] sm:$0xff]
    %v4798 = vld [vmem:[#allocation4 + $0xa0] sm:$0xff]
    %v4799 = vld [vmem:[#allocation4 + $0xa8] sm:$0xff]
    %v4800 = vld [vmem:[#allocation4 + $0xb0] sm:$0xff]
    %v4801 = vld [vmem:[#allocation4 + $0xb8] sm:$0xff]
    %v4803 = vsel %vm4009, %v4790, 0
    %v4806 = vsel %vm4009, %v4791, 0
    %v4809 = vsel %vm4009, %v4792, 0
    %v4812 = vsel %vm4009, %v4793, 0
    %4814 = vmatpush.msra.mxu0 0.0
    %4815 = vmatpush.msra.mxu0 0.0
    %4816 = vmatpush.msra.mxu0 0.0
    %4817 = vmatpush.msra.mxu0 0.0
    %4818 = vmatpush.msra.mxu0 0.0
    %4819 = vmatpush.msra.mxu0 0.0
    %4820 = vmatpush.msra.mxu0 0.0
    %4821 = vmatpush.msra.mxu0 0.0
    %v4822 = vand.u32 %v4801, 4294901760
    %4823 = vmatpush.msra.mxu0 %v4822
    %v4824 = vand.u32 %v4800, 4294901760
    %4825 = vmatpush.msra.mxu0 %v4824
    %v4826 = vand.u32 %v4799, 4294901760
    %4827 = vmatpush.msra.mxu0 %v4826
    %v4828 = vand.u32 %v4798, 4294901760
    %4829 = vmatpush.msra.mxu0 %v4828
    %v4830 = vand.u32 %v4797, 4294901760
    %4831 = vmatpush.msra.mxu0 %v4830
    %v4832 = vand.u32 %v4796, 4294901760
    %4833 = vmatpush.msra.mxu0 %v4832
    %v4834 = vand.u32 %v4795, 4294901760
    %4835 = vmatpush.msra.mxu0 %v4834
    %v4836 = vand.u32 %v4794, 4294901760
    %4837 = vmatpush.msra.mxu0 %v4836
    %v4838 = vand.u32 %v4803, 4294901760
    %v4839 = vsub.f32 %v4803, %v4838
    %v4840 = vand.u32 %v4839, 4294901760
    %v4841 = vsub.f32 %v4839, %v4840
    %v4842 = vand.u32 %v4841, 4294901760
    %4843 = vmatmul.f32.gmra.mxu0 %v4842
    %v4844 = vpop.f32.mrf.mxu0
    %v4845 = vadd.f32 0.0, %v4844
    %v4846 = vand.u32 %v4806, 4294901760
    %v4847 = vsub.f32 %v4806, %v4846
    %v4848 = vand.u32 %v4847, 4294901760
    %v4849 = vsub.f32 %v4847, %v4848
    %v4850 = vand.u32 %v4849, 4294901760
    %4851 = vmatmul.f32.gmra.mxu0 %v4850
    %v4852 = vpop.f32.mrf.mxu0
    %v4853 = vadd.f32 0.0, %v4852
    %v4854 = vand.u32 %v4809, 4294901760
    %v4855 = vsub.f32 %v4809, %v4854
    %v4856 = vand.u32 %v4855, 4294901760
    %v4857 = vsub.f32 %v4855, %v4856
    %v4858 = vand.u32 %v4857, 4294901760
    %4859 = vmatmul.f32.gmra.mxu0 %v4858
    %v4860 = vpop.f32.mrf.mxu0
    %v4861 = vadd.f32 0.0, %v4860
    %v4862 = vand.u32 %v4812, 4294901760
    %v4863 = vsub.f32 %v4812, %v4862
    %v4864 = vand.u32 %v4863, 4294901760
    %v4865 = vsub.f32 %v4863, %v4864
    %v4866 = vand.u32 %v4865, 4294901760
    %4867 = vmatmul.f32.gmra.mxu0 %v4866
    %v4868 = vpop.f32.mrf.mxu0
    %v4869 = vadd.f32 0.0, %v4868
    %4870 = vdwg.mxu0
    %4871 = vmatpush.msra.mxu0 0.0
    %4872 = vmatpush.msra.mxu0 0.0
    %4873 = vmatpush.msra.mxu0 0.0
    %4874 = vmatpush.msra.mxu0 0.0
    %4875 = vmatpush.msra.mxu0 0.0
    %4876 = vmatpush.msra.mxu0 0.0
    %4877 = vmatpush.msra.mxu0 0.0
    %4878 = vmatpush.msra.mxu0 0.0
    %v4879 = vand.u32 %v4801, 4294901760
    %v4880 = vsub.f32 %v4801, %v4879
    %v4881 = vand.u32 %v4880, 4294901760
    %v4882 = vsub.f32 %v4880, %v4881
    %v4883 = vand.u32 %v4882, 4294901760
    %4884 = vmatpush.msra.mxu0 %v4883
    %v4885 = vand.u32 %v4800, 4294901760
    %v4886 = vsub.f32 %v4800, %v4885
    %v4887 = vand.u32 %v4886, 4294901760
    %v4888 = vsub.f32 %v4886, %v4887
    %v4889 = vand.u32 %v4888, 4294901760
    %4890 = vmatpush.msra.mxu0 %v4889
    %v4891 = vand.u32 %v4799, 4294901760
    %v4892 = vsub.f32 %v4799, %v4891
    %v4893 = vand.u32 %v4892, 4294901760
    %v4894 = vsub.f32 %v4892, %v4893
    %v4895 = vand.u32 %v4894, 4294901760
    %4896 = vmatpush.msra.mxu0 %v4895
    %v4897 = vand.u32 %v4798, 4294901760
    %v4898 = vsub.f32 %v4798, %v4897
    %v4899 = vand.u32 %v4898, 4294901760
    %v4900 = vsub.f32 %v4898, %v4899
    %v4901 = vand.u32 %v4900, 4294901760
    %4902 = vmatpush.msra.mxu0 %v4901
    %v4903 = vand.u32 %v4797, 4294901760
    %v4904 = vsub.f32 %v4797, %v4903
    %v4905 = vand.u32 %v4904, 4294901760
    %v4906 = vsub.f32 %v4904, %v4905
    %v4907 = vand.u32 %v4906, 4294901760
    %4908 = vmatpush.msra.mxu0 %v4907
    %v4909 = vand.u32 %v4796, 4294901760
    %v4910 = vsub.f32 %v4796, %v4909
    %v4911 = vand.u32 %v4910, 4294901760
    %v4912 = vsub.f32 %v4910, %v4911
    %v4913 = vand.u32 %v4912, 4294901760
    %4914 = vmatpush.msra.mxu0 %v4913
    %v4915 = vand.u32 %v4795, 4294901760
    %v4916 = vsub.f32 %v4795, %v4915
    %v4917 = vand.u32 %v4916, 4294901760
    %v4918 = vsub.f32 %v4916, %v4917
    %v4919 = vand.u32 %v4918, 4294901760
    %4920 = vmatpush.msra.mxu0 %v4919
    %v4921 = vand.u32 %v4794, 4294901760
    %v4922 = vsub.f32 %v4794, %v4921
    %v4923 = vand.u32 %v4922, 4294901760
    %v4924 = vsub.f32 %v4922, %v4923
    %v4925 = vand.u32 %v4924, 4294901760
    %4926 = vmatpush.msra.mxu0 %v4925
    %v4927 = vand.u32 %v4803, 4294901760
    %4928 = vmatmul.f32.gmra.mxu0 %v4927
    %v4929 = vpop.f32.mrf.mxu0
    %v4930 = vadd.f32 %v4845, %v4929
    %v4931 = vand.u32 %v4806, 4294901760
    %4932 = vmatmul.f32.gmra.mxu0 %v4931
    %v4933 = vpop.f32.mrf.mxu0
    %v4934 = vadd.f32 %v4853, %v4933
    %v4935 = vand.u32 %v4809, 4294901760
    %4936 = vmatmul.f32.gmra.mxu0 %v4935
    %v4937 = vpop.f32.mrf.mxu0
    %v4938 = vadd.f32 %v4861, %v4937
    %v4939 = vand.u32 %v4812, 4294901760
    %4940 = vmatmul.f32.gmra.mxu0 %v4939
    %v4941 = vpop.f32.mrf.mxu0
    %v4942 = vadd.f32 %v4869, %v4941
    %4943 = vdwg.mxu0
    %4944 = vmatpush.msra.mxu0 0.0
    %4945 = vmatpush.msra.mxu0 0.0
    %4946 = vmatpush.msra.mxu0 0.0
    %4947 = vmatpush.msra.mxu0 0.0
    %4948 = vmatpush.msra.mxu0 0.0
    %4949 = vmatpush.msra.mxu0 0.0
    %4950 = vmatpush.msra.mxu0 0.0
    %4951 = vmatpush.msra.mxu0 0.0
    %v4952 = vand.u32 %v4801, 4294901760
    %v4953 = vsub.f32 %v4801, %v4952
    %4954 = vmatpush.msra.mxu0 %v4953
    %v4955 = vand.u32 %v4800, 4294901760
    %v4956 = vsub.f32 %v4800, %v4955
    %4957 = vmatpush.msra.mxu0 %v4956
    %v4958 = vand.u32 %v4799, 4294901760
    %v4959 = vsub.f32 %v4799, %v4958
    %4960 = vmatpush.msra.mxu0 %v4959
    %v4961 = vand.u32 %v4798, 4294901760
    %v4962 = vsub.f32 %v4798, %v4961
    %4963 = vmatpush.msra.mxu0 %v4962
    %v4964 = vand.u32 %v4797, 4294901760
    %v4965 = vsub.f32 %v4797, %v4964
    %4966 = vmatpush.msra.mxu0 %v4965
    %v4967 = vand.u32 %v4796, 4294901760
    %v4968 = vsub.f32 %v4796, %v4967
    %4969 = vmatpush.msra.mxu0 %v4968
    %v4970 = vand.u32 %v4795, 4294901760
    %v4971 = vsub.f32 %v4795, %v4970
    %4972 = vmatpush.msra.mxu0 %v4971
    %v4973 = vand.u32 %v4794, 4294901760
    %v4974 = vsub.f32 %v4794, %v4973
    %4975 = vmatpush.msra.mxu0 %v4974
    %v4976 = vand.u32 %v4803, 4294901760
    %v4977 = vsub.f32 %v4803, %v4976
    %4978 = vmatmul.f32.gmra.mxu0 %v4977
    %v4979 = vpop.f32.mrf.mxu0
    %v4980 = vadd.f32 %v4930, %v4979
    %v4981 = vand.u32 %v4806, 4294901760
    %v4982 = vsub.f32 %v4806, %v4981
    %4983 = vmatmul.f32.gmra.mxu0 %v4982
    %v4984 = vpop.f32.mrf.mxu0
    %v4985 = vadd.f32 %v4934, %v4984
    %v4986 = vand.u32 %v4809, 4294901760
    %v4987 = vsub.f32 %v4809, %v4986
    %4988 = vmatmul.f32.gmra.mxu0 %v4987
    %v4989 = vpop.f32.mrf.mxu0
    %v4990 = vadd.f32 %v4938, %v4989
    %v4991 = vand.u32 %v4812, 4294901760
    %v4992 = vsub.f32 %v4812, %v4991
    %4993 = vmatmul.f32.gmra.mxu0 %v4992
    %v4994 = vpop.f32.mrf.mxu0
    %v4995 = vadd.f32 %v4942, %v4994
    %4996 = vdwg.mxu0
    %4997 = vmatpush.msra.mxu0 0.0
    %4998 = vmatpush.msra.mxu0 0.0
    %4999 = vmatpush.msra.mxu0 0.0
    %5000 = vmatpush.msra.mxu0 0.0
    %5001 = vmatpush.msra.mxu0 0.0
    %5002 = vmatpush.msra.mxu0 0.0
    %5003 = vmatpush.msra.mxu0 0.0
    %5004 = vmatpush.msra.mxu0 0.0
    %v5005 = vand.u32 %v4801, 4294901760
    %5006 = vmatpush.msra.mxu0 %v5005
    %v5007 = vand.u32 %v4800, 4294901760
    %5008 = vmatpush.msra.mxu0 %v5007
    %v5009 = vand.u32 %v4799, 4294901760
    %5010 = vmatpush.msra.mxu0 %v5009
    %v5011 = vand.u32 %v4798, 4294901760
    %5012 = vmatpush.msra.mxu0 %v5011
    %v5013 = vand.u32 %v4797, 4294901760
    %5014 = vmatpush.msra.mxu0 %v5013
    %v5015 = vand.u32 %v4796, 4294901760
    %5016 = vmatpush.msra.mxu0 %v5015
    %v5017 = vand.u32 %v4795, 4294901760
    %5018 = vmatpush.msra.mxu0 %v5017
    %v5019 = vand.u32 %v4794, 4294901760
    %5020 = vmatpush.msra.mxu0 %v5019
    %v5021 = vand.u32 %v4803, 4294901760
    %v5022 = vsub.f32 %v4803, %v5021
    %v5023 = vand.u32 %v5022, 4294901760
    %5024 = vmatmul.f32.gmra.mxu0 %v5023
    %v5025 = vpop.f32.mrf.mxu0
    %v5026 = vadd.f32 %v4980, %v5025
    %v5027 = vand.u32 %v4806, 4294901760
    %v5028 = vsub.f32 %v4806, %v5027
    %v5029 = vand.u32 %v5028, 4294901760
    %5030 = vmatmul.f32.gmra.mxu0 %v5029
    %v5031 = vpop.f32.mrf.mxu0
    %v5032 = vadd.f32 %v4985, %v5031
    %v5033 = vand.u32 %v4809, 4294901760
    %v5034 = vsub.f32 %v4809, %v5033
    %v5035 = vand.u32 %v5034, 4294901760
    %5036 = vmatmul.f32.gmra.mxu0 %v5035
    %v5037 = vpop.f32.mrf.mxu0
    %v5038 = vadd.f32 %v4990, %v5037
    %v5039 = vand.u32 %v4812, 4294901760
    %v5040 = vsub.f32 %v4812, %v5039
    %v5041 = vand.u32 %v5040, 4294901760
    %5042 = vmatmul.f32.gmra.mxu0 %v5041
    %v5043 = vpop.f32.mrf.mxu0
    %v5044 = vadd.f32 %v4995, %v5043
    %5045 = vdwg.mxu0
    %5046 = vmatpush.msra.mxu0 0.0
    %5047 = vmatpush.msra.mxu0 0.0
    %5048 = vmatpush.msra.mxu0 0.0
    %5049 = vmatpush.msra.mxu0 0.0
    %5050 = vmatpush.msra.mxu0 0.0
    %5051 = vmatpush.msra.mxu0 0.0
    %5052 = vmatpush.msra.mxu0 0.0
    %5053 = vmatpush.msra.mxu0 0.0
    %v5054 = vand.u32 %v4801, 4294901760
    %v5055 = vsub.f32 %v4801, %v5054
    %v5056 = vand.u32 %v5055, 4294901760
    %5057 = vmatpush.msra.mxu0 %v5056
    %v5058 = vand.u32 %v4800, 4294901760
    %v5059 = vsub.f32 %v4800, %v5058
    %v5060 = vand.u32 %v5059, 4294901760
    %5061 = vmatpush.msra.mxu0 %v5060
    %v5062 = vand.u32 %v4799, 4294901760
    %v5063 = vsub.f32 %v4799, %v5062
    %v5064 = vand.u32 %v5063, 4294901760
    %5065 = vmatpush.msra.mxu0 %v5064
    %v5066 = vand.u32 %v4798, 4294901760
    %v5067 = vsub.f32 %v4798, %v5066
    %v5068 = vand.u32 %v5067, 4294901760
    %5069 = vmatpush.msra.mxu0 %v5068
    %v5070 = vand.u32 %v4797, 4294901760
    %v5071 = vsub.f32 %v4797, %v5070
    %v5072 = vand.u32 %v5071, 4294901760
    %5073 = vmatpush.msra.mxu0 %v5072
    %v5074 = vand.u32 %v4796, 4294901760
    %v5075 = vsub.f32 %v4796, %v5074
    %v5076 = vand.u32 %v5075, 4294901760
    %5077 = vmatpush.msra.mxu0 %v5076
    %v5078 = vand.u32 %v4795, 4294901760
    %v5079 = vsub.f32 %v4795, %v5078
    %v5080 = vand.u32 %v5079, 4294901760
    %5081 = vmatpush.msra.mxu0 %v5080
    %v5082 = vand.u32 %v4794, 4294901760
    %v5083 = vsub.f32 %v4794, %v5082
    %v5084 = vand.u32 %v5083, 4294901760
    %5085 = vmatpush.msra.mxu0 %v5084
    %v5086 = vand.u32 %v4803, 4294901760
    %5087 = vmatmul.f32.gmra.mxu0 %v5086
    %v5088 = vpop.f32.mrf.mxu0
    %v5089 = vadd.f32 %v5026, %v5088
    %v5090 = vand.u32 %v4806, 4294901760
    %5091 = vmatmul.f32.gmra.mxu0 %v5090
    %v5092 = vpop.f32.mrf.mxu0
    %v5093 = vadd.f32 %v5032, %v5092
    %v5094 = vand.u32 %v4809, 4294901760
    %5095 = vmatmul.f32.gmra.mxu0 %v5094
    %v5096 = vpop.f32.mrf.mxu0
    %v5097 = vadd.f32 %v5038, %v5096
    %v5098 = vand.u32 %v4812, 4294901760
    %5099 = vmatmul.f32.gmra.mxu0 %v5098
    %v5100 = vpop.f32.mrf.mxu0
    %v5101 = vadd.f32 %v5044, %v5100
    %5102 = vdwg.mxu0
    %5103 = vmatpush.msra.mxu0 0.0
    %5104 = vmatpush.msra.mxu0 0.0
    %5105 = vmatpush.msra.mxu0 0.0
    %5106 = vmatpush.msra.mxu0 0.0
    %5107 = vmatpush.msra.mxu0 0.0
    %5108 = vmatpush.msra.mxu0 0.0
    %5109 = vmatpush.msra.mxu0 0.0
    %5110 = vmatpush.msra.mxu0 0.0
    %v5111 = vand.u32 %v4801, 4294901760
    %5112 = vmatpush.msra.mxu0 %v5111
    %v5113 = vand.u32 %v4800, 4294901760
    %5114 = vmatpush.msra.mxu0 %v5113
    %v5115 = vand.u32 %v4799, 4294901760
    %5116 = vmatpush.msra.mxu0 %v5115
    %v5117 = vand.u32 %v4798, 4294901760
    %5118 = vmatpush.msra.mxu0 %v5117
    %v5119 = vand.u32 %v4797, 4294901760
    %5120 = vmatpush.msra.mxu0 %v5119
    %v5121 = vand.u32 %v4796, 4294901760
    %5122 = vmatpush.msra.mxu0 %v5121
    %v5123 = vand.u32 %v4795, 4294901760
    %5124 = vmatpush.msra.mxu0 %v5123
    %v5125 = vand.u32 %v4794, 4294901760
    %5126 = vmatpush.msra.mxu0 %v5125
    %v5127 = vand.u32 %v4803, 4294901760
    %5128 = vmatmul.f32.gmra.mxu0 %v5127
    %v5129 = vpop.f32.mrf.mxu0
    %v5130 = vadd.f32 %v5089, %v5129
    %v5131 = vand.u32 %v4806, 4294901760
    %5132 = vmatmul.f32.gmra.mxu0 %v5131
    %v5133 = vpop.f32.mrf.mxu0
    %v5134 = vadd.f32 %v5093, %v5133
    %v5135 = vand.u32 %v4809, 4294901760
    %5136 = vmatmul.f32.gmra.mxu0 %v5135
    %v5137 = vpop.f32.mrf.mxu0
    %v5138 = vadd.f32 %v5097, %v5137
    %v5139 = vand.u32 %v4812, 4294901760
    %5140 = vmatmul.f32.gmra.mxu0 %v5139
    %v5141 = vpop.f32.mrf.mxu0
    %v5142 = vadd.f32 %v5101, %v5141
    %5143 = vdwg.mxu0
    %v5144 = vadd.f32 %v4776, %v5130
    %v5145 = vadd.f32 %v4780, %v5134
    %v5146 = vadd.f32 %v4784, %v5138
    %v5147 = vadd.f32 %v4788, %v5142
    %v5148 = vld [vmem:[%s6] sm:$0x1]
    %v5150 = vperm.slane %v5148, 0
    %v5152 = vadd.f32 %v5144, %v5150
    %v5153 = vadd.f32 %v5145, %v5150
    %v5154 = vadd.f32 %v5146, %v5150
    %v5155 = vadd.f32 %v5147, %v5150
    %v5156 = vmax.f32 %v5152, 0.0
    %v5157 = vmax.f32 %v5153, 0.0
    %v5158 = vmax.f32 %v5154, 0.0
    %v5159 = vmax.f32 %v5155, 0.0
    %v5164 = vrot.slane %v5156, 2
    %v5165 = vrot.slane %v5156, 4
    %v5166 = vrot.slane %v5156, 6
    %v5167 = vrot.slane %v5157, 2
    %v5168 = vrot.slane %v5157, 4
    %v5169 = vrot.slane %v5157, 6
    %v5170 = vrot.slane %v5158, 2
    %v5171 = vrot.slane %v5158, 4
    %v5172 = vrot.slane %v5158, 6
    %v5173 = vrot.slane %v5159, 2
    %v5174 = vrot.slane %v5159, 4
    %v5175 = vrot.slane %v5159, 6
    %vm5188 = vcmask 1041408
    %v5189 = vsel %vm5188, %v5156, -inf
    %v5190 = vrot.slane %v5189, 4
    %v5191 = vmax.f32 %v5189, %v5190
    %v5192 = vrot.slane %v5191, 2
    %v5193 = vmax.f32 %v5191, %v5192
    %v5194 = vrot.slane %v5193, 1
    %v5195 = vmax.f32 %v5193, %v5194
    %v5196 = vsel %vm5188, %v5164, -inf
    %v5197 = vrot.slane %v5196, 4
    %v5198 = vmax.f32 %v5196, %v5197
    %v5199 = vrot.slane %v5198, 2
    %v5200 = vmax.f32 %v5198, %v5199
    %v5201 = vrot.slane %v5200, 1
    %v5202 = vmax.f32 %v5200, %v5201
    %v5203 = vsel %vm5188, %v5165, -inf
    %v5204 = vrot.slane %v5203, 4
    %v5205 = vmax.f32 %v5203, %v5204
    %v5206 = vrot.slane %v5205, 2
    %v5207 = vmax.f32 %v5205, %v5206
    %v5208 = vrot.slane %v5207, 1
    %v5209 = vmax.f32 %v5207, %v5208
    %v5210 = vsel %vm5188, %v5166, -inf
    %v5211 = vrot.slane %v5210, 4
    %v5212 = vmax.f32 %v5210, %v5211
    %v5213 = vrot.slane %v5212, 2
    %v5214 = vmax.f32 %v5212, %v5213
    %v5215 = vrot.slane %v5214, 1
    %v5216 = vmax.f32 %v5214, %v5215
    %v5217 = vsel %vm5188, %v5157, -inf
    %v5218 = vrot.slane %v5217, 4
    %v5219 = vmax.f32 %v5217, %v5218
    %v5220 = vrot.slane %v5219, 2
    %v5221 = vmax.f32 %v5219, %v5220
    %v5222 = vrot.slane %v5221, 1
    %v5223 = vmax.f32 %v5221, %v5222
    %v5224 = vsel %vm5188, %v5167, -inf
    %v5225 = vrot.slane %v5224, 4
    %v5226 = vmax.f32 %v5224, %v5225
    %v5227 = vrot.slane %v5226, 2
    %v5228 = vmax.f32 %v5226, %v5227
    %v5229 = vrot.slane %v5228, 1
    %v5230 = vmax.f32 %v5228, %v5229
    %v5231 = vsel %vm5188, %v5168, -inf
    %v5232 = vrot.slane %v5231, 4
    %v5233 = vmax.f32 %v5231, %v5232
    %v5234 = vrot.slane %v5233, 2
    %v5235 = vmax.f32 %v5233, %v5234
    %v5236 = vrot.slane %v5235, 1
    %v5237 = vmax.f32 %v5235, %v5236
    %v5238 = vsel %vm5188, %v5169, -inf
    %v5239 = vrot.slane %v5238, 4
    %v5240 = vmax.f32 %v5238, %v5239
    %v5241 = vrot.slane %v5240, 2
    %v5242 = vmax.f32 %v5240, %v5241
    %v5243 = vrot.slane %v5242, 1
    %v5244 = vmax.f32 %v5242, %v5243
    %v5245 = vsel %vm5188, %v5158, -inf
    %v5246 = vrot.slane %v5245, 4
    %v5247 = vmax.f32 %v5245, %v5246
    %v5248 = vrot.slane %v5247, 2
    %v5249 = vmax.f32 %v5247, %v5248
    %v5250 = vrot.slane %v5249, 1
    %v5251 = vmax.f32 %v5249, %v5250
    %v5252 = vsel %vm5188, %v5170, -inf
    %v5253 = vrot.slane %v5252, 4
    %v5254 = vmax.f32 %v5252, %v5253
    %v5255 = vrot.slane %v5254, 2
    %v5256 = vmax.f32 %v5254, %v5255
    %v5257 = vrot.slane %v5256, 1
    %v5258 = vmax.f32 %v5256, %v5257
    %v5259 = vsel %vm5188, %v5171, -inf
    %v5260 = vrot.slane %v5259, 4
    %v5261 = vmax.f32 %v5259, %v5260
    %v5262 = vrot.slane %v5261, 2
    %v5263 = vmax.f32 %v5261, %v5262
    %v5264 = vrot.slane %v5263, 1
    %v5265 = vmax.f32 %v5263, %v5264
    %v5266 = vsel %vm5188, %v5172, -inf
    %v5267 = vrot.slane %v5266, 4
    %v5268 = vmax.f32 %v5266, %v5267
    %v5269 = vrot.slane %v5268, 2
    %v5270 = vmax.f32 %v5268, %v5269
    %v5271 = vrot.slane %v5270, 1
    %v5272 = vmax.f32 %v5270, %v5271
    %v5273 = vsel %vm5188, %v5159, -inf
    %v5274 = vrot.slane %v5273, 4
    %v5275 = vmax.f32 %v5273, %v5274
    %v5276 = vrot.slane %v5275, 2
    %v5277 = vmax.f32 %v5275, %v5276
    %v5278 = vrot.slane %v5277, 1
    %v5279 = vmax.f32 %v5277, %v5278
    %v5280 = vsel %vm5188, %v5173, -inf
    %v5281 = vrot.slane %v5280, 4
    %v5282 = vmax.f32 %v5280, %v5281
    %v5283 = vrot.slane %v5282, 2
    %v5284 = vmax.f32 %v5282, %v5283
    %v5285 = vrot.slane %v5284, 1
    %v5286 = vmax.f32 %v5284, %v5285
    %v5287 = vsel %vm5188, %v5174, -inf
    %v5288 = vrot.slane %v5287, 4
    %v5289 = vmax.f32 %v5287, %v5288
    %v5290 = vrot.slane %v5289, 2
    %v5291 = vmax.f32 %v5289, %v5290
    %v5292 = vrot.slane %v5291, 1
    %v5293 = vmax.f32 %v5291, %v5292
    %v5294 = vsel %vm5188, %v5175, -inf
    %v5295 = vrot.slane %v5294, 4
    %v5296 = vmax.f32 %v5294, %v5295
    %v5297 = vrot.slane %v5296, 2
    %v5298 = vmax.f32 %v5296, %v5297
    %v5299 = vrot.slane %v5298, 1
    %v5300 = vmax.f32 %v5298, %v5299
    %v5317 = vsel %vm1415, %v5202, %v5195
    %v5318 = vsel %vm1417, %v5209, %v5317
    %v5319 = vsel %vm1419, %v5216, %v5318
    %v5320 = vsel %vm1421, %v5223, %v5319
    %v5321 = vsel %vm1423, %v5230, %v5320
    %v5322 = vsel %vm1425, %v5237, %v5321
    %v5323 = vsel %vm1427, %v5244, %v5322
    %v5324 = vsel %vm1415, %v5258, %v5251
    %v5325 = vsel %vm1417, %v5265, %v5324
    %v5326 = vsel %vm1419, %v5272, %v5325
    %v5327 = vsel %vm1421, %v5279, %v5326
    %v5328 = vsel %vm1423, %v5286, %v5327
    %v5329 = vsel %vm1425, %v5293, %v5328
    %v5330 = vsel %vm1427, %v5300, %v5329
    %v5331 = vld [vmem:[#allocation6] sm:$0xff]
    %v5332 = vld [vmem:[#allocation6 + $0x8] sm:$0xff]
    %v5333 = vld [vmem:[#allocation6 + $0x10] sm:$0xff]
    %v5334 = vld [vmem:[#allocation6 + $0x18] sm:$0xff]
    %v5335 = vld [vmem:[#allocation6 + $0x20] sm:$0xff]
    %v5336 = vld [vmem:[#allocation6 + $0x28] sm:$0xff]
    %v5337 = vld [vmem:[#allocation6 + $0x30] sm:$0xff]
    %v5338 = vld [vmem:[#allocation6 + $0x38] sm:$0xff]
    %v5339 = vld [vmem:[#allocation6 + $0x40] sm:$0xff]
    %v5340 = vld [vmem:[#allocation6 + $0x48] sm:$0xff]
    %v5341 = vld [vmem:[#allocation6 + $0x50] sm:$0xff]
    %v5342 = vld [vmem:[#allocation6 + $0x58] sm:$0xff]
    %v5343 = vld [vmem:[#allocation6 + $0x60] sm:$0xff]
    %v5344 = vld [vmem:[#allocation6 + $0x68] sm:$0xff]
    %v5345 = vld [vmem:[#allocation6 + $0x70] sm:$0xff]
    %v5346 = vld [vmem:[#allocation6 + $0x78] sm:$0xff]
    %v5347 = vld [vmem:[#allocation6 + $0x80] sm:$0xff]
    %v5348 = vld [vmem:[#allocation6 + $0x88] sm:$0xff]
    %v5349 = vld [vmem:[#allocation6 + $0x90] sm:$0xff]
    %v5350 = vld [vmem:[#allocation6 + $0x98] sm:$0xff]
    %v5351 = vld [vmem:[#allocation6 + $0xa0] sm:$0xff]
    %v5352 = vld [vmem:[#allocation6 + $0xa8] sm:$0xff]
    %v5353 = vld [vmem:[#allocation6 + $0xb0] sm:$0xff]
    %v5354 = vld [vmem:[#allocation6 + $0xb8] sm:$0xff]
    %v5355 = vld [vmem:[#allocation6 + $0xc0] sm:$0xff]
    %v5356 = vld [vmem:[#allocation6 + $0xc8] sm:$0xff]
    %v5357 = vld [vmem:[#allocation6 + $0xd0] sm:$0xff]
    %v5358 = vld [vmem:[#allocation6 + $0xd8] sm:$0xff]
    %v5359 = vld [vmem:[#allocation6 + $0xe0] sm:$0xff]
    %v5360 = vld [vmem:[#allocation6 + $0xe8] sm:$0xff]
    %v5361 = vld [vmem:[#allocation6 + $0xf0] sm:$0xff]
    %v5362 = vld [vmem:[#allocation6 + $0xf8] sm:$0xff]
    %v5363 = vld [vmem:[#allocation6 + $0x100] sm:$0xff]
    %v5364 = vld [vmem:[#allocation6 + $0x108] sm:$0xff]
    %v5365 = vld [vmem:[#allocation6 + $0x110] sm:$0xff]
    %v5366 = vld [vmem:[#allocation6 + $0x118] sm:$0xff]
    %v5367 = vld [vmem:[#allocation6 + $0x120] sm:$0xff]
    %v5368 = vld [vmem:[#allocation6 + $0x128] sm:$0xff]
    %v5369 = vld [vmem:[#allocation6 + $0x130] sm:$0xff]
    %v5370 = vld [vmem:[#allocation6 + $0x138] sm:$0xff]
    %v5371 = vld [vmem:[#allocation6 + $0x140] sm:$0xff]
    %v5372 = vld [vmem:[#allocation6 + $0x148] sm:$0xff]
    %v5373 = vld [vmem:[#allocation6 + $0x150] sm:$0xff]
    %v5374 = vld [vmem:[#allocation6 + $0x158] sm:$0xff]
    %v5375 = vld [vmem:[#allocation6 + $0x160] sm:$0xff]
    %v5376 = vld [vmem:[#allocation6 + $0x168] sm:$0xff]
    %v5377 = vld [vmem:[#allocation6 + $0x170] sm:$0xff]
    %v5378 = vld [vmem:[#allocation6 + $0x178] sm:$0xff]
    %v5379 = vld [vmem:[#allocation6 + $0x180] sm:$0xff]
    %v5380 = vld [vmem:[#allocation6 + $0x188] sm:$0xff]
    %v5381 = vld [vmem:[#allocation6 + $0x190] sm:$0xff]
    %v5382 = vld [vmem:[#allocation6 + $0x198] sm:$0xff]
    %v5383 = vld [vmem:[#allocation6 + $0x1a0] sm:$0xff]
    %v5384 = vld [vmem:[#allocation6 + $0x1a8] sm:$0xff]
    %v5385 = vld [vmem:[#allocation6 + $0x1b0] sm:$0xff]
    %v5386 = vld [vmem:[#allocation6 + $0x1b8] sm:$0xff]
    %v5387 = vld [vmem:[#allocation6 + $0x1c0] sm:$0xff]
    %v5388 = vld [vmem:[#allocation6 + $0x1c8] sm:$0xff]
    %v5389 = vld [vmem:[#allocation6 + $0x1d0] sm:$0xff]
    %v5390 = vld [vmem:[#allocation6 + $0x1d8] sm:$0xff]
    %v5391 = vld [vmem:[#allocation6 + $0x1e0] sm:$0xff]
    %v5392 = vld [vmem:[#allocation6 + $0x1e8] sm:$0xff]
    %v5393 = vld [vmem:[#allocation6 + $0x1f0] sm:$0xff]
    %v5394 = vld [vmem:[#allocation6 + $0x1f8] sm:$0xff]
    %v5395 = vld [vmem:[#allocation6 + $0x200] sm:$0xff]
    %v5396 = vld [vmem:[#allocation6 + $0x208] sm:$0xff]
    %v5397 = vld [vmem:[#allocation6 + $0x210] sm:$0xff]
    %v5398 = vld [vmem:[#allocation6 + $0x218] sm:$0xff]
    %v5399 = vld [vmem:[#allocation6 + $0x220] sm:$0xff]
    %v5400 = vld [vmem:[#allocation6 + $0x228] sm:$0xff]
    %v5401 = vld [vmem:[#allocation6 + $0x230] sm:$0xff]
    %v5402 = vld [vmem:[#allocation6 + $0x238] sm:$0xff]
    %v5403 = vld [vmem:[#allocation6 + $0x240] sm:$0xff]
    %v5404 = vld [vmem:[#allocation6 + $0x248] sm:$0xff]
    %v5405 = vld [vmem:[#allocation6 + $0x250] sm:$0xff]
    %v5406 = vld [vmem:[#allocation6 + $0x258] sm:$0xff]
    %v5407 = vld [vmem:[#allocation6 + $0x260] sm:$0xff]
    %v5408 = vld [vmem:[#allocation6 + $0x268] sm:$0xff]
    %v5409 = vld [vmem:[#allocation6 + $0x270] sm:$0xff]
    %v5410 = vld [vmem:[#allocation6 + $0x278] sm:$0xff]
    %v5411 = vld [vmem:[#allocation6 + $0x280] sm:$0xff]
    %v5412 = vld [vmem:[#allocation6 + $0x288] sm:$0xff]
    %v5413 = vld [vmem:[#allocation6 + $0x290] sm:$0xff]
    %v5414 = vld [vmem:[#allocation6 + $0x298] sm:$0xff]
    %v5415 = vld [vmem:[#allocation6 + $0x2a0] sm:$0xff]
    %v5416 = vld [vmem:[#allocation6 + $0x2a8] sm:$0xff]
    %v5417 = vld [vmem:[#allocation6 + $0x2b0] sm:$0xff]
    %v5418 = vld [vmem:[#allocation6 + $0x2b8] sm:$0xff]
    %v5419 = vld [vmem:[#allocation6 + $0x2c0] sm:$0xff]
    %v5420 = vld [vmem:[#allocation6 + $0x2c8] sm:$0xff]
    %v5421 = vld [vmem:[#allocation6 + $0x2d0] sm:$0xff]
    %v5422 = vld [vmem:[#allocation6 + $0x2d8] sm:$0xff]
    %v5423 = vld [vmem:[#allocation6 + $0x2e0] sm:$0xff]
    %v5424 = vld [vmem:[#allocation6 + $0x2e8] sm:$0xff]
    %v5425 = vld [vmem:[#allocation6 + $0x2f0] sm:$0xff]
    %v5426 = vld [vmem:[#allocation6 + $0x2f8] sm:$0xff]
    %v5427 = vld [vmem:[#allocation6 + $0x300] sm:$0xff]
    %v5428 = vld [vmem:[#allocation6 + $0x308] sm:$0xff]
    %v5429 = vld [vmem:[#allocation6 + $0x310] sm:$0xff]
    %v5430 = vld [vmem:[#allocation6 + $0x318] sm:$0xff]
    %v5431 = vld [vmem:[#allocation6 + $0x320] sm:$0xff]
    %v5432 = vld [vmem:[#allocation6 + $0x328] sm:$0xff]
    %v5433 = vld [vmem:[#allocation6 + $0x330] sm:$0xff]
    %v5434 = vld [vmem:[#allocation6 + $0x338] sm:$0xff]
    %v5435 = vld [vmem:[#allocation6 + $0x340] sm:$0xff]
    %v5436 = vld [vmem:[#allocation6 + $0x348] sm:$0xff]
    %v5437 = vld [vmem:[#allocation6 + $0x350] sm:$0xff]
    %v5438 = vld [vmem:[#allocation6 + $0x358] sm:$0xff]
    %v5439 = vld [vmem:[#allocation6 + $0x360] sm:$0xff]
    %v5440 = vld [vmem:[#allocation6 + $0x368] sm:$0xff]
    %v5441 = vld [vmem:[#allocation6 + $0x370] sm:$0xff]
    %v5442 = vld [vmem:[#allocation6 + $0x378] sm:$0xff]
    %v5443 = vld [vmem:[#allocation6 + $0x380] sm:$0xff]
    %v5444 = vld [vmem:[#allocation6 + $0x388] sm:$0xff]
    %v5445 = vld [vmem:[#allocation6 + $0x390] sm:$0xff]
    %v5446 = vld [vmem:[#allocation6 + $0x398] sm:$0xff]
    %v5447 = vld [vmem:[#allocation6 + $0x3a0] sm:$0xff]
    %v5448 = vld [vmem:[#allocation6 + $0x3a8] sm:$0xff]
    %v5449 = vld [vmem:[#allocation6 + $0x3b0] sm:$0xff]
    %v5450 = vld [vmem:[#allocation6 + $0x3b8] sm:$0xff]
    %v5451 = vld [vmem:[#allocation6 + $0x3c0] sm:$0xff]
    %v5452 = vld [vmem:[#allocation6 + $0x3c8] sm:$0xff]
    %v5453 = vld [vmem:[#allocation6 + $0x3d0] sm:$0xff]
    %v5454 = vld [vmem:[#allocation6 + $0x3d8] sm:$0xff]
    %v5455 = vld [vmem:[#allocation6 + $0x3e0] sm:$0xff]
    %v5456 = vld [vmem:[#allocation6 + $0x3e8] sm:$0xff]
    %v5457 = vld [vmem:[#allocation6 + $0x3f0] sm:$0xff]
    %v5458 = vld [vmem:[#allocation6 + $0x3f8] sm:$0xff]
    %v5459 = vld [vmem:[#allocation6 + $0x400] sm:$0xff]
    %v5460 = vld [vmem:[#allocation6 + $0x408] sm:$0xff]
    %v5461 = vld [vmem:[#allocation6 + $0x410] sm:$0xff]
    %v5462 = vld [vmem:[#allocation6 + $0x418] sm:$0xff]
    %v5463 = vld [vmem:[#allocation6 + $0x420] sm:$0xff]
    %v5464 = vld [vmem:[#allocation6 + $0x428] sm:$0xff]
    %v5465 = vld [vmem:[#allocation6 + $0x430] sm:$0xff]
    %v5466 = vld [vmem:[#allocation6 + $0x438] sm:$0xff]
    %v5467 = vld [vmem:[#allocation6 + $0x440] sm:$0xff]
    %v5468 = vld [vmem:[#allocation6 + $0x448] sm:$0xff]
    %v5469 = vld [vmem:[#allocation6 + $0x450] sm:$0xff]
    %v5470 = vld [vmem:[#allocation6 + $0x458] sm:$0xff]
    %v5471 = vld [vmem:[#allocation6 + $0x460] sm:$0xff]
    %v5472 = vld [vmem:[#allocation6 + $0x468] sm:$0xff]
    %v5473 = vld [vmem:[#allocation6 + $0x470] sm:$0xff]
    %v5474 = vld [vmem:[#allocation6 + $0x478] sm:$0xff]
    %v5475 = vld [vmem:[#allocation6 + $0x480] sm:$0xff]
    %v5476 = vld [vmem:[#allocation6 + $0x488] sm:$0xff]
    %v5477 = vld [vmem:[#allocation6 + $0x490] sm:$0xff]
    %v5478 = vld [vmem:[#allocation6 + $0x498] sm:$0xff]
    %v5479 = vld [vmem:[#allocation6 + $0x4a0] sm:$0xff]
    %v5480 = vld [vmem:[#allocation6 + $0x4a8] sm:$0xff]
    %v5481 = vld [vmem:[#allocation6 + $0x4b0] sm:$0xff]
    %v5482 = vld [vmem:[#allocation6 + $0x4b8] sm:$0xff]
    %v5483 = vld [vmem:[#allocation6 + $0x4c0] sm:$0xff]
    %v5484 = vld [vmem:[#allocation6 + $0x4c8] sm:$0xff]
    %v5485 = vld [vmem:[#allocation6 + $0x4d0] sm:$0xff]
    %v5486 = vld [vmem:[#allocation6 + $0x4d8] sm:$0xff]
    %v5487 = vld [vmem:[#allocation6 + $0x4e0] sm:$0xff]
    %v5488 = vld [vmem:[#allocation6 + $0x4e8] sm:$0xff]
    %v5489 = vld [vmem:[#allocation6 + $0x4f0] sm:$0xff]
    %v5490 = vld [vmem:[#allocation6 + $0x4f8] sm:$0xff]
    %v5491 = vld [vmem:[#allocation6 + $0x500] sm:$0xff]
    %v5492 = vld [vmem:[#allocation6 + $0x508] sm:$0xff]
    %v5493 = vld [vmem:[#allocation6 + $0x510] sm:$0xff]
    %v5494 = vld [vmem:[#allocation6 + $0x518] sm:$0xff]
    %v5495 = vld [vmem:[#allocation6 + $0x520] sm:$0xff]
    %v5496 = vld [vmem:[#allocation6 + $0x528] sm:$0xff]
    %v5497 = vld [vmem:[#allocation6 + $0x530] sm:$0xff]
    %v5498 = vld [vmem:[#allocation6 + $0x538] sm:$0xff]
    %v5499 = vld [vmem:[#allocation6 + $0x540] sm:$0xff]
    %v5500 = vld [vmem:[#allocation6 + $0x548] sm:$0xff]
    %v5501 = vld [vmem:[#allocation6 + $0x550] sm:$0xff]
    %v5502 = vld [vmem:[#allocation6 + $0x558] sm:$0xff]
    %v5503 = vld [vmem:[#allocation6 + $0x560] sm:$0xff]
    %v5504 = vld [vmem:[#allocation6 + $0x568] sm:$0xff]
    %v5505 = vld [vmem:[#allocation6 + $0x570] sm:$0xff]
    %v5506 = vld [vmem:[#allocation6 + $0x578] sm:$0xff]
    %v5507 = vld [vmem:[#allocation6 + $0x580] sm:$0xff]
    %v5508 = vld [vmem:[#allocation6 + $0x588] sm:$0xff]
    %v5509 = vld [vmem:[#allocation6 + $0x590] sm:$0xff]
    %v5510 = vld [vmem:[#allocation6 + $0x598] sm:$0xff]
    %v5511 = vld [vmem:[#allocation6 + $0x5a0] sm:$0xff]
    %v5512 = vld [vmem:[#allocation6 + $0x5a8] sm:$0xff]
    %v5513 = vld [vmem:[#allocation6 + $0x5b0] sm:$0xff]
    %v5514 = vld [vmem:[#allocation6 + $0x5b8] sm:$0xff]
    %v5515 = vld [vmem:[#allocation6 + $0x5c0] sm:$0xff]
    %v5516 = vld [vmem:[#allocation6 + $0x5c8] sm:$0xff]
    %v5517 = vld [vmem:[#allocation6 + $0x5d0] sm:$0xff]
    %v5518 = vld [vmem:[#allocation6 + $0x5d8] sm:$0xff]
    %v5519 = vld [vmem:[#allocation6 + $0x5e0] sm:$0xff]
    %v5520 = vld [vmem:[#allocation6 + $0x5e8] sm:$0xff]
    %v5521 = vld [vmem:[#allocation6 + $0x5f0] sm:$0xff]
    %v5522 = vld [vmem:[#allocation6 + $0x5f8] sm:$0xff]
    %v5523 = vld [vmem:[#allocation6 + $0x600] sm:$0xff]
    %v5524 = vld [vmem:[#allocation6 + $0x608] sm:$0xff]
    %v5525 = vld [vmem:[#allocation6 + $0x610] sm:$0xff]
    %v5526 = vld [vmem:[#allocation6 + $0x618] sm:$0xff]
    %v5527 = vld [vmem:[#allocation6 + $0x620] sm:$0xff]
    %v5528 = vld [vmem:[#allocation6 + $0x628] sm:$0xff]
    %v5529 = vld [vmem:[#allocation6 + $0x630] sm:$0xff]
    %v5530 = vld [vmem:[#allocation6 + $0x638] sm:$0xff]
    %v5531 = vld [vmem:[#allocation6 + $0x640] sm:$0xff]
    %v5532 = vld [vmem:[#allocation6 + $0x648] sm:$0xff]
    %v5533 = vld [vmem:[#allocation6 + $0x650] sm:$0xff]
    %v5534 = vld [vmem:[#allocation6 + $0x658] sm:$0xff]
    %v5535 = vld [vmem:[#allocation6 + $0x660] sm:$0xff]
    %v5536 = vld [vmem:[#allocation6 + $0x668] sm:$0xff]
    %v5537 = vld [vmem:[#allocation6 + $0x670] sm:$0xff]
    %v5538 = vld [vmem:[#allocation6 + $0x678] sm:$0xff]
    %v5539 = vld [vmem:[#allocation6 + $0x680] sm:$0xff]
    %v5540 = vld [vmem:[#allocation6 + $0x688] sm:$0xff]
    %v5541 = vld [vmem:[#allocation6 + $0x690] sm:$0xff]
    %v5542 = vld [vmem:[#allocation6 + $0x698] sm:$0xff]
    %v5543 = vld [vmem:[#allocation6 + $0x6a0] sm:$0xff]
    %v5544 = vld [vmem:[#allocation6 + $0x6a8] sm:$0xff]
    %v5545 = vld [vmem:[#allocation6 + $0x6b0] sm:$0xff]
    %v5546 = vld [vmem:[#allocation6 + $0x6b8] sm:$0xff]
    %v5547 = vld [vmem:[#allocation6 + $0x6c0] sm:$0xff]
    %v5548 = vld [vmem:[#allocation6 + $0x6c8] sm:$0xff]
    %v5549 = vld [vmem:[#allocation6 + $0x6d0] sm:$0xff]
    %v5550 = vld [vmem:[#allocation6 + $0x6d8] sm:$0xff]
    %v5551 = vld [vmem:[#allocation6 + $0x6e0] sm:$0xff]
    %v5552 = vld [vmem:[#allocation6 + $0x6e8] sm:$0xff]
    %v5553 = vld [vmem:[#allocation6 + $0x6f0] sm:$0xff]
    %v5554 = vld [vmem:[#allocation6 + $0x6f8] sm:$0xff]
    %v5555 = vld [vmem:[#allocation6 + $0x700] sm:$0xff]
    %v5556 = vld [vmem:[#allocation6 + $0x708] sm:$0xff]
    %v5557 = vld [vmem:[#allocation6 + $0x710] sm:$0xff]
    %v5558 = vld [vmem:[#allocation6 + $0x718] sm:$0xff]
    %v5559 = vld [vmem:[#allocation6 + $0x720] sm:$0xff]
    %v5560 = vld [vmem:[#allocation6 + $0x728] sm:$0xff]
    %v5561 = vld [vmem:[#allocation6 + $0x730] sm:$0xff]
    %v5562 = vld [vmem:[#allocation6 + $0x738] sm:$0xff]
    %v5563 = vld [vmem:[#allocation6 + $0x740] sm:$0xff]
    %v5564 = vld [vmem:[#allocation6 + $0x748] sm:$0xff]
    %v5565 = vld [vmem:[#allocation6 + $0x750] sm:$0xff]
    %v5566 = vld [vmem:[#allocation6 + $0x758] sm:$0xff]
    %v5567 = vld [vmem:[#allocation6 + $0x760] sm:$0xff]
    %v5568 = vld [vmem:[#allocation6 + $0x768] sm:$0xff]
    %v5569 = vld [vmem:[#allocation6 + $0x770] sm:$0xff]
    %v5570 = vld [vmem:[#allocation6 + $0x778] sm:$0xff]
    %v5571 = vld [vmem:[#allocation6 + $0x780] sm:$0xff]
    %v5572 = vld [vmem:[#allocation6 + $0x788] sm:$0xff]
    %v5573 = vld [vmem:[#allocation6 + $0x790] sm:$0xff]
    %v5574 = vld [vmem:[#allocation6 + $0x798] sm:$0xff]
    %v5575 = vld [vmem:[#allocation6 + $0x7a0] sm:$0xff]
    %v5576 = vld [vmem:[#allocation6 + $0x7a8] sm:$0xff]
    %v5577 = vld [vmem:[#allocation6 + $0x7b0] sm:$0xff]
    %v5578 = vld [vmem:[#allocation6 + $0x7b8] sm:$0xff]
    %v5579 = vld [vmem:[#allocation6 + $0x7c0] sm:$0xff]
    %v5580 = vld [vmem:[#allocation6 + $0x7c8] sm:$0xff]
    %v5581 = vld [vmem:[#allocation6 + $0x7d0] sm:$0xff]
    %v5582 = vld [vmem:[#allocation6 + $0x7d8] sm:$0xff]
    %v5583 = vld [vmem:[#allocation6 + $0x7e0] sm:$0xff]
    %v5584 = vld [vmem:[#allocation6 + $0x7e8] sm:$0xff]
    %v5585 = vld [vmem:[#allocation6 + $0x7f0] sm:$0xff]
    %v5586 = vld [vmem:[#allocation6 + $0x7f8] sm:$0xff]
    %v5587 = vld [vmem:[%s8] sm:$0x3]
    %v5589 = vperm.slane %v5587, 0
    %v5590 = vperm.slane %v5587, 1
    %5593 = vst [vmem:[#allocation1] ss:$9 sm:$0xff] %v5323
    %s5594 = scalar_lea.vmem [#allocation1], 1
    %5595 = vst [vmem:[%s5594] ss:$9 sm:$0xff] %v5330
    %v5596 = vld [vmem:[#allocation1] sm:$0xff]
    %v5597 = vld [vmem:[#allocation1 + $0x9] sm:$0xff]
    %v5598 = vld [vmem:[#allocation1 + $0x12] sm:$0xff]
    %v5599 = vld [vmem:[#allocation1 + $0x1b] sm:$0xff]
    %v5600 = vld [vmem:[#allocation1 + $0x24] sm:$0xff]
    %v5601 = vld [vmem:[#allocation1 + $0x2d] sm:$0xff]
    %v5602 = vld [vmem:[#allocation1 + $0x36] sm:$0xff]
    %v5603 = vld [vmem:[#allocation1 + $0x3f] sm:$0xff]
    %v5612 = vand.u32 %v5361, 4294901760
    %5613 = vmatpush.msra.mxu0 %v5612
    %v5614 = vand.u32 %v5359, 4294901760
    %5615 = vmatpush.msra.mxu0 %v5614
    %v5616 = vand.u32 %v5357, 4294901760
    %5617 = vmatpush.msra.mxu0 %v5616
    %v5618 = vand.u32 %v5355, 4294901760
    %5619 = vmatpush.msra.mxu0 %v5618
    %v5620 = vand.u32 %v5353, 4294901760
    %5621 = vmatpush.msra.mxu0 %v5620
    %v5622 = vand.u32 %v5351, 4294901760
    %5623 = vmatpush.msra.mxu0 %v5622
    %v5624 = vand.u32 %v5349, 4294901760
    %5625 = vmatpush.msra.mxu0 %v5624
    %v5626 = vand.u32 %v5347, 4294901760
    %5627 = vmatpush.msra.mxu0 %v5626
    %v5628 = vand.u32 %v5345, 4294901760
    %5629 = vmatpush.msra.mxu0 %v5628
    %v5630 = vand.u32 %v5343, 4294901760
    %5631 = vmatpush.msra.mxu0 %v5630
    %v5632 = vand.u32 %v5341, 4294901760
    %5633 = vmatpush.msra.mxu0 %v5632
    %v5634 = vand.u32 %v5339, 4294901760
    %5635 = vmatpush.msra.mxu0 %v5634
    %v5636 = vand.u32 %v5337, 4294901760
    %5637 = vmatpush.msra.mxu0 %v5636
    %v5638 = vand.u32 %v5335, 4294901760
    %5639 = vmatpush.msra.mxu0 %v5638
    %v5640 = vand.u32 %v5333, 4294901760
    %5641 = vmatpush.msra.mxu0 %v5640
    %v5642 = vand.u32 %v5331, 4294901760
    %5643 = vmatpush.msra.mxu0 %v5642
    %v5644 = vand.u32 %v5596, 4294901760
    %v5645 = vsub.f32 %v5596, %v5644
    %v5646 = vand.u32 %v5645, 4294901760
    %v5647 = vsub.f32 %v5645, %v5646
    %v5648 = vand.u32 %v5647, 4294901760
    %5649 = vmatmul.f32.gmra.mxu0 %v5648
    %v5650 = vpop.f32.mrf.mxu0
    %v5651 = vadd.f32 %v5589, %v5650
    %5652 = vdwg.mxu0
    %v5653 = vand.u32 %v5361, 4294901760
    %v5654 = vsub.f32 %v5361, %v5653
    %v5655 = vand.u32 %v5654, 4294901760
    %v5656 = vsub.f32 %v5654, %v5655
    %v5657 = vand.u32 %v5656, 4294901760
    %5658 = vmatpush.msra.mxu0 %v5657
    %v5659 = vand.u32 %v5359, 4294901760
    %v5660 = vsub.f32 %v5359, %v5659
    %v5661 = vand.u32 %v5660, 4294901760
    %v5662 = vsub.f32 %v5660, %v5661
    %v5663 = vand.u32 %v5662, 4294901760
    %5664 = vmatpush.msra.mxu0 %v5663
    %v5665 = vand.u32 %v5357, 4294901760
    %v5666 = vsub.f32 %v5357, %v5665
    %v5667 = vand.u32 %v5666, 4294901760
    %v5668 = vsub.f32 %v5666, %v5667
    %v5669 = vand.u32 %v5668, 4294901760
    %5670 = vmatpush.msra.mxu0 %v5669
    %v5671 = vand.u32 %v5355, 4294901760
    %v5672 = vsub.f32 %v5355, %v5671
    %v5673 = vand.u32 %v5672, 4294901760
    %v5674 = vsub.f32 %v5672, %v5673
    %v5675 = vand.u32 %v5674, 4294901760
    %5676 = vmatpush.msra.mxu0 %v5675
    %v5677 = vand.u32 %v5353, 4294901760
    %v5678 = vsub.f32 %v5353, %v5677
    %v5679 = vand.u32 %v5678, 4294901760
    %v5680 = vsub.f32 %v5678, %v5679
    %v5681 = vand.u32 %v5680, 4294901760
    %5682 = vmatpush.msra.mxu0 %v5681
    %v5683 = vand.u32 %v5351, 4294901760
    %v5684 = vsub.f32 %v5351, %v5683
    %v5685 = vand.u32 %v5684, 4294901760
    %v5686 = vsub.f32 %v5684, %v5685
    %v5687 = vand.u32 %v5686, 4294901760
    %5688 = vmatpush.msra.mxu0 %v5687
    %v5689 = vand.u32 %v5349, 4294901760
    %v5690 = vsub.f32 %v5349, %v5689
    %v5691 = vand.u32 %v5690, 4294901760
    %v5692 = vsub.f32 %v5690, %v5691
    %v5693 = vand.u32 %v5692, 4294901760
    %5694 = vmatpush.msra.mxu0 %v5693
    %v5695 = vand.u32 %v5347, 4294901760
    %v5696 = vsub.f32 %v5347, %v5695
    %v5697 = vand.u32 %v5696, 4294901760
    %v5698 = vsub.f32 %v5696, %v5697
    %v5699 = vand.u32 %v5698, 4294901760
    %5700 = vmatpush.msra.mxu0 %v5699
    %v5701 = vand.u32 %v5345, 4294901760
    %v5702 = vsub.f32 %v5345, %v5701
    %v5703 = vand.u32 %v5702, 4294901760
    %v5704 = vsub.f32 %v5702, %v5703
    %v5705 = vand.u32 %v5704, 4294901760
    %5706 = vmatpush.msra.mxu0 %v5705
    %v5707 = vand.u32 %v5343, 4294901760
    %v5708 = vsub.f32 %v5343, %v5707
    %v5709 = vand.u32 %v5708, 4294901760
    %v5710 = vsub.f32 %v5708, %v5709
    %v5711 = vand.u32 %v5710, 4294901760
    %5712 = vmatpush.msra.mxu0 %v5711
    %v5713 = vand.u32 %v5341, 4294901760
    %v5714 = vsub.f32 %v5341, %v5713
    %v5715 = vand.u32 %v5714, 4294901760
    %v5716 = vsub.f32 %v5714, %v5715
    %v5717 = vand.u32 %v5716, 4294901760
    %5718 = vmatpush.msra.mxu0 %v5717
    %v5719 = vand.u32 %v5339, 4294901760
    %v5720 = vsub.f32 %v5339, %v5719
    %v5721 = vand.u32 %v5720, 4294901760
    %v5722 = vsub.f32 %v5720, %v5721
    %v5723 = vand.u32 %v5722, 4294901760
    %5724 = vmatpush.msra.mxu0 %v5723
    %v5725 = vand.u32 %v5337, 4294901760
    %v5726 = vsub.f32 %v5337, %v5725
    %v5727 = vand.u32 %v5726, 4294901760
    %v5728 = vsub.f32 %v5726, %v5727
    %v5729 = vand.u32 %v5728, 4294901760
    %5730 = vmatpush.msra.mxu0 %v5729
    %v5731 = vand.u32 %v5335, 4294901760
    %v5732 = vsub.f32 %v5335, %v5731
    %v5733 = vand.u32 %v5732, 4294901760
    %v5734 = vsub.f32 %v5732, %v5733
    %v5735 = vand.u32 %v5734, 4294901760
    %5736 = vmatpush.msra.mxu0 %v5735
    %v5737 = vand.u32 %v5333, 4294901760
    %v5738 = vsub.f32 %v5333, %v5737
    %v5739 = vand.u32 %v5738, 4294901760
    %v5740 = vsub.f32 %v5738, %v5739
    %v5741 = vand.u32 %v5740, 4294901760
    %5742 = vmatpush.msra.mxu0 %v5741
    %v5743 = vand.u32 %v5331, 4294901760
    %v5744 = vsub.f32 %v5331, %v5743
    %v5745 = vand.u32 %v5744, 4294901760
    %v5746 = vsub.f32 %v5744, %v5745
    %v5747 = vand.u32 %v5746, 4294901760
    %5748 = vmatpush.msra.mxu0 %v5747
    %v5749 = vand.u32 %v5596, 4294901760
    %5750 = vmatmul.f32.gmra.mxu0 %v5749
    %v5751 = vpop.f32.mrf.mxu0
    %v5752 = vadd.f32 %v5651, %v5751
    %5753 = vdwg.mxu0
    %v5754 = vand.u32 %v5361, 4294901760
    %v5755 = vsub.f32 %v5361, %v5754
    %5756 = vmatpush.msra.mxu0 %v5755
    %v5757 = vand.u32 %v5359, 4294901760
    %v5758 = vsub.f32 %v5359, %v5757
    %5759 = vmatpush.msra.mxu0 %v5758
    %v5760 = vand.u32 %v5357, 4294901760
    %v5761 = vsub.f32 %v5357, %v5760
    %5762 = vmatpush.msra.mxu0 %v5761
    %v5763 = vand.u32 %v5355, 4294901760
    %v5764 = vsub.f32 %v5355, %v5763
    %5765 = vmatpush.msra.mxu0 %v5764
    %v5766 = vand.u32 %v5353, 4294901760
    %v5767 = vsub.f32 %v5353, %v5766
    %5768 = vmatpush.msra.mxu0 %v5767
    %v5769 = vand.u32 %v5351, 4294901760
    %v5770 = vsub.f32 %v5351, %v5769
    %5771 = vmatpush.msra.mxu0 %v5770
    %v5772 = vand.u32 %v5349, 4294901760
    %v5773 = vsub.f32 %v5349, %v5772
    %5774 = vmatpush.msra.mxu0 %v5773
    %v5775 = vand.u32 %v5347, 4294901760
    %v5776 = vsub.f32 %v5347, %v5775
    %5777 = vmatpush.msra.mxu0 %v5776
    %v5778 = vand.u32 %v5345, 4294901760
    %v5779 = vsub.f32 %v5345, %v5778
    %5780 = vmatpush.msra.mxu0 %v5779
    %v5781 = vand.u32 %v5343, 4294901760
    %v5782 = vsub.f32 %v5343, %v5781
    %5783 = vmatpush.msra.mxu0 %v5782
    %v5784 = vand.u32 %v5341, 4294901760
    %v5785 = vsub.f32 %v5341, %v5784
    %5786 = vmatpush.msra.mxu0 %v5785
    %v5787 = vand.u32 %v5339, 4294901760
    %v5788 = vsub.f32 %v5339, %v5787
    %5789 = vmatpush.msra.mxu0 %v5788
    %v5790 = vand.u32 %v5337, 4294901760
    %v5791 = vsub.f32 %v5337, %v5790
    %5792 = vmatpush.msra.mxu0 %v5791
    %v5793 = vand.u32 %v5335, 4294901760
    %v5794 = vsub.f32 %v5335, %v5793
    %5795 = vmatpush.msra.mxu0 %v5794
    %v5796 = vand.u32 %v5333, 4294901760
    %v5797 = vsub.f32 %v5333, %v5796
    %5798 = vmatpush.msra.mxu0 %v5797
    %v5799 = vand.u32 %v5331, 4294901760
    %v5800 = vsub.f32 %v5331, %v5799
    %5801 = vmatpush.msra.mxu0 %v5800
    %v5802 = vand.u32 %v5596, 4294901760
    %v5803 = vsub.f32 %v5596, %v5802
    %5804 = vmatmul.f32.gmra.mxu0 %v5803
    %v5805 = vpop.f32.mrf.mxu0
    %v5806 = vadd.f32 %v5752, %v5805
    %5807 = vdwg.mxu0
    %v5808 = vand.u32 %v5361, 4294901760
    %5809 = vmatpush.msra.mxu0 %v5808
    %v5810 = vand.u32 %v5359, 4294901760
    %5811 = vmatpush.msra.mxu0 %v5810
    %v5812 = vand.u32 %v5357, 4294901760
    %5813 = vmatpush.msra.mxu0 %v5812
    %v5814 = vand.u32 %v5355, 4294901760
    %5815 = vmatpush.msra.mxu0 %v5814
    %v5816 = vand.u32 %v5353, 4294901760
    %5817 = vmatpush.msra.mxu0 %v5816
    %v5818 = vand.u32 %v5351, 4294901760
    %5819 = vmatpush.msra.mxu0 %v5818
    %v5820 = vand.u32 %v5349, 4294901760
    %5821 = vmatpush.msra.mxu0 %v5820
    %v5822 = vand.u32 %v5347, 4294901760
    %5823 = vmatpush.msra.mxu0 %v5822
    %v5824 = vand.u32 %v5345, 4294901760
    %5825 = vmatpush.msra.mxu0 %v5824
    %v5826 = vand.u32 %v5343, 4294901760
    %5827 = vmatpush.msra.mxu0 %v5826
    %v5828 = vand.u32 %v5341, 4294901760
    %5829 = vmatpush.msra.mxu0 %v5828
    %v5830 = vand.u32 %v5339, 4294901760
    %5831 = vmatpush.msra.mxu0 %v5830
    %v5832 = vand.u32 %v5337, 4294901760
    %5833 = vmatpush.msra.mxu0 %v5832
    %v5834 = vand.u32 %v5335, 4294901760
    %5835 = vmatpush.msra.mxu0 %v5834
    %v5836 = vand.u32 %v5333, 4294901760
    %5837 = vmatpush.msra.mxu0 %v5836
    %v5838 = vand.u32 %v5331, 4294901760
    %5839 = vmatpush.msra.mxu0 %v5838
    %v5840 = vand.u32 %v5596, 4294901760
    %v5841 = vsub.f32 %v5596, %v5840
    %v5842 = vand.u32 %v5841, 4294901760
    %5843 = vmatmul.f32.gmra.mxu0 %v5842
    %v5844 = vpop.f32.mrf.mxu0
    %v5845 = vadd.f32 %v5806, %v5844
    %5846 = vdwg.mxu0
    %v5847 = vand.u32 %v5361, 4294901760
    %v5848 = vsub.f32 %v5361, %v5847
    %v5849 = vand.u32 %v5848, 4294901760
    %5850 = vmatpush.msra.mxu0 %v5849
    %v5851 = vand.u32 %v5359, 4294901760
    %v5852 = vsub.f32 %v5359, %v5851
    %v5853 = vand.u32 %v5852, 4294901760
    %5854 = vmatpush.msra.mxu0 %v5853
    %v5855 = vand.u32 %v5357, 4294901760
    %v5856 = vsub.f32 %v5357, %v5855
    %v5857 = vand.u32 %v5856, 4294901760
    %5858 = vmatpush.msra.mxu0 %v5857
    %v5859 = vand.u32 %v5355, 4294901760
    %v5860 = vsub.f32 %v5355, %v5859
    %v5861 = vand.u32 %v5860, 4294901760
    %5862 = vmatpush.msra.mxu0 %v5861
    %v5863 = vand.u32 %v5353, 4294901760
    %v5864 = vsub.f32 %v5353, %v5863
    %v5865 = vand.u32 %v5864, 4294901760
    %5866 = vmatpush.msra.mxu0 %v5865
    %v5867 = vand.u32 %v5351, 4294901760
    %v5868 = vsub.f32 %v5351, %v5867
    %v5869 = vand.u32 %v5868, 4294901760
    %5870 = vmatpush.msra.mxu0 %v5869
    %v5871 = vand.u32 %v5349, 4294901760
    %v5872 = vsub.f32 %v5349, %v5871
    %v5873 = vand.u32 %v5872, 4294901760
    %5874 = vmatpush.msra.mxu0 %v5873
    %v5875 = vand.u32 %v5347, 4294901760
    %v5876 = vsub.f32 %v5347, %v5875
    %v5877 = vand.u32 %v5876, 4294901760
    %5878 = vmatpush.msra.mxu0 %v5877
    %v5879 = vand.u32 %v5345, 4294901760
    %v5880 = vsub.f32 %v5345, %v5879
    %v5881 = vand.u32 %v5880, 4294901760
    %5882 = vmatpush.msra.mxu0 %v5881
    %v5883 = vand.u32 %v5343, 4294901760
    %v5884 = vsub.f32 %v5343, %v5883
    %v5885 = vand.u32 %v5884, 4294901760
    %5886 = vmatpush.msra.mxu0 %v5885
    %v5887 = vand.u32 %v5341, 4294901760
    %v5888 = vsub.f32 %v5341, %v5887
    %v5889 = vand.u32 %v5888, 4294901760
    %5890 = vmatpush.msra.mxu0 %v5889
    %v5891 = vand.u32 %v5339, 4294901760
    %v5892 = vsub.f32 %v5339, %v5891
    %v5893 = vand.u32 %v5892, 4294901760
    %5894 = vmatpush.msra.mxu0 %v5893
    %v5895 = vand.u32 %v5337, 4294901760
    %v5896 = vsub.f32 %v5337, %v5895
    %v5897 = vand.u32 %v5896, 4294901760
    %5898 = vmatpush.msra.mxu0 %v5897
    %v5899 = vand.u32 %v5335, 4294901760
    %v5900 = vsub.f32 %v5335, %v5899
    %v5901 = vand.u32 %v5900, 4294901760
    %5902 = vmatpush.msra.mxu0 %v5901
    %v5903 = vand.u32 %v5333, 4294901760
    %v5904 = vsub.f32 %v5333, %v5903
    %v5905 = vand.u32 %v5904, 4294901760
    %5906 = vmatpush.msra.mxu0 %v5905
    %v5907 = vand.u32 %v5331, 4294901760
    %v5908 = vsub.f32 %v5331, %v5907
    %v5909 = vand.u32 %v5908, 4294901760
    %5910 = vmatpush.msra.mxu0 %v5909
    %v5911 = vand.u32 %v5596, 4294901760
    %5912 = vmatmul.f32.gmra.mxu0 %v5911
    %v5913 = vpop.f32.mrf.mxu0
    %v5914 = vadd.f32 %v5845, %v5913
    %5915 = vdwg.mxu0
    %v5916 = vand.u32 %v5361, 4294901760
    %5917 = vmatpush.msra.mxu0 %v5916
    %v5918 = vand.u32 %v5359, 4294901760
    %5919 = vmatpush.msra.mxu0 %v5918
    %v5920 = vand.u32 %v5357, 4294901760
    %5921 = vmatpush.msra.mxu0 %v5920
    %v5922 = vand.u32 %v5355, 4294901760
    %5923 = vmatpush.msra.mxu0 %v5922
    %v5924 = vand.u32 %v5353, 4294901760
    %5925 = vmatpush.msra.mxu0 %v5924
    %v5926 = vand.u32 %v5351, 4294901760
    %5927 = vmatpush.msra.mxu0 %v5926
    %v5928 = vand.u32 %v5349, 4294901760
    %5929 = vmatpush.msra.mxu0 %v5928
    %v5930 = vand.u32 %v5347, 4294901760
    %5931 = vmatpush.msra.mxu0 %v5930
    %v5932 = vand.u32 %v5345, 4294901760
    %5933 = vmatpush.msra.mxu0 %v5932
    %v5934 = vand.u32 %v5343, 4294901760
    %5935 = vmatpush.msra.mxu0 %v5934
    %v5936 = vand.u32 %v5341, 4294901760
    %5937 = vmatpush.msra.mxu0 %v5936
    %v5938 = vand.u32 %v5339, 4294901760
    %5939 = vmatpush.msra.mxu0 %v5938
    %v5940 = vand.u32 %v5337, 4294901760
    %5941 = vmatpush.msra.mxu0 %v5940
    %v5942 = vand.u32 %v5335, 4294901760
    %5943 = vmatpush.msra.mxu0 %v5942
    %v5944 = vand.u32 %v5333, 4294901760
    %5945 = vmatpush.msra.mxu0 %v5944
    %v5946 = vand.u32 %v5331, 4294901760
    %5947 = vmatpush.msra.mxu0 %v5946
    %v5948 = vand.u32 %v5596, 4294901760
    %5949 = vmatmul.f32.gmra.mxu0 %v5948
    %v5950 = vpop.f32.mrf.mxu0
    %v5951 = vadd.f32 %v5914, %v5950
    %5952 = vdwg.mxu0
    %v5953 = vand.u32 %v5393, 4294901760
    %5954 = vmatpush.msra.mxu0 %v5953
    %v5955 = vand.u32 %v5391, 4294901760
    %5956 = vmatpush.msra.mxu0 %v5955
    %v5957 = vand.u32 %v5389, 4294901760
    %5958 = vmatpush.msra.mxu0 %v5957
    %v5959 = vand.u32 %v5387, 4294901760
    %5960 = vmatpush.msra.mxu0 %v5959
    %v5961 = vand.u32 %v5385, 4294901760
    %5962 = vmatpush.msra.mxu0 %v5961
    %v5963 = vand.u32 %v5383, 4294901760
    %5964 = vmatpush.msra.mxu0 %v5963
    %v5965 = vand.u32 %v5381, 4294901760
    %5966 = vmatpush.msra.mxu0 %v5965
    %v5967 = vand.u32 %v5379, 4294901760
    %5968 = vmatpush.msra.mxu0 %v5967
    %v5969 = vand.u32 %v5377, 4294901760
    %5970 = vmatpush.msra.mxu0 %v5969
    %v5971 = vand.u32 %v5375, 4294901760
    %5972 = vmatpush.msra.mxu0 %v5971
    %v5973 = vand.u32 %v5373, 4294901760
    %5974 = vmatpush.msra.mxu0 %v5973
    %v5975 = vand.u32 %v5371, 4294901760
    %5976 = vmatpush.msra.mxu0 %v5975
    %v5977 = vand.u32 %v5369, 4294901760
    %5978 = vmatpush.msra.mxu0 %v5977
    %v5979 = vand.u32 %v5367, 4294901760
    %5980 = vmatpush.msra.mxu0 %v5979
    %v5981 = vand.u32 %v5365, 4294901760
    %5982 = vmatpush.msra.mxu0 %v5981
    %v5983 = vand.u32 %v5363, 4294901760
    %5984 = vmatpush.msra.mxu0 %v5983
    %v5985 = vand.u32 %v5597, 4294901760
    %v5986 = vsub.f32 %v5597, %v5985
    %v5987 = vand.u32 %v5986, 4294901760
    %v5988 = vsub.f32 %v5986, %v5987
    %v5989 = vand.u32 %v5988, 4294901760
    %5990 = vmatmul.f32.gmra.mxu0 %v5989
    %v5991 = vpop.f32.mrf.mxu0
    %v5992 = vadd.f32 %v5951, %v5991
    %5993 = vdwg.mxu0
    %v5994 = vand.u32 %v5393, 4294901760
    %v5995 = vsub.f32 %v5393, %v5994
    %v5996 = vand.u32 %v5995, 4294901760
    %v5997 = vsub.f32 %v5995, %v5996
    %v5998 = vand.u32 %v5997, 4294901760
    %5999 = vmatpush.msra.mxu0 %v5998
    %v6000 = vand.u32 %v5391, 4294901760
    %v6001 = vsub.f32 %v5391, %v6000
    %v6002 = vand.u32 %v6001, 4294901760
    %v6003 = vsub.f32 %v6001, %v6002
    %v6004 = vand.u32 %v6003, 4294901760
    %6005 = vmatpush.msra.mxu0 %v6004
    %v6006 = vand.u32 %v5389, 4294901760
    %v6007 = vsub.f32 %v5389, %v6006
    %v6008 = vand.u32 %v6007, 4294901760
    %v6009 = vsub.f32 %v6007, %v6008
    %v6010 = vand.u32 %v6009, 4294901760
    %6011 = vmatpush.msra.mxu0 %v6010
    %v6012 = vand.u32 %v5387, 4294901760
    %v6013 = vsub.f32 %v5387, %v6012
    %v6014 = vand.u32 %v6013, 4294901760
    %v6015 = vsub.f32 %v6013, %v6014
    %v6016 = vand.u32 %v6015, 4294901760
    %6017 = vmatpush.msra.mxu0 %v6016
    %v6018 = vand.u32 %v5385, 4294901760
    %v6019 = vsub.f32 %v5385, %v6018
    %v6020 = vand.u32 %v6019, 4294901760
    %v6021 = vsub.f32 %v6019, %v6020
    %v6022 = vand.u32 %v6021, 4294901760
    %6023 = vmatpush.msra.mxu0 %v6022
    %v6024 = vand.u32 %v5383, 4294901760
    %v6025 = vsub.f32 %v5383, %v6024
    %v6026 = vand.u32 %v6025, 4294901760
    %v6027 = vsub.f32 %v6025, %v6026
    %v6028 = vand.u32 %v6027, 4294901760
    %6029 = vmatpush.msra.mxu0 %v6028
    %v6030 = vand.u32 %v5381, 4294901760
    %v6031 = vsub.f32 %v5381, %v6030
    %v6032 = vand.u32 %v6031, 4294901760
    %v6033 = vsub.f32 %v6031, %v6032
    %v6034 = vand.u32 %v6033, 4294901760
    %6035 = vmatpush.msra.mxu0 %v6034
    %v6036 = vand.u32 %v5379, 4294901760
    %v6037 = vsub.f32 %v5379, %v6036
    %v6038 = vand.u32 %v6037, 4294901760
    %v6039 = vsub.f32 %v6037, %v6038
    %v6040 = vand.u32 %v6039, 4294901760
    %6041 = vmatpush.msra.mxu0 %v6040
    %v6042 = vand.u32 %v5377, 4294901760
    %v6043 = vsub.f32 %v5377, %v6042
    %v6044 = vand.u32 %v6043, 4294901760
    %v6045 = vsub.f32 %v6043, %v6044
    %v6046 = vand.u32 %v6045, 4294901760
    %6047 = vmatpush.msra.mxu0 %v6046
    %v6048 = vand.u32 %v5375, 4294901760
    %v6049 = vsub.f32 %v5375, %v6048
    %v6050 = vand.u32 %v6049, 4294901760
    %v6051 = vsub.f32 %v6049, %v6050
    %v6052 = vand.u32 %v6051, 4294901760
    %6053 = vmatpush.msra.mxu0 %v6052
    %v6054 = vand.u32 %v5373, 4294901760
    %v6055 = vsub.f32 %v5373, %v6054
    %v6056 = vand.u32 %v6055, 4294901760
    %v6057 = vsub.f32 %v6055, %v6056
    %v6058 = vand.u32 %v6057, 4294901760
    %6059 = vmatpush.msra.mxu0 %v6058
    %v6060 = vand.u32 %v5371, 4294901760
    %v6061 = vsub.f32 %v5371, %v6060
    %v6062 = vand.u32 %v6061, 4294901760
    %v6063 = vsub.f32 %v6061, %v6062
    %v6064 = vand.u32 %v6063, 4294901760
    %6065 = vmatpush.msra.mxu0 %v6064
    %v6066 = vand.u32 %v5369, 4294901760
    %v6067 = vsub.f32 %v5369, %v6066
    %v6068 = vand.u32 %v6067, 4294901760
    %v6069 = vsub.f32 %v6067, %v6068
    %v6070 = vand.u32 %v6069, 4294901760
    %6071 = vmatpush.msra.mxu0 %v6070
    %v6072 = vand.u32 %v5367, 4294901760
    %v6073 = vsub.f32 %v5367, %v6072
    %v6074 = vand.u32 %v6073, 4294901760
    %v6075 = vsub.f32 %v6073, %v6074
    %v6076 = vand.u32 %v6075, 4294901760
    %6077 = vmatpush.msra.mxu0 %v6076
    %v6078 = vand.u32 %v5365, 4294901760
    %v6079 = vsub.f32 %v5365, %v6078
    %v6080 = vand.u32 %v6079, 4294901760
    %v6081 = vsub.f32 %v6079, %v6080
    %v6082 = vand.u32 %v6081, 4294901760
    %6083 = vmatpush.msra.mxu0 %v6082
    %v6084 = vand.u32 %v5363, 4294901760
    %v6085 = vsub.f32 %v5363, %v6084
    %v6086 = vand.u32 %v6085, 4294901760
    %v6087 = vsub.f32 %v6085, %v6086
    %v6088 = vand.u32 %v6087, 4294901760
    %6089 = vmatpush.msra.mxu0 %v6088
    %v6090 = vand.u32 %v5597, 4294901760
    %6091 = vmatmul.f32.gmra.mxu0 %v6090
    %v6092 = vpop.f32.mrf.mxu0
    %v6093 = vadd.f32 %v5992, %v6092
    %6094 = vdwg.mxu0
    %v6095 = vand.u32 %v5393, 4294901760
    %v6096 = vsub.f32 %v5393, %v6095
    %6097 = vmatpush.msra.mxu0 %v6096
    %v6098 = vand.u32 %v5391, 4294901760
    %v6099 = vsub.f32 %v5391, %v6098
    %6100 = vmatpush.msra.mxu0 %v6099
    %v6101 = vand.u32 %v5389, 4294901760
    %v6102 = vsub.f32 %v5389, %v6101
    %6103 = vmatpush.msra.mxu0 %v6102
    %v6104 = vand.u32 %v5387, 4294901760
    %v6105 = vsub.f32 %v5387, %v6104
    %6106 = vmatpush.msra.mxu0 %v6105
    %v6107 = vand.u32 %v5385, 4294901760
    %v6108 = vsub.f32 %v5385, %v6107
    %6109 = vmatpush.msra.mxu0 %v6108
    %v6110 = vand.u32 %v5383, 4294901760
    %v6111 = vsub.f32 %v5383, %v6110
    %6112 = vmatpush.msra.mxu0 %v6111
    %v6113 = vand.u32 %v5381, 4294901760
    %v6114 = vsub.f32 %v5381, %v6113
    %6115 = vmatpush.msra.mxu0 %v6114
    %v6116 = vand.u32 %v5379, 4294901760
    %v6117 = vsub.f32 %v5379, %v6116
    %6118 = vmatpush.msra.mxu0 %v6117
    %v6119 = vand.u32 %v5377, 4294901760
    %v6120 = vsub.f32 %v5377, %v6119
    %6121 = vmatpush.msra.mxu0 %v6120
    %v6122 = vand.u32 %v5375, 4294901760
    %v6123 = vsub.f32 %v5375, %v6122
    %6124 = vmatpush.msra.mxu0 %v6123
    %v6125 = vand.u32 %v5373, 4294901760
    %v6126 = vsub.f32 %v5373, %v6125
    %6127 = vmatpush.msra.mxu0 %v6126
    %v6128 = vand.u32 %v5371, 4294901760
    %v6129 = vsub.f32 %v5371, %v6128
    %6130 = vmatpush.msra.mxu0 %v6129
    %v6131 = vand.u32 %v5369, 4294901760
    %v6132 = vsub.f32 %v5369, %v6131
    %6133 = vmatpush.msra.mxu0 %v6132
    %v6134 = vand.u32 %v5367, 4294901760
    %v6135 = vsub.f32 %v5367, %v6134
    %6136 = vmatpush.msra.mxu0 %v6135
    %v6137 = vand.u32 %v5365, 4294901760
    %v6138 = vsub.f32 %v5365, %v6137
    %6139 = vmatpush.msra.mxu0 %v6138
    %v6140 = vand.u32 %v5363, 4294901760
    %v6141 = vsub.f32 %v5363, %v6140
    %6142 = vmatpush.msra.mxu0 %v6141
    %v6143 = vand.u32 %v5597, 4294901760
    %v6144 = vsub.f32 %v5597, %v6143
    %6145 = vmatmul.f32.gmra.mxu0 %v6144
    %v6146 = vpop.f32.mrf.mxu0
    %v6147 = vadd.f32 %v6093, %v6146
    %6148 = vdwg.mxu0
    %v6149 = vand.u32 %v5393, 4294901760
    %6150 = vmatpush.msra.mxu0 %v6149
    %v6151 = vand.u32 %v5391, 4294901760
    %6152 = vmatpush.msra.mxu0 %v6151
    %v6153 = vand.u32 %v5389, 4294901760
    %6154 = vmatpush.msra.mxu0 %v6153
    %v6155 = vand.u32 %v5387, 4294901760
    %6156 = vmatpush.msra.mxu0 %v6155
    %v6157 = vand.u32 %v5385, 4294901760
    %6158 = vmatpush.msra.mxu0 %v6157
    %v6159 = vand.u32 %v5383, 4294901760
    %6160 = vmatpush.msra.mxu0 %v6159
    %v6161 = vand.u32 %v5381, 4294901760
    %6162 = vmatpush.msra.mxu0 %v6161
    %v6163 = vand.u32 %v5379, 4294901760
    %6164 = vmatpush.msra.mxu0 %v6163
    %v6165 = vand.u32 %v5377, 4294901760
    %6166 = vmatpush.msra.mxu0 %v6165
    %v6167 = vand.u32 %v5375, 4294901760
    %6168 = vmatpush.msra.mxu0 %v6167
    %v6169 = vand.u32 %v5373, 4294901760
    %6170 = vmatpush.msra.mxu0 %v6169
    %v6171 = vand.u32 %v5371, 4294901760
    %6172 = vmatpush.msra.mxu0 %v6171
    %v6173 = vand.u32 %v5369, 4294901760
    %6174 = vmatpush.msra.mxu0 %v6173
    %v6175 = vand.u32 %v5367, 4294901760
    %6176 = vmatpush.msra.mxu0 %v6175
    %v6177 = vand.u32 %v5365, 4294901760
    %6178 = vmatpush.msra.mxu0 %v6177
    %v6179 = vand.u32 %v5363, 4294901760
    %6180 = vmatpush.msra.mxu0 %v6179
    %v6181 = vand.u32 %v5597, 4294901760
    %v6182 = vsub.f32 %v5597, %v6181
    %v6183 = vand.u32 %v6182, 4294901760
    %6184 = vmatmul.f32.gmra.mxu0 %v6183
    %v6185 = vpop.f32.mrf.mxu0
    %v6186 = vadd.f32 %v6147, %v6185
    %6187 = vdwg.mxu0
    %v6188 = vand.u32 %v5393, 4294901760
    %v6189 = vsub.f32 %v5393, %v6188
    %v6190 = vand.u32 %v6189, 4294901760
    %6191 = vmatpush.msra.mxu0 %v6190
    %v6192 = vand.u32 %v5391, 4294901760
    %v6193 = vsub.f32 %v5391, %v6192
    %v6194 = vand.u32 %v6193, 4294901760
    %6195 = vmatpush.msra.mxu0 %v6194
    %v6196 = vand.u32 %v5389, 4294901760
    %v6197 = vsub.f32 %v5389, %v6196
    %v6198 = vand.u32 %v6197, 4294901760
    %6199 = vmatpush.msra.mxu0 %v6198
    %v6200 = vand.u32 %v5387, 4294901760
    %v6201 = vsub.f32 %v5387, %v6200
    %v6202 = vand.u32 %v6201, 4294901760
    %6203 = vmatpush.msra.mxu0 %v6202
    %v6204 = vand.u32 %v5385, 4294901760
    %v6205 = vsub.f32 %v5385, %v6204
    %v6206 = vand.u32 %v6205, 4294901760
    %6207 = vmatpush.msra.mxu0 %v6206
    %v6208 = vand.u32 %v5383, 4294901760
    %v6209 = vsub.f32 %v5383, %v6208
    %v6210 = vand.u32 %v6209, 4294901760
    %6211 = vmatpush.msra.mxu0 %v6210
    %v6212 = vand.u32 %v5381, 4294901760
    %v6213 = vsub.f32 %v5381, %v6212
    %v6214 = vand.u32 %v6213, 4294901760
    %6215 = vmatpush.msra.mxu0 %v6214
    %v6216 = vand.u32 %v5379, 4294901760
    %v6217 = vsub.f32 %v5379, %v6216
    %v6218 = vand.u32 %v6217, 4294901760
    %6219 = vmatpush.msra.mxu0 %v6218
    %v6220 = vand.u32 %v5377, 4294901760
    %v6221 = vsub.f32 %v5377, %v6220
    %v6222 = vand.u32 %v6221, 4294901760
    %6223 = vmatpush.msra.mxu0 %v6222
    %v6224 = vand.u32 %v5375, 4294901760
    %v6225 = vsub.f32 %v5375, %v6224
    %v6226 = vand.u32 %v6225, 4294901760
    %6227 = vmatpush.msra.mxu0 %v6226
    %v6228 = vand.u32 %v5373, 4294901760
    %v6229 = vsub.f32 %v5373, %v6228
    %v6230 = vand.u32 %v6229, 4294901760
    %6231 = vmatpush.msra.mxu0 %v6230
    %v6232 = vand.u32 %v5371, 4294901760
    %v6233 = vsub.f32 %v5371, %v6232
    %v6234 = vand.u32 %v6233, 4294901760
    %6235 = vmatpush.msra.mxu0 %v6234
    %v6236 = vand.u32 %v5369, 4294901760
    %v6237 = vsub.f32 %v5369, %v6236
    %v6238 = vand.u32 %v6237, 4294901760
    %6239 = vmatpush.msra.mxu0 %v6238
    %v6240 = vand.u32 %v5367, 4294901760
    %v6241 = vsub.f32 %v5367, %v6240
    %v6242 = vand.u32 %v6241, 4294901760
    %6243 = vmatpush.msra.mxu0 %v6242
    %v6244 = vand.u32 %v5365, 4294901760
    %v6245 = vsub.f32 %v5365, %v6244
    %v6246 = vand.u32 %v6245, 4294901760
    %6247 = vmatpush.msra.mxu0 %v6246
    %v6248 = vand.u32 %v5363, 4294901760
    %v6249 = vsub.f32 %v5363, %v6248
    %v6250 = vand.u32 %v6249, 4294901760
    %6251 = vmatpush.msra.mxu0 %v6250
    %v6252 = vand.u32 %v5597, 4294901760
    %6253 = vmatmul.f32.gmra.mxu0 %v6252
    %v6254 = vpop.f32.mrf.mxu0
    %v6255 = vadd.f32 %v6186, %v6254
    %6256 = vdwg.mxu0
    %v6257 = vand.u32 %v5393, 4294901760
    %6258 = vmatpush.msra.mxu0 %v6257
    %v6259 = vand.u32 %v5391, 4294901760
    %6260 = vmatpush.msra.mxu0 %v6259
    %v6261 = vand.u32 %v5389, 4294901760
    %6262 = vmatpush.msra.mxu0 %v6261
    %v6263 = vand.u32 %v5387, 4294901760
    %6264 = vmatpush.msra.mxu0 %v6263
    %v6265 = vand.u32 %v5385, 4294901760
    %6266 = vmatpush.msra.mxu0 %v6265
    %v6267 = vand.u32 %v5383, 4294901760
    %6268 = vmatpush.msra.mxu0 %v6267
    %v6269 = vand.u32 %v5381, 4294901760
    %6270 = vmatpush.msra.mxu0 %v6269
    %v6271 = vand.u32 %v5379, 4294901760
    %6272 = vmatpush.msra.mxu0 %v6271
    %v6273 = vand.u32 %v5377, 4294901760
    %6274 = vmatpush.msra.mxu0 %v6273
    %v6275 = vand.u32 %v5375, 4294901760
    %6276 = vmatpush.msra.mxu0 %v6275
    %v6277 = vand.u32 %v5373, 4294901760
    %6278 = vmatpush.msra.mxu0 %v6277
    %v6279 = vand.u32 %v5371, 4294901760
    %6280 = vmatpush.msra.mxu0 %v6279
    %v6281 = vand.u32 %v5369, 4294901760
    %6282 = vmatpush.msra.mxu0 %v6281
    %v6283 = vand.u32 %v5367, 4294901760
    %6284 = vmatpush.msra.mxu0 %v6283
    %v6285 = vand.u32 %v5365, 4294901760
    %6286 = vmatpush.msra.mxu0 %v6285
    %v6287 = vand.u32 %v5363, 4294901760
    %6288 = vmatpush.msra.mxu0 %v6287
    %v6289 = vand.u32 %v5597, 4294901760
    %6290 = vmatmul.f32.gmra.mxu0 %v6289
    %v6291 = vpop.f32.mrf.mxu0
    %v6292 = vadd.f32 %v6255, %v6291
    %6293 = vdwg.mxu0
    %v6294 = vand.u32 %v5425, 4294901760
    %6295 = vmatpush.msra.mxu0 %v6294
    %v6296 = vand.u32 %v5423, 4294901760
    %6297 = vmatpush.msra.mxu0 %v6296
    %v6298 = vand.u32 %v5421, 4294901760
    %6299 = vmatpush.msra.mxu0 %v6298
    %v6300 = vand.u32 %v5419, 4294901760
    %6301 = vmatpush.msra.mxu0 %v6300
    %v6302 = vand.u32 %v5417, 4294901760
    %6303 = vmatpush.msra.mxu0 %v6302
    %v6304 = vand.u32 %v5415, 4294901760
    %6305 = vmatpush.msra.mxu0 %v6304
    %v6306 = vand.u32 %v5413, 4294901760
    %6307 = vmatpush.msra.mxu0 %v6306
    %v6308 = vand.u32 %v5411, 4294901760
    %6309 = vmatpush.msra.mxu0 %v6308
    %v6310 = vand.u32 %v5409, 4294901760
    %6311 = vmatpush.msra.mxu0 %v6310
    %v6312 = vand.u32 %v5407, 4294901760
    %6313 = vmatpush.msra.mxu0 %v6312
    %v6314 = vand.u32 %v5405, 4294901760
    %6315 = vmatpush.msra.mxu0 %v6314
    %v6316 = vand.u32 %v5403, 4294901760
    %6317 = vmatpush.msra.mxu0 %v6316
    %v6318 = vand.u32 %v5401, 4294901760
    %6319 = vmatpush.msra.mxu0 %v6318
    %v6320 = vand.u32 %v5399, 4294901760
    %6321 = vmatpush.msra.mxu0 %v6320
    %v6322 = vand.u32 %v5397, 4294901760
    %6323 = vmatpush.msra.mxu0 %v6322
    %v6324 = vand.u32 %v5395, 4294901760
    %6325 = vmatpush.msra.mxu0 %v6324
    %v6326 = vand.u32 %v5598, 4294901760
    %v6327 = vsub.f32 %v5598, %v6326
    %v6328 = vand.u32 %v6327, 4294901760
    %v6329 = vsub.f32 %v6327, %v6328
    %v6330 = vand.u32 %v6329, 4294901760
    %6331 = vmatmul.f32.gmra.mxu0 %v6330
    %v6332 = vpop.f32.mrf.mxu0
    %v6333 = vadd.f32 %v6292, %v6332
    %6334 = vdwg.mxu0
    %v6335 = vand.u32 %v5425, 4294901760
    %v6336 = vsub.f32 %v5425, %v6335
    %v6337 = vand.u32 %v6336, 4294901760
    %v6338 = vsub.f32 %v6336, %v6337
    %v6339 = vand.u32 %v6338, 4294901760
    %6340 = vmatpush.msra.mxu0 %v6339
    %v6341 = vand.u32 %v5423, 4294901760
    %v6342 = vsub.f32 %v5423, %v6341
    %v6343 = vand.u32 %v6342, 4294901760
    %v6344 = vsub.f32 %v6342, %v6343
    %v6345 = vand.u32 %v6344, 4294901760
    %6346 = vmatpush.msra.mxu0 %v6345
    %v6347 = vand.u32 %v5421, 4294901760
    %v6348 = vsub.f32 %v5421, %v6347
    %v6349 = vand.u32 %v6348, 4294901760
    %v6350 = vsub.f32 %v6348, %v6349
    %v6351 = vand.u32 %v6350, 4294901760
    %6352 = vmatpush.msra.mxu0 %v6351
    %v6353 = vand.u32 %v5419, 4294901760
    %v6354 = vsub.f32 %v5419, %v6353
    %v6355 = vand.u32 %v6354, 4294901760
    %v6356 = vsub.f32 %v6354, %v6355
    %v6357 = vand.u32 %v6356, 4294901760
    %6358 = vmatpush.msra.mxu0 %v6357
    %v6359 = vand.u32 %v5417, 4294901760
    %v6360 = vsub.f32 %v5417, %v6359
    %v6361 = vand.u32 %v6360, 4294901760
    %v6362 = vsub.f32 %v6360, %v6361
    %v6363 = vand.u32 %v6362, 4294901760
    %6364 = vmatpush.msra.mxu0 %v6363
    %v6365 = vand.u32 %v5415, 4294901760
    %v6366 = vsub.f32 %v5415, %v6365
    %v6367 = vand.u32 %v6366, 4294901760
    %v6368 = vsub.f32 %v6366, %v6367
    %v6369 = vand.u32 %v6368, 4294901760
    %6370 = vmatpush.msra.mxu0 %v6369
    %v6371 = vand.u32 %v5413, 4294901760
    %v6372 = vsub.f32 %v5413, %v6371
    %v6373 = vand.u32 %v6372, 4294901760
    %v6374 = vsub.f32 %v6372, %v6373
    %v6375 = vand.u32 %v6374, 4294901760
    %6376 = vmatpush.msra.mxu0 %v6375
    %v6377 = vand.u32 %v5411, 4294901760
    %v6378 = vsub.f32 %v5411, %v6377
    %v6379 = vand.u32 %v6378, 4294901760
    %v6380 = vsub.f32 %v6378, %v6379
    %v6381 = vand.u32 %v6380, 4294901760
    %6382 = vmatpush.msra.mxu0 %v6381
    %v6383 = vand.u32 %v5409, 4294901760
    %v6384 = vsub.f32 %v5409, %v6383
    %v6385 = vand.u32 %v6384, 4294901760
    %v6386 = vsub.f32 %v6384, %v6385
    %v6387 = vand.u32 %v6386, 4294901760
    %6388 = vmatpush.msra.mxu0 %v6387
    %v6389 = vand.u32 %v5407, 4294901760
    %v6390 = vsub.f32 %v5407, %v6389
    %v6391 = vand.u32 %v6390, 4294901760
    %v6392 = vsub.f32 %v6390, %v6391
    %v6393 = vand.u32 %v6392, 4294901760
    %6394 = vmatpush.msra.mxu0 %v6393
    %v6395 = vand.u32 %v5405, 4294901760
    %v6396 = vsub.f32 %v5405, %v6395
    %v6397 = vand.u32 %v6396, 4294901760
    %v6398 = vsub.f32 %v6396, %v6397
    %v6399 = vand.u32 %v6398, 4294901760
    %6400 = vmatpush.msra.mxu0 %v6399
    %v6401 = vand.u32 %v5403, 4294901760
    %v6402 = vsub.f32 %v5403, %v6401
    %v6403 = vand.u32 %v6402, 4294901760
    %v6404 = vsub.f32 %v6402, %v6403
    %v6405 = vand.u32 %v6404, 4294901760
    %6406 = vmatpush.msra.mxu0 %v6405
    %v6407 = vand.u32 %v5401, 4294901760
    %v6408 = vsub.f32 %v5401, %v6407
    %v6409 = vand.u32 %v6408, 4294901760
    %v6410 = vsub.f32 %v6408, %v6409
    %v6411 = vand.u32 %v6410, 4294901760
    %6412 = vmatpush.msra.mxu0 %v6411
    %v6413 = vand.u32 %v5399, 4294901760
    %v6414 = vsub.f32 %v5399, %v6413
    %v6415 = vand.u32 %v6414, 4294901760
    %v6416 = vsub.f32 %v6414, %v6415
    %v6417 = vand.u32 %v6416, 4294901760
    %6418 = vmatpush.msra.mxu0 %v6417
    %v6419 = vand.u32 %v5397, 4294901760
    %v6420 = vsub.f32 %v5397, %v6419
    %v6421 = vand.u32 %v6420, 4294901760
    %v6422 = vsub.f32 %v6420, %v6421
    %v6423 = vand.u32 %v6422, 4294901760
    %6424 = vmatpush.msra.mxu0 %v6423
    %v6425 = vand.u32 %v5395, 4294901760
    %v6426 = vsub.f32 %v5395, %v6425
    %v6427 = vand.u32 %v6426, 4294901760
    %v6428 = vsub.f32 %v6426, %v6427
    %v6429 = vand.u32 %v6428, 4294901760
    %6430 = vmatpush.msra.mxu0 %v6429
    %v6431 = vand.u32 %v5598, 4294901760
    %6432 = vmatmul.f32.gmra.mxu0 %v6431
    %v6433 = vpop.f32.mrf.mxu0
    %v6434 = vadd.f32 %v6333, %v6433
    %6435 = vdwg.mxu0
    %v6436 = vand.u32 %v5425, 4294901760
    %v6437 = vsub.f32 %v5425, %v6436
    %6438 = vmatpush.msra.mxu0 %v6437
    %v6439 = vand.u32 %v5423, 4294901760
    %v6440 = vsub.f32 %v5423, %v6439
    %6441 = vmatpush.msra.mxu0 %v6440
    %v6442 = vand.u32 %v5421, 4294901760
    %v6443 = vsub.f32 %v5421, %v6442
    %6444 = vmatpush.msra.mxu0 %v6443
    %v6445 = vand.u32 %v5419, 4294901760
    %v6446 = vsub.f32 %v5419, %v6445
    %6447 = vmatpush.msra.mxu0 %v6446
    %v6448 = vand.u32 %v5417, 4294901760
    %v6449 = vsub.f32 %v5417, %v6448
    %6450 = vmatpush.msra.mxu0 %v6449
    %v6451 = vand.u32 %v5415, 4294901760
    %v6452 = vsub.f32 %v5415, %v6451
    %6453 = vmatpush.msra.mxu0 %v6452
    %v6454 = vand.u32 %v5413, 4294901760
    %v6455 = vsub.f32 %v5413, %v6454
    %6456 = vmatpush.msra.mxu0 %v6455
    %v6457 = vand.u32 %v5411, 4294901760
    %v6458 = vsub.f32 %v5411, %v6457
    %6459 = vmatpush.msra.mxu0 %v6458
    %v6460 = vand.u32 %v5409, 4294901760
    %v6461 = vsub.f32 %v5409, %v6460
    %6462 = vmatpush.msra.mxu0 %v6461
    %v6463 = vand.u32 %v5407, 4294901760
    %v6464 = vsub.f32 %v5407, %v6463
    %6465 = vmatpush.msra.mxu0 %v6464
    %v6466 = vand.u32 %v5405, 4294901760
    %v6467 = vsub.f32 %v5405, %v6466
    %6468 = vmatpush.msra.mxu0 %v6467
    %v6469 = vand.u32 %v5403, 4294901760
    %v6470 = vsub.f32 %v5403, %v6469
    %6471 = vmatpush.msra.mxu0 %v6470
    %v6472 = vand.u32 %v5401, 4294901760
    %v6473 = vsub.f32 %v5401, %v6472
    %6474 = vmatpush.msra.mxu0 %v6473
    %v6475 = vand.u32 %v5399, 4294901760
    %v6476 = vsub.f32 %v5399, %v6475
    %6477 = vmatpush.msra.mxu0 %v6476
    %v6478 = vand.u32 %v5397, 4294901760
    %v6479 = vsub.f32 %v5397, %v6478
    %6480 = vmatpush.msra.mxu0 %v6479
    %v6481 = vand.u32 %v5395, 4294901760
    %v6482 = vsub.f32 %v5395, %v6481
    %6483 = vmatpush.msra.mxu0 %v6482
    %v6484 = vand.u32 %v5598, 4294901760
    %v6485 = vsub.f32 %v5598, %v6484
    %6486 = vmatmul.f32.gmra.mxu0 %v6485
    %v6487 = vpop.f32.mrf.mxu0
    %v6488 = vadd.f32 %v6434, %v6487
    %6489 = vdwg.mxu0
    %v6490 = vand.u32 %v5425, 4294901760
    %6491 = vmatpush.msra.mxu0 %v6490
    %v6492 = vand.u32 %v5423, 4294901760
    %6493 = vmatpush.msra.mxu0 %v6492
    %v6494 = vand.u32 %v5421, 4294901760
    %6495 = vmatpush.msra.mxu0 %v6494
    %v6496 = vand.u32 %v5419, 4294901760
    %6497 = vmatpush.msra.mxu0 %v6496
    %v6498 = vand.u32 %v5417, 4294901760
    %6499 = vmatpush.msra.mxu0 %v6498
    %v6500 = vand.u32 %v5415, 4294901760
    %6501 = vmatpush.msra.mxu0 %v6500
    %v6502 = vand.u32 %v5413, 4294901760
    %6503 = vmatpush.msra.mxu0 %v6502
    %v6504 = vand.u32 %v5411, 4294901760
    %6505 = vmatpush.msra.mxu0 %v6504
    %v6506 = vand.u32 %v5409, 4294901760
    %6507 = vmatpush.msra.mxu0 %v6506
    %v6508 = vand.u32 %v5407, 4294901760
    %6509 = vmatpush.msra.mxu0 %v6508
    %v6510 = vand.u32 %v5405, 4294901760
    %6511 = vmatpush.msra.mxu0 %v6510
    %v6512 = vand.u32 %v5403, 4294901760
    %6513 = vmatpush.msra.mxu0 %v6512
    %v6514 = vand.u32 %v5401, 4294901760
    %6515 = vmatpush.msra.mxu0 %v6514
    %v6516 = vand.u32 %v5399, 4294901760
    %6517 = vmatpush.msra.mxu0 %v6516
    %v6518 = vand.u32 %v5397, 4294901760
    %6519 = vmatpush.msra.mxu0 %v6518
    %v6520 = vand.u32 %v5395, 4294901760
    %6521 = vmatpush.msra.mxu0 %v6520
    %v6522 = vand.u32 %v5598, 4294901760
    %v6523 = vsub.f32 %v5598, %v6522
    %v6524 = vand.u32 %v6523, 4294901760
    %6525 = vmatmul.f32.gmra.mxu0 %v6524
    %v6526 = vpop.f32.mrf.mxu0
    %v6527 = vadd.f32 %v6488, %v6526
    %6528 = vdwg.mxu0
    %v6529 = vand.u32 %v5425, 4294901760
    %v6530 = vsub.f32 %v5425, %v6529
    %v6531 = vand.u32 %v6530, 4294901760
    %6532 = vmatpush.msra.mxu0 %v6531
    %v6533 = vand.u32 %v5423, 4294901760
    %v6534 = vsub.f32 %v5423, %v6533
    %v6535 = vand.u32 %v6534, 4294901760
    %6536 = vmatpush.msra.mxu0 %v6535
    %v6537 = vand.u32 %v5421, 4294901760
    %v6538 = vsub.f32 %v5421, %v6537
    %v6539 = vand.u32 %v6538, 4294901760
    %6540 = vmatpush.msra.mxu0 %v6539
    %v6541 = vand.u32 %v5419, 4294901760
    %v6542 = vsub.f32 %v5419, %v6541
    %v6543 = vand.u32 %v6542, 4294901760
    %6544 = vmatpush.msra.mxu0 %v6543
    %v6545 = vand.u32 %v5417, 4294901760
    %v6546 = vsub.f32 %v5417, %v6545
    %v6547 = vand.u32 %v6546, 4294901760
    %6548 = vmatpush.msra.mxu0 %v6547
    %v6549 = vand.u32 %v5415, 4294901760
    %v6550 = vsub.f32 %v5415, %v6549
    %v6551 = vand.u32 %v6550, 4294901760
    %6552 = vmatpush.msra.mxu0 %v6551
    %v6553 = vand.u32 %v5413, 4294901760
    %v6554 = vsub.f32 %v5413, %v6553
    %v6555 = vand.u32 %v6554, 4294901760
    %6556 = vmatpush.msra.mxu0 %v6555
    %v6557 = vand.u32 %v5411, 4294901760
    %v6558 = vsub.f32 %v5411, %v6557
    %v6559 = vand.u32 %v6558, 4294901760
    %6560 = vmatpush.msra.mxu0 %v6559
    %v6561 = vand.u32 %v5409, 4294901760
    %v6562 = vsub.f32 %v5409, %v6561
    %v6563 = vand.u32 %v6562, 4294901760
    %6564 = vmatpush.msra.mxu0 %v6563
    %v6565 = vand.u32 %v5407, 4294901760
    %v6566 = vsub.f32 %v5407, %v6565
    %v6567 = vand.u32 %v6566, 4294901760
    %6568 = vmatpush.msra.mxu0 %v6567
    %v6569 = vand.u32 %v5405, 4294901760
    %v6570 = vsub.f32 %v5405, %v6569
    %v6571 = vand.u32 %v6570, 4294901760
    %6572 = vmatpush.msra.mxu0 %v6571
    %v6573 = vand.u32 %v5403, 4294901760
    %v6574 = vsub.f32 %v5403, %v6573
    %v6575 = vand.u32 %v6574, 4294901760
    %6576 = vmatpush.msra.mxu0 %v6575
    %v6577 = vand.u32 %v5401, 4294901760
    %v6578 = vsub.f32 %v5401, %v6577
    %v6579 = vand.u32 %v6578, 4294901760
    %6580 = vmatpush.msra.mxu0 %v6579
    %v6581 = vand.u32 %v5399, 4294901760
    %v6582 = vsub.f32 %v5399, %v6581
    %v6583 = vand.u32 %v6582, 4294901760
    %6584 = vmatpush.msra.mxu0 %v6583
    %v6585 = vand.u32 %v5397, 4294901760
    %v6586 = vsub.f32 %v5397, %v6585
    %v6587 = vand.u32 %v6586, 4294901760
    %6588 = vmatpush.msra.mxu0 %v6587
    %v6589 = vand.u32 %v5395, 4294901760
    %v6590 = vsub.f32 %v5395, %v6589
    %v6591 = vand.u32 %v6590, 4294901760
    %6592 = vmatpush.msra.mxu0 %v6591
    %v6593 = vand.u32 %v5598, 4294901760
    %6594 = vmatmul.f32.gmra.mxu0 %v6593
    %v6595 = vpop.f32.mrf.mxu0
    %v6596 = vadd.f32 %v6527, %v6595
    %6597 = vdwg.mxu0
    %v6598 = vand.u32 %v5425, 4294901760
    %6599 = vmatpush.msra.mxu0 %v6598
    %v6600 = vand.u32 %v5423, 4294901760
    %6601 = vmatpush.msra.mxu0 %v6600
    %v6602 = vand.u32 %v5421, 4294901760
    %6603 = vmatpush.msra.mxu0 %v6602
    %v6604 = vand.u32 %v5419, 4294901760
    %6605 = vmatpush.msra.mxu0 %v6604
    %v6606 = vand.u32 %v5417, 4294901760
    %6607 = vmatpush.msra.mxu0 %v6606
    %v6608 = vand.u32 %v5415, 4294901760
    %6609 = vmatpush.msra.mxu0 %v6608
    %v6610 = vand.u32 %v5413, 4294901760
    %6611 = vmatpush.msra.mxu0 %v6610
    %v6612 = vand.u32 %v5411, 4294901760
    %6613 = vmatpush.msra.mxu0 %v6612
    %v6614 = vand.u32 %v5409, 4294901760
    %6615 = vmatpush.msra.mxu0 %v6614
    %v6616 = vand.u32 %v5407, 4294901760
    %6617 = vmatpush.msra.mxu0 %v6616
    %v6618 = vand.u32 %v5405, 4294901760
    %6619 = vmatpush.msra.mxu0 %v6618
    %v6620 = vand.u32 %v5403, 4294901760
    %6621 = vmatpush.msra.mxu0 %v6620
    %v6622 = vand.u32 %v5401, 4294901760
    %6623 = vmatpush.msra.mxu0 %v6622
    %v6624 = vand.u32 %v5399, 4294901760
    %6625 = vmatpush.msra.mxu0 %v6624
    %v6626 = vand.u32 %v5397, 4294901760
    %6627 = vmatpush.msra.mxu0 %v6626
    %v6628 = vand.u32 %v5395, 4294901760
    %6629 = vmatpush.msra.mxu0 %v6628
    %v6630 = vand.u32 %v5598, 4294901760
    %6631 = vmatmul.f32.gmra.mxu0 %v6630
    %v6632 = vpop.f32.mrf.mxu0
    %v6633 = vadd.f32 %v6596, %v6632
    %6634 = vdwg.mxu0
    %v6635 = vand.u32 %v5457, 4294901760
    %6636 = vmatpush.msra.mxu0 %v6635
    %v6637 = vand.u32 %v5455, 4294901760
    %6638 = vmatpush.msra.mxu0 %v6637
    %v6639 = vand.u32 %v5453, 4294901760
    %6640 = vmatpush.msra.mxu0 %v6639
    %v6641 = vand.u32 %v5451, 4294901760
    %6642 = vmatpush.msra.mxu0 %v6641
    %v6643 = vand.u32 %v5449, 4294901760
    %6644 = vmatpush.msra.mxu0 %v6643
    %v6645 = vand.u32 %v5447, 4294901760
    %6646 = vmatpush.msra.mxu0 %v6645
    %v6647 = vand.u32 %v5445, 4294901760
    %6648 = vmatpush.msra.mxu0 %v6647
    %v6649 = vand.u32 %v5443, 4294901760
    %6650 = vmatpush.msra.mxu0 %v6649
    %v6651 = vand.u32 %v5441, 4294901760
    %6652 = vmatpush.msra.mxu0 %v6651
    %v6653 = vand.u32 %v5439, 4294901760
    %6654 = vmatpush.msra.mxu0 %v6653
    %v6655 = vand.u32 %v5437, 4294901760
    %6656 = vmatpush.msra.mxu0 %v6655
    %v6657 = vand.u32 %v5435, 4294901760
    %6658 = vmatpush.msra.mxu0 %v6657
    %v6659 = vand.u32 %v5433, 4294901760
    %6660 = vmatpush.msra.mxu0 %v6659
    %v6661 = vand.u32 %v5431, 4294901760
    %6662 = vmatpush.msra.mxu0 %v6661
    %v6663 = vand.u32 %v5429, 4294901760
    %6664 = vmatpush.msra.mxu0 %v6663
    %v6665 = vand.u32 %v5427, 4294901760
    %6666 = vmatpush.msra.mxu0 %v6665
    %v6667 = vand.u32 %v5599, 4294901760
    %v6668 = vsub.f32 %v5599, %v6667
    %v6669 = vand.u32 %v6668, 4294901760
    %v6670 = vsub.f32 %v6668, %v6669
    %v6671 = vand.u32 %v6670, 4294901760
    %6672 = vmatmul.f32.gmra.mxu0 %v6671
    %v6673 = vpop.f32.mrf.mxu0
    %v6674 = vadd.f32 %v6633, %v6673
    %6675 = vdwg.mxu0
    %v6676 = vand.u32 %v5457, 4294901760
    %v6677 = vsub.f32 %v5457, %v6676
    %v6678 = vand.u32 %v6677, 4294901760
    %v6679 = vsub.f32 %v6677, %v6678
    %v6680 = vand.u32 %v6679, 4294901760
    %6681 = vmatpush.msra.mxu0 %v6680
    %v6682 = vand.u32 %v5455, 4294901760
    %v6683 = vsub.f32 %v5455, %v6682
    %v6684 = vand.u32 %v6683, 4294901760
    %v6685 = vsub.f32 %v6683, %v6684
    %v6686 = vand.u32 %v6685, 4294901760
    %6687 = vmatpush.msra.mxu0 %v6686
    %v6688 = vand.u32 %v5453, 4294901760
    %v6689 = vsub.f32 %v5453, %v6688
    %v6690 = vand.u32 %v6689, 4294901760
    %v6691 = vsub.f32 %v6689, %v6690
    %v6692 = vand.u32 %v6691, 4294901760
    %6693 = vmatpush.msra.mxu0 %v6692
    %v6694 = vand.u32 %v5451, 4294901760
    %v6695 = vsub.f32 %v5451, %v6694
    %v6696 = vand.u32 %v6695, 4294901760
    %v6697 = vsub.f32 %v6695, %v6696
    %v6698 = vand.u32 %v6697, 4294901760
    %6699 = vmatpush.msra.mxu0 %v6698
    %v6700 = vand.u32 %v5449, 4294901760
    %v6701 = vsub.f32 %v5449, %v6700
    %v6702 = vand.u32 %v6701, 4294901760
    %v6703 = vsub.f32 %v6701, %v6702
    %v6704 = vand.u32 %v6703, 4294901760
    %6705 = vmatpush.msra.mxu0 %v6704
    %v6706 = vand.u32 %v5447, 4294901760
    %v6707 = vsub.f32 %v5447, %v6706
    %v6708 = vand.u32 %v6707, 4294901760
    %v6709 = vsub.f32 %v6707, %v6708
    %v6710 = vand.u32 %v6709, 4294901760
    %6711 = vmatpush.msra.mxu0 %v6710
    %v6712 = vand.u32 %v5445, 4294901760
    %v6713 = vsub.f32 %v5445, %v6712
    %v6714 = vand.u32 %v6713, 4294901760
    %v6715 = vsub.f32 %v6713, %v6714
    %v6716 = vand.u32 %v6715, 4294901760
    %6717 = vmatpush.msra.mxu0 %v6716
    %v6718 = vand.u32 %v5443, 4294901760
    %v6719 = vsub.f32 %v5443, %v6718
    %v6720 = vand.u32 %v6719, 4294901760
    %v6721 = vsub.f32 %v6719, %v6720
    %v6722 = vand.u32 %v6721, 4294901760
    %6723 = vmatpush.msra.mxu0 %v6722
    %v6724 = vand.u32 %v5441, 4294901760
    %v6725 = vsub.f32 %v5441, %v6724
    %v6726 = vand.u32 %v6725, 4294901760
    %v6727 = vsub.f32 %v6725, %v6726
    %v6728 = vand.u32 %v6727, 4294901760
    %6729 = vmatpush.msra.mxu0 %v6728
    %v6730 = vand.u32 %v5439, 4294901760
    %v6731 = vsub.f32 %v5439, %v6730
    %v6732 = vand.u32 %v6731, 4294901760
    %v6733 = vsub.f32 %v6731, %v6732
    %v6734 = vand.u32 %v6733, 4294901760
    %6735 = vmatpush.msra.mxu0 %v6734
    %v6736 = vand.u32 %v5437, 4294901760
    %v6737 = vsub.f32 %v5437, %v6736
    %v6738 = vand.u32 %v6737, 4294901760
    %v6739 = vsub.f32 %v6737, %v6738
    %v6740 = vand.u32 %v6739, 4294901760
    %6741 = vmatpush.msra.mxu0 %v6740
    %v6742 = vand.u32 %v5435, 4294901760
    %v6743 = vsub.f32 %v5435, %v6742
    %v6744 = vand.u32 %v6743, 4294901760
    %v6745 = vsub.f32 %v6743, %v6744
    %v6746 = vand.u32 %v6745, 4294901760
    %6747 = vmatpush.msra.mxu0 %v6746
    %v6748 = vand.u32 %v5433, 4294901760
    %v6749 = vsub.f32 %v5433, %v6748
    %v6750 = vand.u32 %v6749, 4294901760
    %v6751 = vsub.f32 %v6749, %v6750
    %v6752 = vand.u32 %v6751, 4294901760
    %6753 = vmatpush.msra.mxu0 %v6752
    %v6754 = vand.u32 %v5431, 4294901760
    %v6755 = vsub.f32 %v5431, %v6754
    %v6756 = vand.u32 %v6755, 4294901760
    %v6757 = vsub.f32 %v6755, %v6756
    %v6758 = vand.u32 %v6757, 4294901760
    %6759 = vmatpush.msra.mxu0 %v6758
    %v6760 = vand.u32 %v5429, 4294901760
    %v6761 = vsub.f32 %v5429, %v6760
    %v6762 = vand.u32 %v6761, 4294901760
    %v6763 = vsub.f32 %v6761, %v6762
    %v6764 = vand.u32 %v6763, 4294901760
    %6765 = vmatpush.msra.mxu0 %v6764
    %v6766 = vand.u32 %v5427, 4294901760
    %v6767 = vsub.f32 %v5427, %v6766
    %v6768 = vand.u32 %v6767, 4294901760
    %v6769 = vsub.f32 %v6767, %v6768
    %v6770 = vand.u32 %v6769, 4294901760
    %6771 = vmatpush.msra.mxu0 %v6770
    %v6772 = vand.u32 %v5599, 4294901760
    %6773 = vmatmul.f32.gmra.mxu0 %v6772
    %v6774 = vpop.f32.mrf.mxu0
    %v6775 = vadd.f32 %v6674, %v6774
    %6776 = vdwg.mxu0
    %v6777 = vand.u32 %v5457, 4294901760
    %v6778 = vsub.f32 %v5457, %v6777
    %6779 = vmatpush.msra.mxu0 %v6778
    %v6780 = vand.u32 %v5455, 4294901760
    %v6781 = vsub.f32 %v5455, %v6780
    %6782 = vmatpush.msra.mxu0 %v6781
    %v6783 = vand.u32 %v5453, 4294901760
    %v6784 = vsub.f32 %v5453, %v6783
    %6785 = vmatpush.msra.mxu0 %v6784
    %v6786 = vand.u32 %v5451, 4294901760
    %v6787 = vsub.f32 %v5451, %v6786
    %6788 = vmatpush.msra.mxu0 %v6787
    %v6789 = vand.u32 %v5449, 4294901760
    %v6790 = vsub.f32 %v5449, %v6789
    %6791 = vmatpush.msra.mxu0 %v6790
    %v6792 = vand.u32 %v5447, 4294901760
    %v6793 = vsub.f32 %v5447, %v6792
    %6794 = vmatpush.msra.mxu0 %v6793
    %v6795 = vand.u32 %v5445, 4294901760
    %v6796 = vsub.f32 %v5445, %v6795
    %6797 = vmatpush.msra.mxu0 %v6796
    %v6798 = vand.u32 %v5443, 4294901760
    %v6799 = vsub.f32 %v5443, %v6798
    %6800 = vmatpush.msra.mxu0 %v6799
    %v6801 = vand.u32 %v5441, 4294901760
    %v6802 = vsub.f32 %v5441, %v6801
    %6803 = vmatpush.msra.mxu0 %v6802
    %v6804 = vand.u32 %v5439, 4294901760
    %v6805 = vsub.f32 %v5439, %v6804
    %6806 = vmatpush.msra.mxu0 %v6805
    %v6807 = vand.u32 %v5437, 4294901760
    %v6808 = vsub.f32 %v5437, %v6807
    %6809 = vmatpush.msra.mxu0 %v6808
    %v6810 = vand.u32 %v5435, 4294901760
    %v6811 = vsub.f32 %v5435, %v6810
    %6812 = vmatpush.msra.mxu0 %v6811
    %v6813 = vand.u32 %v5433, 4294901760
    %v6814 = vsub.f32 %v5433, %v6813
    %6815 = vmatpush.msra.mxu0 %v6814
    %v6816 = vand.u32 %v5431, 4294901760
    %v6817 = vsub.f32 %v5431, %v6816
    %6818 = vmatpush.msra.mxu0 %v6817
    %v6819 = vand.u32 %v5429, 4294901760
    %v6820 = vsub.f32 %v5429, %v6819
    %6821 = vmatpush.msra.mxu0 %v6820
    %v6822 = vand.u32 %v5427, 4294901760
    %v6823 = vsub.f32 %v5427, %v6822
    %6824 = vmatpush.msra.mxu0 %v6823
    %v6825 = vand.u32 %v5599, 4294901760
    %v6826 = vsub.f32 %v5599, %v6825
    %6827 = vmatmul.f32.gmra.mxu0 %v6826
    %v6828 = vpop.f32.mrf.mxu0
    %v6829 = vadd.f32 %v6775, %v6828
    %6830 = vdwg.mxu0
    %v6831 = vand.u32 %v5457, 4294901760
    %6832 = vmatpush.msra.mxu0 %v6831
    %v6833 = vand.u32 %v5455, 4294901760
    %6834 = vmatpush.msra.mxu0 %v6833
    %v6835 = vand.u32 %v5453, 4294901760
    %6836 = vmatpush.msra.mxu0 %v6835
    %v6837 = vand.u32 %v5451, 4294901760
    %6838 = vmatpush.msra.mxu0 %v6837
    %v6839 = vand.u32 %v5449, 4294901760
    %6840 = vmatpush.msra.mxu0 %v6839
    %v6841 = vand.u32 %v5447, 4294901760
    %6842 = vmatpush.msra.mxu0 %v6841
    %v6843 = vand.u32 %v5445, 4294901760
    %6844 = vmatpush.msra.mxu0 %v6843
    %v6845 = vand.u32 %v5443, 4294901760
    %6846 = vmatpush.msra.mxu0 %v6845
    %v6847 = vand.u32 %v5441, 4294901760
    %6848 = vmatpush.msra.mxu0 %v6847
    %v6849 = vand.u32 %v5439, 4294901760
    %6850 = vmatpush.msra.mxu0 %v6849
    %v6851 = vand.u32 %v5437, 4294901760
    %6852 = vmatpush.msra.mxu0 %v6851
    %v6853 = vand.u32 %v5435, 4294901760
    %6854 = vmatpush.msra.mxu0 %v6853
    %v6855 = vand.u32 %v5433, 4294901760
    %6856 = vmatpush.msra.mxu0 %v6855
    %v6857 = vand.u32 %v5431, 4294901760
    %6858 = vmatpush.msra.mxu0 %v6857
    %v6859 = vand.u32 %v5429, 4294901760
    %6860 = vmatpush.msra.mxu0 %v6859
    %v6861 = vand.u32 %v5427, 4294901760
    %6862 = vmatpush.msra.mxu0 %v6861
    %v6863 = vand.u32 %v5599, 4294901760
    %v6864 = vsub.f32 %v5599, %v6863
    %v6865 = vand.u32 %v6864, 4294901760
    %6866 = vmatmul.f32.gmra.mxu0 %v6865
    %v6867 = vpop.f32.mrf.mxu0
    %v6868 = vadd.f32 %v6829, %v6867
    %6869 = vdwg.mxu0
    %v6870 = vand.u32 %v5457, 4294901760
    %v6871 = vsub.f32 %v5457, %v6870
    %v6872 = vand.u32 %v6871, 4294901760
    %6873 = vmatpush.msra.mxu0 %v6872
    %v6874 = vand.u32 %v5455, 4294901760
    %v6875 = vsub.f32 %v5455, %v6874
    %v6876 = vand.u32 %v6875, 4294901760
    %6877 = vmatpush.msra.mxu0 %v6876
    %v6878 = vand.u32 %v5453, 4294901760
    %v6879 = vsub.f32 %v5453, %v6878
    %v6880 = vand.u32 %v6879, 4294901760
    %6881 = vmatpush.msra.mxu0 %v6880
    %v6882 = vand.u32 %v5451, 4294901760
    %v6883 = vsub.f32 %v5451, %v6882
    %v6884 = vand.u32 %v6883, 4294901760
    %6885 = vmatpush.msra.mxu0 %v6884
    %v6886 = vand.u32 %v5449, 4294901760
    %v6887 = vsub.f32 %v5449, %v6886
    %v6888 = vand.u32 %v6887, 4294901760
    %6889 = vmatpush.msra.mxu0 %v6888
    %v6890 = vand.u32 %v5447, 4294901760
    %v6891 = vsub.f32 %v5447, %v6890
    %v6892 = vand.u32 %v6891, 4294901760
    %6893 = vmatpush.msra.mxu0 %v6892
    %v6894 = vand.u32 %v5445, 4294901760
    %v6895 = vsub.f32 %v5445, %v6894
    %v6896 = vand.u32 %v6895, 4294901760
    %6897 = vmatpush.msra.mxu0 %v6896
    %v6898 = vand.u32 %v5443, 4294901760
    %v6899 = vsub.f32 %v5443, %v6898
    %v6900 = vand.u32 %v6899, 4294901760
    %6901 = vmatpush.msra.mxu0 %v6900
    %v6902 = vand.u32 %v5441, 4294901760
    %v6903 = vsub.f32 %v5441, %v6902
    %v6904 = vand.u32 %v6903, 4294901760
    %6905 = vmatpush.msra.mxu0 %v6904
    %v6906 = vand.u32 %v5439, 4294901760
    %v6907 = vsub.f32 %v5439, %v6906
    %v6908 = vand.u32 %v6907, 4294901760
    %6909 = vmatpush.msra.mxu0 %v6908
    %v6910 = vand.u32 %v5437, 4294901760
    %v6911 = vsub.f32 %v5437, %v6910
    %v6912 = vand.u32 %v6911, 4294901760
    %6913 = vmatpush.msra.mxu0 %v6912
    %v6914 = vand.u32 %v5435, 4294901760
    %v6915 = vsub.f32 %v5435, %v6914
    %v6916 = vand.u32 %v6915, 4294901760
    %6917 = vmatpush.msra.mxu0 %v6916
    %v6918 = vand.u32 %v5433, 4294901760
    %v6919 = vsub.f32 %v5433, %v6918
    %v6920 = vand.u32 %v6919, 4294901760
    %6921 = vmatpush.msra.mxu0 %v6920
    %v6922 = vand.u32 %v5431, 4294901760
    %v6923 = vsub.f32 %v5431, %v6922
    %v6924 = vand.u32 %v6923, 4294901760
    %6925 = vmatpush.msra.mxu0 %v6924
    %v6926 = vand.u32 %v5429, 4294901760
    %v6927 = vsub.f32 %v5429, %v6926
    %v6928 = vand.u32 %v6927, 4294901760
    %6929 = vmatpush.msra.mxu0 %v6928
    %v6930 = vand.u32 %v5427, 4294901760
    %v6931 = vsub.f32 %v5427, %v6930
    %v6932 = vand.u32 %v6931, 4294901760
    %6933 = vmatpush.msra.mxu0 %v6932
    %v6934 = vand.u32 %v5599, 4294901760
    %6935 = vmatmul.f32.gmra.mxu0 %v6934
    %v6936 = vpop.f32.mrf.mxu0
    %v6937 = vadd.f32 %v6868, %v6936
    %6938 = vdwg.mxu0
    %v6939 = vand.u32 %v5457, 4294901760
    %6940 = vmatpush.msra.mxu0 %v6939
    %v6941 = vand.u32 %v5455, 4294901760
    %6942 = vmatpush.msra.mxu0 %v6941
    %v6943 = vand.u32 %v5453, 4294901760
    %6944 = vmatpush.msra.mxu0 %v6943
    %v6945 = vand.u32 %v5451, 4294901760
    %6946 = vmatpush.msra.mxu0 %v6945
    %v6947 = vand.u32 %v5449, 4294901760
    %6948 = vmatpush.msra.mxu0 %v6947
    %v6949 = vand.u32 %v5447, 4294901760
    %6950 = vmatpush.msra.mxu0 %v6949
    %v6951 = vand.u32 %v5445, 4294901760
    %6952 = vmatpush.msra.mxu0 %v6951
    %v6953 = vand.u32 %v5443, 4294901760
    %6954 = vmatpush.msra.mxu0 %v6953
    %v6955 = vand.u32 %v5441, 4294901760
    %6956 = vmatpush.msra.mxu0 %v6955
    %v6957 = vand.u32 %v5439, 4294901760
    %6958 = vmatpush.msra.mxu0 %v6957
    %v6959 = vand.u32 %v5437, 4294901760
    %6960 = vmatpush.msra.mxu0 %v6959
    %v6961 = vand.u32 %v5435, 4294901760
    %6962 = vmatpush.msra.mxu0 %v6961
    %v6963 = vand.u32 %v5433, 4294901760
    %6964 = vmatpush.msra.mxu0 %v6963
    %v6965 = vand.u32 %v5431, 4294901760
    %6966 = vmatpush.msra.mxu0 %v6965
    %v6967 = vand.u32 %v5429, 4294901760
    %6968 = vmatpush.msra.mxu0 %v6967
    %v6969 = vand.u32 %v5427, 4294901760
    %6970 = vmatpush.msra.mxu0 %v6969
    %v6971 = vand.u32 %v5599, 4294901760
    %6972 = vmatmul.f32.gmra.mxu0 %v6971
    %v6973 = vpop.f32.mrf.mxu0
    %v6974 = vadd.f32 %v6937, %v6973
    %6975 = vdwg.mxu0
    %v6976 = vand.u32 %v5489, 4294901760
    %6977 = vmatpush.msra.mxu0 %v6976
    %v6978 = vand.u32 %v5487, 4294901760
    %6979 = vmatpush.msra.mxu0 %v6978
    %v6980 = vand.u32 %v5485, 4294901760
    %6981 = vmatpush.msra.mxu0 %v6980
    %v6982 = vand.u32 %v5483, 4294901760
    %6983 = vmatpush.msra.mxu0 %v6982
    %v6984 = vand.u32 %v5481, 4294901760
    %6985 = vmatpush.msra.mxu0 %v6984
    %v6986 = vand.u32 %v5479, 4294901760
    %6987 = vmatpush.msra.mxu0 %v6986
    %v6988 = vand.u32 %v5477, 4294901760
    %6989 = vmatpush.msra.mxu0 %v6988
    %v6990 = vand.u32 %v5475, 4294901760
    %6991 = vmatpush.msra.mxu0 %v6990
    %v6992 = vand.u32 %v5473, 4294901760
    %6993 = vmatpush.msra.mxu0 %v6992
    %v6994 = vand.u32 %v5471, 4294901760
    %6995 = vmatpush.msra.mxu0 %v6994
    %v6996 = vand.u32 %v5469, 4294901760
    %6997 = vmatpush.msra.mxu0 %v6996
    %v6998 = vand.u32 %v5467, 4294901760
    %6999 = vmatpush.msra.mxu0 %v6998
    %v7000 = vand.u32 %v5465, 4294901760
    %7001 = vmatpush.msra.mxu0 %v7000
    %v7002 = vand.u32 %v5463, 4294901760
    %7003 = vmatpush.msra.mxu0 %v7002
    %v7004 = vand.u32 %v5461, 4294901760
    %7005 = vmatpush.msra.mxu0 %v7004
    %v7006 = vand.u32 %v5459, 4294901760
    %7007 = vmatpush.msra.mxu0 %v7006
    %v7008 = vand.u32 %v5600, 4294901760
    %v7009 = vsub.f32 %v5600, %v7008
    %v7010 = vand.u32 %v7009, 4294901760
    %v7011 = vsub.f32 %v7009, %v7010
    %v7012 = vand.u32 %v7011, 4294901760
    %7013 = vmatmul.f32.gmra.mxu0 %v7012
    %v7014 = vpop.f32.mrf.mxu0
    %v7015 = vadd.f32 %v6974, %v7014
    %7016 = vdwg.mxu0
    %v7017 = vand.u32 %v5489, 4294901760
    %v7018 = vsub.f32 %v5489, %v7017
    %v7019 = vand.u32 %v7018, 4294901760
    %v7020 = vsub.f32 %v7018, %v7019
    %v7021 = vand.u32 %v7020, 4294901760
    %7022 = vmatpush.msra.mxu0 %v7021
    %v7023 = vand.u32 %v5487, 4294901760
    %v7024 = vsub.f32 %v5487, %v7023
    %v7025 = vand.u32 %v7024, 4294901760
    %v7026 = vsub.f32 %v7024, %v7025
    %v7027 = vand.u32 %v7026, 4294901760
    %7028 = vmatpush.msra.mxu0 %v7027
    %v7029 = vand.u32 %v5485, 4294901760
    %v7030 = vsub.f32 %v5485, %v7029
    %v7031 = vand.u32 %v7030, 4294901760
    %v7032 = vsub.f32 %v7030, %v7031
    %v7033 = vand.u32 %v7032, 4294901760
    %7034 = vmatpush.msra.mxu0 %v7033
    %v7035 = vand.u32 %v5483, 4294901760
    %v7036 = vsub.f32 %v5483, %v7035
    %v7037 = vand.u32 %v7036, 4294901760
    %v7038 = vsub.f32 %v7036, %v7037
    %v7039 = vand.u32 %v7038, 4294901760
    %7040 = vmatpush.msra.mxu0 %v7039
    %v7041 = vand.u32 %v5481, 4294901760
    %v7042 = vsub.f32 %v5481, %v7041
    %v7043 = vand.u32 %v7042, 4294901760
    %v7044 = vsub.f32 %v7042, %v7043
    %v7045 = vand.u32 %v7044, 4294901760
    %7046 = vmatpush.msra.mxu0 %v7045
    %v7047 = vand.u32 %v5479, 4294901760
    %v7048 = vsub.f32 %v5479, %v7047
    %v7049 = vand.u32 %v7048, 4294901760
    %v7050 = vsub.f32 %v7048, %v7049
    %v7051 = vand.u32 %v7050, 4294901760
    %7052 = vmatpush.msra.mxu0 %v7051
    %v7053 = vand.u32 %v5477, 4294901760
    %v7054 = vsub.f32 %v5477, %v7053
    %v7055 = vand.u32 %v7054, 4294901760
    %v7056 = vsub.f32 %v7054, %v7055
    %v7057 = vand.u32 %v7056, 4294901760
    %7058 = vmatpush.msra.mxu0 %v7057
    %v7059 = vand.u32 %v5475, 4294901760
    %v7060 = vsub.f32 %v5475, %v7059
    %v7061 = vand.u32 %v7060, 4294901760
    %v7062 = vsub.f32 %v7060, %v7061
    %v7063 = vand.u32 %v7062, 4294901760
    %7064 = vmatpush.msra.mxu0 %v7063
    %v7065 = vand.u32 %v5473, 4294901760
    %v7066 = vsub.f32 %v5473, %v7065
    %v7067 = vand.u32 %v7066, 4294901760
    %v7068 = vsub.f32 %v7066, %v7067
    %v7069 = vand.u32 %v7068, 4294901760
    %7070 = vmatpush.msra.mxu0 %v7069
    %v7071 = vand.u32 %v5471, 4294901760
    %v7072 = vsub.f32 %v5471, %v7071
    %v7073 = vand.u32 %v7072, 4294901760
    %v7074 = vsub.f32 %v7072, %v7073
    %v7075 = vand.u32 %v7074, 4294901760
    %7076 = vmatpush.msra.mxu0 %v7075
    %v7077 = vand.u32 %v5469, 4294901760
    %v7078 = vsub.f32 %v5469, %v7077
    %v7079 = vand.u32 %v7078, 4294901760
    %v7080 = vsub.f32 %v7078, %v7079
    %v7081 = vand.u32 %v7080, 4294901760
    %7082 = vmatpush.msra.mxu0 %v7081
    %v7083 = vand.u32 %v5467, 4294901760
    %v7084 = vsub.f32 %v5467, %v7083
    %v7085 = vand.u32 %v7084, 4294901760
    %v7086 = vsub.f32 %v7084, %v7085
    %v7087 = vand.u32 %v7086, 4294901760
    %7088 = vmatpush.msra.mxu0 %v7087
    %v7089 = vand.u32 %v5465, 4294901760
    %v7090 = vsub.f32 %v5465, %v7089
    %v7091 = vand.u32 %v7090, 4294901760
    %v7092 = vsub.f32 %v7090, %v7091
    %v7093 = vand.u32 %v7092, 4294901760
    %7094 = vmatpush.msra.mxu0 %v7093
    %v7095 = vand.u32 %v5463, 4294901760
    %v7096 = vsub.f32 %v5463, %v7095
    %v7097 = vand.u32 %v7096, 4294901760
    %v7098 = vsub.f32 %v7096, %v7097
    %v7099 = vand.u32 %v7098, 4294901760
    %7100 = vmatpush.msra.mxu0 %v7099
    %v7101 = vand.u32 %v5461, 4294901760
    %v7102 = vsub.f32 %v5461, %v7101
    %v7103 = vand.u32 %v7102, 4294901760
    %v7104 = vsub.f32 %v7102, %v7103
    %v7105 = vand.u32 %v7104, 4294901760
    %7106 = vmatpush.msra.mxu0 %v7105
    %v7107 = vand.u32 %v5459, 4294901760
    %v7108 = vsub.f32 %v5459, %v7107
    %v7109 = vand.u32 %v7108, 4294901760
    %v7110 = vsub.f32 %v7108, %v7109
    %v7111 = vand.u32 %v7110, 4294901760
    %7112 = vmatpush.msra.mxu0 %v7111
    %v7113 = vand.u32 %v5600, 4294901760
    %7114 = vmatmul.f32.gmra.mxu0 %v7113
    %v7115 = vpop.f32.mrf.mxu0
    %v7116 = vadd.f32 %v7015, %v7115
    %7117 = vdwg.mxu0
    %v7118 = vand.u32 %v5489, 4294901760
    %v7119 = vsub.f32 %v5489, %v7118
    %7120 = vmatpush.msra.mxu0 %v7119
    %v7121 = vand.u32 %v5487, 4294901760
    %v7122 = vsub.f32 %v5487, %v7121
    %7123 = vmatpush.msra.mxu0 %v7122
    %v7124 = vand.u32 %v5485, 4294901760
    %v7125 = vsub.f32 %v5485, %v7124
    %7126 = vmatpush.msra.mxu0 %v7125
    %v7127 = vand.u32 %v5483, 4294901760
    %v7128 = vsub.f32 %v5483, %v7127
    %7129 = vmatpush.msra.mxu0 %v7128
    %v7130 = vand.u32 %v5481, 4294901760
    %v7131 = vsub.f32 %v5481, %v7130
    %7132 = vmatpush.msra.mxu0 %v7131
    %v7133 = vand.u32 %v5479, 4294901760
    %v7134 = vsub.f32 %v5479, %v7133
    %7135 = vmatpush.msra.mxu0 %v7134
    %v7136 = vand.u32 %v5477, 4294901760
    %v7137 = vsub.f32 %v5477, %v7136
    %7138 = vmatpush.msra.mxu0 %v7137
    %v7139 = vand.u32 %v5475, 4294901760
    %v7140 = vsub.f32 %v5475, %v7139
    %7141 = vmatpush.msra.mxu0 %v7140
    %v7142 = vand.u32 %v5473, 4294901760
    %v7143 = vsub.f32 %v5473, %v7142
    %7144 = vmatpush.msra.mxu0 %v7143
    %v7145 = vand.u32 %v5471, 4294901760
    %v7146 = vsub.f32 %v5471, %v7145
    %7147 = vmatpush.msra.mxu0 %v7146
    %v7148 = vand.u32 %v5469, 4294901760
    %v7149 = vsub.f32 %v5469, %v7148
    %7150 = vmatpush.msra.mxu0 %v7149
    %v7151 = vand.u32 %v5467, 4294901760
    %v7152 = vsub.f32 %v5467, %v7151
    %7153 = vmatpush.msra.mxu0 %v7152
    %v7154 = vand.u32 %v5465, 4294901760
    %v7155 = vsub.f32 %v5465, %v7154
    %7156 = vmatpush.msra.mxu0 %v7155
    %v7157 = vand.u32 %v5463, 4294901760
    %v7158 = vsub.f32 %v5463, %v7157
    %7159 = vmatpush.msra.mxu0 %v7158
    %v7160 = vand.u32 %v5461, 4294901760
    %v7161 = vsub.f32 %v5461, %v7160
    %7162 = vmatpush.msra.mxu0 %v7161
    %v7163 = vand.u32 %v5459, 4294901760
    %v7164 = vsub.f32 %v5459, %v7163
    %7165 = vmatpush.msra.mxu0 %v7164
    %v7166 = vand.u32 %v5600, 4294901760
    %v7167 = vsub.f32 %v5600, %v7166
    %7168 = vmatmul.f32.gmra.mxu0 %v7167
    %v7169 = vpop.f32.mrf.mxu0
    %v7170 = vadd.f32 %v7116, %v7169
    %7171 = vdwg.mxu0
    %v7172 = vand.u32 %v5489, 4294901760
    %7173 = vmatpush.msra.mxu0 %v7172
    %v7174 = vand.u32 %v5487, 4294901760
    %7175 = vmatpush.msra.mxu0 %v7174
    %v7176 = vand.u32 %v5485, 4294901760
    %7177 = vmatpush.msra.mxu0 %v7176
    %v7178 = vand.u32 %v5483, 4294901760
    %7179 = vmatpush.msra.mxu0 %v7178
    %v7180 = vand.u32 %v5481, 4294901760
    %7181 = vmatpush.msra.mxu0 %v7180
    %v7182 = vand.u32 %v5479, 4294901760
    %7183 = vmatpush.msra.mxu0 %v7182
    %v7184 = vand.u32 %v5477, 4294901760
    %7185 = vmatpush.msra.mxu0 %v7184
    %v7186 = vand.u32 %v5475, 4294901760
    %7187 = vmatpush.msra.mxu0 %v7186
    %v7188 = vand.u32 %v5473, 4294901760
    %7189 = vmatpush.msra.mxu0 %v7188
    %v7190 = vand.u32 %v5471, 4294901760
    %7191 = vmatpush.msra.mxu0 %v7190
    %v7192 = vand.u32 %v5469, 4294901760
    %7193 = vmatpush.msra.mxu0 %v7192
    %v7194 = vand.u32 %v5467, 4294901760
    %7195 = vmatpush.msra.mxu0 %v7194
    %v7196 = vand.u32 %v5465, 4294901760
    %7197 = vmatpush.msra.mxu0 %v7196
    %v7198 = vand.u32 %v5463, 4294901760
    %7199 = vmatpush.msra.mxu0 %v7198
    %v7200 = vand.u32 %v5461, 4294901760
    %7201 = vmatpush.msra.mxu0 %v7200
    %v7202 = vand.u32 %v5459, 4294901760
    %7203 = vmatpush.msra.mxu0 %v7202
    %v7204 = vand.u32 %v5600, 4294901760
    %v7205 = vsub.f32 %v5600, %v7204
    %v7206 = vand.u32 %v7205, 4294901760
    %7207 = vmatmul.f32.gmra.mxu0 %v7206
    %v7208 = vpop.f32.mrf.mxu0
    %v7209 = vadd.f32 %v7170, %v7208
    %7210 = vdwg.mxu0
    %v7211 = vand.u32 %v5489, 4294901760
    %v7212 = vsub.f32 %v5489, %v7211
    %v7213 = vand.u32 %v7212, 4294901760
    %7214 = vmatpush.msra.mxu0 %v7213
    %v7215 = vand.u32 %v5487, 4294901760
    %v7216 = vsub.f32 %v5487, %v7215
    %v7217 = vand.u32 %v7216, 4294901760
    %7218 = vmatpush.msra.mxu0 %v7217
    %v7219 = vand.u32 %v5485, 4294901760
    %v7220 = vsub.f32 %v5485, %v7219
    %v7221 = vand.u32 %v7220, 4294901760
    %7222 = vmatpush.msra.mxu0 %v7221
    %v7223 = vand.u32 %v5483, 4294901760
    %v7224 = vsub.f32 %v5483, %v7223
    %v7225 = vand.u32 %v7224, 4294901760
    %7226 = vmatpush.msra.mxu0 %v7225
    %v7227 = vand.u32 %v5481, 4294901760
    %v7228 = vsub.f32 %v5481, %v7227
    %v7229 = vand.u32 %v7228, 4294901760
    %7230 = vmatpush.msra.mxu0 %v7229
    %v7231 = vand.u32 %v5479, 4294901760
    %v7232 = vsub.f32 %v5479, %v7231
    %v7233 = vand.u32 %v7232, 4294901760
    %7234 = vmatpush.msra.mxu0 %v7233
    %v7235 = vand.u32 %v5477, 4294901760
    %v7236 = vsub.f32 %v5477, %v7235
    %v7237 = vand.u32 %v7236, 4294901760
    %7238 = vmatpush.msra.mxu0 %v7237
    %v7239 = vand.u32 %v5475, 4294901760
    %v7240 = vsub.f32 %v5475, %v7239
    %v7241 = vand.u32 %v7240, 4294901760
    %7242 = vmatpush.msra.mxu0 %v7241
    %v7243 = vand.u32 %v5473, 4294901760
    %v7244 = vsub.f32 %v5473, %v7243
    %v7245 = vand.u32 %v7244, 4294901760
    %7246 = vmatpush.msra.mxu0 %v7245
    %v7247 = vand.u32 %v5471, 4294901760
    %v7248 = vsub.f32 %v5471, %v7247
    %v7249 = vand.u32 %v7248, 4294901760
    %7250 = vmatpush.msra.mxu0 %v7249
    %v7251 = vand.u32 %v5469, 4294901760
    %v7252 = vsub.f32 %v5469, %v7251
    %v7253 = vand.u32 %v7252, 4294901760
    %7254 = vmatpush.msra.mxu0 %v7253
    %v7255 = vand.u32 %v5467, 4294901760
    %v7256 = vsub.f32 %v5467, %v7255
    %v7257 = vand.u32 %v7256, 4294901760
    %7258 = vmatpush.msra.mxu0 %v7257
    %v7259 = vand.u32 %v5465, 4294901760
    %v7260 = vsub.f32 %v5465, %v7259
    %v7261 = vand.u32 %v7260, 4294901760
    %7262 = vmatpush.msra.mxu0 %v7261
    %v7263 = vand.u32 %v5463, 4294901760
    %v7264 = vsub.f32 %v5463, %v7263
    %v7265 = vand.u32 %v7264, 4294901760
    %7266 = vmatpush.msra.mxu0 %v7265
    %v7267 = vand.u32 %v5461, 4294901760
    %v7268 = vsub.f32 %v5461, %v7267
    %v7269 = vand.u32 %v7268, 4294901760
    %7270 = vmatpush.msra.mxu0 %v7269
    %v7271 = vand.u32 %v5459, 4294901760
    %v7272 = vsub.f32 %v5459, %v7271
    %v7273 = vand.u32 %v7272, 4294901760
    %7274 = vmatpush.msra.mxu0 %v7273
    %v7275 = vand.u32 %v5600, 4294901760
    %7276 = vmatmul.f32.gmra.mxu0 %v7275
    %v7277 = vpop.f32.mrf.mxu0
    %v7278 = vadd.f32 %v7209, %v7277
    %7279 = vdwg.mxu0
    %v7280 = vand.u32 %v5489, 4294901760
    %7281 = vmatpush.msra.mxu0 %v7280
    %v7282 = vand.u32 %v5487, 4294901760
    %7283 = vmatpush.msra.mxu0 %v7282
    %v7284 = vand.u32 %v5485, 4294901760
    %7285 = vmatpush.msra.mxu0 %v7284
    %v7286 = vand.u32 %v5483, 4294901760
    %7287 = vmatpush.msra.mxu0 %v7286
    %v7288 = vand.u32 %v5481, 4294901760
    %7289 = vmatpush.msra.mxu0 %v7288
    %v7290 = vand.u32 %v5479, 4294901760
    %7291 = vmatpush.msra.mxu0 %v7290
    %v7292 = vand.u32 %v5477, 4294901760
    %7293 = vmatpush.msra.mxu0 %v7292
    %v7294 = vand.u32 %v5475, 4294901760
    %7295 = vmatpush.msra.mxu0 %v7294
    %v7296 = vand.u32 %v5473, 4294901760
    %7297 = vmatpush.msra.mxu0 %v7296
    %v7298 = vand.u32 %v5471, 4294901760
    %7299 = vmatpush.msra.mxu0 %v7298
    %v7300 = vand.u32 %v5469, 4294901760
    %7301 = vmatpush.msra.mxu0 %v7300
    %v7302 = vand.u32 %v5467, 4294901760
    %7303 = vmatpush.msra.mxu0 %v7302
    %v7304 = vand.u32 %v5465, 4294901760
    %7305 = vmatpush.msra.mxu0 %v7304
    %v7306 = vand.u32 %v5463, 4294901760
    %7307 = vmatpush.msra.mxu0 %v7306
    %v7308 = vand.u32 %v5461, 4294901760
    %7309 = vmatpush.msra.mxu0 %v7308
    %v7310 = vand.u32 %v5459, 4294901760
    %7311 = vmatpush.msra.mxu0 %v7310
    %v7312 = vand.u32 %v5600, 4294901760
    %7313 = vmatmul.f32.gmra.mxu0 %v7312
    %v7314 = vpop.f32.mrf.mxu0
    %v7315 = vadd.f32 %v7278, %v7314
    %7316 = vdwg.mxu0
    %v7317 = vand.u32 %v5521, 4294901760
    %7318 = vmatpush.msra.mxu0 %v7317
    %v7319 = vand.u32 %v5519, 4294901760
    %7320 = vmatpush.msra.mxu0 %v7319
    %v7321 = vand.u32 %v5517, 4294901760
    %7322 = vmatpush.msra.mxu0 %v7321
    %v7323 = vand.u32 %v5515, 4294901760
    %7324 = vmatpush.msra.mxu0 %v7323
    %v7325 = vand.u32 %v5513, 4294901760
    %7326 = vmatpush.msra.mxu0 %v7325
    %v7327 = vand.u32 %v5511, 4294901760
    %7328 = vmatpush.msra.mxu0 %v7327
    %v7329 = vand.u32 %v5509, 4294901760
    %7330 = vmatpush.msra.mxu0 %v7329
    %v7331 = vand.u32 %v5507, 4294901760
    %7332 = vmatpush.msra.mxu0 %v7331
    %v7333 = vand.u32 %v5505, 4294901760
    %7334 = vmatpush.msra.mxu0 %v7333
    %v7335 = vand.u32 %v5503, 4294901760
    %7336 = vmatpush.msra.mxu0 %v7335
    %v7337 = vand.u32 %v5501, 4294901760
    %7338 = vmatpush.msra.mxu0 %v7337
    %v7339 = vand.u32 %v5499, 4294901760
    %7340 = vmatpush.msra.mxu0 %v7339
    %v7341 = vand.u32 %v5497, 4294901760
    %7342 = vmatpush.msra.mxu0 %v7341
    %v7343 = vand.u32 %v5495, 4294901760
    %7344 = vmatpush.msra.mxu0 %v7343
    %v7345 = vand.u32 %v5493, 4294901760
    %7346 = vmatpush.msra.mxu0 %v7345
    %v7347 = vand.u32 %v5491, 4294901760
    %7348 = vmatpush.msra.mxu0 %v7347
    %v7349 = vand.u32 %v5601, 4294901760
    %v7350 = vsub.f32 %v5601, %v7349
    %v7351 = vand.u32 %v7350, 4294901760
    %v7352 = vsub.f32 %v7350, %v7351
    %v7353 = vand.u32 %v7352, 4294901760
    %7354 = vmatmul.f32.gmra.mxu0 %v7353
    %v7355 = vpop.f32.mrf.mxu0
    %v7356 = vadd.f32 %v7315, %v7355
    %7357 = vdwg.mxu0
    %v7358 = vand.u32 %v5521, 4294901760
    %v7359 = vsub.f32 %v5521, %v7358
    %v7360 = vand.u32 %v7359, 4294901760
    %v7361 = vsub.f32 %v7359, %v7360
    %v7362 = vand.u32 %v7361, 4294901760
    %7363 = vmatpush.msra.mxu0 %v7362
    %v7364 = vand.u32 %v5519, 4294901760
    %v7365 = vsub.f32 %v5519, %v7364
    %v7366 = vand.u32 %v7365, 4294901760
    %v7367 = vsub.f32 %v7365, %v7366
    %v7368 = vand.u32 %v7367, 4294901760
    %7369 = vmatpush.msra.mxu0 %v7368
    %v7370 = vand.u32 %v5517, 4294901760
    %v7371 = vsub.f32 %v5517, %v7370
    %v7372 = vand.u32 %v7371, 4294901760
    %v7373 = vsub.f32 %v7371, %v7372
    %v7374 = vand.u32 %v7373, 4294901760
    %7375 = vmatpush.msra.mxu0 %v7374
    %v7376 = vand.u32 %v5515, 4294901760
    %v7377 = vsub.f32 %v5515, %v7376
    %v7378 = vand.u32 %v7377, 4294901760
    %v7379 = vsub.f32 %v7377, %v7378
    %v7380 = vand.u32 %v7379, 4294901760
    %7381 = vmatpush.msra.mxu0 %v7380
    %v7382 = vand.u32 %v5513, 4294901760
    %v7383 = vsub.f32 %v5513, %v7382
    %v7384 = vand.u32 %v7383, 4294901760
    %v7385 = vsub.f32 %v7383, %v7384
    %v7386 = vand.u32 %v7385, 4294901760
    %7387 = vmatpush.msra.mxu0 %v7386
    %v7388 = vand.u32 %v5511, 4294901760
    %v7389 = vsub.f32 %v5511, %v7388
    %v7390 = vand.u32 %v7389, 4294901760
    %v7391 = vsub.f32 %v7389, %v7390
    %v7392 = vand.u32 %v7391, 4294901760
    %7393 = vmatpush.msra.mxu0 %v7392
    %v7394 = vand.u32 %v5509, 4294901760
    %v7395 = vsub.f32 %v5509, %v7394
    %v7396 = vand.u32 %v7395, 4294901760
    %v7397 = vsub.f32 %v7395, %v7396
    %v7398 = vand.u32 %v7397, 4294901760
    %7399 = vmatpush.msra.mxu0 %v7398
    %v7400 = vand.u32 %v5507, 4294901760
    %v7401 = vsub.f32 %v5507, %v7400
    %v7402 = vand.u32 %v7401, 4294901760
    %v7403 = vsub.f32 %v7401, %v7402
    %v7404 = vand.u32 %v7403, 4294901760
    %7405 = vmatpush.msra.mxu0 %v7404
    %v7406 = vand.u32 %v5505, 4294901760
    %v7407 = vsub.f32 %v5505, %v7406
    %v7408 = vand.u32 %v7407, 4294901760
    %v7409 = vsub.f32 %v7407, %v7408
    %v7410 = vand.u32 %v7409, 4294901760
    %7411 = vmatpush.msra.mxu0 %v7410
    %v7412 = vand.u32 %v5503, 4294901760
    %v7413 = vsub.f32 %v5503, %v7412
    %v7414 = vand.u32 %v7413, 4294901760
    %v7415 = vsub.f32 %v7413, %v7414
    %v7416 = vand.u32 %v7415, 4294901760
    %7417 = vmatpush.msra.mxu0 %v7416
    %v7418 = vand.u32 %v5501, 4294901760
    %v7419 = vsub.f32 %v5501, %v7418
    %v7420 = vand.u32 %v7419, 4294901760
    %v7421 = vsub.f32 %v7419, %v7420
    %v7422 = vand.u32 %v7421, 4294901760
    %7423 = vmatpush.msra.mxu0 %v7422
    %v7424 = vand.u32 %v5499, 4294901760
    %v7425 = vsub.f32 %v5499, %v7424
    %v7426 = vand.u32 %v7425, 4294901760
    %v7427 = vsub.f32 %v7425, %v7426
    %v7428 = vand.u32 %v7427, 4294901760
    %7429 = vmatpush.msra.mxu0 %v7428
    %v7430 = vand.u32 %v5497, 4294901760
    %v7431 = vsub.f32 %v5497, %v7430
    %v7432 = vand.u32 %v7431, 4294901760
    %v7433 = vsub.f32 %v7431, %v7432
    %v7434 = vand.u32 %v7433, 4294901760
    %7435 = vmatpush.msra.mxu0 %v7434
    %v7436 = vand.u32 %v5495, 4294901760
    %v7437 = vsub.f32 %v5495, %v7436
    %v7438 = vand.u32 %v7437, 4294901760
    %v7439 = vsub.f32 %v7437, %v7438
    %v7440 = vand.u32 %v7439, 4294901760
    %7441 = vmatpush.msra.mxu0 %v7440
    %v7442 = vand.u32 %v5493, 4294901760
    %v7443 = vsub.f32 %v5493, %v7442
    %v7444 = vand.u32 %v7443, 4294901760
    %v7445 = vsub.f32 %v7443, %v7444
    %v7446 = vand.u32 %v7445, 4294901760
    %7447 = vmatpush.msra.mxu0 %v7446
    %v7448 = vand.u32 %v5491, 4294901760
    %v7449 = vsub.f32 %v5491, %v7448
    %v7450 = vand.u32 %v7449, 4294901760
    %v7451 = vsub.f32 %v7449, %v7450
    %v7452 = vand.u32 %v7451, 4294901760
    %7453 = vmatpush.msra.mxu0 %v7452
    %v7454 = vand.u32 %v5601, 4294901760
    %7455 = vmatmul.f32.gmra.mxu0 %v7454
    %v7456 = vpop.f32.mrf.mxu0
    %v7457 = vadd.f32 %v7356, %v7456
    %7458 = vdwg.mxu0
    %v7459 = vand.u32 %v5521, 4294901760
    %v7460 = vsub.f32 %v5521, %v7459
    %7461 = vmatpush.msra.mxu0 %v7460
    %v7462 = vand.u32 %v5519, 4294901760
    %v7463 = vsub.f32 %v5519, %v7462
    %7464 = vmatpush.msra.mxu0 %v7463
    %v7465 = vand.u32 %v5517, 4294901760
    %v7466 = vsub.f32 %v5517, %v7465
    %7467 = vmatpush.msra.mxu0 %v7466
    %v7468 = vand.u32 %v5515, 4294901760
    %v7469 = vsub.f32 %v5515, %v7468
    %7470 = vmatpush.msra.mxu0 %v7469
    %v7471 = vand.u32 %v5513, 4294901760
    %v7472 = vsub.f32 %v5513, %v7471
    %7473 = vmatpush.msra.mxu0 %v7472
    %v7474 = vand.u32 %v5511, 4294901760
    %v7475 = vsub.f32 %v5511, %v7474
    %7476 = vmatpush.msra.mxu0 %v7475
    %v7477 = vand.u32 %v5509, 4294901760
    %v7478 = vsub.f32 %v5509, %v7477
    %7479 = vmatpush.msra.mxu0 %v7478
    %v7480 = vand.u32 %v5507, 4294901760
    %v7481 = vsub.f32 %v5507, %v7480
    %7482 = vmatpush.msra.mxu0 %v7481
    %v7483 = vand.u32 %v5505, 4294901760
    %v7484 = vsub.f32 %v5505, %v7483
    %7485 = vmatpush.msra.mxu0 %v7484
    %v7486 = vand.u32 %v5503, 4294901760
    %v7487 = vsub.f32 %v5503, %v7486
    %7488 = vmatpush.msra.mxu0 %v7487
    %v7489 = vand.u32 %v5501, 4294901760
    %v7490 = vsub.f32 %v5501, %v7489
    %7491 = vmatpush.msra.mxu0 %v7490
    %v7492 = vand.u32 %v5499, 4294901760
    %v7493 = vsub.f32 %v5499, %v7492
    %7494 = vmatpush.msra.mxu0 %v7493
    %v7495 = vand.u32 %v5497, 4294901760
    %v7496 = vsub.f32 %v5497, %v7495
    %7497 = vmatpush.msra.mxu0 %v7496
    %v7498 = vand.u32 %v5495, 4294901760
    %v7499 = vsub.f32 %v5495, %v7498
    %7500 = vmatpush.msra.mxu0 %v7499
    %v7501 = vand.u32 %v5493, 4294901760
    %v7502 = vsub.f32 %v5493, %v7501
    %7503 = vmatpush.msra.mxu0 %v7502
    %v7504 = vand.u32 %v5491, 4294901760
    %v7505 = vsub.f32 %v5491, %v7504
    %7506 = vmatpush.msra.mxu0 %v7505
    %v7507 = vand.u32 %v5601, 4294901760
    %v7508 = vsub.f32 %v5601, %v7507
    %7509 = vmatmul.f32.gmra.mxu0 %v7508
    %v7510 = vpop.f32.mrf.mxu0
    %v7511 = vadd.f32 %v7457, %v7510
    %7512 = vdwg.mxu0
    %v7513 = vand.u32 %v5521, 4294901760
    %7514 = vmatpush.msra.mxu0 %v7513
    %v7515 = vand.u32 %v5519, 4294901760
    %7516 = vmatpush.msra.mxu0 %v7515
    %v7517 = vand.u32 %v5517, 4294901760
    %7518 = vmatpush.msra.mxu0 %v7517
    %v7519 = vand.u32 %v5515, 4294901760
    %7520 = vmatpush.msra.mxu0 %v7519
    %v7521 = vand.u32 %v5513, 4294901760
    %7522 = vmatpush.msra.mxu0 %v7521
    %v7523 = vand.u32 %v5511, 4294901760
    %7524 = vmatpush.msra.mxu0 %v7523
    %v7525 = vand.u32 %v5509, 4294901760
    %7526 = vmatpush.msra.mxu0 %v7525
    %v7527 = vand.u32 %v5507, 4294901760
    %7528 = vmatpush.msra.mxu0 %v7527
    %v7529 = vand.u32 %v5505, 4294901760
    %7530 = vmatpush.msra.mxu0 %v7529
    %v7531 = vand.u32 %v5503, 4294901760
    %7532 = vmatpush.msra.mxu0 %v7531
    %v7533 = vand.u32 %v5501, 4294901760
    %7534 = vmatpush.msra.mxu0 %v7533
    %v7535 = vand.u32 %v5499, 4294901760
    %7536 = vmatpush.msra.mxu0 %v7535
    %v7537 = vand.u32 %v5497, 4294901760
    %7538 = vmatpush.msra.mxu0 %v7537
    %v7539 = vand.u32 %v5495, 4294901760
    %7540 = vmatpush.msra.mxu0 %v7539
    %v7541 = vand.u32 %v5493, 4294901760
    %7542 = vmatpush.msra.mxu0 %v7541
    %v7543 = vand.u32 %v5491, 4294901760
    %7544 = vmatpush.msra.mxu0 %v7543
    %v7545 = vand.u32 %v5601, 4294901760
    %v7546 = vsub.f32 %v5601, %v7545
    %v7547 = vand.u32 %v7546, 4294901760
    %7548 = vmatmul.f32.gmra.mxu0 %v7547
    %v7549 = vpop.f32.mrf.mxu0
    %v7550 = vadd.f32 %v7511, %v7549
    %7551 = vdwg.mxu0
    %v7552 = vand.u32 %v5521, 4294901760
    %v7553 = vsub.f32 %v5521, %v7552
    %v7554 = vand.u32 %v7553, 4294901760
    %7555 = vmatpush.msra.mxu0 %v7554
    %v7556 = vand.u32 %v5519, 4294901760
    %v7557 = vsub.f32 %v5519, %v7556
    %v7558 = vand.u32 %v7557, 4294901760
    %7559 = vmatpush.msra.mxu0 %v7558
    %v7560 = vand.u32 %v5517, 4294901760
    %v7561 = vsub.f32 %v5517, %v7560
    %v7562 = vand.u32 %v7561, 4294901760
    %7563 = vmatpush.msra.mxu0 %v7562
    %v7564 = vand.u32 %v5515, 4294901760
    %v7565 = vsub.f32 %v5515, %v7564
    %v7566 = vand.u32 %v7565, 4294901760
    %7567 = vmatpush.msra.mxu0 %v7566
    %v7568 = vand.u32 %v5513, 4294901760
    %v7569 = vsub.f32 %v5513, %v7568
    %v7570 = vand.u32 %v7569, 4294901760
    %7571 = vmatpush.msra.mxu0 %v7570
    %v7572 = vand.u32 %v5511, 4294901760
    %v7573 = vsub.f32 %v5511, %v7572
    %v7574 = vand.u32 %v7573, 4294901760
    %7575 = vmatpush.msra.mxu0 %v7574
    %v7576 = vand.u32 %v5509, 4294901760
    %v7577 = vsub.f32 %v5509, %v7576
    %v7578 = vand.u32 %v7577, 4294901760
    %7579 = vmatpush.msra.mxu0 %v7578
    %v7580 = vand.u32 %v5507, 4294901760
    %v7581 = vsub.f32 %v5507, %v7580
    %v7582 = vand.u32 %v7581, 4294901760
    %7583 = vmatpush.msra.mxu0 %v7582
    %v7584 = vand.u32 %v5505, 4294901760
    %v7585 = vsub.f32 %v5505, %v7584
    %v7586 = vand.u32 %v7585, 4294901760
    %7587 = vmatpush.msra.mxu0 %v7586
    %v7588 = vand.u32 %v5503, 4294901760
    %v7589 = vsub.f32 %v5503, %v7588
    %v7590 = vand.u32 %v7589, 4294901760
    %7591 = vmatpush.msra.mxu0 %v7590
    %v7592 = vand.u32 %v5501, 4294901760
    %v7593 = vsub.f32 %v5501, %v7592
    %v7594 = vand.u32 %v7593, 4294901760
    %7595 = vmatpush.msra.mxu0 %v7594
    %v7596 = vand.u32 %v5499, 4294901760
    %v7597 = vsub.f32 %v5499, %v7596
    %v7598 = vand.u32 %v7597, 4294901760
    %7599 = vmatpush.msra.mxu0 %v7598
    %v7600 = vand.u32 %v5497, 4294901760
    %v7601 = vsub.f32 %v5497, %v7600
    %v7602 = vand.u32 %v7601, 4294901760
    %7603 = vmatpush.msra.mxu0 %v7602
    %v7604 = vand.u32 %v5495, 4294901760
    %v7605 = vsub.f32 %v5495, %v7604
    %v7606 = vand.u32 %v7605, 4294901760
    %7607 = vmatpush.msra.mxu0 %v7606
    %v7608 = vand.u32 %v5493, 4294901760
    %v7609 = vsub.f32 %v5493, %v7608
    %v7610 = vand.u32 %v7609, 4294901760
    %7611 = vmatpush.msra.mxu0 %v7610
    %v7612 = vand.u32 %v5491, 4294901760
    %v7613 = vsub.f32 %v5491, %v7612
    %v7614 = vand.u32 %v7613, 4294901760
    %7615 = vmatpush.msra.mxu0 %v7614
    %v7616 = vand.u32 %v5601, 4294901760
    %7617 = vmatmul.f32.gmra.mxu0 %v7616
    %v7618 = vpop.f32.mrf.mxu0
    %v7619 = vadd.f32 %v7550, %v7618
    %7620 = vdwg.mxu0
    %v7621 = vand.u32 %v5521, 4294901760
    %7622 = vmatpush.msra.mxu0 %v7621
    %v7623 = vand.u32 %v5519, 4294901760
    %7624 = vmatpush.msra.mxu0 %v7623
    %v7625 = vand.u32 %v5517, 4294901760
    %7626 = vmatpush.msra.mxu0 %v7625
    %v7627 = vand.u32 %v5515, 4294901760
    %7628 = vmatpush.msra.mxu0 %v7627
    %v7629 = vand.u32 %v5513, 4294901760
    %7630 = vmatpush.msra.mxu0 %v7629
    %v7631 = vand.u32 %v5511, 4294901760
    %7632 = vmatpush.msra.mxu0 %v7631
    %v7633 = vand.u32 %v5509, 4294901760
    %7634 = vmatpush.msra.mxu0 %v7633
    %v7635 = vand.u32 %v5507, 4294901760
    %7636 = vmatpush.msra.mxu0 %v7635
    %v7637 = vand.u32 %v5505, 4294901760
    %7638 = vmatpush.msra.mxu0 %v7637
    %v7639 = vand.u32 %v5503, 4294901760
    %7640 = vmatpush.msra.mxu0 %v7639
    %v7641 = vand.u32 %v5501, 4294901760
    %7642 = vmatpush.msra.mxu0 %v7641
    %v7643 = vand.u32 %v5499, 4294901760
    %7644 = vmatpush.msra.mxu0 %v7643
    %v7645 = vand.u32 %v5497, 4294901760
    %7646 = vmatpush.msra.mxu0 %v7645
    %v7647 = vand.u32 %v5495, 4294901760
    %7648 = vmatpush.msra.mxu0 %v7647
    %v7649 = vand.u32 %v5493, 4294901760
    %7650 = vmatpush.msra.mxu0 %v7649
    %v7651 = vand.u32 %v5491, 4294901760
    %7652 = vmatpush.msra.mxu0 %v7651
    %v7653 = vand.u32 %v5601, 4294901760
    %7654 = vmatmul.f32.gmra.mxu0 %v7653
    %v7655 = vpop.f32.mrf.mxu0
    %v7656 = vadd.f32 %v7619, %v7655
    %7657 = vdwg.mxu0
    %v7658 = vand.u32 %v5553, 4294901760
    %7659 = vmatpush.msra.mxu0 %v7658
    %v7660 = vand.u32 %v5551, 4294901760
    %7661 = vmatpush.msra.mxu0 %v7660
    %v7662 = vand.u32 %v5549, 4294901760
    %7663 = vmatpush.msra.mxu0 %v7662
    %v7664 = vand.u32 %v5547, 4294901760
    %7665 = vmatpush.msra.mxu0 %v7664
    %v7666 = vand.u32 %v5545, 4294901760
    %7667 = vmatpush.msra.mxu0 %v7666
    %v7668 = vand.u32 %v5543, 4294901760
    %7669 = vmatpush.msra.mxu0 %v7668
    %v7670 = vand.u32 %v5541, 4294901760
    %7671 = vmatpush.msra.mxu0 %v7670
    %v7672 = vand.u32 %v5539, 4294901760
    %7673 = vmatpush.msra.mxu0 %v7672
    %v7674 = vand.u32 %v5537, 4294901760
    %7675 = vmatpush.msra.mxu0 %v7674
    %v7676 = vand.u32 %v5535, 4294901760
    %7677 = vmatpush.msra.mxu0 %v7676
    %v7678 = vand.u32 %v5533, 4294901760
    %7679 = vmatpush.msra.mxu0 %v7678
    %v7680 = vand.u32 %v5531, 4294901760
    %7681 = vmatpush.msra.mxu0 %v7680
    %v7682 = vand.u32 %v5529, 4294901760
    %7683 = vmatpush.msra.mxu0 %v7682
    %v7684 = vand.u32 %v5527, 4294901760
    %7685 = vmatpush.msra.mxu0 %v7684
    %v7686 = vand.u32 %v5525, 4294901760
    %7687 = vmatpush.msra.mxu0 %v7686
    %v7688 = vand.u32 %v5523, 4294901760
    %7689 = vmatpush.msra.mxu0 %v7688
    %v7690 = vand.u32 %v5602, 4294901760
    %v7691 = vsub.f32 %v5602, %v7690
    %v7692 = vand.u32 %v7691, 4294901760
    %v7693 = vsub.f32 %v7691, %v7692
    %v7694 = vand.u32 %v7693, 4294901760
    %7695 = vmatmul.f32.gmra.mxu0 %v7694
    %v7696 = vpop.f32.mrf.mxu0
    %v7697 = vadd.f32 %v7656, %v7696
    %7698 = vdwg.mxu0
    %v7699 = vand.u32 %v5553, 4294901760
    %v7700 = vsub.f32 %v5553, %v7699
    %v7701 = vand.u32 %v7700, 4294901760
    %v7702 = vsub.f32 %v7700, %v7701
    %v7703 = vand.u32 %v7702, 4294901760
    %7704 = vmatpush.msra.mxu0 %v7703
    %v7705 = vand.u32 %v5551, 4294901760
    %v7706 = vsub.f32 %v5551, %v7705
    %v7707 = vand.u32 %v7706, 4294901760
    %v7708 = vsub.f32 %v7706, %v7707
    %v7709 = vand.u32 %v7708, 4294901760
    %7710 = vmatpush.msra.mxu0 %v7709
    %v7711 = vand.u32 %v5549, 4294901760
    %v7712 = vsub.f32 %v5549, %v7711
    %v7713 = vand.u32 %v7712, 4294901760
    %v7714 = vsub.f32 %v7712, %v7713
    %v7715 = vand.u32 %v7714, 4294901760
    %7716 = vmatpush.msra.mxu0 %v7715
    %v7717 = vand.u32 %v5547, 4294901760
    %v7718 = vsub.f32 %v5547, %v7717
    %v7719 = vand.u32 %v7718, 4294901760
    %v7720 = vsub.f32 %v7718, %v7719
    %v7721 = vand.u32 %v7720, 4294901760
    %7722 = vmatpush.msra.mxu0 %v7721
    %v7723 = vand.u32 %v5545, 4294901760
    %v7724 = vsub.f32 %v5545, %v7723
    %v7725 = vand.u32 %v7724, 4294901760
    %v7726 = vsub.f32 %v7724, %v7725
    %v7727 = vand.u32 %v7726, 4294901760
    %7728 = vmatpush.msra.mxu0 %v7727
    %v7729 = vand.u32 %v5543, 4294901760
    %v7730 = vsub.f32 %v5543, %v7729
    %v7731 = vand.u32 %v7730, 4294901760
    %v7732 = vsub.f32 %v7730, %v7731
    %v7733 = vand.u32 %v7732, 4294901760
    %7734 = vmatpush.msra.mxu0 %v7733
    %v7735 = vand.u32 %v5541, 4294901760
    %v7736 = vsub.f32 %v5541, %v7735
    %v7737 = vand.u32 %v7736, 4294901760
    %v7738 = vsub.f32 %v7736, %v7737
    %v7739 = vand.u32 %v7738, 4294901760
    %7740 = vmatpush.msra.mxu0 %v7739
    %v7741 = vand.u32 %v5539, 4294901760
    %v7742 = vsub.f32 %v5539, %v7741
    %v7743 = vand.u32 %v7742, 4294901760
    %v7744 = vsub.f32 %v7742, %v7743
    %v7745 = vand.u32 %v7744, 4294901760
    %7746 = vmatpush.msra.mxu0 %v7745
    %v7747 = vand.u32 %v5537, 4294901760
    %v7748 = vsub.f32 %v5537, %v7747
    %v7749 = vand.u32 %v7748, 4294901760
    %v7750 = vsub.f32 %v7748, %v7749
    %v7751 = vand.u32 %v7750, 4294901760
    %7752 = vmatpush.msra.mxu0 %v7751
    %v7753 = vand.u32 %v5535, 4294901760
    %v7754 = vsub.f32 %v5535, %v7753
    %v7755 = vand.u32 %v7754, 4294901760
    %v7756 = vsub.f32 %v7754, %v7755
    %v7757 = vand.u32 %v7756, 4294901760
    %7758 = vmatpush.msra.mxu0 %v7757
    %v7759 = vand.u32 %v5533, 4294901760
    %v7760 = vsub.f32 %v5533, %v7759
    %v7761 = vand.u32 %v7760, 4294901760
    %v7762 = vsub.f32 %v7760, %v7761
    %v7763 = vand.u32 %v7762, 4294901760
    %7764 = vmatpush.msra.mxu0 %v7763
    %v7765 = vand.u32 %v5531, 4294901760
    %v7766 = vsub.f32 %v5531, %v7765
    %v7767 = vand.u32 %v7766, 4294901760
    %v7768 = vsub.f32 %v7766, %v7767
    %v7769 = vand.u32 %v7768, 4294901760
    %7770 = vmatpush.msra.mxu0 %v7769
    %v7771 = vand.u32 %v5529, 4294901760
    %v7772 = vsub.f32 %v5529, %v7771
    %v7773 = vand.u32 %v7772, 4294901760
    %v7774 = vsub.f32 %v7772, %v7773
    %v7775 = vand.u32 %v7774, 4294901760
    %7776 = vmatpush.msra.mxu0 %v7775
    %v7777 = vand.u32 %v5527, 4294901760
    %v7778 = vsub.f32 %v5527, %v7777
    %v7779 = vand.u32 %v7778, 4294901760
    %v7780 = vsub.f32 %v7778, %v7779
    %v7781 = vand.u32 %v7780, 4294901760
    %7782 = vmatpush.msra.mxu0 %v7781
    %v7783 = vand.u32 %v5525, 4294901760
    %v7784 = vsub.f32 %v5525, %v7783
    %v7785 = vand.u32 %v7784, 4294901760
    %v7786 = vsub.f32 %v7784, %v7785
    %v7787 = vand.u32 %v7786, 4294901760
    %7788 = vmatpush.msra.mxu0 %v7787
    %v7789 = vand.u32 %v5523, 4294901760
    %v7790 = vsub.f32 %v5523, %v7789
    %v7791 = vand.u32 %v7790, 4294901760
    %v7792 = vsub.f32 %v7790, %v7791
    %v7793 = vand.u32 %v7792, 4294901760
    %7794 = vmatpush.msra.mxu0 %v7793
    %v7795 = vand.u32 %v5602, 4294901760
    %7796 = vmatmul.f32.gmra.mxu0 %v7795
    %v7797 = vpop.f32.mrf.mxu0
    %v7798 = vadd.f32 %v7697, %v7797
    %7799 = vdwg.mxu0
    %v7800 = vand.u32 %v5553, 4294901760
    %v7801 = vsub.f32 %v5553, %v7800
    %7802 = vmatpush.msra.mxu0 %v7801
    %v7803 = vand.u32 %v5551, 4294901760
    %v7804 = vsub.f32 %v5551, %v7803
    %7805 = vmatpush.msra.mxu0 %v7804
    %v7806 = vand.u32 %v5549, 4294901760
    %v7807 = vsub.f32 %v5549, %v7806
    %7808 = vmatpush.msra.mxu0 %v7807
    %v7809 = vand.u32 %v5547, 4294901760
    %v7810 = vsub.f32 %v5547, %v7809
    %7811 = vmatpush.msra.mxu0 %v7810
    %v7812 = vand.u32 %v5545, 4294901760
    %v7813 = vsub.f32 %v5545, %v7812
    %7814 = vmatpush.msra.mxu0 %v7813
    %v7815 = vand.u32 %v5543, 4294901760
    %v7816 = vsub.f32 %v5543, %v7815
    %7817 = vmatpush.msra.mxu0 %v7816
    %v7818 = vand.u32 %v5541, 4294901760
    %v7819 = vsub.f32 %v5541, %v7818
    %7820 = vmatpush.msra.mxu0 %v7819
    %v7821 = vand.u32 %v5539, 4294901760
    %v7822 = vsub.f32 %v5539, %v7821
    %7823 = vmatpush.msra.mxu0 %v7822
    %v7824 = vand.u32 %v5537, 4294901760
    %v7825 = vsub.f32 %v5537, %v7824
    %7826 = vmatpush.msra.mxu0 %v7825
    %v7827 = vand.u32 %v5535, 4294901760
    %v7828 = vsub.f32 %v5535, %v7827
    %7829 = vmatpush.msra.mxu0 %v7828
    %v7830 = vand.u32 %v5533, 4294901760
    %v7831 = vsub.f32 %v5533, %v7830
    %7832 = vmatpush.msra.mxu0 %v7831
    %v7833 = vand.u32 %v5531, 4294901760
    %v7834 = vsub.f32 %v5531, %v7833
    %7835 = vmatpush.msra.mxu0 %v7834
    %v7836 = vand.u32 %v5529, 4294901760
    %v7837 = vsub.f32 %v5529, %v7836
    %7838 = vmatpush.msra.mxu0 %v7837
    %v7839 = vand.u32 %v5527, 4294901760
    %v7840 = vsub.f32 %v5527, %v7839
    %7841 = vmatpush.msra.mxu0 %v7840
    %v7842 = vand.u32 %v5525, 4294901760
    %v7843 = vsub.f32 %v5525, %v7842
    %7844 = vmatpush.msra.mxu0 %v7843
    %v7845 = vand.u32 %v5523, 4294901760
    %v7846 = vsub.f32 %v5523, %v7845
    %7847 = vmatpush.msra.mxu0 %v7846
    %v7848 = vand.u32 %v5602, 4294901760
    %v7849 = vsub.f32 %v5602, %v7848
    %7850 = vmatmul.f32.gmra.mxu0 %v7849
    %v7851 = vpop.f32.mrf.mxu0
    %v7852 = vadd.f32 %v7798, %v7851
    %7853 = vdwg.mxu0
    %v7854 = vand.u32 %v5553, 4294901760
    %7855 = vmatpush.msra.mxu0 %v7854
    %v7856 = vand.u32 %v5551, 4294901760
    %7857 = vmatpush.msra.mxu0 %v7856
    %v7858 = vand.u32 %v5549, 4294901760
    %7859 = vmatpush.msra.mxu0 %v7858
    %v7860 = vand.u32 %v5547, 4294901760
    %7861 = vmatpush.msra.mxu0 %v7860
    %v7862 = vand.u32 %v5545, 4294901760
    %7863 = vmatpush.msra.mxu0 %v7862
    %v7864 = vand.u32 %v5543, 4294901760
    %7865 = vmatpush.msra.mxu0 %v7864
    %v7866 = vand.u32 %v5541, 4294901760
    %7867 = vmatpush.msra.mxu0 %v7866
    %v7868 = vand.u32 %v5539, 4294901760
    %7869 = vmatpush.msra.mxu0 %v7868
    %v7870 = vand.u32 %v5537, 4294901760
    %7871 = vmatpush.msra.mxu0 %v7870
    %v7872 = vand.u32 %v5535, 4294901760
    %7873 = vmatpush.msra.mxu0 %v7872
    %v7874 = vand.u32 %v5533, 4294901760
    %7875 = vmatpush.msra.mxu0 %v7874
    %v7876 = vand.u32 %v5531, 4294901760
    %7877 = vmatpush.msra.mxu0 %v7876
    %v7878 = vand.u32 %v5529, 4294901760
    %7879 = vmatpush.msra.mxu0 %v7878
    %v7880 = vand.u32 %v5527, 4294901760
    %7881 = vmatpush.msra.mxu0 %v7880
    %v7882 = vand.u32 %v5525, 4294901760
    %7883 = vmatpush.msra.mxu0 %v7882
    %v7884 = vand.u32 %v5523, 4294901760
    %7885 = vmatpush.msra.mxu0 %v7884
    %v7886 = vand.u32 %v5602, 4294901760
    %v7887 = vsub.f32 %v5602, %v7886
    %v7888 = vand.u32 %v7887, 4294901760
    %7889 = vmatmul.f32.gmra.mxu0 %v7888
    %v7890 = vpop.f32.mrf.mxu0
    %v7891 = vadd.f32 %v7852, %v7890
    %7892 = vdwg.mxu0
    %v7893 = vand.u32 %v5553, 4294901760
    %v7894 = vsub.f32 %v5553, %v7893
    %v7895 = vand.u32 %v7894, 4294901760
    %7896 = vmatpush.msra.mxu0 %v7895
    %v7897 = vand.u32 %v5551, 4294901760
    %v7898 = vsub.f32 %v5551, %v7897
    %v7899 = vand.u32 %v7898, 4294901760
    %7900 = vmatpush.msra.mxu0 %v7899
    %v7901 = vand.u32 %v5549, 4294901760
    %v7902 = vsub.f32 %v5549, %v7901
    %v7903 = vand.u32 %v7902, 4294901760
    %7904 = vmatpush.msra.mxu0 %v7903
    %v7905 = vand.u32 %v5547, 4294901760
    %v7906 = vsub.f32 %v5547, %v7905
    %v7907 = vand.u32 %v7906, 4294901760
    %7908 = vmatpush.msra.mxu0 %v7907
    %v7909 = vand.u32 %v5545, 4294901760
    %v7910 = vsub.f32 %v5545, %v7909
    %v7911 = vand.u32 %v7910, 4294901760
    %7912 = vmatpush.msra.mxu0 %v7911
    %v7913 = vand.u32 %v5543, 4294901760
    %v7914 = vsub.f32 %v5543, %v7913
    %v7915 = vand.u32 %v7914, 4294901760
    %7916 = vmatpush.msra.mxu0 %v7915
    %v7917 = vand.u32 %v5541, 4294901760
    %v7918 = vsub.f32 %v5541, %v7917
    %v7919 = vand.u32 %v7918, 4294901760
    %7920 = vmatpush.msra.mxu0 %v7919
    %v7921 = vand.u32 %v5539, 4294901760
    %v7922 = vsub.f32 %v5539, %v7921
    %v7923 = vand.u32 %v7922, 4294901760
    %7924 = vmatpush.msra.mxu0 %v7923
    %v7925 = vand.u32 %v5537, 4294901760
    %v7926 = vsub.f32 %v5537, %v7925
    %v7927 = vand.u32 %v7926, 4294901760
    %7928 = vmatpush.msra.mxu0 %v7927
    %v7929 = vand.u32 %v5535, 4294901760
    %v7930 = vsub.f32 %v5535, %v7929
    %v7931 = vand.u32 %v7930, 4294901760
    %7932 = vmatpush.msra.mxu0 %v7931
    %v7933 = vand.u32 %v5533, 4294901760
    %v7934 = vsub.f32 %v5533, %v7933
    %v7935 = vand.u32 %v7934, 4294901760
    %7936 = vmatpush.msra.mxu0 %v7935
    %v7937 = vand.u32 %v5531, 4294901760
    %v7938 = vsub.f32 %v5531, %v7937
    %v7939 = vand.u32 %v7938, 4294901760
    %7940 = vmatpush.msra.mxu0 %v7939
    %v7941 = vand.u32 %v5529, 4294901760
    %v7942 = vsub.f32 %v5529, %v7941
    %v7943 = vand.u32 %v7942, 4294901760
    %7944 = vmatpush.msra.mxu0 %v7943
    %v7945 = vand.u32 %v5527, 4294901760
    %v7946 = vsub.f32 %v5527, %v7945
    %v7947 = vand.u32 %v7946, 4294901760
    %7948 = vmatpush.msra.mxu0 %v7947
    %v7949 = vand.u32 %v5525, 4294901760
    %v7950 = vsub.f32 %v5525, %v7949
    %v7951 = vand.u32 %v7950, 4294901760
    %7952 = vmatpush.msra.mxu0 %v7951
    %v7953 = vand.u32 %v5523, 4294901760
    %v7954 = vsub.f32 %v5523, %v7953
    %v7955 = vand.u32 %v7954, 4294901760
    %7956 = vmatpush.msra.mxu0 %v7955
    %v7957 = vand.u32 %v5602, 4294901760
    %7958 = vmatmul.f32.gmra.mxu0 %v7957
    %v7959 = vpop.f32.mrf.mxu0
    %v7960 = vadd.f32 %v7891, %v7959
    %7961 = vdwg.mxu0
    %v7962 = vand.u32 %v5553, 4294901760
    %7963 = vmatpush.msra.mxu0 %v7962
    %v7964 = vand.u32 %v5551, 4294901760
    %7965 = vmatpush.msra.mxu0 %v7964
    %v7966 = vand.u32 %v5549, 4294901760
    %7967 = vmatpush.msra.mxu0 %v7966
    %v7968 = vand.u32 %v5547, 4294901760
    %7969 = vmatpush.msra.mxu0 %v7968
    %v7970 = vand.u32 %v5545, 4294901760
    %7971 = vmatpush.msra.mxu0 %v7970
    %v7972 = vand.u32 %v5543, 4294901760
    %7973 = vmatpush.msra.mxu0 %v7972
    %v7974 = vand.u32 %v5541, 4294901760
    %7975 = vmatpush.msra.mxu0 %v7974
    %v7976 = vand.u32 %v5539, 4294901760
    %7977 = vmatpush.msra.mxu0 %v7976
    %v7978 = vand.u32 %v5537, 4294901760
    %7979 = vmatpush.msra.mxu0 %v7978
    %v7980 = vand.u32 %v5535, 4294901760
    %7981 = vmatpush.msra.mxu0 %v7980
    %v7982 = vand.u32 %v5533, 4294901760
    %7983 = vmatpush.msra.mxu0 %v7982
    %v7984 = vand.u32 %v5531, 4294901760
    %7985 = vmatpush.msra.mxu0 %v7984
    %v7986 = vand.u32 %v5529, 4294901760
    %7987 = vmatpush.msra.mxu0 %v7986
    %v7988 = vand.u32 %v5527, 4294901760
    %7989 = vmatpush.msra.mxu0 %v7988
    %v7990 = vand.u32 %v5525, 4294901760
    %7991 = vmatpush.msra.mxu0 %v7990
    %v7992 = vand.u32 %v5523, 4294901760
    %7993 = vmatpush.msra.mxu0 %v7992
    %v7994 = vand.u32 %v5602, 4294901760
    %7995 = vmatmul.f32.gmra.mxu0 %v7994
    %v7996 = vpop.f32.mrf.mxu0
    %v7997 = vadd.f32 %v7960, %v7996
    %7998 = vdwg.mxu0
    %v7999 = vand.u32 %v5585, 4294901760
    %8000 = vmatpush.msra.mxu0 %v7999
    %v8001 = vand.u32 %v5583, 4294901760
    %8002 = vmatpush.msra.mxu0 %v8001
    %v8003 = vand.u32 %v5581, 4294901760
    %8004 = vmatpush.msra.mxu0 %v8003
    %v8005 = vand.u32 %v5579, 4294901760
    %8006 = vmatpush.msra.mxu0 %v8005
    %v8007 = vand.u32 %v5577, 4294901760
    %8008 = vmatpush.msra.mxu0 %v8007
    %v8009 = vand.u32 %v5575, 4294901760
    %8010 = vmatpush.msra.mxu0 %v8009
    %v8011 = vand.u32 %v5573, 4294901760
    %8012 = vmatpush.msra.mxu0 %v8011
    %v8013 = vand.u32 %v5571, 4294901760
    %8014 = vmatpush.msra.mxu0 %v8013
    %v8015 = vand.u32 %v5569, 4294901760
    %8016 = vmatpush.msra.mxu0 %v8015
    %v8017 = vand.u32 %v5567, 4294901760
    %8018 = vmatpush.msra.mxu0 %v8017
    %v8019 = vand.u32 %v5565, 4294901760
    %8020 = vmatpush.msra.mxu0 %v8019
    %v8021 = vand.u32 %v5563, 4294901760
    %8022 = vmatpush.msra.mxu0 %v8021
    %v8023 = vand.u32 %v5561, 4294901760
    %8024 = vmatpush.msra.mxu0 %v8023
    %v8025 = vand.u32 %v5559, 4294901760
    %8026 = vmatpush.msra.mxu0 %v8025
    %v8027 = vand.u32 %v5557, 4294901760
    %8028 = vmatpush.msra.mxu0 %v8027
    %v8029 = vand.u32 %v5555, 4294901760
    %8030 = vmatpush.msra.mxu0 %v8029
    %v8031 = vand.u32 %v5603, 4294901760
    %v8032 = vsub.f32 %v5603, %v8031
    %v8033 = vand.u32 %v8032, 4294901760
    %v8034 = vsub.f32 %v8032, %v8033
    %v8035 = vand.u32 %v8034, 4294901760
    %8036 = vmatmul.f32.gmra.mxu0 %v8035
    %v8037 = vpop.f32.mrf.mxu0
    %v8038 = vadd.f32 %v7997, %v8037
    %8039 = vdwg.mxu0
    %v8040 = vand.u32 %v5585, 4294901760
    %v8041 = vsub.f32 %v5585, %v8040
    %v8042 = vand.u32 %v8041, 4294901760
    %v8043 = vsub.f32 %v8041, %v8042
    %v8044 = vand.u32 %v8043, 4294901760
    %8045 = vmatpush.msra.mxu0 %v8044
    %v8046 = vand.u32 %v5583, 4294901760
    %v8047 = vsub.f32 %v5583, %v8046
    %v8048 = vand.u32 %v8047, 4294901760
    %v8049 = vsub.f32 %v8047, %v8048
    %v8050 = vand.u32 %v8049, 4294901760
    %8051 = vmatpush.msra.mxu0 %v8050
    %v8052 = vand.u32 %v5581, 4294901760
    %v8053 = vsub.f32 %v5581, %v8052
    %v8054 = vand.u32 %v8053, 4294901760
    %v8055 = vsub.f32 %v8053, %v8054
    %v8056 = vand.u32 %v8055, 4294901760
    %8057 = vmatpush.msra.mxu0 %v8056
    %v8058 = vand.u32 %v5579, 4294901760
    %v8059 = vsub.f32 %v5579, %v8058
    %v8060 = vand.u32 %v8059, 4294901760
    %v8061 = vsub.f32 %v8059, %v8060
    %v8062 = vand.u32 %v8061, 4294901760
    %8063 = vmatpush.msra.mxu0 %v8062
    %v8064 = vand.u32 %v5577, 4294901760
    %v8065 = vsub.f32 %v5577, %v8064
    %v8066 = vand.u32 %v8065, 4294901760
    %v8067 = vsub.f32 %v8065, %v8066
    %v8068 = vand.u32 %v8067, 4294901760
    %8069 = vmatpush.msra.mxu0 %v8068
    %v8070 = vand.u32 %v5575, 4294901760
    %v8071 = vsub.f32 %v5575, %v8070
    %v8072 = vand.u32 %v8071, 4294901760
    %v8073 = vsub.f32 %v8071, %v8072
    %v8074 = vand.u32 %v8073, 4294901760
    %8075 = vmatpush.msra.mxu0 %v8074
    %v8076 = vand.u32 %v5573, 4294901760
    %v8077 = vsub.f32 %v5573, %v8076
    %v8078 = vand.u32 %v8077, 4294901760
    %v8079 = vsub.f32 %v8077, %v8078
    %v8080 = vand.u32 %v8079, 4294901760
    %8081 = vmatpush.msra.mxu0 %v8080
    %v8082 = vand.u32 %v5571, 4294901760
    %v8083 = vsub.f32 %v5571, %v8082
    %v8084 = vand.u32 %v8083, 4294901760
    %v8085 = vsub.f32 %v8083, %v8084
    %v8086 = vand.u32 %v8085, 4294901760
    %8087 = vmatpush.msra.mxu0 %v8086
    %v8088 = vand.u32 %v5569, 4294901760
    %v8089 = vsub.f32 %v5569, %v8088
    %v8090 = vand.u32 %v8089, 4294901760
    %v8091 = vsub.f32 %v8089, %v8090
    %v8092 = vand.u32 %v8091, 4294901760
    %8093 = vmatpush.msra.mxu0 %v8092
    %v8094 = vand.u32 %v5567, 4294901760
    %v8095 = vsub.f32 %v5567, %v8094
    %v8096 = vand.u32 %v8095, 4294901760
    %v8097 = vsub.f32 %v8095, %v8096
    %v8098 = vand.u32 %v8097, 4294901760
    %8099 = vmatpush.msra.mxu0 %v8098
    %v8100 = vand.u32 %v5565, 4294901760
    %v8101 = vsub.f32 %v5565, %v8100
    %v8102 = vand.u32 %v8101, 4294901760
    %v8103 = vsub.f32 %v8101, %v8102
    %v8104 = vand.u32 %v8103, 4294901760
    %8105 = vmatpush.msra.mxu0 %v8104
    %v8106 = vand.u32 %v5563, 4294901760
    %v8107 = vsub.f32 %v5563, %v8106
    %v8108 = vand.u32 %v8107, 4294901760
    %v8109 = vsub.f32 %v8107, %v8108
    %v8110 = vand.u32 %v8109, 4294901760
    %8111 = vmatpush.msra.mxu0 %v8110
    %v8112 = vand.u32 %v5561, 4294901760
    %v8113 = vsub.f32 %v5561, %v8112
    %v8114 = vand.u32 %v8113, 4294901760
    %v8115 = vsub.f32 %v8113, %v8114
    %v8116 = vand.u32 %v8115, 4294901760
    %8117 = vmatpush.msra.mxu0 %v8116
    %v8118 = vand.u32 %v5559, 4294901760
    %v8119 = vsub.f32 %v5559, %v8118
    %v8120 = vand.u32 %v8119, 4294901760
    %v8121 = vsub.f32 %v8119, %v8120
    %v8122 = vand.u32 %v8121, 4294901760
    %8123 = vmatpush.msra.mxu0 %v8122
    %v8124 = vand.u32 %v5557, 4294901760
    %v8125 = vsub.f32 %v5557, %v8124
    %v8126 = vand.u32 %v8125, 4294901760
    %v8127 = vsub.f32 %v8125, %v8126
    %v8128 = vand.u32 %v8127, 4294901760
    %8129 = vmatpush.msra.mxu0 %v8128
    %v8130 = vand.u32 %v5555, 4294901760
    %v8131 = vsub.f32 %v5555, %v8130
    %v8132 = vand.u32 %v8131, 4294901760
    %v8133 = vsub.f32 %v8131, %v8132
    %v8134 = vand.u32 %v8133, 4294901760
    %8135 = vmatpush.msra.mxu0 %v8134
    %v8136 = vand.u32 %v5603, 4294901760
    %8137 = vmatmul.f32.gmra.mxu0 %v8136
    %v8138 = vpop.f32.mrf.mxu0
    %v8139 = vadd.f32 %v8038, %v8138
    %8140 = vdwg.mxu0
    %v8141 = vand.u32 %v5585, 4294901760
    %v8142 = vsub.f32 %v5585, %v8141
    %8143 = vmatpush.msra.mxu0 %v8142
    %v8144 = vand.u32 %v5583, 4294901760
    %v8145 = vsub.f32 %v5583, %v8144
    %8146 = vmatpush.msra.mxu0 %v8145
    %v8147 = vand.u32 %v5581, 4294901760
    %v8148 = vsub.f32 %v5581, %v8147
    %8149 = vmatpush.msra.mxu0 %v8148
    %v8150 = vand.u32 %v5579, 4294901760
    %v8151 = vsub.f32 %v5579, %v8150
    %8152 = vmatpush.msra.mxu0 %v8151
    %v8153 = vand.u32 %v5577, 4294901760
    %v8154 = vsub.f32 %v5577, %v8153
    %8155 = vmatpush.msra.mxu0 %v8154
    %v8156 = vand.u32 %v5575, 4294901760
    %v8157 = vsub.f32 %v5575, %v8156
    %8158 = vmatpush.msra.mxu0 %v8157
    %v8159 = vand.u32 %v5573, 4294901760
    %v8160 = vsub.f32 %v5573, %v8159
    %8161 = vmatpush.msra.mxu0 %v8160
    %v8162 = vand.u32 %v5571, 4294901760
    %v8163 = vsub.f32 %v5571, %v8162
    %8164 = vmatpush.msra.mxu0 %v8163
    %v8165 = vand.u32 %v5569, 4294901760
    %v8166 = vsub.f32 %v5569, %v8165
    %8167 = vmatpush.msra.mxu0 %v8166
    %v8168 = vand.u32 %v5567, 4294901760
    %v8169 = vsub.f32 %v5567, %v8168
    %8170 = vmatpush.msra.mxu0 %v8169
    %v8171 = vand.u32 %v5565, 4294901760
    %v8172 = vsub.f32 %v5565, %v8171
    %8173 = vmatpush.msra.mxu0 %v8172
    %v8174 = vand.u32 %v5563, 4294901760
    %v8175 = vsub.f32 %v5563, %v8174
    %8176 = vmatpush.msra.mxu0 %v8175
    %v8177 = vand.u32 %v5561, 4294901760
    %v8178 = vsub.f32 %v5561, %v8177
    %8179 = vmatpush.msra.mxu0 %v8178
    %v8180 = vand.u32 %v5559, 4294901760
    %v8181 = vsub.f32 %v5559, %v8180
    %8182 = vmatpush.msra.mxu0 %v8181
    %v8183 = vand.u32 %v5557, 4294901760
    %v8184 = vsub.f32 %v5557, %v8183
    %8185 = vmatpush.msra.mxu0 %v8184
    %v8186 = vand.u32 %v5555, 4294901760
    %v8187 = vsub.f32 %v5555, %v8186
    %8188 = vmatpush.msra.mxu0 %v8187
    %v8189 = vand.u32 %v5603, 4294901760
    %v8190 = vsub.f32 %v5603, %v8189
    %8191 = vmatmul.f32.gmra.mxu0 %v8190
    %v8192 = vpop.f32.mrf.mxu0
    %v8193 = vadd.f32 %v8139, %v8192
    %8194 = vdwg.mxu0
    %v8195 = vand.u32 %v5585, 4294901760
    %8196 = vmatpush.msra.mxu0 %v8195
    %v8197 = vand.u32 %v5583, 4294901760
    %8198 = vmatpush.msra.mxu0 %v8197
    %v8199 = vand.u32 %v5581, 4294901760
    %8200 = vmatpush.msra.mxu0 %v8199
    %v8201 = vand.u32 %v5579, 4294901760
    %8202 = vmatpush.msra.mxu0 %v8201
    %v8203 = vand.u32 %v5577, 4294901760
    %8204 = vmatpush.msra.mxu0 %v8203
    %v8205 = vand.u32 %v5575, 4294901760
    %8206 = vmatpush.msra.mxu0 %v8205
    %v8207 = vand.u32 %v5573, 4294901760
    %8208 = vmatpush.msra.mxu0 %v8207
    %v8209 = vand.u32 %v5571, 4294901760
    %8210 = vmatpush.msra.mxu0 %v8209
    %v8211 = vand.u32 %v5569, 4294901760
    %8212 = vmatpush.msra.mxu0 %v8211
    %v8213 = vand.u32 %v5567, 4294901760
    %8214 = vmatpush.msra.mxu0 %v8213
    %v8215 = vand.u32 %v5565, 4294901760
    %8216 = vmatpush.msra.mxu0 %v8215
    %v8217 = vand.u32 %v5563, 4294901760
    %8218 = vmatpush.msra.mxu0 %v8217
    %v8219 = vand.u32 %v5561, 4294901760
    %8220 = vmatpush.msra.mxu0 %v8219
    %v8221 = vand.u32 %v5559, 4294901760
    %8222 = vmatpush.msra.mxu0 %v8221
    %v8223 = vand.u32 %v5557, 4294901760
    %8224 = vmatpush.msra.mxu0 %v8223
    %v8225 = vand.u32 %v5555, 4294901760
    %8226 = vmatpush.msra.mxu0 %v8225
    %v8227 = vand.u32 %v5603, 4294901760
    %v8228 = vsub.f32 %v5603, %v8227
    %v8229 = vand.u32 %v8228, 4294901760
    %8230 = vmatmul.f32.gmra.mxu0 %v8229
    %v8231 = vpop.f32.mrf.mxu0
    %v8232 = vadd.f32 %v8193, %v8231
    %8233 = vdwg.mxu0
    %v8234 = vand.u32 %v5585, 4294901760
    %v8235 = vsub.f32 %v5585, %v8234
    %v8236 = vand.u32 %v8235, 4294901760
    %8237 = vmatpush.msra.mxu0 %v8236
    %v8238 = vand.u32 %v5583, 4294901760
    %v8239 = vsub.f32 %v5583, %v8238
    %v8240 = vand.u32 %v8239, 4294901760
    %8241 = vmatpush.msra.mxu0 %v8240
    %v8242 = vand.u32 %v5581, 4294901760
    %v8243 = vsub.f32 %v5581, %v8242
    %v8244 = vand.u32 %v8243, 4294901760
    %8245 = vmatpush.msra.mxu0 %v8244
    %v8246 = vand.u32 %v5579, 4294901760
    %v8247 = vsub.f32 %v5579, %v8246
    %v8248 = vand.u32 %v8247, 4294901760
    %8249 = vmatpush.msra.mxu0 %v8248
    %v8250 = vand.u32 %v5577, 4294901760
    %v8251 = vsub.f32 %v5577, %v8250
    %v8252 = vand.u32 %v8251, 4294901760
    %8253 = vmatpush.msra.mxu0 %v8252
    %v8254 = vand.u32 %v5575, 4294901760
    %v8255 = vsub.f32 %v5575, %v8254
    %v8256 = vand.u32 %v8255, 4294901760
    %8257 = vmatpush.msra.mxu0 %v8256
    %v8258 = vand.u32 %v5573, 4294901760
    %v8259 = vsub.f32 %v5573, %v8258
    %v8260 = vand.u32 %v8259, 4294901760
    %8261 = vmatpush.msra.mxu0 %v8260
    %v8262 = vand.u32 %v5571, 4294901760
    %v8263 = vsub.f32 %v5571, %v8262
    %v8264 = vand.u32 %v8263, 4294901760
    %8265 = vmatpush.msra.mxu0 %v8264
    %v8266 = vand.u32 %v5569, 4294901760
    %v8267 = vsub.f32 %v5569, %v8266
    %v8268 = vand.u32 %v8267, 4294901760
    %8269 = vmatpush.msra.mxu0 %v8268
    %v8270 = vand.u32 %v5567, 4294901760
    %v8271 = vsub.f32 %v5567, %v8270
    %v8272 = vand.u32 %v8271, 4294901760
    %8273 = vmatpush.msra.mxu0 %v8272
    %v8274 = vand.u32 %v5565, 4294901760
    %v8275 = vsub.f32 %v5565, %v8274
    %v8276 = vand.u32 %v8275, 4294901760
    %8277 = vmatpush.msra.mxu0 %v8276
    %v8278 = vand.u32 %v5563, 4294901760
    %v8279 = vsub.f32 %v5563, %v8278
    %v8280 = vand.u32 %v8279, 4294901760
    %8281 = vmatpush.msra.mxu0 %v8280
    %v8282 = vand.u32 %v5561, 4294901760
    %v8283 = vsub.f32 %v5561, %v8282
    %v8284 = vand.u32 %v8283, 4294901760
    %8285 = vmatpush.msra.mxu0 %v8284
    %v8286 = vand.u32 %v5559, 4294901760
    %v8287 = vsub.f32 %v5559, %v8286
    %v8288 = vand.u32 %v8287, 4294901760
    %8289 = vmatpush.msra.mxu0 %v8288
    %v8290 = vand.u32 %v5557, 4294901760
    %v8291 = vsub.f32 %v5557, %v8290
    %v8292 = vand.u32 %v8291, 4294901760
    %8293 = vmatpush.msra.mxu0 %v8292
    %v8294 = vand.u32 %v5555, 4294901760
    %v8295 = vsub.f32 %v5555, %v8294
    %v8296 = vand.u32 %v8295, 4294901760
    %8297 = vmatpush.msra.mxu0 %v8296
    %v8298 = vand.u32 %v5603, 4294901760
    %8299 = vmatmul.f32.gmra.mxu0 %v8298
    %v8300 = vpop.f32.mrf.mxu0
    %v8301 = vadd.f32 %v8232, %v8300
    %8302 = vdwg.mxu0
    %v8303 = vand.u32 %v5585, 4294901760
    %8304 = vmatpush.msra.mxu0 %v8303
    %v8305 = vand.u32 %v5583, 4294901760
    %8306 = vmatpush.msra.mxu0 %v8305
    %v8307 = vand.u32 %v5581, 4294901760
    %8308 = vmatpush.msra.mxu0 %v8307
    %v8309 = vand.u32 %v5579, 4294901760
    %8310 = vmatpush.msra.mxu0 %v8309
    %v8311 = vand.u32 %v5577, 4294901760
    %8312 = vmatpush.msra.mxu0 %v8311
    %v8313 = vand.u32 %v5575, 4294901760
    %8314 = vmatpush.msra.mxu0 %v8313
    %v8315 = vand.u32 %v5573, 4294901760
    %8316 = vmatpush.msra.mxu0 %v8315
    %v8317 = vand.u32 %v5571, 4294901760
    %8318 = vmatpush.msra.mxu0 %v8317
    %v8319 = vand.u32 %v5569, 4294901760
    %8320 = vmatpush.msra.mxu0 %v8319
    %v8321 = vand.u32 %v5567, 4294901760
    %8322 = vmatpush.msra.mxu0 %v8321
    %v8323 = vand.u32 %v5565, 4294901760
    %8324 = vmatpush.msra.mxu0 %v8323
    %v8325 = vand.u32 %v5563, 4294901760
    %8326 = vmatpush.msra.mxu0 %v8325
    %v8327 = vand.u32 %v5561, 4294901760
    %8328 = vmatpush.msra.mxu0 %v8327
    %v8329 = vand.u32 %v5559, 4294901760
    %8330 = vmatpush.msra.mxu0 %v8329
    %v8331 = vand.u32 %v5557, 4294901760
    %8332 = vmatpush.msra.mxu0 %v8331
    %v8333 = vand.u32 %v5555, 4294901760
    %8334 = vmatpush.msra.mxu0 %v8333
    %v8335 = vand.u32 %v5603, 4294901760
    %8336 = vmatmul.f32.gmra.mxu0 %v8335
    %v8337 = vpop.f32.mrf.mxu0
    %v8338 = vadd.f32 %v8301, %v8337
    %8339 = vdwg.mxu0
    %v8340 = vand.u32 %v5362, 4294901760
    %8341 = vmatpush.msra.mxu0 %v8340
    %v8342 = vand.u32 %v5360, 4294901760
    %8343 = vmatpush.msra.mxu0 %v8342
    %v8344 = vand.u32 %v5358, 4294901760
    %8345 = vmatpush.msra.mxu0 %v8344
    %v8346 = vand.u32 %v5356, 4294901760
    %8347 = vmatpush.msra.mxu0 %v8346
    %v8348 = vand.u32 %v5354, 4294901760
    %8349 = vmatpush.msra.mxu0 %v8348
    %v8350 = vand.u32 %v5352, 4294901760
    %8351 = vmatpush.msra.mxu0 %v8350
    %v8352 = vand.u32 %v5350, 4294901760
    %8353 = vmatpush.msra.mxu0 %v8352
    %v8354 = vand.u32 %v5348, 4294901760
    %8355 = vmatpush.msra.mxu0 %v8354
    %v8356 = vand.u32 %v5346, 4294901760
    %8357 = vmatpush.msra.mxu0 %v8356
    %v8358 = vand.u32 %v5344, 4294901760
    %8359 = vmatpush.msra.mxu0 %v8358
    %v8360 = vand.u32 %v5342, 4294901760
    %8361 = vmatpush.msra.mxu0 %v8360
    %v8362 = vand.u32 %v5340, 4294901760
    %8363 = vmatpush.msra.mxu0 %v8362
    %v8364 = vand.u32 %v5338, 4294901760
    %8365 = vmatpush.msra.mxu0 %v8364
    %v8366 = vand.u32 %v5336, 4294901760
    %8367 = vmatpush.msra.mxu0 %v8366
    %v8368 = vand.u32 %v5334, 4294901760
    %8369 = vmatpush.msra.mxu0 %v8368
    %v8370 = vand.u32 %v5332, 4294901760
    %8371 = vmatpush.msra.mxu0 %v8370
    %v8372 = vand.u32 %v5596, 4294901760
    %v8373 = vsub.f32 %v5596, %v8372
    %v8374 = vand.u32 %v8373, 4294901760
    %v8375 = vsub.f32 %v8373, %v8374
    %v8376 = vand.u32 %v8375, 4294901760
    %8377 = vmatmul.f32.gmra.mxu0 %v8376
    %v8378 = vpop.f32.mrf.mxu0
    %v8379 = vadd.f32 %v5590, %v8378
    %8380 = vdwg.mxu0
    %v8381 = vand.u32 %v5362, 4294901760
    %v8382 = vsub.f32 %v5362, %v8381
    %v8383 = vand.u32 %v8382, 4294901760
    %v8384 = vsub.f32 %v8382, %v8383
    %v8385 = vand.u32 %v8384, 4294901760
    %8386 = vmatpush.msra.mxu0 %v8385
    %v8387 = vand.u32 %v5360, 4294901760
    %v8388 = vsub.f32 %v5360, %v8387
    %v8389 = vand.u32 %v8388, 4294901760
    %v8390 = vsub.f32 %v8388, %v8389
    %v8391 = vand.u32 %v8390, 4294901760
    %8392 = vmatpush.msra.mxu0 %v8391
    %v8393 = vand.u32 %v5358, 4294901760
    %v8394 = vsub.f32 %v5358, %v8393
    %v8395 = vand.u32 %v8394, 4294901760
    %v8396 = vsub.f32 %v8394, %v8395
    %v8397 = vand.u32 %v8396, 4294901760
    %8398 = vmatpush.msra.mxu0 %v8397
    %v8399 = vand.u32 %v5356, 4294901760
    %v8400 = vsub.f32 %v5356, %v8399
    %v8401 = vand.u32 %v8400, 4294901760
    %v8402 = vsub.f32 %v8400, %v8401
    %v8403 = vand.u32 %v8402, 4294901760
    %8404 = vmatpush.msra.mxu0 %v8403
    %v8405 = vand.u32 %v5354, 4294901760
    %v8406 = vsub.f32 %v5354, %v8405
    %v8407 = vand.u32 %v8406, 4294901760
    %v8408 = vsub.f32 %v8406, %v8407
    %v8409 = vand.u32 %v8408, 4294901760
    %8410 = vmatpush.msra.mxu0 %v8409
    %v8411 = vand.u32 %v5352, 4294901760
    %v8412 = vsub.f32 %v5352, %v8411
    %v8413 = vand.u32 %v8412, 4294901760
    %v8414 = vsub.f32 %v8412, %v8413
    %v8415 = vand.u32 %v8414, 4294901760
    %8416 = vmatpush.msra.mxu0 %v8415
    %v8417 = vand.u32 %v5350, 4294901760
    %v8418 = vsub.f32 %v5350, %v8417
    %v8419 = vand.u32 %v8418, 4294901760
    %v8420 = vsub.f32 %v8418, %v8419
    %v8421 = vand.u32 %v8420, 4294901760
    %8422 = vmatpush.msra.mxu0 %v8421
    %v8423 = vand.u32 %v5348, 4294901760
    %v8424 = vsub.f32 %v5348, %v8423
    %v8425 = vand.u32 %v8424, 4294901760
    %v8426 = vsub.f32 %v8424, %v8425
    %v8427 = vand.u32 %v8426, 4294901760
    %8428 = vmatpush.msra.mxu0 %v8427
    %v8429 = vand.u32 %v5346, 4294901760
    %v8430 = vsub.f32 %v5346, %v8429
    %v8431 = vand.u32 %v8430, 4294901760
    %v8432 = vsub.f32 %v8430, %v8431
    %v8433 = vand.u32 %v8432, 4294901760
    %8434 = vmatpush.msra.mxu0 %v8433
    %v8435 = vand.u32 %v5344, 4294901760
    %v8436 = vsub.f32 %v5344, %v8435
    %v8437 = vand.u32 %v8436, 4294901760
    %v8438 = vsub.f32 %v8436, %v8437
    %v8439 = vand.u32 %v8438, 4294901760
    %8440 = vmatpush.msra.mxu0 %v8439
    %v8441 = vand.u32 %v5342, 4294901760
    %v8442 = vsub.f32 %v5342, %v8441
    %v8443 = vand.u32 %v8442, 4294901760
    %v8444 = vsub.f32 %v8442, %v8443
    %v8445 = vand.u32 %v8444, 4294901760
    %8446 = vmatpush.msra.mxu0 %v8445
    %v8447 = vand.u32 %v5340, 4294901760
    %v8448 = vsub.f32 %v5340, %v8447
    %v8449 = vand.u32 %v8448, 4294901760
    %v8450 = vsub.f32 %v8448, %v8449
    %v8451 = vand.u32 %v8450, 4294901760
    %8452 = vmatpush.msra.mxu0 %v8451
    %v8453 = vand.u32 %v5338, 4294901760
    %v8454 = vsub.f32 %v5338, %v8453
    %v8455 = vand.u32 %v8454, 4294901760
    %v8456 = vsub.f32 %v8454, %v8455
    %v8457 = vand.u32 %v8456, 4294901760
    %8458 = vmatpush.msra.mxu0 %v8457
    %v8459 = vand.u32 %v5336, 4294901760
    %v8460 = vsub.f32 %v5336, %v8459
    %v8461 = vand.u32 %v8460, 4294901760
    %v8462 = vsub.f32 %v8460, %v8461
    %v8463 = vand.u32 %v8462, 4294901760
    %8464 = vmatpush.msra.mxu0 %v8463
    %v8465 = vand.u32 %v5334, 4294901760
    %v8466 = vsub.f32 %v5334, %v8465
    %v8467 = vand.u32 %v8466, 4294901760
    %v8468 = vsub.f32 %v8466, %v8467
    %v8469 = vand.u32 %v8468, 4294901760
    %8470 = vmatpush.msra.mxu0 %v8469
    %v8471 = vand.u32 %v5332, 4294901760
    %v8472 = vsub.f32 %v5332, %v8471
    %v8473 = vand.u32 %v8472, 4294901760
    %v8474 = vsub.f32 %v8472, %v8473
    %v8475 = vand.u32 %v8474, 4294901760
    %8476 = vmatpush.msra.mxu0 %v8475
    %v8477 = vand.u32 %v5596, 4294901760
    %8478 = vmatmul.f32.gmra.mxu0 %v8477
    %v8479 = vpop.f32.mrf.mxu0
    %v8480 = vadd.f32 %v8379, %v8479
    %8481 = vdwg.mxu0
    %v8482 = vand.u32 %v5362, 4294901760
    %v8483 = vsub.f32 %v5362, %v8482
    %8484 = vmatpush.msra.mxu0 %v8483
    %v8485 = vand.u32 %v5360, 4294901760
    %v8486 = vsub.f32 %v5360, %v8485
    %8487 = vmatpush.msra.mxu0 %v8486
    %v8488 = vand.u32 %v5358, 4294901760
    %v8489 = vsub.f32 %v5358, %v8488
    %8490 = vmatpush.msra.mxu0 %v8489
    %v8491 = vand.u32 %v5356, 4294901760
    %v8492 = vsub.f32 %v5356, %v8491
    %8493 = vmatpush.msra.mxu0 %v8492
    %v8494 = vand.u32 %v5354, 4294901760
    %v8495 = vsub.f32 %v5354, %v8494
    %8496 = vmatpush.msra.mxu0 %v8495
    %v8497 = vand.u32 %v5352, 4294901760
    %v8498 = vsub.f32 %v5352, %v8497
    %8499 = vmatpush.msra.mxu0 %v8498
    %v8500 = vand.u32 %v5350, 4294901760
    %v8501 = vsub.f32 %v5350, %v8500
    %8502 = vmatpush.msra.mxu0 %v8501
    %v8503 = vand.u32 %v5348, 4294901760
    %v8504 = vsub.f32 %v5348, %v8503
    %8505 = vmatpush.msra.mxu0 %v8504
    %v8506 = vand.u32 %v5346, 4294901760
    %v8507 = vsub.f32 %v5346, %v8506
    %8508 = vmatpush.msra.mxu0 %v8507
    %v8509 = vand.u32 %v5344, 4294901760
    %v8510 = vsub.f32 %v5344, %v8509
    %8511 = vmatpush.msra.mxu0 %v8510
    %v8512 = vand.u32 %v5342, 4294901760
    %v8513 = vsub.f32 %v5342, %v8512
    %8514 = vmatpush.msra.mxu0 %v8513
    %v8515 = vand.u32 %v5340, 4294901760
    %v8516 = vsub.f32 %v5340, %v8515
    %8517 = vmatpush.msra.mxu0 %v8516
    %v8518 = vand.u32 %v5338, 4294901760
    %v8519 = vsub.f32 %v5338, %v8518
    %8520 = vmatpush.msra.mxu0 %v8519
    %v8521 = vand.u32 %v5336, 4294901760
    %v8522 = vsub.f32 %v5336, %v8521
    %8523 = vmatpush.msra.mxu0 %v8522
    %v8524 = vand.u32 %v5334, 4294901760
    %v8525 = vsub.f32 %v5334, %v8524
    %8526 = vmatpush.msra.mxu0 %v8525
    %v8527 = vand.u32 %v5332, 4294901760
    %v8528 = vsub.f32 %v5332, %v8527
    %8529 = vmatpush.msra.mxu0 %v8528
    %v8530 = vand.u32 %v5596, 4294901760
    %v8531 = vsub.f32 %v5596, %v8530
    %8532 = vmatmul.f32.gmra.mxu0 %v8531
    %v8533 = vpop.f32.mrf.mxu0
    %v8534 = vadd.f32 %v8480, %v8533
    %8535 = vdwg.mxu0
    %v8536 = vand.u32 %v5362, 4294901760
    %8537 = vmatpush.msra.mxu0 %v8536
    %v8538 = vand.u32 %v5360, 4294901760
    %8539 = vmatpush.msra.mxu0 %v8538
    %v8540 = vand.u32 %v5358, 4294901760
    %8541 = vmatpush.msra.mxu0 %v8540
    %v8542 = vand.u32 %v5356, 4294901760
    %8543 = vmatpush.msra.mxu0 %v8542
    %v8544 = vand.u32 %v5354, 4294901760
    %8545 = vmatpush.msra.mxu0 %v8544
    %v8546 = vand.u32 %v5352, 4294901760
    %8547 = vmatpush.msra.mxu0 %v8546
    %v8548 = vand.u32 %v5350, 4294901760
    %8549 = vmatpush.msra.mxu0 %v8548
    %v8550 = vand.u32 %v5348, 4294901760
    %8551 = vmatpush.msra.mxu0 %v8550
    %v8552 = vand.u32 %v5346, 4294901760
    %8553 = vmatpush.msra.mxu0 %v8552
    %v8554 = vand.u32 %v5344, 4294901760
    %8555 = vmatpush.msra.mxu0 %v8554
    %v8556 = vand.u32 %v5342, 4294901760
    %8557 = vmatpush.msra.mxu0 %v8556
    %v8558 = vand.u32 %v5340, 4294901760
    %8559 = vmatpush.msra.mxu0 %v8558
    %v8560 = vand.u32 %v5338, 4294901760
    %8561 = vmatpush.msra.mxu0 %v8560
    %v8562 = vand.u32 %v5336, 4294901760
    %8563 = vmatpush.msra.mxu0 %v8562
    %v8564 = vand.u32 %v5334, 4294901760
    %8565 = vmatpush.msra.mxu0 %v8564
    %v8566 = vand.u32 %v5332, 4294901760
    %8567 = vmatpush.msra.mxu0 %v8566
    %v8568 = vand.u32 %v5596, 4294901760
    %v8569 = vsub.f32 %v5596, %v8568
    %v8570 = vand.u32 %v8569, 4294901760
    %8571 = vmatmul.f32.gmra.mxu0 %v8570
    %v8572 = vpop.f32.mrf.mxu0
    %v8573 = vadd.f32 %v8534, %v8572
    %8574 = vdwg.mxu0
    %v8575 = vand.u32 %v5362, 4294901760
    %v8576 = vsub.f32 %v5362, %v8575
    %v8577 = vand.u32 %v8576, 4294901760
    %8578 = vmatpush.msra.mxu0 %v8577
    %v8579 = vand.u32 %v5360, 4294901760
    %v8580 = vsub.f32 %v5360, %v8579
    %v8581 = vand.u32 %v8580, 4294901760
    %8582 = vmatpush.msra.mxu0 %v8581
    %v8583 = vand.u32 %v5358, 4294901760
    %v8584 = vsub.f32 %v5358, %v8583
    %v8585 = vand.u32 %v8584, 4294901760
    %8586 = vmatpush.msra.mxu0 %v8585
    %v8587 = vand.u32 %v5356, 4294901760
    %v8588 = vsub.f32 %v5356, %v8587
    %v8589 = vand.u32 %v8588, 4294901760
    %8590 = vmatpush.msra.mxu0 %v8589
    %v8591 = vand.u32 %v5354, 4294901760
    %v8592 = vsub.f32 %v5354, %v8591
    %v8593 = vand.u32 %v8592, 4294901760
    %8594 = vmatpush.msra.mxu0 %v8593
    %v8595 = vand.u32 %v5352, 4294901760
    %v8596 = vsub.f32 %v5352, %v8595
    %v8597 = vand.u32 %v8596, 4294901760
    %8598 = vmatpush.msra.mxu0 %v8597
    %v8599 = vand.u32 %v5350, 4294901760
    %v8600 = vsub.f32 %v5350, %v8599
    %v8601 = vand.u32 %v8600, 4294901760
    %8602 = vmatpush.msra.mxu0 %v8601
    %v8603 = vand.u32 %v5348, 4294901760
    %v8604 = vsub.f32 %v5348, %v8603
    %v8605 = vand.u32 %v8604, 4294901760
    %8606 = vmatpush.msra.mxu0 %v8605
    %v8607 = vand.u32 %v5346, 4294901760
    %v8608 = vsub.f32 %v5346, %v8607
    %v8609 = vand.u32 %v8608, 4294901760
    %8610 = vmatpush.msra.mxu0 %v8609
    %v8611 = vand.u32 %v5344, 4294901760
    %v8612 = vsub.f32 %v5344, %v8611
    %v8613 = vand.u32 %v8612, 4294901760
    %8614 = vmatpush.msra.mxu0 %v8613
    %v8615 = vand.u32 %v5342, 4294901760
    %v8616 = vsub.f32 %v5342, %v8615
    %v8617 = vand.u32 %v8616, 4294901760
    %8618 = vmatpush.msra.mxu0 %v8617
    %v8619 = vand.u32 %v5340, 4294901760
    %v8620 = vsub.f32 %v5340, %v8619
    %v8621 = vand.u32 %v8620, 4294901760
    %8622 = vmatpush.msra.mxu0 %v8621
    %v8623 = vand.u32 %v5338, 4294901760
    %v8624 = vsub.f32 %v5338, %v8623
    %v8625 = vand.u32 %v8624, 4294901760
    %8626 = vmatpush.msra.mxu0 %v8625
    %v8627 = vand.u32 %v5336, 4294901760
    %v8628 = vsub.f32 %v5336, %v8627
    %v8629 = vand.u32 %v8628, 4294901760
    %8630 = vmatpush.msra.mxu0 %v8629
    %v8631 = vand.u32 %v5334, 4294901760
    %v8632 = vsub.f32 %v5334, %v8631
    %v8633 = vand.u32 %v8632, 4294901760
    %8634 = vmatpush.msra.mxu0 %v8633
    %v8635 = vand.u32 %v5332, 4294901760
    %v8636 = vsub.f32 %v5332, %v8635
    %v8637 = vand.u32 %v8636, 4294901760
    %8638 = vmatpush.msra.mxu0 %v8637
    %v8639 = vand.u32 %v5596, 4294901760
    %8640 = vmatmul.f32.gmra.mxu0 %v8639
    %v8641 = vpop.f32.mrf.mxu0
    %v8642 = vadd.f32 %v8573, %v8641
    %8643 = vdwg.mxu0
    %v8644 = vand.u32 %v5362, 4294901760
    %8645 = vmatpush.msra.mxu0 %v8644
    %v8646 = vand.u32 %v5360, 4294901760
    %8647 = vmatpush.msra.mxu0 %v8646
    %v8648 = vand.u32 %v5358, 4294901760
    %8649 = vmatpush.msra.mxu0 %v8648
    %v8650 = vand.u32 %v5356, 4294901760
    %8651 = vmatpush.msra.mxu0 %v8650
    %v8652 = vand.u32 %v5354, 4294901760
    %8653 = vmatpush.msra.mxu0 %v8652
    %v8654 = vand.u32 %v5352, 4294901760
    %8655 = vmatpush.msra.mxu0 %v8654
    %v8656 = vand.u32 %v5350, 4294901760
    %8657 = vmatpush.msra.mxu0 %v8656
    %v8658 = vand.u32 %v5348, 4294901760
    %8659 = vmatpush.msra.mxu0 %v8658
    %v8660 = vand.u32 %v5346, 4294901760
    %8661 = vmatpush.msra.mxu0 %v8660
    %v8662 = vand.u32 %v5344, 4294901760
    %8663 = vmatpush.msra.mxu0 %v8662
    %v8664 = vand.u32 %v5342, 4294901760
    %8665 = vmatpush.msra.mxu0 %v8664
    %v8666 = vand.u32 %v5340, 4294901760
    %8667 = vmatpush.msra.mxu0 %v8666
    %v8668 = vand.u32 %v5338, 4294901760
    %8669 = vmatpush.msra.mxu0 %v8668
    %v8670 = vand.u32 %v5336, 4294901760
    %8671 = vmatpush.msra.mxu0 %v8670
    %v8672 = vand.u32 %v5334, 4294901760
    %8673 = vmatpush.msra.mxu0 %v8672
    %v8674 = vand.u32 %v5332, 4294901760
    %8675 = vmatpush.msra.mxu0 %v8674
    %v8676 = vand.u32 %v5596, 4294901760
    %8677 = vmatmul.f32.gmra.mxu0 %v8676
    %v8678 = vpop.f32.mrf.mxu0
    %v8679 = vadd.f32 %v8642, %v8678
    %8680 = vdwg.mxu0
    %v8681 = vand.u32 %v5394, 4294901760
    %8682 = vmatpush.msra.mxu0 %v8681
    %v8683 = vand.u32 %v5392, 4294901760
    %8684 = vmatpush.msra.mxu0 %v8683
    %v8685 = vand.u32 %v5390, 4294901760
    %8686 = vmatpush.msra.mxu0 %v8685
    %v8687 = vand.u32 %v5388, 4294901760
    %8688 = vmatpush.msra.mxu0 %v8687
    %v8689 = vand.u32 %v5386, 4294901760
    %8690 = vmatpush.msra.mxu0 %v8689
    %v8691 = vand.u32 %v5384, 4294901760
    %8692 = vmatpush.msra.mxu0 %v8691
    %v8693 = vand.u32 %v5382, 4294901760
    %8694 = vmatpush.msra.mxu0 %v8693
    %v8695 = vand.u32 %v5380, 4294901760
    %8696 = vmatpush.msra.mxu0 %v8695
    %v8697 = vand.u32 %v5378, 4294901760
    %8698 = vmatpush.msra.mxu0 %v8697
    %v8699 = vand.u32 %v5376, 4294901760
    %8700 = vmatpush.msra.mxu0 %v8699
    %v8701 = vand.u32 %v5374, 4294901760
    %8702 = vmatpush.msra.mxu0 %v8701
    %v8703 = vand.u32 %v5372, 4294901760
    %8704 = vmatpush.msra.mxu0 %v8703
    %v8705 = vand.u32 %v5370, 4294901760
    %8706 = vmatpush.msra.mxu0 %v8705
    %v8707 = vand.u32 %v5368, 4294901760
    %8708 = vmatpush.msra.mxu0 %v8707
    %v8709 = vand.u32 %v5366, 4294901760
    %8710 = vmatpush.msra.mxu0 %v8709
    %v8711 = vand.u32 %v5364, 4294901760
    %8712 = vmatpush.msra.mxu0 %v8711
    %v8713 = vand.u32 %v5597, 4294901760
    %v8714 = vsub.f32 %v5597, %v8713
    %v8715 = vand.u32 %v8714, 4294901760
    %v8716 = vsub.f32 %v8714, %v8715
    %v8717 = vand.u32 %v8716, 4294901760
    %8718 = vmatmul.f32.gmra.mxu0 %v8717
    %v8719 = vpop.f32.mrf.mxu0
    %v8720 = vadd.f32 %v8679, %v8719
    %8721 = vdwg.mxu0
    %v8722 = vand.u32 %v5394, 4294901760
    %v8723 = vsub.f32 %v5394, %v8722
    %v8724 = vand.u32 %v8723, 4294901760
    %v8725 = vsub.f32 %v8723, %v8724
    %v8726 = vand.u32 %v8725, 4294901760
    %8727 = vmatpush.msra.mxu0 %v8726
    %v8728 = vand.u32 %v5392, 4294901760
    %v8729 = vsub.f32 %v5392, %v8728
    %v8730 = vand.u32 %v8729, 4294901760
    %v8731 = vsub.f32 %v8729, %v8730
    %v8732 = vand.u32 %v8731, 4294901760
    %8733 = vmatpush.msra.mxu0 %v8732
    %v8734 = vand.u32 %v5390, 4294901760
    %v8735 = vsub.f32 %v5390, %v8734
    %v8736 = vand.u32 %v8735, 4294901760
    %v8737 = vsub.f32 %v8735, %v8736
    %v8738 = vand.u32 %v8737, 4294901760
    %8739 = vmatpush.msra.mxu0 %v8738
    %v8740 = vand.u32 %v5388, 4294901760
    %v8741 = vsub.f32 %v5388, %v8740
    %v8742 = vand.u32 %v8741, 4294901760
    %v8743 = vsub.f32 %v8741, %v8742
    %v8744 = vand.u32 %v8743, 4294901760
    %8745 = vmatpush.msra.mxu0 %v8744
    %v8746 = vand.u32 %v5386, 4294901760
    %v8747 = vsub.f32 %v5386, %v8746
    %v8748 = vand.u32 %v8747, 4294901760
    %v8749 = vsub.f32 %v8747, %v8748
    %v8750 = vand.u32 %v8749, 4294901760
    %8751 = vmatpush.msra.mxu0 %v8750
    %v8752 = vand.u32 %v5384, 4294901760
    %v8753 = vsub.f32 %v5384, %v8752
    %v8754 = vand.u32 %v8753, 4294901760
    %v8755 = vsub.f32 %v8753, %v8754
    %v8756 = vand.u32 %v8755, 4294901760
    %8757 = vmatpush.msra.mxu0 %v8756
    %v8758 = vand.u32 %v5382, 4294901760
    %v8759 = vsub.f32 %v5382, %v8758
    %v8760 = vand.u32 %v8759, 4294901760
    %v8761 = vsub.f32 %v8759, %v8760
    %v8762 = vand.u32 %v8761, 4294901760
    %8763 = vmatpush.msra.mxu0 %v8762
    %v8764 = vand.u32 %v5380, 4294901760
    %v8765 = vsub.f32 %v5380, %v8764
    %v8766 = vand.u32 %v8765, 4294901760
    %v8767 = vsub.f32 %v8765, %v8766
    %v8768 = vand.u32 %v8767, 4294901760
    %8769 = vmatpush.msra.mxu0 %v8768
    %v8770 = vand.u32 %v5378, 4294901760
    %v8771 = vsub.f32 %v5378, %v8770
    %v8772 = vand.u32 %v8771, 4294901760
    %v8773 = vsub.f32 %v8771, %v8772
    %v8774 = vand.u32 %v8773, 4294901760
    %8775 = vmatpush.msra.mxu0 %v8774
    %v8776 = vand.u32 %v5376, 4294901760
    %v8777 = vsub.f32 %v5376, %v8776
    %v8778 = vand.u32 %v8777, 4294901760
    %v8779 = vsub.f32 %v8777, %v8778
    %v8780 = vand.u32 %v8779, 4294901760
    %8781 = vmatpush.msra.mxu0 %v8780
    %v8782 = vand.u32 %v5374, 4294901760
    %v8783 = vsub.f32 %v5374, %v8782
    %v8784 = vand.u32 %v8783, 4294901760
    %v8785 = vsub.f32 %v8783, %v8784
    %v8786 = vand.u32 %v8785, 4294901760
    %8787 = vmatpush.msra.mxu0 %v8786
    %v8788 = vand.u32 %v5372, 4294901760
    %v8789 = vsub.f32 %v5372, %v8788
    %v8790 = vand.u32 %v8789, 4294901760
    %v8791 = vsub.f32 %v8789, %v8790
    %v8792 = vand.u32 %v8791, 4294901760
    %8793 = vmatpush.msra.mxu0 %v8792
    %v8794 = vand.u32 %v5370, 4294901760
    %v8795 = vsub.f32 %v5370, %v8794
    %v8796 = vand.u32 %v8795, 4294901760
    %v8797 = vsub.f32 %v8795, %v8796
    %v8798 = vand.u32 %v8797, 4294901760
    %8799 = vmatpush.msra.mxu0 %v8798
    %v8800 = vand.u32 %v5368, 4294901760
    %v8801 = vsub.f32 %v5368, %v8800
    %v8802 = vand.u32 %v8801, 4294901760
    %v8803 = vsub.f32 %v8801, %v8802
    %v8804 = vand.u32 %v8803, 4294901760
    %8805 = vmatpush.msra.mxu0 %v8804
    %v8806 = vand.u32 %v5366, 4294901760
    %v8807 = vsub.f32 %v5366, %v8806
    %v8808 = vand.u32 %v8807, 4294901760
    %v8809 = vsub.f32 %v8807, %v8808
    %v8810 = vand.u32 %v8809, 4294901760
    %8811 = vmatpush.msra.mxu0 %v8810
    %v8812 = vand.u32 %v5364, 4294901760
    %v8813 = vsub.f32 %v5364, %v8812
    %v8814 = vand.u32 %v8813, 4294901760
    %v8815 = vsub.f32 %v8813, %v8814
    %v8816 = vand.u32 %v8815, 4294901760
    %8817 = vmatpush.msra.mxu0 %v8816
    %v8818 = vand.u32 %v5597, 4294901760
    %8819 = vmatmul.f32.gmra.mxu0 %v8818
    %v8820 = vpop.f32.mrf.mxu0
    %v8821 = vadd.f32 %v8720, %v8820
    %8822 = vdwg.mxu0
    %v8823 = vand.u32 %v5394, 4294901760
    %v8824 = vsub.f32 %v5394, %v8823
    %8825 = vmatpush.msra.mxu0 %v8824
    %v8826 = vand.u32 %v5392, 4294901760
    %v8827 = vsub.f32 %v5392, %v8826
    %8828 = vmatpush.msra.mxu0 %v8827
    %v8829 = vand.u32 %v5390, 4294901760
    %v8830 = vsub.f32 %v5390, %v8829
    %8831 = vmatpush.msra.mxu0 %v8830
    %v8832 = vand.u32 %v5388, 4294901760
    %v8833 = vsub.f32 %v5388, %v8832
    %8834 = vmatpush.msra.mxu0 %v8833
    %v8835 = vand.u32 %v5386, 4294901760
    %v8836 = vsub.f32 %v5386, %v8835
    %8837 = vmatpush.msra.mxu0 %v8836
    %v8838 = vand.u32 %v5384, 4294901760
    %v8839 = vsub.f32 %v5384, %v8838
    %8840 = vmatpush.msra.mxu0 %v8839
    %v8841 = vand.u32 %v5382, 4294901760
    %v8842 = vsub.f32 %v5382, %v8841
    %8843 = vmatpush.msra.mxu0 %v8842
    %v8844 = vand.u32 %v5380, 4294901760
    %v8845 = vsub.f32 %v5380, %v8844
    %8846 = vmatpush.msra.mxu0 %v8845
    %v8847 = vand.u32 %v5378, 4294901760
    %v8848 = vsub.f32 %v5378, %v8847
    %8849 = vmatpush.msra.mxu0 %v8848
    %v8850 = vand.u32 %v5376, 4294901760
    %v8851 = vsub.f32 %v5376, %v8850
    %8852 = vmatpush.msra.mxu0 %v8851
    %v8853 = vand.u32 %v5374, 4294901760
    %v8854 = vsub.f32 %v5374, %v8853
    %8855 = vmatpush.msra.mxu0 %v8854
    %v8856 = vand.u32 %v5372, 4294901760
    %v8857 = vsub.f32 %v5372, %v8856
    %8858 = vmatpush.msra.mxu0 %v8857
    %v8859 = vand.u32 %v5370, 4294901760
    %v8860 = vsub.f32 %v5370, %v8859
    %8861 = vmatpush.msra.mxu0 %v8860
    %v8862 = vand.u32 %v5368, 4294901760
    %v8863 = vsub.f32 %v5368, %v8862
    %8864 = vmatpush.msra.mxu0 %v8863
    %v8865 = vand.u32 %v5366, 4294901760
    %v8866 = vsub.f32 %v5366, %v8865
    %8867 = vmatpush.msra.mxu0 %v8866
    %v8868 = vand.u32 %v5364, 4294901760
    %v8869 = vsub.f32 %v5364, %v8868
    %8870 = vmatpush.msra.mxu0 %v8869
    %v8871 = vand.u32 %v5597, 4294901760
    %v8872 = vsub.f32 %v5597, %v8871
    %8873 = vmatmul.f32.gmra.mxu0 %v8872
    %v8874 = vpop.f32.mrf.mxu0
    %v8875 = vadd.f32 %v8821, %v8874
    %8876 = vdwg.mxu0
    %v8877 = vand.u32 %v5394, 4294901760
    %8878 = vmatpush.msra.mxu0 %v8877
    %v8879 = vand.u32 %v5392, 4294901760
    %8880 = vmatpush.msra.mxu0 %v8879
    %v8881 = vand.u32 %v5390, 4294901760
    %8882 = vmatpush.msra.mxu0 %v8881
    %v8883 = vand.u32 %v5388, 4294901760
    %8884 = vmatpush.msra.mxu0 %v8883
    %v8885 = vand.u32 %v5386, 4294901760
    %8886 = vmatpush.msra.mxu0 %v8885
    %v8887 = vand.u32 %v5384, 4294901760
    %8888 = vmatpush.msra.mxu0 %v8887
    %v8889 = vand.u32 %v5382, 4294901760
    %8890 = vmatpush.msra.mxu0 %v8889
    %v8891 = vand.u32 %v5380, 4294901760
    %8892 = vmatpush.msra.mxu0 %v8891
    %v8893 = vand.u32 %v5378, 4294901760
    %8894 = vmatpush.msra.mxu0 %v8893
    %v8895 = vand.u32 %v5376, 4294901760
    %8896 = vmatpush.msra.mxu0 %v8895
    %v8897 = vand.u32 %v5374, 4294901760
    %8898 = vmatpush.msra.mxu0 %v8897
    %v8899 = vand.u32 %v5372, 4294901760
    %8900 = vmatpush.msra.mxu0 %v8899
    %v8901 = vand.u32 %v5370, 4294901760
    %8902 = vmatpush.msra.mxu0 %v8901
    %v8903 = vand.u32 %v5368, 4294901760
    %8904 = vmatpush.msra.mxu0 %v8903
    %v8905 = vand.u32 %v5366, 4294901760
    %8906 = vmatpush.msra.mxu0 %v8905
    %v8907 = vand.u32 %v5364, 4294901760
    %8908 = vmatpush.msra.mxu0 %v8907
    %v8909 = vand.u32 %v5597, 4294901760
    %v8910 = vsub.f32 %v5597, %v8909
    %v8911 = vand.u32 %v8910, 4294901760
    %8912 = vmatmul.f32.gmra.mxu0 %v8911
    %v8913 = vpop.f32.mrf.mxu0
    %v8914 = vadd.f32 %v8875, %v8913
    %8915 = vdwg.mxu0
    %v8916 = vand.u32 %v5394, 4294901760
    %v8917 = vsub.f32 %v5394, %v8916
    %v8918 = vand.u32 %v8917, 4294901760
    %8919 = vmatpush.msra.mxu0 %v8918
    %v8920 = vand.u32 %v5392, 4294901760
    %v8921 = vsub.f32 %v5392, %v8920
    %v8922 = vand.u32 %v8921, 4294901760
    %8923 = vmatpush.msra.mxu0 %v8922
    %v8924 = vand.u32 %v5390, 4294901760
    %v8925 = vsub.f32 %v5390, %v8924
    %v8926 = vand.u32 %v8925, 4294901760
    %8927 = vmatpush.msra.mxu0 %v8926
    %v8928 = vand.u32 %v5388, 4294901760
    %v8929 = vsub.f32 %v5388, %v8928
    %v8930 = vand.u32 %v8929, 4294901760
    %8931 = vmatpush.msra.mxu0 %v8930
    %v8932 = vand.u32 %v5386, 4294901760
    %v8933 = vsub.f32 %v5386, %v8932
    %v8934 = vand.u32 %v8933, 4294901760
    %8935 = vmatpush.msra.mxu0 %v8934
    %v8936 = vand.u32 %v5384, 4294901760
    %v8937 = vsub.f32 %v5384, %v8936
    %v8938 = vand.u32 %v8937, 4294901760
    %8939 = vmatpush.msra.mxu0 %v8938
    %v8940 = vand.u32 %v5382, 4294901760
    %v8941 = vsub.f32 %v5382, %v8940
    %v8942 = vand.u32 %v8941, 4294901760
    %8943 = vmatpush.msra.mxu0 %v8942
    %v8944 = vand.u32 %v5380, 4294901760
    %v8945 = vsub.f32 %v5380, %v8944
    %v8946 = vand.u32 %v8945, 4294901760
    %8947 = vmatpush.msra.mxu0 %v8946
    %v8948 = vand.u32 %v5378, 4294901760
    %v8949 = vsub.f32 %v5378, %v8948
    %v8950 = vand.u32 %v8949, 4294901760
    %8951 = vmatpush.msra.mxu0 %v8950
    %v8952 = vand.u32 %v5376, 4294901760
    %v8953 = vsub.f32 %v5376, %v8952
    %v8954 = vand.u32 %v8953, 4294901760
    %8955 = vmatpush.msra.mxu0 %v8954
    %v8956 = vand.u32 %v5374, 4294901760
    %v8957 = vsub.f32 %v5374, %v8956
    %v8958 = vand.u32 %v8957, 4294901760
    %8959 = vmatpush.msra.mxu0 %v8958
    %v8960 = vand.u32 %v5372, 4294901760
    %v8961 = vsub.f32 %v5372, %v8960
    %v8962 = vand.u32 %v8961, 4294901760
    %8963 = vmatpush.msra.mxu0 %v8962
    %v8964 = vand.u32 %v5370, 4294901760
    %v8965 = vsub.f32 %v5370, %v8964
    %v8966 = vand.u32 %v8965, 4294901760
    %8967 = vmatpush.msra.mxu0 %v8966
    %v8968 = vand.u32 %v5368, 4294901760
    %v8969 = vsub.f32 %v5368, %v8968
    %v8970 = vand.u32 %v8969, 4294901760
    %8971 = vmatpush.msra.mxu0 %v8970
    %v8972 = vand.u32 %v5366, 4294901760
    %v8973 = vsub.f32 %v5366, %v8972
    %v8974 = vand.u32 %v8973, 4294901760
    %8975 = vmatpush.msra.mxu0 %v8974
    %v8976 = vand.u32 %v5364, 4294901760
    %v8977 = vsub.f32 %v5364, %v8976
    %v8978 = vand.u32 %v8977, 4294901760
    %8979 = vmatpush.msra.mxu0 %v8978
    %v8980 = vand.u32 %v5597, 4294901760
    %8981 = vmatmul.f32.gmra.mxu0 %v8980
    %v8982 = vpop.f32.mrf.mxu0
    %v8983 = vadd.f32 %v8914, %v8982
    %8984 = vdwg.mxu0
    %v8985 = vand.u32 %v5394, 4294901760
    %8986 = vmatpush.msra.mxu0 %v8985
    %v8987 = vand.u32 %v5392, 4294901760
    %8988 = vmatpush.msra.mxu0 %v8987
    %v8989 = vand.u32 %v5390, 4294901760
    %8990 = vmatpush.msra.mxu0 %v8989
    %v8991 = vand.u32 %v5388, 4294901760
    %8992 = vmatpush.msra.mxu0 %v8991
    %v8993 = vand.u32 %v5386, 4294901760
    %8994 = vmatpush.msra.mxu0 %v8993
    %v8995 = vand.u32 %v5384, 4294901760
    %8996 = vmatpush.msra.mxu0 %v8995
    %v8997 = vand.u32 %v5382, 4294901760
    %8998 = vmatpush.msra.mxu0 %v8997
    %v8999 = vand.u32 %v5380, 4294901760
    %9000 = vmatpush.msra.mxu0 %v8999
    %v9001 = vand.u32 %v5378, 4294901760
    %9002 = vmatpush.msra.mxu0 %v9001
    %v9003 = vand.u32 %v5376, 4294901760
    %9004 = vmatpush.msra.mxu0 %v9003
    %v9005 = vand.u32 %v5374, 4294901760
    %9006 = vmatpush.msra.mxu0 %v9005
    %v9007 = vand.u32 %v5372, 4294901760
    %9008 = vmatpush.msra.mxu0 %v9007
    %v9009 = vand.u32 %v5370, 4294901760
    %9010 = vmatpush.msra.mxu0 %v9009
    %v9011 = vand.u32 %v5368, 4294901760
    %9012 = vmatpush.msra.mxu0 %v9011
    %v9013 = vand.u32 %v5366, 4294901760
    %9014 = vmatpush.msra.mxu0 %v9013
    %v9015 = vand.u32 %v5364, 4294901760
    %9016 = vmatpush.msra.mxu0 %v9015
    %v9017 = vand.u32 %v5597, 4294901760
    %9018 = vmatmul.f32.gmra.mxu0 %v9017
    %v9019 = vpop.f32.mrf.mxu0
    %v9020 = vadd.f32 %v8983, %v9019
    %9021 = vdwg.mxu0
    %v9022 = vand.u32 %v5426, 4294901760
    %9023 = vmatpush.msra.mxu0 %v9022
    %v9024 = vand.u32 %v5424, 4294901760
    %9025 = vmatpush.msra.mxu0 %v9024
    %v9026 = vand.u32 %v5422, 4294901760
    %9027 = vmatpush.msra.mxu0 %v9026
    %v9028 = vand.u32 %v5420, 4294901760
    %9029 = vmatpush.msra.mxu0 %v9028
    %v9030 = vand.u32 %v5418, 4294901760
    %9031 = vmatpush.msra.mxu0 %v9030
    %v9032 = vand.u32 %v5416, 4294901760
    %9033 = vmatpush.msra.mxu0 %v9032
    %v9034 = vand.u32 %v5414, 4294901760
    %9035 = vmatpush.msra.mxu0 %v9034
    %v9036 = vand.u32 %v5412, 4294901760
    %9037 = vmatpush.msra.mxu0 %v9036
    %v9038 = vand.u32 %v5410, 4294901760
    %9039 = vmatpush.msra.mxu0 %v9038
    %v9040 = vand.u32 %v5408, 4294901760
    %9041 = vmatpush.msra.mxu0 %v9040
    %v9042 = vand.u32 %v5406, 4294901760
    %9043 = vmatpush.msra.mxu0 %v9042
    %v9044 = vand.u32 %v5404, 4294901760
    %9045 = vmatpush.msra.mxu0 %v9044
    %v9046 = vand.u32 %v5402, 4294901760
    %9047 = vmatpush.msra.mxu0 %v9046
    %v9048 = vand.u32 %v5400, 4294901760
    %9049 = vmatpush.msra.mxu0 %v9048
    %v9050 = vand.u32 %v5398, 4294901760
    %9051 = vmatpush.msra.mxu0 %v9050
    %v9052 = vand.u32 %v5396, 4294901760
    %9053 = vmatpush.msra.mxu0 %v9052
    %v9054 = vand.u32 %v5598, 4294901760
    %v9055 = vsub.f32 %v5598, %v9054
    %v9056 = vand.u32 %v9055, 4294901760
    %v9057 = vsub.f32 %v9055, %v9056
    %v9058 = vand.u32 %v9057, 4294901760
    %9059 = vmatmul.f32.gmra.mxu0 %v9058
    %v9060 = vpop.f32.mrf.mxu0
    %v9061 = vadd.f32 %v9020, %v9060
    %9062 = vdwg.mxu0
    %v9063 = vand.u32 %v5426, 4294901760
    %v9064 = vsub.f32 %v5426, %v9063
    %v9065 = vand.u32 %v9064, 4294901760
    %v9066 = vsub.f32 %v9064, %v9065
    %v9067 = vand.u32 %v9066, 4294901760
    %9068 = vmatpush.msra.mxu0 %v9067
    %v9069 = vand.u32 %v5424, 4294901760
    %v9070 = vsub.f32 %v5424, %v9069
    %v9071 = vand.u32 %v9070, 4294901760
    %v9072 = vsub.f32 %v9070, %v9071
    %v9073 = vand.u32 %v9072, 4294901760
    %9074 = vmatpush.msra.mxu0 %v9073
    %v9075 = vand.u32 %v5422, 4294901760
    %v9076 = vsub.f32 %v5422, %v9075
    %v9077 = vand.u32 %v9076, 4294901760
    %v9078 = vsub.f32 %v9076, %v9077
    %v9079 = vand.u32 %v9078, 4294901760
    %9080 = vmatpush.msra.mxu0 %v9079
    %v9081 = vand.u32 %v5420, 4294901760
    %v9082 = vsub.f32 %v5420, %v9081
    %v9083 = vand.u32 %v9082, 4294901760
    %v9084 = vsub.f32 %v9082, %v9083
    %v9085 = vand.u32 %v9084, 4294901760
    %9086 = vmatpush.msra.mxu0 %v9085
    %v9087 = vand.u32 %v5418, 4294901760
    %v9088 = vsub.f32 %v5418, %v9087
    %v9089 = vand.u32 %v9088, 4294901760
    %v9090 = vsub.f32 %v9088, %v9089
    %v9091 = vand.u32 %v9090, 4294901760
    %9092 = vmatpush.msra.mxu0 %v9091
    %v9093 = vand.u32 %v5416, 4294901760
    %v9094 = vsub.f32 %v5416, %v9093
    %v9095 = vand.u32 %v9094, 4294901760
    %v9096 = vsub.f32 %v9094, %v9095
    %v9097 = vand.u32 %v9096, 4294901760
    %9098 = vmatpush.msra.mxu0 %v9097
    %v9099 = vand.u32 %v5414, 4294901760
    %v9100 = vsub.f32 %v5414, %v9099
    %v9101 = vand.u32 %v9100, 4294901760
    %v9102 = vsub.f32 %v9100, %v9101
    %v9103 = vand.u32 %v9102, 4294901760
    %9104 = vmatpush.msra.mxu0 %v9103
    %v9105 = vand.u32 %v5412, 4294901760
    %v9106 = vsub.f32 %v5412, %v9105
    %v9107 = vand.u32 %v9106, 4294901760
    %v9108 = vsub.f32 %v9106, %v9107
    %v9109 = vand.u32 %v9108, 4294901760
    %9110 = vmatpush.msra.mxu0 %v9109
    %v9111 = vand.u32 %v5410, 4294901760
    %v9112 = vsub.f32 %v5410, %v9111
    %v9113 = vand.u32 %v9112, 4294901760
    %v9114 = vsub.f32 %v9112, %v9113
    %v9115 = vand.u32 %v9114, 4294901760
    %9116 = vmatpush.msra.mxu0 %v9115
    %v9117 = vand.u32 %v5408, 4294901760
    %v9118 = vsub.f32 %v5408, %v9117
    %v9119 = vand.u32 %v9118, 4294901760
    %v9120 = vsub.f32 %v9118, %v9119
    %v9121 = vand.u32 %v9120, 4294901760
    %9122 = vmatpush.msra.mxu0 %v9121
    %v9123 = vand.u32 %v5406, 4294901760
    %v9124 = vsub.f32 %v5406, %v9123
    %v9125 = vand.u32 %v9124, 4294901760
    %v9126 = vsub.f32 %v9124, %v9125
    %v9127 = vand.u32 %v9126, 4294901760
    %9128 = vmatpush.msra.mxu0 %v9127
    %v9129 = vand.u32 %v5404, 4294901760
    %v9130 = vsub.f32 %v5404, %v9129
    %v9131 = vand.u32 %v9130, 4294901760
    %v9132 = vsub.f32 %v9130, %v9131
    %v9133 = vand.u32 %v9132, 4294901760
    %9134 = vmatpush.msra.mxu0 %v9133
    %v9135 = vand.u32 %v5402, 4294901760
    %v9136 = vsub.f32 %v5402, %v9135
    %v9137 = vand.u32 %v9136, 4294901760
    %v9138 = vsub.f32 %v9136, %v9137
    %v9139 = vand.u32 %v9138, 4294901760
    %9140 = vmatpush.msra.mxu0 %v9139
    %v9141 = vand.u32 %v5400, 4294901760
    %v9142 = vsub.f32 %v5400, %v9141
    %v9143 = vand.u32 %v9142, 4294901760
    %v9144 = vsub.f32 %v9142, %v9143
    %v9145 = vand.u32 %v9144, 4294901760
    %9146 = vmatpush.msra.mxu0 %v9145
    %v9147 = vand.u32 %v5398, 4294901760
    %v9148 = vsub.f32 %v5398, %v9147
    %v9149 = vand.u32 %v9148, 4294901760
    %v9150 = vsub.f32 %v9148, %v9149
    %v9151 = vand.u32 %v9150, 4294901760
    %9152 = vmatpush.msra.mxu0 %v9151
    %v9153 = vand.u32 %v5396, 4294901760
    %v9154 = vsub.f32 %v5396, %v9153
    %v9155 = vand.u32 %v9154, 4294901760
    %v9156 = vsub.f32 %v9154, %v9155
    %v9157 = vand.u32 %v9156, 4294901760
    %9158 = vmatpush.msra.mxu0 %v9157
    %v9159 = vand.u32 %v5598, 4294901760
    %9160 = vmatmul.f32.gmra.mxu0 %v9159
    %v9161 = vpop.f32.mrf.mxu0
    %v9162 = vadd.f32 %v9061, %v9161
    %9163 = vdwg.mxu0
    %v9164 = vand.u32 %v5426, 4294901760
    %v9165 = vsub.f32 %v5426, %v9164
    %9166 = vmatpush.msra.mxu0 %v9165
    %v9167 = vand.u32 %v5424, 4294901760
    %v9168 = vsub.f32 %v5424, %v9167
    %9169 = vmatpush.msra.mxu0 %v9168
    %v9170 = vand.u32 %v5422, 4294901760
    %v9171 = vsub.f32 %v5422, %v9170
    %9172 = vmatpush.msra.mxu0 %v9171
    %v9173 = vand.u32 %v5420, 4294901760
    %v9174 = vsub.f32 %v5420, %v9173
    %9175 = vmatpush.msra.mxu0 %v9174
    %v9176 = vand.u32 %v5418, 4294901760
    %v9177 = vsub.f32 %v5418, %v9176
    %9178 = vmatpush.msra.mxu0 %v9177
    %v9179 = vand.u32 %v5416, 4294901760
    %v9180 = vsub.f32 %v5416, %v9179
    %9181 = vmatpush.msra.mxu0 %v9180
    %v9182 = vand.u32 %v5414, 4294901760
    %v9183 = vsub.f32 %v5414, %v9182
    %9184 = vmatpush.msra.mxu0 %v9183
    %v9185 = vand.u32 %v5412, 4294901760
    %v9186 = vsub.f32 %v5412, %v9185
    %9187 = vmatpush.msra.mxu0 %v9186
    %v9188 = vand.u32 %v5410, 4294901760
    %v9189 = vsub.f32 %v5410, %v9188
    %9190 = vmatpush.msra.mxu0 %v9189
    %v9191 = vand.u32 %v5408, 4294901760
    %v9192 = vsub.f32 %v5408, %v9191
    %9193 = vmatpush.msra.mxu0 %v9192
    %v9194 = vand.u32 %v5406, 4294901760
    %v9195 = vsub.f32 %v5406, %v9194
    %9196 = vmatpush.msra.mxu0 %v9195
    %v9197 = vand.u32 %v5404, 4294901760
    %v9198 = vsub.f32 %v5404, %v9197
    %9199 = vmatpush.msra.mxu0 %v9198
    %v9200 = vand.u32 %v5402, 4294901760
    %v9201 = vsub.f32 %v5402, %v9200
    %9202 = vmatpush.msra.mxu0 %v9201
    %v9203 = vand.u32 %v5400, 4294901760
    %v9204 = vsub.f32 %v5400, %v9203
    %9205 = vmatpush.msra.mxu0 %v9204
    %v9206 = vand.u32 %v5398, 4294901760
    %v9207 = vsub.f32 %v5398, %v9206
    %9208 = vmatpush.msra.mxu0 %v9207
    %v9209 = vand.u32 %v5396, 4294901760
    %v9210 = vsub.f32 %v5396, %v9209
    %9211 = vmatpush.msra.mxu0 %v9210
    %v9212 = vand.u32 %v5598, 4294901760
    %v9213 = vsub.f32 %v5598, %v9212
    %9214 = vmatmul.f32.gmra.mxu0 %v9213
    %v9215 = vpop.f32.mrf.mxu0
    %v9216 = vadd.f32 %v9162, %v9215
    %9217 = vdwg.mxu0
    %v9218 = vand.u32 %v5426, 4294901760
    %9219 = vmatpush.msra.mxu0 %v9218
    %v9220 = vand.u32 %v5424, 4294901760
    %9221 = vmatpush.msra.mxu0 %v9220
    %v9222 = vand.u32 %v5422, 4294901760
    %9223 = vmatpush.msra.mxu0 %v9222
    %v9224 = vand.u32 %v5420, 4294901760
    %9225 = vmatpush.msra.mxu0 %v9224
    %v9226 = vand.u32 %v5418, 4294901760
    %9227 = vmatpush.msra.mxu0 %v9226
    %v9228 = vand.u32 %v5416, 4294901760
    %9229 = vmatpush.msra.mxu0 %v9228
    %v9230 = vand.u32 %v5414, 4294901760
    %9231 = vmatpush.msra.mxu0 %v9230
    %v9232 = vand.u32 %v5412, 4294901760
    %9233 = vmatpush.msra.mxu0 %v9232
    %v9234 = vand.u32 %v5410, 4294901760
    %9235 = vmatpush.msra.mxu0 %v9234
    %v9236 = vand.u32 %v5408, 4294901760
    %9237 = vmatpush.msra.mxu0 %v9236
    %v9238 = vand.u32 %v5406, 4294901760
    %9239 = vmatpush.msra.mxu0 %v9238
    %v9240 = vand.u32 %v5404, 4294901760
    %9241 = vmatpush.msra.mxu0 %v9240
    %v9242 = vand.u32 %v5402, 4294901760
    %9243 = vmatpush.msra.mxu0 %v9242
    %v9244 = vand.u32 %v5400, 4294901760
    %9245 = vmatpush.msra.mxu0 %v9244
    %v9246 = vand.u32 %v5398, 4294901760
    %9247 = vmatpush.msra.mxu0 %v9246
    %v9248 = vand.u32 %v5396, 4294901760
    %9249 = vmatpush.msra.mxu0 %v9248
    %v9250 = vand.u32 %v5598, 4294901760
    %v9251 = vsub.f32 %v5598, %v9250
    %v9252 = vand.u32 %v9251, 4294901760
    %9253 = vmatmul.f32.gmra.mxu0 %v9252
    %v9254 = vpop.f32.mrf.mxu0
    %v9255 = vadd.f32 %v9216, %v9254
    %9256 = vdwg.mxu0
    %v9257 = vand.u32 %v5426, 4294901760
    %v9258 = vsub.f32 %v5426, %v9257
    %v9259 = vand.u32 %v9258, 4294901760
    %9260 = vmatpush.msra.mxu0 %v9259
    %v9261 = vand.u32 %v5424, 4294901760
    %v9262 = vsub.f32 %v5424, %v9261
    %v9263 = vand.u32 %v9262, 4294901760
    %9264 = vmatpush.msra.mxu0 %v9263
    %v9265 = vand.u32 %v5422, 4294901760
    %v9266 = vsub.f32 %v5422, %v9265
    %v9267 = vand.u32 %v9266, 4294901760
    %9268 = vmatpush.msra.mxu0 %v9267
    %v9269 = vand.u32 %v5420, 4294901760
    %v9270 = vsub.f32 %v5420, %v9269
    %v9271 = vand.u32 %v9270, 4294901760
    %9272 = vmatpush.msra.mxu0 %v9271
    %v9273 = vand.u32 %v5418, 4294901760
    %v9274 = vsub.f32 %v5418, %v9273
    %v9275 = vand.u32 %v9274, 4294901760
    %9276 = vmatpush.msra.mxu0 %v9275
    %v9277 = vand.u32 %v5416, 4294901760
    %v9278 = vsub.f32 %v5416, %v9277
    %v9279 = vand.u32 %v9278, 4294901760
    %9280 = vmatpush.msra.mxu0 %v9279
    %v9281 = vand.u32 %v5414, 4294901760
    %v9282 = vsub.f32 %v5414, %v9281
    %v9283 = vand.u32 %v9282, 4294901760
    %9284 = vmatpush.msra.mxu0 %v9283
    %v9285 = vand.u32 %v5412, 4294901760
    %v9286 = vsub.f32 %v5412, %v9285
    %v9287 = vand.u32 %v9286, 4294901760
    %9288 = vmatpush.msra.mxu0 %v9287
    %v9289 = vand.u32 %v5410, 4294901760
    %v9290 = vsub.f32 %v5410, %v9289
    %v9291 = vand.u32 %v9290, 4294901760
    %9292 = vmatpush.msra.mxu0 %v9291
    %v9293 = vand.u32 %v5408, 4294901760
    %v9294 = vsub.f32 %v5408, %v9293
    %v9295 = vand.u32 %v9294, 4294901760
    %9296 = vmatpush.msra.mxu0 %v9295
    %v9297 = vand.u32 %v5406, 4294901760
    %v9298 = vsub.f32 %v5406, %v9297
    %v9299 = vand.u32 %v9298, 4294901760
    %9300 = vmatpush.msra.mxu0 %v9299
    %v9301 = vand.u32 %v5404, 4294901760
    %v9302 = vsub.f32 %v5404, %v9301
    %v9303 = vand.u32 %v9302, 4294901760
    %9304 = vmatpush.msra.mxu0 %v9303
    %v9305 = vand.u32 %v5402, 4294901760
    %v9306 = vsub.f32 %v5402, %v9305
    %v9307 = vand.u32 %v9306, 4294901760
    %9308 = vmatpush.msra.mxu0 %v9307
    %v9309 = vand.u32 %v5400, 4294901760
    %v9310 = vsub.f32 %v5400, %v9309
    %v9311 = vand.u32 %v9310, 4294901760
    %9312 = vmatpush.msra.mxu0 %v9311
    %v9313 = vand.u32 %v5398, 4294901760
    %v9314 = vsub.f32 %v5398, %v9313
    %v9315 = vand.u32 %v9314, 4294901760
    %9316 = vmatpush.msra.mxu0 %v9315
    %v9317 = vand.u32 %v5396, 4294901760
    %v9318 = vsub.f32 %v5396, %v9317
    %v9319 = vand.u32 %v9318, 4294901760
    %9320 = vmatpush.msra.mxu0 %v9319
    %v9321 = vand.u32 %v5598, 4294901760
    %9322 = vmatmul.f32.gmra.mxu0 %v9321
    %v9323 = vpop.f32.mrf.mxu0
    %v9324 = vadd.f32 %v9255, %v9323
    %9325 = vdwg.mxu0
    %v9326 = vand.u32 %v5426, 4294901760
    %9327 = vmatpush.msra.mxu0 %v9326
    %v9328 = vand.u32 %v5424, 4294901760
    %9329 = vmatpush.msra.mxu0 %v9328
    %v9330 = vand.u32 %v5422, 4294901760
    %9331 = vmatpush.msra.mxu0 %v9330
    %v9332 = vand.u32 %v5420, 4294901760
    %9333 = vmatpush.msra.mxu0 %v9332
    %v9334 = vand.u32 %v5418, 4294901760
    %9335 = vmatpush.msra.mxu0 %v9334
    %v9336 = vand.u32 %v5416, 4294901760
    %9337 = vmatpush.msra.mxu0 %v9336
    %v9338 = vand.u32 %v5414, 4294901760
    %9339 = vmatpush.msra.mxu0 %v9338
    %v9340 = vand.u32 %v5412, 4294901760
    %9341 = vmatpush.msra.mxu0 %v9340
    %v9342 = vand.u32 %v5410, 4294901760
    %9343 = vmatpush.msra.mxu0 %v9342
    %v9344 = vand.u32 %v5408, 4294901760
    %9345 = vmatpush.msra.mxu0 %v9344
    %v9346 = vand.u32 %v5406, 4294901760
    %9347 = vmatpush.msra.mxu0 %v9346
    %v9348 = vand.u32 %v5404, 4294901760
    %9349 = vmatpush.msra.mxu0 %v9348
    %v9350 = vand.u32 %v5402, 4294901760
    %9351 = vmatpush.msra.mxu0 %v9350
    %v9352 = vand.u32 %v5400, 4294901760
    %9353 = vmatpush.msra.mxu0 %v9352
    %v9354 = vand.u32 %v5398, 4294901760
    %9355 = vmatpush.msra.mxu0 %v9354
    %v9356 = vand.u32 %v5396, 4294901760
    %9357 = vmatpush.msra.mxu0 %v9356
    %v9358 = vand.u32 %v5598, 4294901760
    %9359 = vmatmul.f32.gmra.mxu0 %v9358
    %v9360 = vpop.f32.mrf.mxu0
    %v9361 = vadd.f32 %v9324, %v9360
    %9362 = vdwg.mxu0
    %v9363 = vand.u32 %v5458, 4294901760
    %9364 = vmatpush.msra.mxu0 %v9363
    %v9365 = vand.u32 %v5456, 4294901760
    %9366 = vmatpush.msra.mxu0 %v9365
    %v9367 = vand.u32 %v5454, 4294901760
    %9368 = vmatpush.msra.mxu0 %v9367
    %v9369 = vand.u32 %v5452, 4294901760
    %9370 = vmatpush.msra.mxu0 %v9369
    %v9371 = vand.u32 %v5450, 4294901760
    %9372 = vmatpush.msra.mxu0 %v9371
    %v9373 = vand.u32 %v5448, 4294901760
    %9374 = vmatpush.msra.mxu0 %v9373
    %v9375 = vand.u32 %v5446, 4294901760
    %9376 = vmatpush.msra.mxu0 %v9375
    %v9377 = vand.u32 %v5444, 4294901760
    %9378 = vmatpush.msra.mxu0 %v9377
    %v9379 = vand.u32 %v5442, 4294901760
    %9380 = vmatpush.msra.mxu0 %v9379
    %v9381 = vand.u32 %v5440, 4294901760
    %9382 = vmatpush.msra.mxu0 %v9381
    %v9383 = vand.u32 %v5438, 4294901760
    %9384 = vmatpush.msra.mxu0 %v9383
    %v9385 = vand.u32 %v5436, 4294901760
    %9386 = vmatpush.msra.mxu0 %v9385
    %v9387 = vand.u32 %v5434, 4294901760
    %9388 = vmatpush.msra.mxu0 %v9387
    %v9389 = vand.u32 %v5432, 4294901760
    %9390 = vmatpush.msra.mxu0 %v9389
    %v9391 = vand.u32 %v5430, 4294901760
    %9392 = vmatpush.msra.mxu0 %v9391
    %v9393 = vand.u32 %v5428, 4294901760
    %9394 = vmatpush.msra.mxu0 %v9393
    %v9395 = vand.u32 %v5599, 4294901760
    %v9396 = vsub.f32 %v5599, %v9395
    %v9397 = vand.u32 %v9396, 4294901760
    %v9398 = vsub.f32 %v9396, %v9397
    %v9399 = vand.u32 %v9398, 4294901760
    %9400 = vmatmul.f32.gmra.mxu0 %v9399
    %v9401 = vpop.f32.mrf.mxu0
    %v9402 = vadd.f32 %v9361, %v9401
    %9403 = vdwg.mxu0
    %v9404 = vand.u32 %v5458, 4294901760
    %v9405 = vsub.f32 %v5458, %v9404
    %v9406 = vand.u32 %v9405, 4294901760
    %v9407 = vsub.f32 %v9405, %v9406
    %v9408 = vand.u32 %v9407, 4294901760
    %9409 = vmatpush.msra.mxu0 %v9408
    %v9410 = vand.u32 %v5456, 4294901760
    %v9411 = vsub.f32 %v5456, %v9410
    %v9412 = vand.u32 %v9411, 4294901760
    %v9413 = vsub.f32 %v9411, %v9412
    %v9414 = vand.u32 %v9413, 4294901760
    %9415 = vmatpush.msra.mxu0 %v9414
    %v9416 = vand.u32 %v5454, 4294901760
    %v9417 = vsub.f32 %v5454, %v9416
    %v9418 = vand.u32 %v9417, 4294901760
    %v9419 = vsub.f32 %v9417, %v9418
    %v9420 = vand.u32 %v9419, 4294901760
    %9421 = vmatpush.msra.mxu0 %v9420
    %v9422 = vand.u32 %v5452, 4294901760
    %v9423 = vsub.f32 %v5452, %v9422
    %v9424 = vand.u32 %v9423, 4294901760
    %v9425 = vsub.f32 %v9423, %v9424
    %v9426 = vand.u32 %v9425, 4294901760
    %9427 = vmatpush.msra.mxu0 %v9426
    %v9428 = vand.u32 %v5450, 4294901760
    %v9429 = vsub.f32 %v5450, %v9428
    %v9430 = vand.u32 %v9429, 4294901760
    %v9431 = vsub.f32 %v9429, %v9430
    %v9432 = vand.u32 %v9431, 4294901760
    %9433 = vmatpush.msra.mxu0 %v9432
    %v9434 = vand.u32 %v5448, 4294901760
    %v9435 = vsub.f32 %v5448, %v9434
    %v9436 = vand.u32 %v9435, 4294901760
    %v9437 = vsub.f32 %v9435, %v9436
    %v9438 = vand.u32 %v9437, 4294901760
    %9439 = vmatpush.msra.mxu0 %v9438
    %v9440 = vand.u32 %v5446, 4294901760
    %v9441 = vsub.f32 %v5446, %v9440
    %v9442 = vand.u32 %v9441, 4294901760
    %v9443 = vsub.f32 %v9441, %v9442
    %v9444 = vand.u32 %v9443, 4294901760
    %9445 = vmatpush.msra.mxu0 %v9444
    %v9446 = vand.u32 %v5444, 4294901760
    %v9447 = vsub.f32 %v5444, %v9446
    %v9448 = vand.u32 %v9447, 4294901760
    %v9449 = vsub.f32 %v9447, %v9448
    %v9450 = vand.u32 %v9449, 4294901760
    %9451 = vmatpush.msra.mxu0 %v9450
    %v9452 = vand.u32 %v5442, 4294901760
    %v9453 = vsub.f32 %v5442, %v9452
    %v9454 = vand.u32 %v9453, 4294901760
    %v9455 = vsub.f32 %v9453, %v9454
    %v9456 = vand.u32 %v9455, 4294901760
    %9457 = vmatpush.msra.mxu0 %v9456
    %v9458 = vand.u32 %v5440, 4294901760
    %v9459 = vsub.f32 %v5440, %v9458
    %v9460 = vand.u32 %v9459, 4294901760
    %v9461 = vsub.f32 %v9459, %v9460
    %v9462 = vand.u32 %v9461, 4294901760
    %9463 = vmatpush.msra.mxu0 %v9462
    %v9464 = vand.u32 %v5438, 4294901760
    %v9465 = vsub.f32 %v5438, %v9464
    %v9466 = vand.u32 %v9465, 4294901760
    %v9467 = vsub.f32 %v9465, %v9466
    %v9468 = vand.u32 %v9467, 4294901760
    %9469 = vmatpush.msra.mxu0 %v9468
    %v9470 = vand.u32 %v5436, 4294901760
    %v9471 = vsub.f32 %v5436, %v9470
    %v9472 = vand.u32 %v9471, 4294901760
    %v9473 = vsub.f32 %v9471, %v9472
    %v9474 = vand.u32 %v9473, 4294901760
    %9475 = vmatpush.msra.mxu0 %v9474
    %v9476 = vand.u32 %v5434, 4294901760
    %v9477 = vsub.f32 %v5434, %v9476
    %v9478 = vand.u32 %v9477, 4294901760
    %v9479 = vsub.f32 %v9477, %v9478
    %v9480 = vand.u32 %v9479, 4294901760
    %9481 = vmatpush.msra.mxu0 %v9480
    %v9482 = vand.u32 %v5432, 4294901760
    %v9483 = vsub.f32 %v5432, %v9482
    %v9484 = vand.u32 %v9483, 4294901760
    %v9485 = vsub.f32 %v9483, %v9484
    %v9486 = vand.u32 %v9485, 4294901760
    %9487 = vmatpush.msra.mxu0 %v9486
    %v9488 = vand.u32 %v5430, 4294901760
    %v9489 = vsub.f32 %v5430, %v9488
    %v9490 = vand.u32 %v9489, 4294901760
    %v9491 = vsub.f32 %v9489, %v9490
    %v9492 = vand.u32 %v9491, 4294901760
    %9493 = vmatpush.msra.mxu0 %v9492
    %v9494 = vand.u32 %v5428, 4294901760
    %v9495 = vsub.f32 %v5428, %v9494
    %v9496 = vand.u32 %v9495, 4294901760
    %v9497 = vsub.f32 %v9495, %v9496
    %v9498 = vand.u32 %v9497, 4294901760
    %9499 = vmatpush.msra.mxu0 %v9498
    %v9500 = vand.u32 %v5599, 4294901760
    %9501 = vmatmul.f32.gmra.mxu0 %v9500
    %v9502 = vpop.f32.mrf.mxu0
    %v9503 = vadd.f32 %v9402, %v9502
    %9504 = vdwg.mxu0
    %v9505 = vand.u32 %v5458, 4294901760
    %v9506 = vsub.f32 %v5458, %v9505
    %9507 = vmatpush.msra.mxu0 %v9506
    %v9508 = vand.u32 %v5456, 4294901760
    %v9509 = vsub.f32 %v5456, %v9508
    %9510 = vmatpush.msra.mxu0 %v9509
    %v9511 = vand.u32 %v5454, 4294901760
    %v9512 = vsub.f32 %v5454, %v9511
    %9513 = vmatpush.msra.mxu0 %v9512
    %v9514 = vand.u32 %v5452, 4294901760
    %v9515 = vsub.f32 %v5452, %v9514
    %9516 = vmatpush.msra.mxu0 %v9515
    %v9517 = vand.u32 %v5450, 4294901760
    %v9518 = vsub.f32 %v5450, %v9517
    %9519 = vmatpush.msra.mxu0 %v9518
    %v9520 = vand.u32 %v5448, 4294901760
    %v9521 = vsub.f32 %v5448, %v9520
    %9522 = vmatpush.msra.mxu0 %v9521
    %v9523 = vand.u32 %v5446, 4294901760
    %v9524 = vsub.f32 %v5446, %v9523
    %9525 = vmatpush.msra.mxu0 %v9524
    %v9526 = vand.u32 %v5444, 4294901760
    %v9527 = vsub.f32 %v5444, %v9526
    %9528 = vmatpush.msra.mxu0 %v9527
    %v9529 = vand.u32 %v5442, 4294901760
    %v9530 = vsub.f32 %v5442, %v9529
    %9531 = vmatpush.msra.mxu0 %v9530
    %v9532 = vand.u32 %v5440, 4294901760
    %v9533 = vsub.f32 %v5440, %v9532
    %9534 = vmatpush.msra.mxu0 %v9533
    %v9535 = vand.u32 %v5438, 4294901760
    %v9536 = vsub.f32 %v5438, %v9535
    %9537 = vmatpush.msra.mxu0 %v9536
    %v9538 = vand.u32 %v5436, 4294901760
    %v9539 = vsub.f32 %v5436, %v9538
    %9540 = vmatpush.msra.mxu0 %v9539
    %v9541 = vand.u32 %v5434, 4294901760
    %v9542 = vsub.f32 %v5434, %v9541
    %9543 = vmatpush.msra.mxu0 %v9542
    %v9544 = vand.u32 %v5432, 4294901760
    %v9545 = vsub.f32 %v5432, %v9544
    %9546 = vmatpush.msra.mxu0 %v9545
    %v9547 = vand.u32 %v5430, 4294901760
    %v9548 = vsub.f32 %v5430, %v9547
    %9549 = vmatpush.msra.mxu0 %v9548
    %v9550 = vand.u32 %v5428, 4294901760
    %v9551 = vsub.f32 %v5428, %v9550
    %9552 = vmatpush.msra.mxu0 %v9551
    %v9553 = vand.u32 %v5599, 4294901760
    %v9554 = vsub.f32 %v5599, %v9553
    %9555 = vmatmul.f32.gmra.mxu0 %v9554
    %v9556 = vpop.f32.mrf.mxu0
    %v9557 = vadd.f32 %v9503, %v9556
    %9558 = vdwg.mxu0
    %v9559 = vand.u32 %v5458, 4294901760
    %9560 = vmatpush.msra.mxu0 %v9559
    %v9561 = vand.u32 %v5456, 4294901760
    %9562 = vmatpush.msra.mxu0 %v9561
    %v9563 = vand.u32 %v5454, 4294901760
    %9564 = vmatpush.msra.mxu0 %v9563
    %v9565 = vand.u32 %v5452, 4294901760
    %9566 = vmatpush.msra.mxu0 %v9565
    %v9567 = vand.u32 %v5450, 4294901760
    %9568 = vmatpush.msra.mxu0 %v9567
    %v9569 = vand.u32 %v5448, 4294901760
    %9570 = vmatpush.msra.mxu0 %v9569
    %v9571 = vand.u32 %v5446, 4294901760
    %9572 = vmatpush.msra.mxu0 %v9571
    %v9573 = vand.u32 %v5444, 4294901760
    %9574 = vmatpush.msra.mxu0 %v9573
    %v9575 = vand.u32 %v5442, 4294901760
    %9576 = vmatpush.msra.mxu0 %v9575
    %v9577 = vand.u32 %v5440, 4294901760
    %9578 = vmatpush.msra.mxu0 %v9577
    %v9579 = vand.u32 %v5438, 4294901760
    %9580 = vmatpush.msra.mxu0 %v9579
    %v9581 = vand.u32 %v5436, 4294901760
    %9582 = vmatpush.msra.mxu0 %v9581
    %v9583 = vand.u32 %v5434, 4294901760
    %9584 = vmatpush.msra.mxu0 %v9583
    %v9585 = vand.u32 %v5432, 4294901760
    %9586 = vmatpush.msra.mxu0 %v9585
    %v9587 = vand.u32 %v5430, 4294901760
    %9588 = vmatpush.msra.mxu0 %v9587
    %v9589 = vand.u32 %v5428, 4294901760
    %9590 = vmatpush.msra.mxu0 %v9589
    %v9591 = vand.u32 %v5599, 4294901760
    %v9592 = vsub.f32 %v5599, %v9591
    %v9593 = vand.u32 %v9592, 4294901760
    %9594 = vmatmul.f32.gmra.mxu0 %v9593
    %v9595 = vpop.f32.mrf.mxu0
    %v9596 = vadd.f32 %v9557, %v9595
    %9597 = vdwg.mxu0
    %v9598 = vand.u32 %v5458, 4294901760
    %v9599 = vsub.f32 %v5458, %v9598
    %v9600 = vand.u32 %v9599, 4294901760
    %9601 = vmatpush.msra.mxu0 %v9600
    %v9602 = vand.u32 %v5456, 4294901760
    %v9603 = vsub.f32 %v5456, %v9602
    %v9604 = vand.u32 %v9603, 4294901760
    %9605 = vmatpush.msra.mxu0 %v9604
    %v9606 = vand.u32 %v5454, 4294901760
    %v9607 = vsub.f32 %v5454, %v9606
    %v9608 = vand.u32 %v9607, 4294901760
    %9609 = vmatpush.msra.mxu0 %v9608
    %v9610 = vand.u32 %v5452, 4294901760
    %v9611 = vsub.f32 %v5452, %v9610
    %v9612 = vand.u32 %v9611, 4294901760
    %9613 = vmatpush.msra.mxu0 %v9612
    %v9614 = vand.u32 %v5450, 4294901760
    %v9615 = vsub.f32 %v5450, %v9614
    %v9616 = vand.u32 %v9615, 4294901760
    %9617 = vmatpush.msra.mxu0 %v9616
    %v9618 = vand.u32 %v5448, 4294901760
    %v9619 = vsub.f32 %v5448, %v9618
    %v9620 = vand.u32 %v9619, 4294901760
    %9621 = vmatpush.msra.mxu0 %v9620
    %v9622 = vand.u32 %v5446, 4294901760
    %v9623 = vsub.f32 %v5446, %v9622
    %v9624 = vand.u32 %v9623, 4294901760
    %9625 = vmatpush.msra.mxu0 %v9624
    %v9626 = vand.u32 %v5444, 4294901760
    %v9627 = vsub.f32 %v5444, %v9626
    %v9628 = vand.u32 %v9627, 4294901760
    %9629 = vmatpush.msra.mxu0 %v9628
    %v9630 = vand.u32 %v5442, 4294901760
    %v9631 = vsub.f32 %v5442, %v9630
    %v9632 = vand.u32 %v9631, 4294901760
    %9633 = vmatpush.msra.mxu0 %v9632
    %v9634 = vand.u32 %v5440, 4294901760
    %v9635 = vsub.f32 %v5440, %v9634
    %v9636 = vand.u32 %v9635, 4294901760
    %9637 = vmatpush.msra.mxu0 %v9636
    %v9638 = vand.u32 %v5438, 4294901760
    %v9639 = vsub.f32 %v5438, %v9638
    %v9640 = vand.u32 %v9639, 4294901760
    %9641 = vmatpush.msra.mxu0 %v9640
    %v9642 = vand.u32 %v5436, 4294901760
    %v9643 = vsub.f32 %v5436, %v9642
    %v9644 = vand.u32 %v9643, 4294901760
    %9645 = vmatpush.msra.mxu0 %v9644
    %v9646 = vand.u32 %v5434, 4294901760
    %v9647 = vsub.f32 %v5434, %v9646
    %v9648 = vand.u32 %v9647, 4294901760
    %9649 = vmatpush.msra.mxu0 %v9648
    %v9650 = vand.u32 %v5432, 4294901760
    %v9651 = vsub.f32 %v5432, %v9650
    %v9652 = vand.u32 %v9651, 4294901760
    %9653 = vmatpush.msra.mxu0 %v9652
    %v9654 = vand.u32 %v5430, 4294901760
    %v9655 = vsub.f32 %v5430, %v9654
    %v9656 = vand.u32 %v9655, 4294901760
    %9657 = vmatpush.msra.mxu0 %v9656
    %v9658 = vand.u32 %v5428, 4294901760
    %v9659 = vsub.f32 %v5428, %v9658
    %v9660 = vand.u32 %v9659, 4294901760
    %9661 = vmatpush.msra.mxu0 %v9660
    %v9662 = vand.u32 %v5599, 4294901760
    %9663 = vmatmul.f32.gmra.mxu0 %v9662
    %v9664 = vpop.f32.mrf.mxu0
    %v9665 = vadd.f32 %v9596, %v9664
    %9666 = vdwg.mxu0
    %v9667 = vand.u32 %v5458, 4294901760
    %9668 = vmatpush.msra.mxu0 %v9667
    %v9669 = vand.u32 %v5456, 4294901760
    %9670 = vmatpush.msra.mxu0 %v9669
    %v9671 = vand.u32 %v5454, 4294901760
    %9672 = vmatpush.msra.mxu0 %v9671
    %v9673 = vand.u32 %v5452, 4294901760
    %9674 = vmatpush.msra.mxu0 %v9673
    %v9675 = vand.u32 %v5450, 4294901760
    %9676 = vmatpush.msra.mxu0 %v9675
    %v9677 = vand.u32 %v5448, 4294901760
    %9678 = vmatpush.msra.mxu0 %v9677
    %v9679 = vand.u32 %v5446, 4294901760
    %9680 = vmatpush.msra.mxu0 %v9679
    %v9681 = vand.u32 %v5444, 4294901760
    %9682 = vmatpush.msra.mxu0 %v9681
    %v9683 = vand.u32 %v5442, 4294901760
    %9684 = vmatpush.msra.mxu0 %v9683
    %v9685 = vand.u32 %v5440, 4294901760
    %9686 = vmatpush.msra.mxu0 %v9685
    %v9687 = vand.u32 %v5438, 4294901760
    %9688 = vmatpush.msra.mxu0 %v9687
    %v9689 = vand.u32 %v5436, 4294901760
    %9690 = vmatpush.msra.mxu0 %v9689
    %v9691 = vand.u32 %v5434, 4294901760
    %9692 = vmatpush.msra.mxu0 %v9691
    %v9693 = vand.u32 %v5432, 4294901760
    %9694 = vmatpush.msra.mxu0 %v9693
    %v9695 = vand.u32 %v5430, 4294901760
    %9696 = vmatpush.msra.mxu0 %v9695
    %v9697 = vand.u32 %v5428, 4294901760
    %9698 = vmatpush.msra.mxu0 %v9697
    %v9699 = vand.u32 %v5599, 4294901760
    %9700 = vmatmul.f32.gmra.mxu0 %v9699
    %v9701 = vpop.f32.mrf.mxu0
    %v9702 = vadd.f32 %v9665, %v9701
    %9703 = vdwg.mxu0
    %v9704 = vand.u32 %v5490, 4294901760
    %9705 = vmatpush.msra.mxu0 %v9704
    %v9706 = vand.u32 %v5488, 4294901760
    %9707 = vmatpush.msra.mxu0 %v9706
    %v9708 = vand.u32 %v5486, 4294901760
    %9709 = vmatpush.msra.mxu0 %v9708
    %v9710 = vand.u32 %v5484, 4294901760
    %9711 = vmatpush.msra.mxu0 %v9710
    %v9712 = vand.u32 %v5482, 4294901760
    %9713 = vmatpush.msra.mxu0 %v9712
    %v9714 = vand.u32 %v5480, 4294901760
    %9715 = vmatpush.msra.mxu0 %v9714
    %v9716 = vand.u32 %v5478, 4294901760
    %9717 = vmatpush.msra.mxu0 %v9716
    %v9718 = vand.u32 %v5476, 4294901760
    %9719 = vmatpush.msra.mxu0 %v9718
    %v9720 = vand.u32 %v5474, 4294901760
    %9721 = vmatpush.msra.mxu0 %v9720
    %v9722 = vand.u32 %v5472, 4294901760
    %9723 = vmatpush.msra.mxu0 %v9722
    %v9724 = vand.u32 %v5470, 4294901760
    %9725 = vmatpush.msra.mxu0 %v9724
    %v9726 = vand.u32 %v5468, 4294901760
    %9727 = vmatpush.msra.mxu0 %v9726
    %v9728 = vand.u32 %v5466, 4294901760
    %9729 = vmatpush.msra.mxu0 %v9728
    %v9730 = vand.u32 %v5464, 4294901760
    %9731 = vmatpush.msra.mxu0 %v9730
    %v9732 = vand.u32 %v5462, 4294901760
    %9733 = vmatpush.msra.mxu0 %v9732
    %v9734 = vand.u32 %v5460, 4294901760
    %9735 = vmatpush.msra.mxu0 %v9734
    %v9736 = vand.u32 %v5600, 4294901760
    %v9737 = vsub.f32 %v5600, %v9736
    %v9738 = vand.u32 %v9737, 4294901760
    %v9739 = vsub.f32 %v9737, %v9738
    %v9740 = vand.u32 %v9739, 4294901760
    %9741 = vmatmul.f32.gmra.mxu0 %v9740
    %v9742 = vpop.f32.mrf.mxu0
    %v9743 = vadd.f32 %v9702, %v9742
    %9744 = vdwg.mxu0
    %v9745 = vand.u32 %v5490, 4294901760
    %v9746 = vsub.f32 %v5490, %v9745
    %v9747 = vand.u32 %v9746, 4294901760
    %v9748 = vsub.f32 %v9746, %v9747
    %v9749 = vand.u32 %v9748, 4294901760
    %9750 = vmatpush.msra.mxu0 %v9749
    %v9751 = vand.u32 %v5488, 4294901760
    %v9752 = vsub.f32 %v5488, %v9751
    %v9753 = vand.u32 %v9752, 4294901760
    %v9754 = vsub.f32 %v9752, %v9753
    %v9755 = vand.u32 %v9754, 4294901760
    %9756 = vmatpush.msra.mxu0 %v9755
    %v9757 = vand.u32 %v5486, 4294901760
    %v9758 = vsub.f32 %v5486, %v9757
    %v9759 = vand.u32 %v9758, 4294901760
    %v9760 = vsub.f32 %v9758, %v9759
    %v9761 = vand.u32 %v9760, 4294901760
    %9762 = vmatpush.msra.mxu0 %v9761
    %v9763 = vand.u32 %v5484, 4294901760
    %v9764 = vsub.f32 %v5484, %v9763
    %v9765 = vand.u32 %v9764, 4294901760
    %v9766 = vsub.f32 %v9764, %v9765
    %v9767 = vand.u32 %v9766, 4294901760
    %9768 = vmatpush.msra.mxu0 %v9767
    %v9769 = vand.u32 %v5482, 4294901760
    %v9770 = vsub.f32 %v5482, %v9769
    %v9771 = vand.u32 %v9770, 4294901760
    %v9772 = vsub.f32 %v9770, %v9771
    %v9773 = vand.u32 %v9772, 4294901760
    %9774 = vmatpush.msra.mxu0 %v9773
    %v9775 = vand.u32 %v5480, 4294901760
    %v9776 = vsub.f32 %v5480, %v9775
    %v9777 = vand.u32 %v9776, 4294901760
    %v9778 = vsub.f32 %v9776, %v9777
    %v9779 = vand.u32 %v9778, 4294901760
    %9780 = vmatpush.msra.mxu0 %v9779
    %v9781 = vand.u32 %v5478, 4294901760
    %v9782 = vsub.f32 %v5478, %v9781
    %v9783 = vand.u32 %v9782, 4294901760
    %v9784 = vsub.f32 %v9782, %v9783
    %v9785 = vand.u32 %v9784, 4294901760
    %9786 = vmatpush.msra.mxu0 %v9785
    %v9787 = vand.u32 %v5476, 4294901760
    %v9788 = vsub.f32 %v5476, %v9787
    %v9789 = vand.u32 %v9788, 4294901760
    %v9790 = vsub.f32 %v9788, %v9789
    %v9791 = vand.u32 %v9790, 4294901760
    %9792 = vmatpush.msra.mxu0 %v9791
    %v9793 = vand.u32 %v5474, 4294901760
    %v9794 = vsub.f32 %v5474, %v9793
    %v9795 = vand.u32 %v9794, 4294901760
    %v9796 = vsub.f32 %v9794, %v9795
    %v9797 = vand.u32 %v9796, 4294901760
    %9798 = vmatpush.msra.mxu0 %v9797
    %v9799 = vand.u32 %v5472, 4294901760
    %v9800 = vsub.f32 %v5472, %v9799
    %v9801 = vand.u32 %v9800, 4294901760
    %v9802 = vsub.f32 %v9800, %v9801
    %v9803 = vand.u32 %v9802, 4294901760
    %9804 = vmatpush.msra.mxu0 %v9803
    %v9805 = vand.u32 %v5470, 4294901760
    %v9806 = vsub.f32 %v5470, %v9805
    %v9807 = vand.u32 %v9806, 4294901760
    %v9808 = vsub.f32 %v9806, %v9807
    %v9809 = vand.u32 %v9808, 4294901760
    %9810 = vmatpush.msra.mxu0 %v9809
    %v9811 = vand.u32 %v5468, 4294901760
    %v9812 = vsub.f32 %v5468, %v9811
    %v9813 = vand.u32 %v9812, 4294901760
    %v9814 = vsub.f32 %v9812, %v9813
    %v9815 = vand.u32 %v9814, 4294901760
    %9816 = vmatpush.msra.mxu0 %v9815
    %v9817 = vand.u32 %v5466, 4294901760
    %v9818 = vsub.f32 %v5466, %v9817
    %v9819 = vand.u32 %v9818, 4294901760
    %v9820 = vsub.f32 %v9818, %v9819
    %v9821 = vand.u32 %v9820, 4294901760
    %9822 = vmatpush.msra.mxu0 %v9821
    %v9823 = vand.u32 %v5464, 4294901760
    %v9824 = vsub.f32 %v5464, %v9823
    %v9825 = vand.u32 %v9824, 4294901760
    %v9826 = vsub.f32 %v9824, %v9825
    %v9827 = vand.u32 %v9826, 4294901760
    %9828 = vmatpush.msra.mxu0 %v9827
    %v9829 = vand.u32 %v5462, 4294901760
    %v9830 = vsub.f32 %v5462, %v9829
    %v9831 = vand.u32 %v9830, 4294901760
    %v9832 = vsub.f32 %v9830, %v9831
    %v9833 = vand.u32 %v9832, 4294901760
    %9834 = vmatpush.msra.mxu0 %v9833
    %v9835 = vand.u32 %v5460, 4294901760
    %v9836 = vsub.f32 %v5460, %v9835
    %v9837 = vand.u32 %v9836, 4294901760
    %v9838 = vsub.f32 %v9836, %v9837
    %v9839 = vand.u32 %v9838, 4294901760
    %9840 = vmatpush.msra.mxu0 %v9839
    %v9841 = vand.u32 %v5600, 4294901760
    %9842 = vmatmul.f32.gmra.mxu0 %v9841
    %v9843 = vpop.f32.mrf.mxu0
    %v9844 = vadd.f32 %v9743, %v9843
    %9845 = vdwg.mxu0
    %v9846 = vand.u32 %v5490, 4294901760
    %v9847 = vsub.f32 %v5490, %v9846
    %9848 = vmatpush.msra.mxu0 %v9847
    %v9849 = vand.u32 %v5488, 4294901760
    %v9850 = vsub.f32 %v5488, %v9849
    %9851 = vmatpush.msra.mxu0 %v9850
    %v9852 = vand.u32 %v5486, 4294901760
    %v9853 = vsub.f32 %v5486, %v9852
    %9854 = vmatpush.msra.mxu0 %v9853
    %v9855 = vand.u32 %v5484, 4294901760
    %v9856 = vsub.f32 %v5484, %v9855
    %9857 = vmatpush.msra.mxu0 %v9856
    %v9858 = vand.u32 %v5482, 4294901760
    %v9859 = vsub.f32 %v5482, %v9858
    %9860 = vmatpush.msra.mxu0 %v9859
    %v9861 = vand.u32 %v5480, 4294901760
    %v9862 = vsub.f32 %v5480, %v9861
    %9863 = vmatpush.msra.mxu0 %v9862
    %v9864 = vand.u32 %v5478, 4294901760
    %v9865 = vsub.f32 %v5478, %v9864
    %9866 = vmatpush.msra.mxu0 %v9865
    %v9867 = vand.u32 %v5476, 4294901760
    %v9868 = vsub.f32 %v5476, %v9867
    %9869 = vmatpush.msra.mxu0 %v9868
    %v9870 = vand.u32 %v5474, 4294901760
    %v9871 = vsub.f32 %v5474, %v9870
    %9872 = vmatpush.msra.mxu0 %v9871
    %v9873 = vand.u32 %v5472, 4294901760
    %v9874 = vsub.f32 %v5472, %v9873
    %9875 = vmatpush.msra.mxu0 %v9874
    %v9876 = vand.u32 %v5470, 4294901760
    %v9877 = vsub.f32 %v5470, %v9876
    %9878 = vmatpush.msra.mxu0 %v9877
    %v9879 = vand.u32 %v5468, 4294901760
    %v9880 = vsub.f32 %v5468, %v9879
    %9881 = vmatpush.msra.mxu0 %v9880
    %v9882 = vand.u32 %v5466, 4294901760
    %v9883 = vsub.f32 %v5466, %v9882
    %9884 = vmatpush.msra.mxu0 %v9883
    %v9885 = vand.u32 %v5464, 4294901760
    %v9886 = vsub.f32 %v5464, %v9885
    %9887 = vmatpush.msra.mxu0 %v9886
    %v9888 = vand.u32 %v5462, 4294901760
    %v9889 = vsub.f32 %v5462, %v9888
    %9890 = vmatpush.msra.mxu0 %v9889
    %v9891 = vand.u32 %v5460, 4294901760
    %v9892 = vsub.f32 %v5460, %v9891
    %9893 = vmatpush.msra.mxu0 %v9892
    %v9894 = vand.u32 %v5600, 4294901760
    %v9895 = vsub.f32 %v5600, %v9894
    %9896 = vmatmul.f32.gmra.mxu0 %v9895
    %v9897 = vpop.f32.mrf.mxu0
    %v9898 = vadd.f32 %v9844, %v9897
    %9899 = vdwg.mxu0
    %v9900 = vand.u32 %v5490, 4294901760
    %9901 = vmatpush.msra.mxu0 %v9900
    %v9902 = vand.u32 %v5488, 4294901760
    %9903 = vmatpush.msra.mxu0 %v9902
    %v9904 = vand.u32 %v5486, 4294901760
    %9905 = vmatpush.msra.mxu0 %v9904
    %v9906 = vand.u32 %v5484, 4294901760
    %9907 = vmatpush.msra.mxu0 %v9906
    %v9908 = vand.u32 %v5482, 4294901760
    %9909 = vmatpush.msra.mxu0 %v9908
    %v9910 = vand.u32 %v5480, 4294901760
    %9911 = vmatpush.msra.mxu0 %v9910
    %v9912 = vand.u32 %v5478, 4294901760
    %9913 = vmatpush.msra.mxu0 %v9912
    %v9914 = vand.u32 %v5476, 4294901760
    %9915 = vmatpush.msra.mxu0 %v9914
    %v9916 = vand.u32 %v5474, 4294901760
    %9917 = vmatpush.msra.mxu0 %v9916
    %v9918 = vand.u32 %v5472, 4294901760
    %9919 = vmatpush.msra.mxu0 %v9918
    %v9920 = vand.u32 %v5470, 4294901760
    %9921 = vmatpush.msra.mxu0 %v9920
    %v9922 = vand.u32 %v5468, 4294901760
    %9923 = vmatpush.msra.mxu0 %v9922
    %v9924 = vand.u32 %v5466, 4294901760
    %9925 = vmatpush.msra.mxu0 %v9924
    %v9926 = vand.u32 %v5464, 4294901760
    %9927 = vmatpush.msra.mxu0 %v9926
    %v9928 = vand.u32 %v5462, 4294901760
    %9929 = vmatpush.msra.mxu0 %v9928
    %v9930 = vand.u32 %v5460, 4294901760
    %9931 = vmatpush.msra.mxu0 %v9930
    %v9932 = vand.u32 %v5600, 4294901760
    %v9933 = vsub.f32 %v5600, %v9932
    %v9934 = vand.u32 %v9933, 4294901760
    %9935 = vmatmul.f32.gmra.mxu0 %v9934
    %v9936 = vpop.f32.mrf.mxu0
    %v9937 = vadd.f32 %v9898, %v9936
    %9938 = vdwg.mxu0
    %v9939 = vand.u32 %v5490, 4294901760
    %v9940 = vsub.f32 %v5490, %v9939
    %v9941 = vand.u32 %v9940, 4294901760
    %9942 = vmatpush.msra.mxu0 %v9941
    %v9943 = vand.u32 %v5488, 4294901760
    %v9944 = vsub.f32 %v5488, %v9943
    %v9945 = vand.u32 %v9944, 4294901760
    %9946 = vmatpush.msra.mxu0 %v9945
    %v9947 = vand.u32 %v5486, 4294901760
    %v9948 = vsub.f32 %v5486, %v9947
    %v9949 = vand.u32 %v9948, 4294901760
    %9950 = vmatpush.msra.mxu0 %v9949
    %v9951 = vand.u32 %v5484, 4294901760
    %v9952 = vsub.f32 %v5484, %v9951
    %v9953 = vand.u32 %v9952, 4294901760
    %9954 = vmatpush.msra.mxu0 %v9953
    %v9955 = vand.u32 %v5482, 4294901760
    %v9956 = vsub.f32 %v5482, %v9955
    %v9957 = vand.u32 %v9956, 4294901760
    %9958 = vmatpush.msra.mxu0 %v9957
    %v9959 = vand.u32 %v5480, 4294901760
    %v9960 = vsub.f32 %v5480, %v9959
    %v9961 = vand.u32 %v9960, 4294901760
    %9962 = vmatpush.msra.mxu0 %v9961
    %v9963 = vand.u32 %v5478, 4294901760
    %v9964 = vsub.f32 %v5478, %v9963
    %v9965 = vand.u32 %v9964, 4294901760
    %9966 = vmatpush.msra.mxu0 %v9965
    %v9967 = vand.u32 %v5476, 4294901760
    %v9968 = vsub.f32 %v5476, %v9967
    %v9969 = vand.u32 %v9968, 4294901760
    %9970 = vmatpush.msra.mxu0 %v9969
    %v9971 = vand.u32 %v5474, 4294901760
    %v9972 = vsub.f32 %v5474, %v9971
    %v9973 = vand.u32 %v9972, 4294901760
    %9974 = vmatpush.msra.mxu0 %v9973
    %v9975 = vand.u32 %v5472, 4294901760
    %v9976 = vsub.f32 %v5472, %v9975
    %v9977 = vand.u32 %v9976, 4294901760
    %9978 = vmatpush.msra.mxu0 %v9977
    %v9979 = vand.u32 %v5470, 4294901760
    %v9980 = vsub.f32 %v5470, %v9979
    %v9981 = vand.u32 %v9980, 4294901760
    %9982 = vmatpush.msra.mxu0 %v9981
    %v9983 = vand.u32 %v5468, 4294901760
    %v9984 = vsub.f32 %v5468, %v9983
    %v9985 = vand.u32 %v9984, 4294901760
    %9986 = vmatpush.msra.mxu0 %v9985
    %v9987 = vand.u32 %v5466, 4294901760
    %v9988 = vsub.f32 %v5466, %v9987
    %v9989 = vand.u32 %v9988, 4294901760
    %9990 = vmatpush.msra.mxu0 %v9989
    %v9991 = vand.u32 %v5464, 4294901760
    %v9992 = vsub.f32 %v5464, %v9991
    %v9993 = vand.u32 %v9992, 4294901760
    %9994 = vmatpush.msra.mxu0 %v9993
    %v9995 = vand.u32 %v5462, 4294901760
    %v9996 = vsub.f32 %v5462, %v9995
    %v9997 = vand.u32 %v9996, 4294901760
    %9998 = vmatpush.msra.mxu0 %v9997
    %v9999 = vand.u32 %v5460, 4294901760
    %v10000 = vsub.f32 %v5460, %v9999
    %v10001 = vand.u32 %v10000, 4294901760
    %10002 = vmatpush.msra.mxu0 %v10001
    %v10003 = vand.u32 %v5600, 4294901760
    %10004 = vmatmul.f32.gmra.mxu0 %v10003
    %v10005 = vpop.f32.mrf.mxu0
    %v10006 = vadd.f32 %v9937, %v10005
    %10007 = vdwg.mxu0
    %v10008 = vand.u32 %v5490, 4294901760
    %10009 = vmatpush.msra.mxu0 %v10008
    %v10010 = vand.u32 %v5488, 4294901760
    %10011 = vmatpush.msra.mxu0 %v10010
    %v10012 = vand.u32 %v5486, 4294901760
    %10013 = vmatpush.msra.mxu0 %v10012
    %v10014 = vand.u32 %v5484, 4294901760
    %10015 = vmatpush.msra.mxu0 %v10014
    %v10016 = vand.u32 %v5482, 4294901760
    %10017 = vmatpush.msra.mxu0 %v10016
    %v10018 = vand.u32 %v5480, 4294901760
    %10019 = vmatpush.msra.mxu0 %v10018
    %v10020 = vand.u32 %v5478, 4294901760
    %10021 = vmatpush.msra.mxu0 %v10020
    %v10022 = vand.u32 %v5476, 4294901760
    %10023 = vmatpush.msra.mxu0 %v10022
    %v10024 = vand.u32 %v5474, 4294901760
    %10025 = vmatpush.msra.mxu0 %v10024
    %v10026 = vand.u32 %v5472, 4294901760
    %10027 = vmatpush.msra.mxu0 %v10026
    %v10028 = vand.u32 %v5470, 4294901760
    %10029 = vmatpush.msra.mxu0 %v10028
    %v10030 = vand.u32 %v5468, 4294901760
    %10031 = vmatpush.msra.mxu0 %v10030
    %v10032 = vand.u32 %v5466, 4294901760
    %10033 = vmatpush.msra.mxu0 %v10032
    %v10034 = vand.u32 %v5464, 4294901760
    %10035 = vmatpush.msra.mxu0 %v10034
    %v10036 = vand.u32 %v5462, 4294901760
    %10037 = vmatpush.msra.mxu0 %v10036
    %v10038 = vand.u32 %v5460, 4294901760
    %10039 = vmatpush.msra.mxu0 %v10038
    %v10040 = vand.u32 %v5600, 4294901760
    %10041 = vmatmul.f32.gmra.mxu0 %v10040
    %v10042 = vpop.f32.mrf.mxu0
    %v10043 = vadd.f32 %v10006, %v10042
    %10044 = vdwg.mxu0
    %v10045 = vand.u32 %v5522, 4294901760
    %10046 = vmatpush.msra.mxu0 %v10045
    %v10047 = vand.u32 %v5520, 4294901760
    %10048 = vmatpush.msra.mxu0 %v10047
    %v10049 = vand.u32 %v5518, 4294901760
    %10050 = vmatpush.msra.mxu0 %v10049
    %v10051 = vand.u32 %v5516, 4294901760
    %10052 = vmatpush.msra.mxu0 %v10051
    %v10053 = vand.u32 %v5514, 4294901760
    %10054 = vmatpush.msra.mxu0 %v10053
    %v10055 = vand.u32 %v5512, 4294901760
    %10056 = vmatpush.msra.mxu0 %v10055
    %v10057 = vand.u32 %v5510, 4294901760
    %10058 = vmatpush.msra.mxu0 %v10057
    %v10059 = vand.u32 %v5508, 4294901760
    %10060 = vmatpush.msra.mxu0 %v10059
    %v10061 = vand.u32 %v5506, 4294901760
    %10062 = vmatpush.msra.mxu0 %v10061
    %v10063 = vand.u32 %v5504, 4294901760
    %10064 = vmatpush.msra.mxu0 %v10063
    %v10065 = vand.u32 %v5502, 4294901760
    %10066 = vmatpush.msra.mxu0 %v10065
    %v10067 = vand.u32 %v5500, 4294901760
    %10068 = vmatpush.msra.mxu0 %v10067
    %v10069 = vand.u32 %v5498, 4294901760
    %10070 = vmatpush.msra.mxu0 %v10069
    %v10071 = vand.u32 %v5496, 4294901760
    %10072 = vmatpush.msra.mxu0 %v10071
    %v10073 = vand.u32 %v5494, 4294901760
    %10074 = vmatpush.msra.mxu0 %v10073
    %v10075 = vand.u32 %v5492, 4294901760
    %10076 = vmatpush.msra.mxu0 %v10075
    %v10077 = vand.u32 %v5601, 4294901760
    %v10078 = vsub.f32 %v5601, %v10077
    %v10079 = vand.u32 %v10078, 4294901760
    %v10080 = vsub.f32 %v10078, %v10079
    %v10081 = vand.u32 %v10080, 4294901760
    %10082 = vmatmul.f32.gmra.mxu0 %v10081
    %v10083 = vpop.f32.mrf.mxu0
    %v10084 = vadd.f32 %v10043, %v10083
    %10085 = vdwg.mxu0
    %v10086 = vand.u32 %v5522, 4294901760
    %v10087 = vsub.f32 %v5522, %v10086
    %v10088 = vand.u32 %v10087, 4294901760
    %v10089 = vsub.f32 %v10087, %v10088
    %v10090 = vand.u32 %v10089, 4294901760
    %10091 = vmatpush.msra.mxu0 %v10090
    %v10092 = vand.u32 %v5520, 4294901760
    %v10093 = vsub.f32 %v5520, %v10092
    %v10094 = vand.u32 %v10093, 4294901760
    %v10095 = vsub.f32 %v10093, %v10094
    %v10096 = vand.u32 %v10095, 4294901760
    %10097 = vmatpush.msra.mxu0 %v10096
    %v10098 = vand.u32 %v5518, 4294901760
    %v10099 = vsub.f32 %v5518, %v10098
    %v10100 = vand.u32 %v10099, 4294901760
    %v10101 = vsub.f32 %v10099, %v10100
    %v10102 = vand.u32 %v10101, 4294901760
    %10103 = vmatpush.msra.mxu0 %v10102
    %v10104 = vand.u32 %v5516, 4294901760
    %v10105 = vsub.f32 %v5516, %v10104
    %v10106 = vand.u32 %v10105, 4294901760
    %v10107 = vsub.f32 %v10105, %v10106
    %v10108 = vand.u32 %v10107, 4294901760
    %10109 = vmatpush.msra.mxu0 %v10108
    %v10110 = vand.u32 %v5514, 4294901760
    %v10111 = vsub.f32 %v5514, %v10110
    %v10112 = vand.u32 %v10111, 4294901760
    %v10113 = vsub.f32 %v10111, %v10112
    %v10114 = vand.u32 %v10113, 4294901760
    %10115 = vmatpush.msra.mxu0 %v10114
    %v10116 = vand.u32 %v5512, 4294901760
    %v10117 = vsub.f32 %v5512, %v10116
    %v10118 = vand.u32 %v10117, 4294901760
    %v10119 = vsub.f32 %v10117, %v10118
    %v10120 = vand.u32 %v10119, 4294901760
    %10121 = vmatpush.msra.mxu0 %v10120
    %v10122 = vand.u32 %v5510, 4294901760
    %v10123 = vsub.f32 %v5510, %v10122
    %v10124 = vand.u32 %v10123, 4294901760
    %v10125 = vsub.f32 %v10123, %v10124
    %v10126 = vand.u32 %v10125, 4294901760
    %10127 = vmatpush.msra.mxu0 %v10126
    %v10128 = vand.u32 %v5508, 4294901760
    %v10129 = vsub.f32 %v5508, %v10128
    %v10130 = vand.u32 %v10129, 4294901760
    %v10131 = vsub.f32 %v10129, %v10130
    %v10132 = vand.u32 %v10131, 4294901760
    %10133 = vmatpush.msra.mxu0 %v10132
    %v10134 = vand.u32 %v5506, 4294901760
    %v10135 = vsub.f32 %v5506, %v10134
    %v10136 = vand.u32 %v10135, 4294901760
    %v10137 = vsub.f32 %v10135, %v10136
    %v10138 = vand.u32 %v10137, 4294901760
    %10139 = vmatpush.msra.mxu0 %v10138
    %v10140 = vand.u32 %v5504, 4294901760
    %v10141 = vsub.f32 %v5504, %v10140
    %v10142 = vand.u32 %v10141, 4294901760
    %v10143 = vsub.f32 %v10141, %v10142
    %v10144 = vand.u32 %v10143, 4294901760
    %10145 = vmatpush.msra.mxu0 %v10144
    %v10146 = vand.u32 %v5502, 4294901760
    %v10147 = vsub.f32 %v5502, %v10146
    %v10148 = vand.u32 %v10147, 4294901760
    %v10149 = vsub.f32 %v10147, %v10148
    %v10150 = vand.u32 %v10149, 4294901760
    %10151 = vmatpush.msra.mxu0 %v10150
    %v10152 = vand.u32 %v5500, 4294901760
    %v10153 = vsub.f32 %v5500, %v10152
    %v10154 = vand.u32 %v10153, 4294901760
    %v10155 = vsub.f32 %v10153, %v10154
    %v10156 = vand.u32 %v10155, 4294901760
    %10157 = vmatpush.msra.mxu0 %v10156
    %v10158 = vand.u32 %v5498, 4294901760
    %v10159 = vsub.f32 %v5498, %v10158
    %v10160 = vand.u32 %v10159, 4294901760
    %v10161 = vsub.f32 %v10159, %v10160
    %v10162 = vand.u32 %v10161, 4294901760
    %10163 = vmatpush.msra.mxu0 %v10162
    %v10164 = vand.u32 %v5496, 4294901760
    %v10165 = vsub.f32 %v5496, %v10164
    %v10166 = vand.u32 %v10165, 4294901760
    %v10167 = vsub.f32 %v10165, %v10166
    %v10168 = vand.u32 %v10167, 4294901760
    %10169 = vmatpush.msra.mxu0 %v10168
    %v10170 = vand.u32 %v5494, 4294901760
    %v10171 = vsub.f32 %v5494, %v10170
    %v10172 = vand.u32 %v10171, 4294901760
    %v10173 = vsub.f32 %v10171, %v10172
    %v10174 = vand.u32 %v10173, 4294901760
    %10175 = vmatpush.msra.mxu0 %v10174
    %v10176 = vand.u32 %v5492, 4294901760
    %v10177 = vsub.f32 %v5492, %v10176
    %v10178 = vand.u32 %v10177, 4294901760
    %v10179 = vsub.f32 %v10177, %v10178
    %v10180 = vand.u32 %v10179, 4294901760
    %10181 = vmatpush.msra.mxu0 %v10180
    %v10182 = vand.u32 %v5601, 4294901760
    %10183 = vmatmul.f32.gmra.mxu0 %v10182
    %v10184 = vpop.f32.mrf.mxu0
    %v10185 = vadd.f32 %v10084, %v10184
    %10186 = vdwg.mxu0
    %v10187 = vand.u32 %v5522, 4294901760
    %v10188 = vsub.f32 %v5522, %v10187
    %10189 = vmatpush.msra.mxu0 %v10188
    %v10190 = vand.u32 %v5520, 4294901760
    %v10191 = vsub.f32 %v5520, %v10190
    %10192 = vmatpush.msra.mxu0 %v10191
    %v10193 = vand.u32 %v5518, 4294901760
    %v10194 = vsub.f32 %v5518, %v10193
    %10195 = vmatpush.msra.mxu0 %v10194
    %v10196 = vand.u32 %v5516, 4294901760
    %v10197 = vsub.f32 %v5516, %v10196
    %10198 = vmatpush.msra.mxu0 %v10197
    %v10199 = vand.u32 %v5514, 4294901760
    %v10200 = vsub.f32 %v5514, %v10199
    %10201 = vmatpush.msra.mxu0 %v10200
    %v10202 = vand.u32 %v5512, 4294901760
    %v10203 = vsub.f32 %v5512, %v10202
    %10204 = vmatpush.msra.mxu0 %v10203
    %v10205 = vand.u32 %v5510, 4294901760
    %v10206 = vsub.f32 %v5510, %v10205
    %10207 = vmatpush.msra.mxu0 %v10206
    %v10208 = vand.u32 %v5508, 4294901760
    %v10209 = vsub.f32 %v5508, %v10208
    %10210 = vmatpush.msra.mxu0 %v10209
    %v10211 = vand.u32 %v5506, 4294901760
    %v10212 = vsub.f32 %v5506, %v10211
    %10213 = vmatpush.msra.mxu0 %v10212
    %v10214 = vand.u32 %v5504, 4294901760
    %v10215 = vsub.f32 %v5504, %v10214
    %10216 = vmatpush.msra.mxu0 %v10215
    %v10217 = vand.u32 %v5502, 4294901760
    %v10218 = vsub.f32 %v5502, %v10217
    %10219 = vmatpush.msra.mxu0 %v10218
    %v10220 = vand.u32 %v5500, 4294901760
    %v10221 = vsub.f32 %v5500, %v10220
    %10222 = vmatpush.msra.mxu0 %v10221
    %v10223 = vand.u32 %v5498, 4294901760
    %v10224 = vsub.f32 %v5498, %v10223
    %10225 = vmatpush.msra.mxu0 %v10224
    %v10226 = vand.u32 %v5496, 4294901760
    %v10227 = vsub.f32 %v5496, %v10226
    %10228 = vmatpush.msra.mxu0 %v10227
    %v10229 = vand.u32 %v5494, 4294901760
    %v10230 = vsub.f32 %v5494, %v10229
    %10231 = vmatpush.msra.mxu0 %v10230
    %v10232 = vand.u32 %v5492, 4294901760
    %v10233 = vsub.f32 %v5492, %v10232
    %10234 = vmatpush.msra.mxu0 %v10233
    %v10235 = vand.u32 %v5601, 4294901760
    %v10236 = vsub.f32 %v5601, %v10235
    %10237 = vmatmul.f32.gmra.mxu0 %v10236
    %v10238 = vpop.f32.mrf.mxu0
    %v10239 = vadd.f32 %v10185, %v10238
    %10240 = vdwg.mxu0
    %v10241 = vand.u32 %v5522, 4294901760
    %10242 = vmatpush.msra.mxu0 %v10241
    %v10243 = vand.u32 %v5520, 4294901760
    %10244 = vmatpush.msra.mxu0 %v10243
    %v10245 = vand.u32 %v5518, 4294901760
    %10246 = vmatpush.msra.mxu0 %v10245
    %v10247 = vand.u32 %v5516, 4294901760
    %10248 = vmatpush.msra.mxu0 %v10247
    %v10249 = vand.u32 %v5514, 4294901760
    %10250 = vmatpush.msra.mxu0 %v10249
    %v10251 = vand.u32 %v5512, 4294901760
    %10252 = vmatpush.msra.mxu0 %v10251
    %v10253 = vand.u32 %v5510, 4294901760
    %10254 = vmatpush.msra.mxu0 %v10253
    %v10255 = vand.u32 %v5508, 4294901760
    %10256 = vmatpush.msra.mxu0 %v10255
    %v10257 = vand.u32 %v5506, 4294901760
    %10258 = vmatpush.msra.mxu0 %v10257
    %v10259 = vand.u32 %v5504, 4294901760
    %10260 = vmatpush.msra.mxu0 %v10259
    %v10261 = vand.u32 %v5502, 4294901760
    %10262 = vmatpush.msra.mxu0 %v10261
    %v10263 = vand.u32 %v5500, 4294901760
    %10264 = vmatpush.msra.mxu0 %v10263
    %v10265 = vand.u32 %v5498, 4294901760
    %10266 = vmatpush.msra.mxu0 %v10265
    %v10267 = vand.u32 %v5496, 4294901760
    %10268 = vmatpush.msra.mxu0 %v10267
    %v10269 = vand.u32 %v5494, 4294901760
    %10270 = vmatpush.msra.mxu0 %v10269
    %v10271 = vand.u32 %v5492, 4294901760
    %10272 = vmatpush.msra.mxu0 %v10271
    %v10273 = vand.u32 %v5601, 4294901760
    %v10274 = vsub.f32 %v5601, %v10273
    %v10275 = vand.u32 %v10274, 4294901760
    %10276 = vmatmul.f32.gmra.mxu0 %v10275
    %v10277 = vpop.f32.mrf.mxu0
    %v10278 = vadd.f32 %v10239, %v10277
    %10279 = vdwg.mxu0
    %v10280 = vand.u32 %v5522, 4294901760
    %v10281 = vsub.f32 %v5522, %v10280
    %v10282 = vand.u32 %v10281, 4294901760
    %10283 = vmatpush.msra.mxu0 %v10282
    %v10284 = vand.u32 %v5520, 4294901760
    %v10285 = vsub.f32 %v5520, %v10284
    %v10286 = vand.u32 %v10285, 4294901760
    %10287 = vmatpush.msra.mxu0 %v10286
    %v10288 = vand.u32 %v5518, 4294901760
    %v10289 = vsub.f32 %v5518, %v10288
    %v10290 = vand.u32 %v10289, 4294901760
    %10291 = vmatpush.msra.mxu0 %v10290
    %v10292 = vand.u32 %v5516, 4294901760
    %v10293 = vsub.f32 %v5516, %v10292
    %v10294 = vand.u32 %v10293, 4294901760
    %10295 = vmatpush.msra.mxu0 %v10294
    %v10296 = vand.u32 %v5514, 4294901760
    %v10297 = vsub.f32 %v5514, %v10296
    %v10298 = vand.u32 %v10297, 4294901760
    %10299 = vmatpush.msra.mxu0 %v10298
    %v10300 = vand.u32 %v5512, 4294901760
    %v10301 = vsub.f32 %v5512, %v10300
    %v10302 = vand.u32 %v10301, 4294901760
    %10303 = vmatpush.msra.mxu0 %v10302
    %v10304 = vand.u32 %v5510, 4294901760
    %v10305 = vsub.f32 %v5510, %v10304
    %v10306 = vand.u32 %v10305, 4294901760
    %10307 = vmatpush.msra.mxu0 %v10306
    %v10308 = vand.u32 %v5508, 4294901760
    %v10309 = vsub.f32 %v5508, %v10308
    %v10310 = vand.u32 %v10309, 4294901760
    %10311 = vmatpush.msra.mxu0 %v10310
    %v10312 = vand.u32 %v5506, 4294901760
    %v10313 = vsub.f32 %v5506, %v10312
    %v10314 = vand.u32 %v10313, 4294901760
    %10315 = vmatpush.msra.mxu0 %v10314
    %v10316 = vand.u32 %v5504, 4294901760
    %v10317 = vsub.f32 %v5504, %v10316
    %v10318 = vand.u32 %v10317, 4294901760
    %10319 = vmatpush.msra.mxu0 %v10318
    %v10320 = vand.u32 %v5502, 4294901760
    %v10321 = vsub.f32 %v5502, %v10320
    %v10322 = vand.u32 %v10321, 4294901760
    %10323 = vmatpush.msra.mxu0 %v10322
    %v10324 = vand.u32 %v5500, 4294901760
    %v10325 = vsub.f32 %v5500, %v10324
    %v10326 = vand.u32 %v10325, 4294901760
    %10327 = vmatpush.msra.mxu0 %v10326
    %v10328 = vand.u32 %v5498, 4294901760
    %v10329 = vsub.f32 %v5498, %v10328
    %v10330 = vand.u32 %v10329, 4294901760
    %10331 = vmatpush.msra.mxu0 %v10330
    %v10332 = vand.u32 %v5496, 4294901760
    %v10333 = vsub.f32 %v5496, %v10332
    %v10334 = vand.u32 %v10333, 4294901760
    %10335 = vmatpush.msra.mxu0 %v10334
    %v10336 = vand.u32 %v5494, 4294901760
    %v10337 = vsub.f32 %v5494, %v10336
    %v10338 = vand.u32 %v10337, 4294901760
    %10339 = vmatpush.msra.mxu0 %v10338
    %v10340 = vand.u32 %v5492, 4294901760
    %v10341 = vsub.f32 %v5492, %v10340
    %v10342 = vand.u32 %v10341, 4294901760
    %10343 = vmatpush.msra.mxu0 %v10342
    %v10344 = vand.u32 %v5601, 4294901760
    %10345 = vmatmul.f32.gmra.mxu0 %v10344
    %v10346 = vpop.f32.mrf.mxu0
    %v10347 = vadd.f32 %v10278, %v10346
    %10348 = vdwg.mxu0
    %v10349 = vand.u32 %v5522, 4294901760
    %10350 = vmatpush.msra.mxu0 %v10349
    %v10351 = vand.u32 %v5520, 4294901760
    %10352 = vmatpush.msra.mxu0 %v10351
    %v10353 = vand.u32 %v5518, 4294901760
    %10354 = vmatpush.msra.mxu0 %v10353
    %v10355 = vand.u32 %v5516, 4294901760
    %10356 = vmatpush.msra.mxu0 %v10355
    %v10357 = vand.u32 %v5514, 4294901760
    %10358 = vmatpush.msra.mxu0 %v10357
    %v10359 = vand.u32 %v5512, 4294901760
    %10360 = vmatpush.msra.mxu0 %v10359
    %v10361 = vand.u32 %v5510, 4294901760
    %10362 = vmatpush.msra.mxu0 %v10361
    %v10363 = vand.u32 %v5508, 4294901760
    %10364 = vmatpush.msra.mxu0 %v10363
    %v10365 = vand.u32 %v5506, 4294901760
    %10366 = vmatpush.msra.mxu0 %v10365
    %v10367 = vand.u32 %v5504, 4294901760
    %10368 = vmatpush.msra.mxu0 %v10367
    %v10369 = vand.u32 %v5502, 4294901760
    %10370 = vmatpush.msra.mxu0 %v10369
    %v10371 = vand.u32 %v5500, 4294901760
    %10372 = vmatpush.msra.mxu0 %v10371
    %v10373 = vand.u32 %v5498, 4294901760
    %10374 = vmatpush.msra.mxu0 %v10373
    %v10375 = vand.u32 %v5496, 4294901760
    %10376 = vmatpush.msra.mxu0 %v10375
    %v10377 = vand.u32 %v5494, 4294901760
    %10378 = vmatpush.msra.mxu0 %v10377
    %v10379 = vand.u32 %v5492, 4294901760
    %10380 = vmatpush.msra.mxu0 %v10379
    %v10381 = vand.u32 %v5601, 4294901760
    %10382 = vmatmul.f32.gmra.mxu0 %v10381
    %v10383 = vpop.f32.mrf.mxu0
    %v10384 = vadd.f32 %v10347, %v10383
    %10385 = vdwg.mxu0
    %v10386 = vand.u32 %v5554, 4294901760
    %10387 = vmatpush.msra.mxu0 %v10386
    %v10388 = vand.u32 %v5552, 4294901760
    %10389 = vmatpush.msra.mxu0 %v10388
    %v10390 = vand.u32 %v5550, 4294901760
    %10391 = vmatpush.msra.mxu0 %v10390
    %v10392 = vand.u32 %v5548, 4294901760
    %10393 = vmatpush.msra.mxu0 %v10392
    %v10394 = vand.u32 %v5546, 4294901760
    %10395 = vmatpush.msra.mxu0 %v10394
    %v10396 = vand.u32 %v5544, 4294901760
    %10397 = vmatpush.msra.mxu0 %v10396
    %v10398 = vand.u32 %v5542, 4294901760
    %10399 = vmatpush.msra.mxu0 %v10398
    %v10400 = vand.u32 %v5540, 4294901760
    %10401 = vmatpush.msra.mxu0 %v10400
    %v10402 = vand.u32 %v5538, 4294901760
    %10403 = vmatpush.msra.mxu0 %v10402
    %v10404 = vand.u32 %v5536, 4294901760
    %10405 = vmatpush.msra.mxu0 %v10404
    %v10406 = vand.u32 %v5534, 4294901760
    %10407 = vmatpush.msra.mxu0 %v10406
    %v10408 = vand.u32 %v5532, 4294901760
    %10409 = vmatpush.msra.mxu0 %v10408
    %v10410 = vand.u32 %v5530, 4294901760
    %10411 = vmatpush.msra.mxu0 %v10410
    %v10412 = vand.u32 %v5528, 4294901760
    %10413 = vmatpush.msra.mxu0 %v10412
    %v10414 = vand.u32 %v5526, 4294901760
    %10415 = vmatpush.msra.mxu0 %v10414
    %v10416 = vand.u32 %v5524, 4294901760
    %10417 = vmatpush.msra.mxu0 %v10416
    %v10418 = vand.u32 %v5602, 4294901760
    %v10419 = vsub.f32 %v5602, %v10418
    %v10420 = vand.u32 %v10419, 4294901760
    %v10421 = vsub.f32 %v10419, %v10420
    %v10422 = vand.u32 %v10421, 4294901760
    %10423 = vmatmul.f32.gmra.mxu0 %v10422
    %v10424 = vpop.f32.mrf.mxu0
    %v10425 = vadd.f32 %v10384, %v10424
    %10426 = vdwg.mxu0
    %v10427 = vand.u32 %v5554, 4294901760
    %v10428 = vsub.f32 %v5554, %v10427
    %v10429 = vand.u32 %v10428, 4294901760
    %v10430 = vsub.f32 %v10428, %v10429
    %v10431 = vand.u32 %v10430, 4294901760
    %10432 = vmatpush.msra.mxu0 %v10431
    %v10433 = vand.u32 %v5552, 4294901760
    %v10434 = vsub.f32 %v5552, %v10433
    %v10435 = vand.u32 %v10434, 4294901760
    %v10436 = vsub.f32 %v10434, %v10435
    %v10437 = vand.u32 %v10436, 4294901760
    %10438 = vmatpush.msra.mxu0 %v10437
    %v10439 = vand.u32 %v5550, 4294901760
    %v10440 = vsub.f32 %v5550, %v10439
    %v10441 = vand.u32 %v10440, 4294901760
    %v10442 = vsub.f32 %v10440, %v10441
    %v10443 = vand.u32 %v10442, 4294901760
    %10444 = vmatpush.msra.mxu0 %v10443
    %v10445 = vand.u32 %v5548, 4294901760
    %v10446 = vsub.f32 %v5548, %v10445
    %v10447 = vand.u32 %v10446, 4294901760
    %v10448 = vsub.f32 %v10446, %v10447
    %v10449 = vand.u32 %v10448, 4294901760
    %10450 = vmatpush.msra.mxu0 %v10449
    %v10451 = vand.u32 %v5546, 4294901760
    %v10452 = vsub.f32 %v5546, %v10451
    %v10453 = vand.u32 %v10452, 4294901760
    %v10454 = vsub.f32 %v10452, %v10453
    %v10455 = vand.u32 %v10454, 4294901760
    %10456 = vmatpush.msra.mxu0 %v10455
    %v10457 = vand.u32 %v5544, 4294901760
    %v10458 = vsub.f32 %v5544, %v10457
    %v10459 = vand.u32 %v10458, 4294901760
    %v10460 = vsub.f32 %v10458, %v10459
    %v10461 = vand.u32 %v10460, 4294901760
    %10462 = vmatpush.msra.mxu0 %v10461
    %v10463 = vand.u32 %v5542, 4294901760
    %v10464 = vsub.f32 %v5542, %v10463
    %v10465 = vand.u32 %v10464, 4294901760
    %v10466 = vsub.f32 %v10464, %v10465
    %v10467 = vand.u32 %v10466, 4294901760
    %10468 = vmatpush.msra.mxu0 %v10467
    %v10469 = vand.u32 %v5540, 4294901760
    %v10470 = vsub.f32 %v5540, %v10469
    %v10471 = vand.u32 %v10470, 4294901760
    %v10472 = vsub.f32 %v10470, %v10471
    %v10473 = vand.u32 %v10472, 4294901760
    %10474 = vmatpush.msra.mxu0 %v10473
    %v10475 = vand.u32 %v5538, 4294901760
    %v10476 = vsub.f32 %v5538, %v10475
    %v10477 = vand.u32 %v10476, 4294901760
    %v10478 = vsub.f32 %v10476, %v10477
    %v10479 = vand.u32 %v10478, 4294901760
    %10480 = vmatpush.msra.mxu0 %v10479
    %v10481 = vand.u32 %v5536, 4294901760
    %v10482 = vsub.f32 %v5536, %v10481
    %v10483 = vand.u32 %v10482, 4294901760
    %v10484 = vsub.f32 %v10482, %v10483
    %v10485 = vand.u32 %v10484, 4294901760
    %10486 = vmatpush.msra.mxu0 %v10485
    %v10487 = vand.u32 %v5534, 4294901760
    %v10488 = vsub.f32 %v5534, %v10487
    %v10489 = vand.u32 %v10488, 4294901760
    %v10490 = vsub.f32 %v10488, %v10489
    %v10491 = vand.u32 %v10490, 4294901760
    %10492 = vmatpush.msra.mxu0 %v10491
    %v10493 = vand.u32 %v5532, 4294901760
    %v10494 = vsub.f32 %v5532, %v10493
    %v10495 = vand.u32 %v10494, 4294901760
    %v10496 = vsub.f32 %v10494, %v10495
    %v10497 = vand.u32 %v10496, 4294901760
    %10498 = vmatpush.msra.mxu0 %v10497
    %v10499 = vand.u32 %v5530, 4294901760
    %v10500 = vsub.f32 %v5530, %v10499
    %v10501 = vand.u32 %v10500, 4294901760
    %v10502 = vsub.f32 %v10500, %v10501
    %v10503 = vand.u32 %v10502, 4294901760
    %10504 = vmatpush.msra.mxu0 %v10503
    %v10505 = vand.u32 %v5528, 4294901760
    %v10506 = vsub.f32 %v5528, %v10505
    %v10507 = vand.u32 %v10506, 4294901760
    %v10508 = vsub.f32 %v10506, %v10507
    %v10509 = vand.u32 %v10508, 4294901760
    %10510 = vmatpush.msra.mxu0 %v10509
    %v10511 = vand.u32 %v5526, 4294901760
    %v10512 = vsub.f32 %v5526, %v10511
    %v10513 = vand.u32 %v10512, 4294901760
    %v10514 = vsub.f32 %v10512, %v10513
    %v10515 = vand.u32 %v10514, 4294901760
    %10516 = vmatpush.msra.mxu0 %v10515
    %v10517 = vand.u32 %v5524, 4294901760
    %v10518 = vsub.f32 %v5524, %v10517
    %v10519 = vand.u32 %v10518, 4294901760
    %v10520 = vsub.f32 %v10518, %v10519
    %v10521 = vand.u32 %v10520, 4294901760
    %10522 = vmatpush.msra.mxu0 %v10521
    %v10523 = vand.u32 %v5602, 4294901760
    %10524 = vmatmul.f32.gmra.mxu0 %v10523
    %v10525 = vpop.f32.mrf.mxu0
    %v10526 = vadd.f32 %v10425, %v10525
    %10527 = vdwg.mxu0
    %v10528 = vand.u32 %v5554, 4294901760
    %v10529 = vsub.f32 %v5554, %v10528
    %10530 = vmatpush.msra.mxu0 %v10529
    %v10531 = vand.u32 %v5552, 4294901760
    %v10532 = vsub.f32 %v5552, %v10531
    %10533 = vmatpush.msra.mxu0 %v10532
    %v10534 = vand.u32 %v5550, 4294901760
    %v10535 = vsub.f32 %v5550, %v10534
    %10536 = vmatpush.msra.mxu0 %v10535
    %v10537 = vand.u32 %v5548, 4294901760
    %v10538 = vsub.f32 %v5548, %v10537
    %10539 = vmatpush.msra.mxu0 %v10538
    %v10540 = vand.u32 %v5546, 4294901760
    %v10541 = vsub.f32 %v5546, %v10540
    %10542 = vmatpush.msra.mxu0 %v10541
    %v10543 = vand.u32 %v5544, 4294901760
    %v10544 = vsub.f32 %v5544, %v10543
    %10545 = vmatpush.msra.mxu0 %v10544
    %v10546 = vand.u32 %v5542, 4294901760
    %v10547 = vsub.f32 %v5542, %v10546
    %10548 = vmatpush.msra.mxu0 %v10547
    %v10549 = vand.u32 %v5540, 4294901760
    %v10550 = vsub.f32 %v5540, %v10549
    %10551 = vmatpush.msra.mxu0 %v10550
    %v10552 = vand.u32 %v5538, 4294901760
    %v10553 = vsub.f32 %v5538, %v10552
    %10554 = vmatpush.msra.mxu0 %v10553
    %v10555 = vand.u32 %v5536, 4294901760
    %v10556 = vsub.f32 %v5536, %v10555
    %10557 = vmatpush.msra.mxu0 %v10556
    %v10558 = vand.u32 %v5534, 4294901760
    %v10559 = vsub.f32 %v5534, %v10558
    %10560 = vmatpush.msra.mxu0 %v10559
    %v10561 = vand.u32 %v5532, 4294901760
    %v10562 = vsub.f32 %v5532, %v10561
    %10563 = vmatpush.msra.mxu0 %v10562
    %v10564 = vand.u32 %v5530, 4294901760
    %v10565 = vsub.f32 %v5530, %v10564
    %10566 = vmatpush.msra.mxu0 %v10565
    %v10567 = vand.u32 %v5528, 4294901760
    %v10568 = vsub.f32 %v5528, %v10567
    %10569 = vmatpush.msra.mxu0 %v10568
    %v10570 = vand.u32 %v5526, 4294901760
    %v10571 = vsub.f32 %v5526, %v10570
    %10572 = vmatpush.msra.mxu0 %v10571
    %v10573 = vand.u32 %v5524, 4294901760
    %v10574 = vsub.f32 %v5524, %v10573
    %10575 = vmatpush.msra.mxu0 %v10574
    %v10576 = vand.u32 %v5602, 4294901760
    %v10577 = vsub.f32 %v5602, %v10576
    %10578 = vmatmul.f32.gmra.mxu0 %v10577
    %v10579 = vpop.f32.mrf.mxu0
    %v10580 = vadd.f32 %v10526, %v10579
    %10581 = vdwg.mxu0
    %v10582 = vand.u32 %v5554, 4294901760
    %10583 = vmatpush.msra.mxu0 %v10582
    %v10584 = vand.u32 %v5552, 4294901760
    %10585 = vmatpush.msra.mxu0 %v10584
    %v10586 = vand.u32 %v5550, 4294901760
    %10587 = vmatpush.msra.mxu0 %v10586
    %v10588 = vand.u32 %v5548, 4294901760
    %10589 = vmatpush.msra.mxu0 %v10588
    %v10590 = vand.u32 %v5546, 4294901760
    %10591 = vmatpush.msra.mxu0 %v10590
    %v10592 = vand.u32 %v5544, 4294901760
    %10593 = vmatpush.msra.mxu0 %v10592
    %v10594 = vand.u32 %v5542, 4294901760
    %10595 = vmatpush.msra.mxu0 %v10594
    %v10596 = vand.u32 %v5540, 4294901760
    %10597 = vmatpush.msra.mxu0 %v10596
    %v10598 = vand.u32 %v5538, 4294901760
    %10599 = vmatpush.msra.mxu0 %v10598
    %v10600 = vand.u32 %v5536, 4294901760
    %10601 = vmatpush.msra.mxu0 %v10600
    %v10602 = vand.u32 %v5534, 4294901760
    %10603 = vmatpush.msra.mxu0 %v10602
    %v10604 = vand.u32 %v5532, 4294901760
    %10605 = vmatpush.msra.mxu0 %v10604
    %v10606 = vand.u32 %v5530, 4294901760
    %10607 = vmatpush.msra.mxu0 %v10606
    %v10608 = vand.u32 %v5528, 4294901760
    %10609 = vmatpush.msra.mxu0 %v10608
    %v10610 = vand.u32 %v5526, 4294901760
    %10611 = vmatpush.msra.mxu0 %v10610
    %v10612 = vand.u32 %v5524, 4294901760
    %10613 = vmatpush.msra.mxu0 %v10612
    %v10614 = vand.u32 %v5602, 4294901760
    %v10615 = vsub.f32 %v5602, %v10614
    %v10616 = vand.u32 %v10615, 4294901760
    %10617 = vmatmul.f32.gmra.mxu0 %v10616
    %v10618 = vpop.f32.mrf.mxu0
    %v10619 = vadd.f32 %v10580, %v10618
    %10620 = vdwg.mxu0
    %v10621 = vand.u32 %v5554, 4294901760
    %v10622 = vsub.f32 %v5554, %v10621
    %v10623 = vand.u32 %v10622, 4294901760
    %10624 = vmatpush.msra.mxu0 %v10623
    %v10625 = vand.u32 %v5552, 4294901760
    %v10626 = vsub.f32 %v5552, %v10625
    %v10627 = vand.u32 %v10626, 4294901760
    %10628 = vmatpush.msra.mxu0 %v10627
    %v10629 = vand.u32 %v5550, 4294901760
    %v10630 = vsub.f32 %v5550, %v10629
    %v10631 = vand.u32 %v10630, 4294901760
    %10632 = vmatpush.msra.mxu0 %v10631
    %v10633 = vand.u32 %v5548, 4294901760
    %v10634 = vsub.f32 %v5548, %v10633
    %v10635 = vand.u32 %v10634, 4294901760
    %10636 = vmatpush.msra.mxu0 %v10635
    %v10637 = vand.u32 %v5546, 4294901760
    %v10638 = vsub.f32 %v5546, %v10637
    %v10639 = vand.u32 %v10638, 4294901760
    %10640 = vmatpush.msra.mxu0 %v10639
    %v10641 = vand.u32 %v5544, 4294901760
    %v10642 = vsub.f32 %v5544, %v10641
    %v10643 = vand.u32 %v10642, 4294901760
    %10644 = vmatpush.msra.mxu0 %v10643
    %v10645 = vand.u32 %v5542, 4294901760
    %v10646 = vsub.f32 %v5542, %v10645
    %v10647 = vand.u32 %v10646, 4294901760
    %10648 = vmatpush.msra.mxu0 %v10647
    %v10649 = vand.u32 %v5540, 4294901760
    %v10650 = vsub.f32 %v5540, %v10649
    %v10651 = vand.u32 %v10650, 4294901760
    %10652 = vmatpush.msra.mxu0 %v10651
    %v10653 = vand.u32 %v5538, 4294901760
    %v10654 = vsub.f32 %v5538, %v10653
    %v10655 = vand.u32 %v10654, 4294901760
    %10656 = vmatpush.msra.mxu0 %v10655
    %v10657 = vand.u32 %v5536, 4294901760
    %v10658 = vsub.f32 %v5536, %v10657
    %v10659 = vand.u32 %v10658, 4294901760
    %10660 = vmatpush.msra.mxu0 %v10659
    %v10661 = vand.u32 %v5534, 4294901760
    %v10662 = vsub.f32 %v5534, %v10661
    %v10663 = vand.u32 %v10662, 4294901760
    %10664 = vmatpush.msra.mxu0 %v10663
    %v10665 = vand.u32 %v5532, 4294901760
    %v10666 = vsub.f32 %v5532, %v10665
    %v10667 = vand.u32 %v10666, 4294901760
    %10668 = vmatpush.msra.mxu0 %v10667
    %v10669 = vand.u32 %v5530, 4294901760
    %v10670 = vsub.f32 %v5530, %v10669
    %v10671 = vand.u32 %v10670, 4294901760
    %10672 = vmatpush.msra.mxu0 %v10671
    %v10673 = vand.u32 %v5528, 4294901760
    %v10674 = vsub.f32 %v5528, %v10673
    %v10675 = vand.u32 %v10674, 4294901760
    %10676 = vmatpush.msra.mxu0 %v10675
    %v10677 = vand.u32 %v5526, 4294901760
    %v10678 = vsub.f32 %v5526, %v10677
    %v10679 = vand.u32 %v10678, 4294901760
    %10680 = vmatpush.msra.mxu0 %v10679
    %v10681 = vand.u32 %v5524, 4294901760
    %v10682 = vsub.f32 %v5524, %v10681
    %v10683 = vand.u32 %v10682, 4294901760
    %10684 = vmatpush.msra.mxu0 %v10683
    %v10685 = vand.u32 %v5602, 4294901760
    %10686 = vmatmul.f32.gmra.mxu0 %v10685
    %v10687 = vpop.f32.mrf.mxu0
    %v10688 = vadd.f32 %v10619, %v10687
    %10689 = vdwg.mxu0
    %v10690 = vand.u32 %v5554, 4294901760
    %10691 = vmatpush.msra.mxu0 %v10690
    %v10692 = vand.u32 %v5552, 4294901760
    %10693 = vmatpush.msra.mxu0 %v10692
    %v10694 = vand.u32 %v5550, 4294901760
    %10695 = vmatpush.msra.mxu0 %v10694
    %v10696 = vand.u32 %v5548, 4294901760
    %10697 = vmatpush.msra.mxu0 %v10696
    %v10698 = vand.u32 %v5546, 4294901760
    %10699 = vmatpush.msra.mxu0 %v10698
    %v10700 = vand.u32 %v5544, 4294901760
    %10701 = vmatpush.msra.mxu0 %v10700
    %v10702 = vand.u32 %v5542, 4294901760
    %10703 = vmatpush.msra.mxu0 %v10702
    %v10704 = vand.u32 %v5540, 4294901760
    %10705 = vmatpush.msra.mxu0 %v10704
    %v10706 = vand.u32 %v5538, 4294901760
    %10707 = vmatpush.msra.mxu0 %v10706
    %v10708 = vand.u32 %v5536, 4294901760
    %10709 = vmatpush.msra.mxu0 %v10708
    %v10710 = vand.u32 %v5534, 4294901760
    %10711 = vmatpush.msra.mxu0 %v10710
    %v10712 = vand.u32 %v5532, 4294901760
    %10713 = vmatpush.msra.mxu0 %v10712
    %v10714 = vand.u32 %v5530, 4294901760
    %10715 = vmatpush.msra.mxu0 %v10714
    %v10716 = vand.u32 %v5528, 4294901760
    %10717 = vmatpush.msra.mxu0 %v10716
    %v10718 = vand.u32 %v5526, 4294901760
    %10719 = vmatpush.msra.mxu0 %v10718
    %v10720 = vand.u32 %v5524, 4294901760
    %10721 = vmatpush.msra.mxu0 %v10720
    %v10722 = vand.u32 %v5602, 4294901760
    %10723 = vmatmul.f32.gmra.mxu0 %v10722
    %v10724 = vpop.f32.mrf.mxu0
    %v10725 = vadd.f32 %v10688, %v10724
    %10726 = vdwg.mxu0
    %v10727 = vand.u32 %v5586, 4294901760
    %10728 = vmatpush.msra.mxu0 %v10727
    %v10729 = vand.u32 %v5584, 4294901760
    %10730 = vmatpush.msra.mxu0 %v10729
    %v10731 = vand.u32 %v5582, 4294901760
    %10732 = vmatpush.msra.mxu0 %v10731
    %v10733 = vand.u32 %v5580, 4294901760
    %10734 = vmatpush.msra.mxu0 %v10733
    %v10735 = vand.u32 %v5578, 4294901760
    %10736 = vmatpush.msra.mxu0 %v10735
    %v10737 = vand.u32 %v5576, 4294901760
    %10738 = vmatpush.msra.mxu0 %v10737
    %v10739 = vand.u32 %v5574, 4294901760
    %10740 = vmatpush.msra.mxu0 %v10739
    %v10741 = vand.u32 %v5572, 4294901760
    %10742 = vmatpush.msra.mxu0 %v10741
    %v10743 = vand.u32 %v5570, 4294901760
    %10744 = vmatpush.msra.mxu0 %v10743
    %v10745 = vand.u32 %v5568, 4294901760
    %10746 = vmatpush.msra.mxu0 %v10745
    %v10747 = vand.u32 %v5566, 4294901760
    %10748 = vmatpush.msra.mxu0 %v10747
    %v10749 = vand.u32 %v5564, 4294901760
    %10750 = vmatpush.msra.mxu0 %v10749
    %v10751 = vand.u32 %v5562, 4294901760
    %10752 = vmatpush.msra.mxu0 %v10751
    %v10753 = vand.u32 %v5560, 4294901760
    %10754 = vmatpush.msra.mxu0 %v10753
    %v10755 = vand.u32 %v5558, 4294901760
    %10756 = vmatpush.msra.mxu0 %v10755
    %v10757 = vand.u32 %v5556, 4294901760
    %10758 = vmatpush.msra.mxu0 %v10757
    %v10759 = vand.u32 %v5603, 4294901760
    %v10760 = vsub.f32 %v5603, %v10759
    %v10761 = vand.u32 %v10760, 4294901760
    %v10762 = vsub.f32 %v10760, %v10761
    %v10763 = vand.u32 %v10762, 4294901760
    %10764 = vmatmul.f32.gmra.mxu0 %v10763
    %v10765 = vpop.f32.mrf.mxu0
    %v10766 = vadd.f32 %v10725, %v10765
    %10767 = vdwg.mxu0
    %v10768 = vand.u32 %v5586, 4294901760
    %v10769 = vsub.f32 %v5586, %v10768
    %v10770 = vand.u32 %v10769, 4294901760
    %v10771 = vsub.f32 %v10769, %v10770
    %v10772 = vand.u32 %v10771, 4294901760
    %10773 = vmatpush.msra.mxu0 %v10772
    %v10774 = vand.u32 %v5584, 4294901760
    %v10775 = vsub.f32 %v5584, %v10774
    %v10776 = vand.u32 %v10775, 4294901760
    %v10777 = vsub.f32 %v10775, %v10776
    %v10778 = vand.u32 %v10777, 4294901760
    %10779 = vmatpush.msra.mxu0 %v10778
    %v10780 = vand.u32 %v5582, 4294901760
    %v10781 = vsub.f32 %v5582, %v10780
    %v10782 = vand.u32 %v10781, 4294901760
    %v10783 = vsub.f32 %v10781, %v10782
    %v10784 = vand.u32 %v10783, 4294901760
    %10785 = vmatpush.msra.mxu0 %v10784
    %v10786 = vand.u32 %v5580, 4294901760
    %v10787 = vsub.f32 %v5580, %v10786
    %v10788 = vand.u32 %v10787, 4294901760
    %v10789 = vsub.f32 %v10787, %v10788
    %v10790 = vand.u32 %v10789, 4294901760
    %10791 = vmatpush.msra.mxu0 %v10790
    %v10792 = vand.u32 %v5578, 4294901760
    %v10793 = vsub.f32 %v5578, %v10792
    %v10794 = vand.u32 %v10793, 4294901760
    %v10795 = vsub.f32 %v10793, %v10794
    %v10796 = vand.u32 %v10795, 4294901760
    %10797 = vmatpush.msra.mxu0 %v10796
    %v10798 = vand.u32 %v5576, 4294901760
    %v10799 = vsub.f32 %v5576, %v10798
    %v10800 = vand.u32 %v10799, 4294901760
    %v10801 = vsub.f32 %v10799, %v10800
    %v10802 = vand.u32 %v10801, 4294901760
    %10803 = vmatpush.msra.mxu0 %v10802
    %v10804 = vand.u32 %v5574, 4294901760
    %v10805 = vsub.f32 %v5574, %v10804
    %v10806 = vand.u32 %v10805, 4294901760
    %v10807 = vsub.f32 %v10805, %v10806
    %v10808 = vand.u32 %v10807, 4294901760
    %10809 = vmatpush.msra.mxu0 %v10808
    %v10810 = vand.u32 %v5572, 4294901760
    %v10811 = vsub.f32 %v5572, %v10810
    %v10812 = vand.u32 %v10811, 4294901760
    %v10813 = vsub.f32 %v10811, %v10812
    %v10814 = vand.u32 %v10813, 4294901760
    %10815 = vmatpush.msra.mxu0 %v10814
    %v10816 = vand.u32 %v5570, 4294901760
    %v10817 = vsub.f32 %v5570, %v10816
    %v10818 = vand.u32 %v10817, 4294901760
    %v10819 = vsub.f32 %v10817, %v10818
    %v10820 = vand.u32 %v10819, 4294901760
    %10821 = vmatpush.msra.mxu0 %v10820
    %v10822 = vand.u32 %v5568, 4294901760
    %v10823 = vsub.f32 %v5568, %v10822
    %v10824 = vand.u32 %v10823, 4294901760
    %v10825 = vsub.f32 %v10823, %v10824
    %v10826 = vand.u32 %v10825, 4294901760
    %10827 = vmatpush.msra.mxu0 %v10826
    %v10828 = vand.u32 %v5566, 4294901760
    %v10829 = vsub.f32 %v5566, %v10828
    %v10830 = vand.u32 %v10829, 4294901760
    %v10831 = vsub.f32 %v10829, %v10830
    %v10832 = vand.u32 %v10831, 4294901760
    %10833 = vmatpush.msra.mxu0 %v10832
    %v10834 = vand.u32 %v5564, 4294901760
    %v10835 = vsub.f32 %v5564, %v10834
    %v10836 = vand.u32 %v10835, 4294901760
    %v10837 = vsub.f32 %v10835, %v10836
    %v10838 = vand.u32 %v10837, 4294901760
    %10839 = vmatpush.msra.mxu0 %v10838
    %v10840 = vand.u32 %v5562, 4294901760
    %v10841 = vsub.f32 %v5562, %v10840
    %v10842 = vand.u32 %v10841, 4294901760
    %v10843 = vsub.f32 %v10841, %v10842
    %v10844 = vand.u32 %v10843, 4294901760
    %10845 = vmatpush.msra.mxu0 %v10844
    %v10846 = vand.u32 %v5560, 4294901760
    %v10847 = vsub.f32 %v5560, %v10846
    %v10848 = vand.u32 %v10847, 4294901760
    %v10849 = vsub.f32 %v10847, %v10848
    %v10850 = vand.u32 %v10849, 4294901760
    %10851 = vmatpush.msra.mxu0 %v10850
    %v10852 = vand.u32 %v5558, 4294901760
    %v10853 = vsub.f32 %v5558, %v10852
    %v10854 = vand.u32 %v10853, 4294901760
    %v10855 = vsub.f32 %v10853, %v10854
    %v10856 = vand.u32 %v10855, 4294901760
    %10857 = vmatpush.msra.mxu0 %v10856
    %v10858 = vand.u32 %v5556, 4294901760
    %v10859 = vsub.f32 %v5556, %v10858
    %v10860 = vand.u32 %v10859, 4294901760
    %v10861 = vsub.f32 %v10859, %v10860
    %v10862 = vand.u32 %v10861, 4294901760
    %10863 = vmatpush.msra.mxu0 %v10862
    %v10864 = vand.u32 %v5603, 4294901760
    %10865 = vmatmul.f32.gmra.mxu0 %v10864
    %v10866 = vpop.f32.mrf.mxu0
    %v10867 = vadd.f32 %v10766, %v10866
    %10868 = vdwg.mxu0
    %v10869 = vand.u32 %v5586, 4294901760
    %v10870 = vsub.f32 %v5586, %v10869
    %10871 = vmatpush.msra.mxu0 %v10870
    %v10872 = vand.u32 %v5584, 4294901760
    %v10873 = vsub.f32 %v5584, %v10872
    %10874 = vmatpush.msra.mxu0 %v10873
    %v10875 = vand.u32 %v5582, 4294901760
    %v10876 = vsub.f32 %v5582, %v10875
    %10877 = vmatpush.msra.mxu0 %v10876
    %v10878 = vand.u32 %v5580, 4294901760
    %v10879 = vsub.f32 %v5580, %v10878
    %10880 = vmatpush.msra.mxu0 %v10879
    %v10881 = vand.u32 %v5578, 4294901760
    %v10882 = vsub.f32 %v5578, %v10881
    %10883 = vmatpush.msra.mxu0 %v10882
    %v10884 = vand.u32 %v5576, 4294901760
    %v10885 = vsub.f32 %v5576, %v10884
    %10886 = vmatpush.msra.mxu0 %v10885
    %v10887 = vand.u32 %v5574, 4294901760
    %v10888 = vsub.f32 %v5574, %v10887
    %10889 = vmatpush.msra.mxu0 %v10888
    %v10890 = vand.u32 %v5572, 4294901760
    %v10891 = vsub.f32 %v5572, %v10890
    %10892 = vmatpush.msra.mxu0 %v10891
    %v10893 = vand.u32 %v5570, 4294901760
    %v10894 = vsub.f32 %v5570, %v10893
    %10895 = vmatpush.msra.mxu0 %v10894
    %v10896 = vand.u32 %v5568, 4294901760
    %v10897 = vsub.f32 %v5568, %v10896
    %10898 = vmatpush.msra.mxu0 %v10897
    %v10899 = vand.u32 %v5566, 4294901760
    %v10900 = vsub.f32 %v5566, %v10899
    %10901 = vmatpush.msra.mxu0 %v10900
    %v10902 = vand.u32 %v5564, 4294901760
    %v10903 = vsub.f32 %v5564, %v10902
    %10904 = vmatpush.msra.mxu0 %v10903
    %v10905 = vand.u32 %v5562, 4294901760
    %v10906 = vsub.f32 %v5562, %v10905
    %10907 = vmatpush.msra.mxu0 %v10906
    %v10908 = vand.u32 %v5560, 4294901760
    %v10909 = vsub.f32 %v5560, %v10908
    %10910 = vmatpush.msra.mxu0 %v10909
    %v10911 = vand.u32 %v5558, 4294901760
    %v10912 = vsub.f32 %v5558, %v10911
    %10913 = vmatpush.msra.mxu0 %v10912
    %v10914 = vand.u32 %v5556, 4294901760
    %v10915 = vsub.f32 %v5556, %v10914
    %10916 = vmatpush.msra.mxu0 %v10915
    %v10917 = vand.u32 %v5603, 4294901760
    %v10918 = vsub.f32 %v5603, %v10917
    %10919 = vmatmul.f32.gmra.mxu0 %v10918
    %v10920 = vpop.f32.mrf.mxu0
    %v10921 = vadd.f32 %v10867, %v10920
    %10922 = vdwg.mxu0
    %v10923 = vand.u32 %v5586, 4294901760
    %10924 = vmatpush.msra.mxu0 %v10923
    %v10925 = vand.u32 %v5584, 4294901760
    %10926 = vmatpush.msra.mxu0 %v10925
    %v10927 = vand.u32 %v5582, 4294901760
    %10928 = vmatpush.msra.mxu0 %v10927
    %v10929 = vand.u32 %v5580, 4294901760
    %10930 = vmatpush.msra.mxu0 %v10929
    %v10931 = vand.u32 %v5578, 4294901760
    %10932 = vmatpush.msra.mxu0 %v10931
    %v10933 = vand.u32 %v5576, 4294901760
    %10934 = vmatpush.msra.mxu0 %v10933
    %v10935 = vand.u32 %v5574, 4294901760
    %10936 = vmatpush.msra.mxu0 %v10935
    %v10937 = vand.u32 %v5572, 4294901760
    %10938 = vmatpush.msra.mxu0 %v10937
    %v10939 = vand.u32 %v5570, 4294901760
    %10940 = vmatpush.msra.mxu0 %v10939
    %v10941 = vand.u32 %v5568, 4294901760
    %10942 = vmatpush.msra.mxu0 %v10941
    %v10943 = vand.u32 %v5566, 4294901760
    %10944 = vmatpush.msra.mxu0 %v10943
    %v10945 = vand.u32 %v5564, 4294901760
    %10946 = vmatpush.msra.mxu0 %v10945
    %v10947 = vand.u32 %v5562, 4294901760
    %10948 = vmatpush.msra.mxu0 %v10947
    %v10949 = vand.u32 %v5560, 4294901760
    %10950 = vmatpush.msra.mxu0 %v10949
    %v10951 = vand.u32 %v5558, 4294901760
    %10952 = vmatpush.msra.mxu0 %v10951
    %v10953 = vand.u32 %v5556, 4294901760
    %10954 = vmatpush.msra.mxu0 %v10953
    %v10955 = vand.u32 %v5603, 4294901760
    %v10956 = vsub.f32 %v5603, %v10955
    %v10957 = vand.u32 %v10956, 4294901760
    %10958 = vmatmul.f32.gmra.mxu0 %v10957
    %v10959 = vpop.f32.mrf.mxu0
    %v10960 = vadd.f32 %v10921, %v10959
    %10961 = vdwg.mxu0
    %v10962 = vand.u32 %v5586, 4294901760
    %v10963 = vsub.f32 %v5586, %v10962
    %v10964 = vand.u32 %v10963, 4294901760
    %10965 = vmatpush.msra.mxu0 %v10964
    %v10966 = vand.u32 %v5584, 4294901760
    %v10967 = vsub.f32 %v5584, %v10966
    %v10968 = vand.u32 %v10967, 4294901760
    %10969 = vmatpush.msra.mxu0 %v10968
    %v10970 = vand.u32 %v5582, 4294901760
    %v10971 = vsub.f32 %v5582, %v10970
    %v10972 = vand.u32 %v10971, 4294901760
    %10973 = vmatpush.msra.mxu0 %v10972
    %v10974 = vand.u32 %v5580, 4294901760
    %v10975 = vsub.f32 %v5580, %v10974
    %v10976 = vand.u32 %v10975, 4294901760
    %10977 = vmatpush.msra.mxu0 %v10976
    %v10978 = vand.u32 %v5578, 4294901760
    %v10979 = vsub.f32 %v5578, %v10978
    %v10980 = vand.u32 %v10979, 4294901760
    %10981 = vmatpush.msra.mxu0 %v10980
    %v10982 = vand.u32 %v5576, 4294901760
    %v10983 = vsub.f32 %v5576, %v10982
    %v10984 = vand.u32 %v10983, 4294901760
    %10985 = vmatpush.msra.mxu0 %v10984
    %v10986 = vand.u32 %v5574, 4294901760
    %v10987 = vsub.f32 %v5574, %v10986
    %v10988 = vand.u32 %v10987, 4294901760
    %10989 = vmatpush.msra.mxu0 %v10988
    %v10990 = vand.u32 %v5572, 4294901760
    %v10991 = vsub.f32 %v5572, %v10990
    %v10992 = vand.u32 %v10991, 4294901760
    %10993 = vmatpush.msra.mxu0 %v10992
    %v10994 = vand.u32 %v5570, 4294901760
    %v10995 = vsub.f32 %v5570, %v10994
    %v10996 = vand.u32 %v10995, 4294901760
    %10997 = vmatpush.msra.mxu0 %v10996
    %v10998 = vand.u32 %v5568, 4294901760
    %v10999 = vsub.f32 %v5568, %v10998
    %v11000 = vand.u32 %v10999, 4294901760
    %11001 = vmatpush.msra.mxu0 %v11000
    %v11002 = vand.u32 %v5566, 4294901760
    %v11003 = vsub.f32 %v5566, %v11002
    %v11004 = vand.u32 %v11003, 4294901760
    %11005 = vmatpush.msra.mxu0 %v11004
    %v11006 = vand.u32 %v5564, 4294901760
    %v11007 = vsub.f32 %v5564, %v11006
    %v11008 = vand.u32 %v11007, 4294901760
    %11009 = vmatpush.msra.mxu0 %v11008
    %v11010 = vand.u32 %v5562, 4294901760
    %v11011 = vsub.f32 %v5562, %v11010
    %v11012 = vand.u32 %v11011, 4294901760
    %11013 = vmatpush.msra.mxu0 %v11012
    %v11014 = vand.u32 %v5560, 4294901760
    %v11015 = vsub.f32 %v5560, %v11014
    %v11016 = vand.u32 %v11015, 4294901760
    %11017 = vmatpush.msra.mxu0 %v11016
    %v11018 = vand.u32 %v5558, 4294901760
    %v11019 = vsub.f32 %v5558, %v11018
    %v11020 = vand.u32 %v11019, 4294901760
    %11021 = vmatpush.msra.mxu0 %v11020
    %v11022 = vand.u32 %v5556, 4294901760
    %v11023 = vsub.f32 %v5556, %v11022
    %v11024 = vand.u32 %v11023, 4294901760
    %11025 = vmatpush.msra.mxu0 %v11024
    %v11026 = vand.u32 %v5603, 4294901760
    %11027 = vmatmul.f32.gmra.mxu0 %v11026
    %v11028 = vpop.f32.mrf.mxu0
    %v11029 = vadd.f32 %v10960, %v11028
    %11030 = vdwg.mxu0
    %v11031 = vand.u32 %v5586, 4294901760
    %11032 = vmatpush.msra.mxu0 %v11031
    %v11033 = vand.u32 %v5584, 4294901760
    %11034 = vmatpush.msra.mxu0 %v11033
    %v11035 = vand.u32 %v5582, 4294901760
    %11036 = vmatpush.msra.mxu0 %v11035
    %v11037 = vand.u32 %v5580, 4294901760
    %11038 = vmatpush.msra.mxu0 %v11037
    %v11039 = vand.u32 %v5578, 4294901760
    %11040 = vmatpush.msra.mxu0 %v11039
    %v11041 = vand.u32 %v5576, 4294901760
    %11042 = vmatpush.msra.mxu0 %v11041
    %v11043 = vand.u32 %v5574, 4294901760
    %11044 = vmatpush.msra.mxu0 %v11043
    %v11045 = vand.u32 %v5572, 4294901760
    %11046 = vmatpush.msra.mxu0 %v11045
    %v11047 = vand.u32 %v5570, 4294901760
    %11048 = vmatpush.msra.mxu0 %v11047
    %v11049 = vand.u32 %v5568, 4294901760
    %11050 = vmatpush.msra.mxu0 %v11049
    %v11051 = vand.u32 %v5566, 4294901760
    %11052 = vmatpush.msra.mxu0 %v11051
    %v11053 = vand.u32 %v5564, 4294901760
    %11054 = vmatpush.msra.mxu0 %v11053
    %v11055 = vand.u32 %v5562, 4294901760
    %11056 = vmatpush.msra.mxu0 %v11055
    %v11057 = vand.u32 %v5560, 4294901760
    %11058 = vmatpush.msra.mxu0 %v11057
    %v11059 = vand.u32 %v5558, 4294901760
    %11060 = vmatpush.msra.mxu0 %v11059
    %v11061 = vand.u32 %v5556, 4294901760
    %11062 = vmatpush.msra.mxu0 %v11061
    %v11063 = vand.u32 %v5603, 4294901760
    %11064 = vmatmul.f32.gmra.mxu0 %v11063
    %v11065 = vpop.f32.mrf.mxu0
    %v11066 = vadd.f32 %v11029, %v11065
    %11067 = vdwg.mxu0
    %v11068 = vmax.f32 %v8338, 0.0
    %v11069 = vmax.f32 %v11066, 0.0
    %v11070 = vld [vmem:[%s9] sm:$0xff]
    %v11071 = vld [vmem:[%s9 + $0x8] sm:$0xff]
    %v11072 = vld [vmem:[%s9 + $0x10] sm:$0xff]
    %v11073 = vld [vmem:[%s9 + $0x18] sm:$0xff]
    %v11074 = vld [vmem:[%s9 + $0x20] sm:$0xff]
    %v11075 = vld [vmem:[%s9 + $0x28] sm:$0xff]
    %v11076 = vld [vmem:[%s9 + $0x30] sm:$0xff]
    %v11077 = vld [vmem:[%s9 + $0x38] sm:$0xff]
    %v11078 = vld [vmem:[%s9 + $0x40] sm:$0xff]
    %v11079 = vld [vmem:[%s9 + $0x48] sm:$0xff]
    %v11080 = vld [vmem:[%s9 + $0x50] sm:$0xff]
    %v11081 = vld [vmem:[%s9 + $0x58] sm:$0xff]
    %v11082 = vld [vmem:[%s9 + $0x60] sm:$0xff]
    %v11083 = vld [vmem:[%s9 + $0x68] sm:$0xff]
    %v11084 = vld [vmem:[%s9 + $0x70] sm:$0xff]
    %v11085 = vld [vmem:[%s9 + $0x78] sm:$0xff]
    %v11086 = vld [vmem:[%s9 + $0x80] sm:$0xff]
    %v11087 = vld [vmem:[%s9 + $0x88] sm:$0xff]
    %v11088 = vld [vmem:[%s9 + $0x90] sm:$0xff]
    %v11089 = vld [vmem:[%s9 + $0x98] sm:$0xff]
    %v11090 = vld [vmem:[%s9 + $0xa0] sm:$0xff]
    %v11091 = vld [vmem:[%s9 + $0xa8] sm:$0xff]
    %v11092 = vld [vmem:[%s9 + $0xb0] sm:$0xff]
    %v11093 = vld [vmem:[%s9 + $0xb8] sm:$0xff]
    %v11094 = vld [vmem:[%s9 + $0xc0] sm:$0xff]
    %v11095 = vld [vmem:[%s9 + $0xc8] sm:$0xff]
    %v11096 = vld [vmem:[%s9 + $0xd0] sm:$0xff]
    %v11097 = vld [vmem:[%s9 + $0xd8] sm:$0xff]
    %v11098 = vld [vmem:[%s9 + $0xe0] sm:$0xff]
    %v11099 = vld [vmem:[%s9 + $0xe8] sm:$0xff]
    %v11100 = vld [vmem:[%s9 + $0xf0] sm:$0xff]
    %v11101 = vld [vmem:[%s9 + $0xf8] sm:$0xff]
    %v11102 = vld [vmem:[%s10] sm:$0x1]
    %v11104 = vperm.slane %v11102, 0
    %v11106 = vand.u32 %v11085, 4294901760
    %11107 = vmatpush.msra.mxu0 %v11106
    %v11108 = vand.u32 %v11084, 4294901760
    %11109 = vmatpush.msra.mxu0 %v11108
    %v11110 = vand.u32 %v11083, 4294901760
    %11111 = vmatpush.msra.mxu0 %v11110
    %v11112 = vand.u32 %v11082, 4294901760
    %11113 = vmatpush.msra.mxu0 %v11112
    %v11114 = vand.u32 %v11081, 4294901760
    %11115 = vmatpush.msra.mxu0 %v11114
    %v11116 = vand.u32 %v11080, 4294901760
    %11117 = vmatpush.msra.mxu0 %v11116
    %v11118 = vand.u32 %v11079, 4294901760
    %11119 = vmatpush.msra.mxu0 %v11118
    %v11120 = vand.u32 %v11078, 4294901760
    %11121 = vmatpush.msra.mxu0 %v11120
    %v11122 = vand.u32 %v11077, 4294901760
    %11123 = vmatpush.msra.mxu0 %v11122
    %v11124 = vand.u32 %v11076, 4294901760
    %11125 = vmatpush.msra.mxu0 %v11124
    %v11126 = vand.u32 %v11075, 4294901760
    %11127 = vmatpush.msra.mxu0 %v11126
    %v11128 = vand.u32 %v11074, 4294901760
    %11129 = vmatpush.msra.mxu0 %v11128
    %v11130 = vand.u32 %v11073, 4294901760
    %11131 = vmatpush.msra.mxu0 %v11130
    %v11132 = vand.u32 %v11072, 4294901760
    %11133 = vmatpush.msra.mxu0 %v11132
    %v11134 = vand.u32 %v11071, 4294901760
    %11135 = vmatpush.msra.mxu0 %v11134
    %v11136 = vand.u32 %v11070, 4294901760
    %11137 = vmatpush.msra.mxu0 %v11136
    %v11138 = vand.u32 %v11068, 4294901760
    %v11139 = vsub.f32 %v11068, %v11138
    %v11140 = vand.u32 %v11139, 4294901760
    %v11141 = vsub.f32 %v11139, %v11140
    %v11142 = vand.u32 %v11141, 4294901760
    %11143 = vmatmul.f32.gmra.mxu0 %v11142
    %v11144 = vpop.f32.mrf.mxu0
    %v11145 = vadd.f32 %v11104, %v11144
    %11146 = vdwg.mxu0
    %v11147 = vand.u32 %v11085, 4294901760
    %v11148 = vsub.f32 %v11085, %v11147
    %v11149 = vand.u32 %v11148, 4294901760
    %v11150 = vsub.f32 %v11148, %v11149
    %v11151 = vand.u32 %v11150, 4294901760
    %11152 = vmatpush.msra.mxu0 %v11151
    %v11153 = vand.u32 %v11084, 4294901760
    %v11154 = vsub.f32 %v11084, %v11153
    %v11155 = vand.u32 %v11154, 4294901760
    %v11156 = vsub.f32 %v11154, %v11155
    %v11157 = vand.u32 %v11156, 4294901760
    %11158 = vmatpush.msra.mxu0 %v11157
    %v11159 = vand.u32 %v11083, 4294901760
    %v11160 = vsub.f32 %v11083, %v11159
    %v11161 = vand.u32 %v11160, 4294901760
    %v11162 = vsub.f32 %v11160, %v11161
    %v11163 = vand.u32 %v11162, 4294901760
    %11164 = vmatpush.msra.mxu0 %v11163
    %v11165 = vand.u32 %v11082, 4294901760
    %v11166 = vsub.f32 %v11082, %v11165
    %v11167 = vand.u32 %v11166, 4294901760
    %v11168 = vsub.f32 %v11166, %v11167
    %v11169 = vand.u32 %v11168, 4294901760
    %11170 = vmatpush.msra.mxu0 %v11169
    %v11171 = vand.u32 %v11081, 4294901760
    %v11172 = vsub.f32 %v11081, %v11171
    %v11173 = vand.u32 %v11172, 4294901760
    %v11174 = vsub.f32 %v11172, %v11173
    %v11175 = vand.u32 %v11174, 4294901760
    %11176 = vmatpush.msra.mxu0 %v11175
    %v11177 = vand.u32 %v11080, 4294901760
    %v11178 = vsub.f32 %v11080, %v11177
    %v11179 = vand.u32 %v11178, 4294901760
    %v11180 = vsub.f32 %v11178, %v11179
    %v11181 = vand.u32 %v11180, 4294901760
    %11182 = vmatpush.msra.mxu0 %v11181
    %v11183 = vand.u32 %v11079, 4294901760
    %v11184 = vsub.f32 %v11079, %v11183
    %v11185 = vand.u32 %v11184, 4294901760
    %v11186 = vsub.f32 %v11184, %v11185
    %v11187 = vand.u32 %v11186, 4294901760
    %11188 = vmatpush.msra.mxu0 %v11187
    %v11189 = vand.u32 %v11078, 4294901760
    %v11190 = vsub.f32 %v11078, %v11189
    %v11191 = vand.u32 %v11190, 4294901760
    %v11192 = vsub.f32 %v11190, %v11191
    %v11193 = vand.u32 %v11192, 4294901760
    %11194 = vmatpush.msra.mxu0 %v11193
    %v11195 = vand.u32 %v11077, 4294901760
    %v11196 = vsub.f32 %v11077, %v11195
    %v11197 = vand.u32 %v11196, 4294901760
    %v11198 = vsub.f32 %v11196, %v11197
    %v11199 = vand.u32 %v11198, 4294901760
    %11200 = vmatpush.msra.mxu0 %v11199
    %v11201 = vand.u32 %v11076, 4294901760
    %v11202 = vsub.f32 %v11076, %v11201
    %v11203 = vand.u32 %v11202, 4294901760
    %v11204 = vsub.f32 %v11202, %v11203
    %v11205 = vand.u32 %v11204, 4294901760
    %11206 = vmatpush.msra.mxu0 %v11205
    %v11207 = vand.u32 %v11075, 4294901760
    %v11208 = vsub.f32 %v11075, %v11207
    %v11209 = vand.u32 %v11208, 4294901760
    %v11210 = vsub.f32 %v11208, %v11209
    %v11211 = vand.u32 %v11210, 4294901760
    %11212 = vmatpush.msra.mxu0 %v11211
    %v11213 = vand.u32 %v11074, 4294901760
    %v11214 = vsub.f32 %v11074, %v11213
    %v11215 = vand.u32 %v11214, 4294901760
    %v11216 = vsub.f32 %v11214, %v11215
    %v11217 = vand.u32 %v11216, 4294901760
    %11218 = vmatpush.msra.mxu0 %v11217
    %v11219 = vand.u32 %v11073, 4294901760
    %v11220 = vsub.f32 %v11073, %v11219
    %v11221 = vand.u32 %v11220, 4294901760
    %v11222 = vsub.f32 %v11220, %v11221
    %v11223 = vand.u32 %v11222, 4294901760
    %11224 = vmatpush.msra.mxu0 %v11223
    %v11225 = vand.u32 %v11072, 4294901760
    %v11226 = vsub.f32 %v11072, %v11225
    %v11227 = vand.u32 %v11226, 4294901760
    %v11228 = vsub.f32 %v11226, %v11227
    %v11229 = vand.u32 %v11228, 4294901760
    %11230 = vmatpush.msra.mxu0 %v11229
    %v11231 = vand.u32 %v11071, 4294901760
    %v11232 = vsub.f32 %v11071, %v11231
    %v11233 = vand.u32 %v11232, 4294901760
    %v11234 = vsub.f32 %v11232, %v11233
    %v11235 = vand.u32 %v11234, 4294901760
    %11236 = vmatpush.msra.mxu0 %v11235
    %v11237 = vand.u32 %v11070, 4294901760
    %v11238 = vsub.f32 %v11070, %v11237
    %v11239 = vand.u32 %v11238, 4294901760
    %v11240 = vsub.f32 %v11238, %v11239
    %v11241 = vand.u32 %v11240, 4294901760
    %11242 = vmatpush.msra.mxu0 %v11241
    %v11243 = vand.u32 %v11068, 4294901760
    %11244 = vmatmul.f32.gmra.mxu0 %v11243
    %v11245 = vpop.f32.mrf.mxu0
    %v11246 = vadd.f32 %v11145, %v11245
    %11247 = vdwg.mxu0
    %v11248 = vand.u32 %v11085, 4294901760
    %v11249 = vsub.f32 %v11085, %v11248
    %11250 = vmatpush.msra.mxu0 %v11249
    %v11251 = vand.u32 %v11084, 4294901760
    %v11252 = vsub.f32 %v11084, %v11251
    %11253 = vmatpush.msra.mxu0 %v11252
    %v11254 = vand.u32 %v11083, 4294901760
    %v11255 = vsub.f32 %v11083, %v11254
    %11256 = vmatpush.msra.mxu0 %v11255
    %v11257 = vand.u32 %v11082, 4294901760
    %v11258 = vsub.f32 %v11082, %v11257
    %11259 = vmatpush.msra.mxu0 %v11258
    %v11260 = vand.u32 %v11081, 4294901760
    %v11261 = vsub.f32 %v11081, %v11260
    %11262 = vmatpush.msra.mxu0 %v11261
    %v11263 = vand.u32 %v11080, 4294901760
    %v11264 = vsub.f32 %v11080, %v11263
    %11265 = vmatpush.msra.mxu0 %v11264
    %v11266 = vand.u32 %v11079, 4294901760
    %v11267 = vsub.f32 %v11079, %v11266
    %11268 = vmatpush.msra.mxu0 %v11267
    %v11269 = vand.u32 %v11078, 4294901760
    %v11270 = vsub.f32 %v11078, %v11269
    %11271 = vmatpush.msra.mxu0 %v11270
    %v11272 = vand.u32 %v11077, 4294901760
    %v11273 = vsub.f32 %v11077, %v11272
    %11274 = vmatpush.msra.mxu0 %v11273
    %v11275 = vand.u32 %v11076, 4294901760
    %v11276 = vsub.f32 %v11076, %v11275
    %11277 = vmatpush.msra.mxu0 %v11276
    %v11278 = vand.u32 %v11075, 4294901760
    %v11279 = vsub.f32 %v11075, %v11278
    %11280 = vmatpush.msra.mxu0 %v11279
    %v11281 = vand.u32 %v11074, 4294901760
    %v11282 = vsub.f32 %v11074, %v11281
    %11283 = vmatpush.msra.mxu0 %v11282
    %v11284 = vand.u32 %v11073, 4294901760
    %v11285 = vsub.f32 %v11073, %v11284
    %11286 = vmatpush.msra.mxu0 %v11285
    %v11287 = vand.u32 %v11072, 4294901760
    %v11288 = vsub.f32 %v11072, %v11287
    %11289 = vmatpush.msra.mxu0 %v11288
    %v11290 = vand.u32 %v11071, 4294901760
    %v11291 = vsub.f32 %v11071, %v11290
    %11292 = vmatpush.msra.mxu0 %v11291
    %v11293 = vand.u32 %v11070, 4294901760
    %v11294 = vsub.f32 %v11070, %v11293
    %11295 = vmatpush.msra.mxu0 %v11294
    %v11296 = vand.u32 %v11068, 4294901760
    %v11297 = vsub.f32 %v11068, %v11296
    %11298 = vmatmul.f32.gmra.mxu0 %v11297
    %v11299 = vpop.f32.mrf.mxu0
    %v11300 = vadd.f32 %v11246, %v11299
    %11301 = vdwg.mxu0
    %v11302 = vand.u32 %v11085, 4294901760
    %11303 = vmatpush.msra.mxu0 %v11302
    %v11304 = vand.u32 %v11084, 4294901760
    %11305 = vmatpush.msra.mxu0 %v11304
    %v11306 = vand.u32 %v11083, 4294901760
    %11307 = vmatpush.msra.mxu0 %v11306
    %v11308 = vand.u32 %v11082, 4294901760
    %11309 = vmatpush.msra.mxu0 %v11308
    %v11310 = vand.u32 %v11081, 4294901760
    %11311 = vmatpush.msra.mxu0 %v11310
    %v11312 = vand.u32 %v11080, 4294901760
    %11313 = vmatpush.msra.mxu0 %v11312
    %v11314 = vand.u32 %v11079, 4294901760
    %11315 = vmatpush.msra.mxu0 %v11314
    %v11316 = vand.u32 %v11078, 4294901760
    %11317 = vmatpush.msra.mxu0 %v11316
    %v11318 = vand.u32 %v11077, 4294901760
    %11319 = vmatpush.msra.mxu0 %v11318
    %v11320 = vand.u32 %v11076, 4294901760
    %11321 = vmatpush.msra.mxu0 %v11320
    %v11322 = vand.u32 %v11075, 4294901760
    %11323 = vmatpush.msra.mxu0 %v11322
    %v11324 = vand.u32 %v11074, 4294901760
    %11325 = vmatpush.msra.mxu0 %v11324
    %v11326 = vand.u32 %v11073, 4294901760
    %11327 = vmatpush.msra.mxu0 %v11326
    %v11328 = vand.u32 %v11072, 4294901760
    %11329 = vmatpush.msra.mxu0 %v11328
    %v11330 = vand.u32 %v11071, 4294901760
    %11331 = vmatpush.msra.mxu0 %v11330
    %v11332 = vand.u32 %v11070, 4294901760
    %11333 = vmatpush.msra.mxu0 %v11332
    %v11334 = vand.u32 %v11068, 4294901760
    %v11335 = vsub.f32 %v11068, %v11334
    %v11336 = vand.u32 %v11335, 4294901760
    %11337 = vmatmul.f32.gmra.mxu0 %v11336
    %v11338 = vpop.f32.mrf.mxu0
    %v11339 = vadd.f32 %v11300, %v11338
    %11340 = vdwg.mxu0
    %v11341 = vand.u32 %v11085, 4294901760
    %v11342 = vsub.f32 %v11085, %v11341
    %v11343 = vand.u32 %v11342, 4294901760
    %11344 = vmatpush.msra.mxu0 %v11343
    %v11345 = vand.u32 %v11084, 4294901760
    %v11346 = vsub.f32 %v11084, %v11345
    %v11347 = vand.u32 %v11346, 4294901760
    %11348 = vmatpush.msra.mxu0 %v11347
    %v11349 = vand.u32 %v11083, 4294901760
    %v11350 = vsub.f32 %v11083, %v11349
    %v11351 = vand.u32 %v11350, 4294901760
    %11352 = vmatpush.msra.mxu0 %v11351
    %v11353 = vand.u32 %v11082, 4294901760
    %v11354 = vsub.f32 %v11082, %v11353
    %v11355 = vand.u32 %v11354, 4294901760
    %11356 = vmatpush.msra.mxu0 %v11355
    %v11357 = vand.u32 %v11081, 4294901760
    %v11358 = vsub.f32 %v11081, %v11357
    %v11359 = vand.u32 %v11358, 4294901760
    %11360 = vmatpush.msra.mxu0 %v11359
    %v11361 = vand.u32 %v11080, 4294901760
    %v11362 = vsub.f32 %v11080, %v11361
    %v11363 = vand.u32 %v11362, 4294901760
    %11364 = vmatpush.msra.mxu0 %v11363
    %v11365 = vand.u32 %v11079, 4294901760
    %v11366 = vsub.f32 %v11079, %v11365
    %v11367 = vand.u32 %v11366, 4294901760
    %11368 = vmatpush.msra.mxu0 %v11367
    %v11369 = vand.u32 %v11078, 4294901760
    %v11370 = vsub.f32 %v11078, %v11369
    %v11371 = vand.u32 %v11370, 4294901760
    %11372 = vmatpush.msra.mxu0 %v11371
    %v11373 = vand.u32 %v11077, 4294901760
    %v11374 = vsub.f32 %v11077, %v11373
    %v11375 = vand.u32 %v11374, 4294901760
    %11376 = vmatpush.msra.mxu0 %v11375
    %v11377 = vand.u32 %v11076, 4294901760
    %v11378 = vsub.f32 %v11076, %v11377
    %v11379 = vand.u32 %v11378, 4294901760
    %11380 = vmatpush.msra.mxu0 %v11379
    %v11381 = vand.u32 %v11075, 4294901760
    %v11382 = vsub.f32 %v11075, %v11381
    %v11383 = vand.u32 %v11382, 4294901760
    %11384 = vmatpush.msra.mxu0 %v11383
    %v11385 = vand.u32 %v11074, 4294901760
    %v11386 = vsub.f32 %v11074, %v11385
    %v11387 = vand.u32 %v11386, 4294901760
    %11388 = vmatpush.msra.mxu0 %v11387
    %v11389 = vand.u32 %v11073, 4294901760
    %v11390 = vsub.f32 %v11073, %v11389
    %v11391 = vand.u32 %v11390, 4294901760
    %11392 = vmatpush.msra.mxu0 %v11391
    %v11393 = vand.u32 %v11072, 4294901760
    %v11394 = vsub.f32 %v11072, %v11393
    %v11395 = vand.u32 %v11394, 4294901760
    %11396 = vmatpush.msra.mxu0 %v11395
    %v11397 = vand.u32 %v11071, 4294901760
    %v11398 = vsub.f32 %v11071, %v11397
    %v11399 = vand.u32 %v11398, 4294901760
    %11400 = vmatpush.msra.mxu0 %v11399
    %v11401 = vand.u32 %v11070, 4294901760
    %v11402 = vsub.f32 %v11070, %v11401
    %v11403 = vand.u32 %v11402, 4294901760
    %11404 = vmatpush.msra.mxu0 %v11403
    %v11405 = vand.u32 %v11068, 4294901760
    %11406 = vmatmul.f32.gmra.mxu0 %v11405
    %v11407 = vpop.f32.mrf.mxu0
    %v11408 = vadd.f32 %v11339, %v11407
    %11409 = vdwg.mxu0
    %v11410 = vand.u32 %v11085, 4294901760
    %11411 = vmatpush.msra.mxu0 %v11410
    %v11412 = vand.u32 %v11084, 4294901760
    %11413 = vmatpush.msra.mxu0 %v11412
    %v11414 = vand.u32 %v11083, 4294901760
    %11415 = vmatpush.msra.mxu0 %v11414
    %v11416 = vand.u32 %v11082, 4294901760
    %11417 = vmatpush.msra.mxu0 %v11416
    %v11418 = vand.u32 %v11081, 4294901760
    %11419 = vmatpush.msra.mxu0 %v11418
    %v11420 = vand.u32 %v11080, 4294901760
    %11421 = vmatpush.msra.mxu0 %v11420
    %v11422 = vand.u32 %v11079, 4294901760
    %11423 = vmatpush.msra.mxu0 %v11422
    %v11424 = vand.u32 %v11078, 4294901760
    %11425 = vmatpush.msra.mxu0 %v11424
    %v11426 = vand.u32 %v11077, 4294901760
    %11427 = vmatpush.msra.mxu0 %v11426
    %v11428 = vand.u32 %v11076, 4294901760
    %11429 = vmatpush.msra.mxu0 %v11428
    %v11430 = vand.u32 %v11075, 4294901760
    %11431 = vmatpush.msra.mxu0 %v11430
    %v11432 = vand.u32 %v11074, 4294901760
    %11433 = vmatpush.msra.mxu0 %v11432
    %v11434 = vand.u32 %v11073, 4294901760
    %11435 = vmatpush.msra.mxu0 %v11434
    %v11436 = vand.u32 %v11072, 4294901760
    %11437 = vmatpush.msra.mxu0 %v11436
    %v11438 = vand.u32 %v11071, 4294901760
    %11439 = vmatpush.msra.mxu0 %v11438
    %v11440 = vand.u32 %v11070, 4294901760
    %11441 = vmatpush.msra.mxu0 %v11440
    %v11442 = vand.u32 %v11068, 4294901760
    %11443 = vmatmul.f32.gmra.mxu0 %v11442
    %v11444 = vpop.f32.mrf.mxu0
    %v11445 = vadd.f32 %v11408, %v11444
    %11446 = vdwg.mxu0
    %v11447 = vand.u32 %v11101, 4294901760
    %11448 = vmatpush.msra.mxu0 %v11447
    %v11449 = vand.u32 %v11100, 4294901760
    %11450 = vmatpush.msra.mxu0 %v11449
    %v11451 = vand.u32 %v11099, 4294901760
    %11452 = vmatpush.msra.mxu0 %v11451
    %v11453 = vand.u32 %v11098, 4294901760
    %11454 = vmatpush.msra.mxu0 %v11453
    %v11455 = vand.u32 %v11097, 4294901760
    %11456 = vmatpush.msra.mxu0 %v11455
    %v11457 = vand.u32 %v11096, 4294901760
    %11458 = vmatpush.msra.mxu0 %v11457
    %v11459 = vand.u32 %v11095, 4294901760
    %11460 = vmatpush.msra.mxu0 %v11459
    %v11461 = vand.u32 %v11094, 4294901760
    %11462 = vmatpush.msra.mxu0 %v11461
    %v11463 = vand.u32 %v11093, 4294901760
    %11464 = vmatpush.msra.mxu0 %v11463
    %v11465 = vand.u32 %v11092, 4294901760
    %11466 = vmatpush.msra.mxu0 %v11465
    %v11467 = vand.u32 %v11091, 4294901760
    %11468 = vmatpush.msra.mxu0 %v11467
    %v11469 = vand.u32 %v11090, 4294901760
    %11470 = vmatpush.msra.mxu0 %v11469
    %v11471 = vand.u32 %v11089, 4294901760
    %11472 = vmatpush.msra.mxu0 %v11471
    %v11473 = vand.u32 %v11088, 4294901760
    %11474 = vmatpush.msra.mxu0 %v11473
    %v11475 = vand.u32 %v11087, 4294901760
    %11476 = vmatpush.msra.mxu0 %v11475
    %v11477 = vand.u32 %v11086, 4294901760
    %11478 = vmatpush.msra.mxu0 %v11477
    %v11479 = vand.u32 %v11069, 4294901760
    %v11480 = vsub.f32 %v11069, %v11479
    %v11481 = vand.u32 %v11480, 4294901760
    %v11482 = vsub.f32 %v11480, %v11481
    %v11483 = vand.u32 %v11482, 4294901760
    %11484 = vmatmul.f32.gmra.mxu0 %v11483
    %v11485 = vpop.f32.mrf.mxu0
    %v11486 = vadd.f32 %v11445, %v11485
    %11487 = vdwg.mxu0
    %v11488 = vand.u32 %v11101, 4294901760
    %v11489 = vsub.f32 %v11101, %v11488
    %v11490 = vand.u32 %v11489, 4294901760
    %v11491 = vsub.f32 %v11489, %v11490
    %v11492 = vand.u32 %v11491, 4294901760
    %11493 = vmatpush.msra.mxu0 %v11492
    %v11494 = vand.u32 %v11100, 4294901760
    %v11495 = vsub.f32 %v11100, %v11494
    %v11496 = vand.u32 %v11495, 4294901760
    %v11497 = vsub.f32 %v11495, %v11496
    %v11498 = vand.u32 %v11497, 4294901760
    %11499 = vmatpush.msra.mxu0 %v11498
    %v11500 = vand.u32 %v11099, 4294901760
    %v11501 = vsub.f32 %v11099, %v11500
    %v11502 = vand.u32 %v11501, 4294901760
    %v11503 = vsub.f32 %v11501, %v11502
    %v11504 = vand.u32 %v11503, 4294901760
    %11505 = vmatpush.msra.mxu0 %v11504
    %v11506 = vand.u32 %v11098, 4294901760
    %v11507 = vsub.f32 %v11098, %v11506
    %v11508 = vand.u32 %v11507, 4294901760
    %v11509 = vsub.f32 %v11507, %v11508
    %v11510 = vand.u32 %v11509, 4294901760
    %11511 = vmatpush.msra.mxu0 %v11510
    %v11512 = vand.u32 %v11097, 4294901760
    %v11513 = vsub.f32 %v11097, %v11512
    %v11514 = vand.u32 %v11513, 4294901760
    %v11515 = vsub.f32 %v11513, %v11514
    %v11516 = vand.u32 %v11515, 4294901760
    %11517 = vmatpush.msra.mxu0 %v11516
    %v11518 = vand.u32 %v11096, 4294901760
    %v11519 = vsub.f32 %v11096, %v11518
    %v11520 = vand.u32 %v11519, 4294901760
    %v11521 = vsub.f32 %v11519, %v11520
    %v11522 = vand.u32 %v11521, 4294901760
    %11523 = vmatpush.msra.mxu0 %v11522
    %v11524 = vand.u32 %v11095, 4294901760
    %v11525 = vsub.f32 %v11095, %v11524
    %v11526 = vand.u32 %v11525, 4294901760
    %v11527 = vsub.f32 %v11525, %v11526
    %v11528 = vand.u32 %v11527, 4294901760
    %11529 = vmatpush.msra.mxu0 %v11528
    %v11530 = vand.u32 %v11094, 4294901760
    %v11531 = vsub.f32 %v11094, %v11530
    %v11532 = vand.u32 %v11531, 4294901760
    %v11533 = vsub.f32 %v11531, %v11532
    %v11534 = vand.u32 %v11533, 4294901760
    %11535 = vmatpush.msra.mxu0 %v11534
    %v11536 = vand.u32 %v11093, 4294901760
    %v11537 = vsub.f32 %v11093, %v11536
    %v11538 = vand.u32 %v11537, 4294901760
    %v11539 = vsub.f32 %v11537, %v11538
    %v11540 = vand.u32 %v11539, 4294901760
    %11541 = vmatpush.msra.mxu0 %v11540
    %v11542 = vand.u32 %v11092, 4294901760
    %v11543 = vsub.f32 %v11092, %v11542
    %v11544 = vand.u32 %v11543, 4294901760
    %v11545 = vsub.f32 %v11543, %v11544
    %v11546 = vand.u32 %v11545, 4294901760
    %11547 = vmatpush.msra.mxu0 %v11546
    %v11548 = vand.u32 %v11091, 4294901760
    %v11549 = vsub.f32 %v11091, %v11548
    %v11550 = vand.u32 %v11549, 4294901760
    %v11551 = vsub.f32 %v11549, %v11550
    %v11552 = vand.u32 %v11551, 4294901760
    %11553 = vmatpush.msra.mxu0 %v11552
    %v11554 = vand.u32 %v11090, 4294901760
    %v11555 = vsub.f32 %v11090, %v11554
    %v11556 = vand.u32 %v11555, 4294901760
    %v11557 = vsub.f32 %v11555, %v11556
    %v11558 = vand.u32 %v11557, 4294901760
    %11559 = vmatpush.msra.mxu0 %v11558
    %v11560 = vand.u32 %v11089, 4294901760
    %v11561 = vsub.f32 %v11089, %v11560
    %v11562 = vand.u32 %v11561, 4294901760
    %v11563 = vsub.f32 %v11561, %v11562
    %v11564 = vand.u32 %v11563, 4294901760
    %11565 = vmatpush.msra.mxu0 %v11564
    %v11566 = vand.u32 %v11088, 4294901760
    %v11567 = vsub.f32 %v11088, %v11566
    %v11568 = vand.u32 %v11567, 4294901760
    %v11569 = vsub.f32 %v11567, %v11568
    %v11570 = vand.u32 %v11569, 4294901760
    %11571 = vmatpush.msra.mxu0 %v11570
    %v11572 = vand.u32 %v11087, 4294901760
    %v11573 = vsub.f32 %v11087, %v11572
    %v11574 = vand.u32 %v11573, 4294901760
    %v11575 = vsub.f32 %v11573, %v11574
    %v11576 = vand.u32 %v11575, 4294901760
    %11577 = vmatpush.msra.mxu0 %v11576
    %v11578 = vand.u32 %v11086, 4294901760
    %v11579 = vsub.f32 %v11086, %v11578
    %v11580 = vand.u32 %v11579, 4294901760
    %v11581 = vsub.f32 %v11579, %v11580
    %v11582 = vand.u32 %v11581, 4294901760
    %11583 = vmatpush.msra.mxu0 %v11582
    %v11584 = vand.u32 %v11069, 4294901760
    %11585 = vmatmul.f32.gmra.mxu0 %v11584
    %v11586 = vpop.f32.mrf.mxu0
    %v11587 = vadd.f32 %v11486, %v11586
    %11588 = vdwg.mxu0
    %v11589 = vand.u32 %v11101, 4294901760
    %v11590 = vsub.f32 %v11101, %v11589
    %11591 = vmatpush.msra.mxu0 %v11590
    %v11592 = vand.u32 %v11100, 4294901760
    %v11593 = vsub.f32 %v11100, %v11592
    %11594 = vmatpush.msra.mxu0 %v11593
    %v11595 = vand.u32 %v11099, 4294901760
    %v11596 = vsub.f32 %v11099, %v11595
    %11597 = vmatpush.msra.mxu0 %v11596
    %v11598 = vand.u32 %v11098, 4294901760
    %v11599 = vsub.f32 %v11098, %v11598
    %11600 = vmatpush.msra.mxu0 %v11599
    %v11601 = vand.u32 %v11097, 4294901760
    %v11602 = vsub.f32 %v11097, %v11601
    %11603 = vmatpush.msra.mxu0 %v11602
    %v11604 = vand.u32 %v11096, 4294901760
    %v11605 = vsub.f32 %v11096, %v11604
    %11606 = vmatpush.msra.mxu0 %v11605
    %v11607 = vand.u32 %v11095, 4294901760
    %v11608 = vsub.f32 %v11095, %v11607
    %11609 = vmatpush.msra.mxu0 %v11608
    %v11610 = vand.u32 %v11094, 4294901760
    %v11611 = vsub.f32 %v11094, %v11610
    %11612 = vmatpush.msra.mxu0 %v11611
    %v11613 = vand.u32 %v11093, 4294901760
    %v11614 = vsub.f32 %v11093, %v11613
    %11615 = vmatpush.msra.mxu0 %v11614
    %v11616 = vand.u32 %v11092, 4294901760
    %v11617 = vsub.f32 %v11092, %v11616
    %11618 = vmatpush.msra.mxu0 %v11617
    %v11619 = vand.u32 %v11091, 4294901760
    %v11620 = vsub.f32 %v11091, %v11619
    %11621 = vmatpush.msra.mxu0 %v11620
    %v11622 = vand.u32 %v11090, 4294901760
    %v11623 = vsub.f32 %v11090, %v11622
    %11624 = vmatpush.msra.mxu0 %v11623
    %v11625 = vand.u32 %v11089, 4294901760
    %v11626 = vsub.f32 %v11089, %v11625
    %11627 = vmatpush.msra.mxu0 %v11626
    %v11628 = vand.u32 %v11088, 4294901760
    %v11629 = vsub.f32 %v11088, %v11628
    %11630 = vmatpush.msra.mxu0 %v11629
    %v11631 = vand.u32 %v11087, 4294901760
    %v11632 = vsub.f32 %v11087, %v11631
    %11633 = vmatpush.msra.mxu0 %v11632
    %v11634 = vand.u32 %v11086, 4294901760
    %v11635 = vsub.f32 %v11086, %v11634
    %11636 = vmatpush.msra.mxu0 %v11635
    %v11637 = vand.u32 %v11069, 4294901760
    %v11638 = vsub.f32 %v11069, %v11637
    %11639 = vmatmul.f32.gmra.mxu0 %v11638
    %v11640 = vpop.f32.mrf.mxu0
    %v11641 = vadd.f32 %v11587, %v11640
    %11642 = vdwg.mxu0
    %v11643 = vand.u32 %v11101, 4294901760
    %11644 = vmatpush.msra.mxu0 %v11643
    %v11645 = vand.u32 %v11100, 4294901760
    %11646 = vmatpush.msra.mxu0 %v11645
    %v11647 = vand.u32 %v11099, 4294901760
    %11648 = vmatpush.msra.mxu0 %v11647
    %v11649 = vand.u32 %v11098, 4294901760
    %11650 = vmatpush.msra.mxu0 %v11649
    %v11651 = vand.u32 %v11097, 4294901760
    %11652 = vmatpush.msra.mxu0 %v11651
    %v11653 = vand.u32 %v11096, 4294901760
    %11654 = vmatpush.msra.mxu0 %v11653
    %v11655 = vand.u32 %v11095, 4294901760
    %11656 = vmatpush.msra.mxu0 %v11655
    %v11657 = vand.u32 %v11094, 4294901760
    %11658 = vmatpush.msra.mxu0 %v11657
    %v11659 = vand.u32 %v11093, 4294901760
    %11660 = vmatpush.msra.mxu0 %v11659
    %v11661 = vand.u32 %v11092, 4294901760
    %11662 = vmatpush.msra.mxu0 %v11661
    %v11663 = vand.u32 %v11091, 4294901760
    %11664 = vmatpush.msra.mxu0 %v11663
    %v11665 = vand.u32 %v11090, 4294901760
    %11666 = vmatpush.msra.mxu0 %v11665
    %v11667 = vand.u32 %v11089, 4294901760
    %11668 = vmatpush.msra.mxu0 %v11667
    %v11669 = vand.u32 %v11088, 4294901760
    %11670 = vmatpush.msra.mxu0 %v11669
    %v11671 = vand.u32 %v11087, 4294901760
    %11672 = vmatpush.msra.mxu0 %v11671
    %v11673 = vand.u32 %v11086, 4294901760
    %11674 = vmatpush.msra.mxu0 %v11673
    %v11675 = vand.u32 %v11069, 4294901760
    %v11676 = vsub.f32 %v11069, %v11675
    %v11677 = vand.u32 %v11676, 4294901760
    %11678 = vmatmul.f32.gmra.mxu0 %v11677
    %v11679 = vpop.f32.mrf.mxu0
    %v11680 = vadd.f32 %v11641, %v11679
    %11681 = vdwg.mxu0
    %v11682 = vand.u32 %v11101, 4294901760
    %v11683 = vsub.f32 %v11101, %v11682
    %v11684 = vand.u32 %v11683, 4294901760
    %11685 = vmatpush.msra.mxu0 %v11684
    %v11686 = vand.u32 %v11100, 4294901760
    %v11687 = vsub.f32 %v11100, %v11686
    %v11688 = vand.u32 %v11687, 4294901760
    %11689 = vmatpush.msra.mxu0 %v11688
    %v11690 = vand.u32 %v11099, 4294901760
    %v11691 = vsub.f32 %v11099, %v11690
    %v11692 = vand.u32 %v11691, 4294901760
    %11693 = vmatpush.msra.mxu0 %v11692
    %v11694 = vand.u32 %v11098, 4294901760
    %v11695 = vsub.f32 %v11098, %v11694
    %v11696 = vand.u32 %v11695, 4294901760
    %11697 = vmatpush.msra.mxu0 %v11696
    %v11698 = vand.u32 %v11097, 4294901760
    %v11699 = vsub.f32 %v11097, %v11698
    %v11700 = vand.u32 %v11699, 4294901760
    %11701 = vmatpush.msra.mxu0 %v11700
    %v11702 = vand.u32 %v11096, 4294901760
    %v11703 = vsub.f32 %v11096, %v11702
    %v11704 = vand.u32 %v11703, 4294901760
    %11705 = vmatpush.msra.mxu0 %v11704
    %v11706 = vand.u32 %v11095, 4294901760
    %v11707 = vsub.f32 %v11095, %v11706
    %v11708 = vand.u32 %v11707, 4294901760
    %11709 = vmatpush.msra.mxu0 %v11708
    %v11710 = vand.u32 %v11094, 4294901760
    %v11711 = vsub.f32 %v11094, %v11710
    %v11712 = vand.u32 %v11711, 4294901760
    %11713 = vmatpush.msra.mxu0 %v11712
    %v11714 = vand.u32 %v11093, 4294901760
    %v11715 = vsub.f32 %v11093, %v11714
    %v11716 = vand.u32 %v11715, 4294901760
    %11717 = vmatpush.msra.mxu0 %v11716
    %v11718 = vand.u32 %v11092, 4294901760
    %v11719 = vsub.f32 %v11092, %v11718
    %v11720 = vand.u32 %v11719, 4294901760
    %11721 = vmatpush.msra.mxu0 %v11720
    %v11722 = vand.u32 %v11091, 4294901760
    %v11723 = vsub.f32 %v11091, %v11722
    %v11724 = vand.u32 %v11723, 4294901760
    %11725 = vmatpush.msra.mxu0 %v11724
    %v11726 = vand.u32 %v11090, 4294901760
    %v11727 = vsub.f32 %v11090, %v11726
    %v11728 = vand.u32 %v11727, 4294901760
    %11729 = vmatpush.msra.mxu0 %v11728
    %v11730 = vand.u32 %v11089, 4294901760
    %v11731 = vsub.f32 %v11089, %v11730
    %v11732 = vand.u32 %v11731, 4294901760
    %11733 = vmatpush.msra.mxu0 %v11732
    %v11734 = vand.u32 %v11088, 4294901760
    %v11735 = vsub.f32 %v11088, %v11734
    %v11736 = vand.u32 %v11735, 4294901760
    %11737 = vmatpush.msra.mxu0 %v11736
    %v11738 = vand.u32 %v11087, 4294901760
    %v11739 = vsub.f32 %v11087, %v11738
    %v11740 = vand.u32 %v11739, 4294901760
    %11741 = vmatpush.msra.mxu0 %v11740
    %v11742 = vand.u32 %v11086, 4294901760
    %v11743 = vsub.f32 %v11086, %v11742
    %v11744 = vand.u32 %v11743, 4294901760
    %11745 = vmatpush.msra.mxu0 %v11744
    %v11746 = vand.u32 %v11069, 4294901760
    %11747 = vmatmul.f32.gmra.mxu0 %v11746
    %v11748 = vpop.f32.mrf.mxu0
    %v11749 = vadd.f32 %v11680, %v11748
    %11750 = vdwg.mxu0
    %v11751 = vand.u32 %v11101, 4294901760
    %11752 = vmatpush.msra.mxu0 %v11751
    %v11753 = vand.u32 %v11100, 4294901760
    %11754 = vmatpush.msra.mxu0 %v11753
    %v11755 = vand.u32 %v11099, 4294901760
    %11756 = vmatpush.msra.mxu0 %v11755
    %v11757 = vand.u32 %v11098, 4294901760
    %11758 = vmatpush.msra.mxu0 %v11757
    %v11759 = vand.u32 %v11097, 4294901760
    %11760 = vmatpush.msra.mxu0 %v11759
    %v11761 = vand.u32 %v11096, 4294901760
    %11762 = vmatpush.msra.mxu0 %v11761
    %v11763 = vand.u32 %v11095, 4294901760
    %11764 = vmatpush.msra.mxu0 %v11763
    %v11765 = vand.u32 %v11094, 4294901760
    %11766 = vmatpush.msra.mxu0 %v11765
    %v11767 = vand.u32 %v11093, 4294901760
    %11768 = vmatpush.msra.mxu0 %v11767
    %v11769 = vand.u32 %v11092, 4294901760
    %11770 = vmatpush.msra.mxu0 %v11769
    %v11771 = vand.u32 %v11091, 4294901760
    %11772 = vmatpush.msra.mxu0 %v11771
    %v11773 = vand.u32 %v11090, 4294901760
    %11774 = vmatpush.msra.mxu0 %v11773
    %v11775 = vand.u32 %v11089, 4294901760
    %11776 = vmatpush.msra.mxu0 %v11775
    %v11777 = vand.u32 %v11088, 4294901760
    %11778 = vmatpush.msra.mxu0 %v11777
    %v11779 = vand.u32 %v11087, 4294901760
    %11780 = vmatpush.msra.mxu0 %v11779
    %v11781 = vand.u32 %v11086, 4294901760
    %11782 = vmatpush.msra.mxu0 %v11781
    %v11783 = vand.u32 %v11069, 4294901760
    %11784 = vmatmul.f32.gmra.mxu0 %v11783
    %v11785 = vpop.f32.mrf.mxu0
    %v11786 = vadd.f32 %v11749, %v11785
    %11787 = vdwg.mxu0
    %11788 = vst [vmem:[%s11] sm:$0x3] %v11786
    // Predicated region
    $region54: #{multi_task_cnn_forward.1} parent=1 // pred_check
      _
    $region55: #{multi_task_cnn_forward.1} parent=1 // pred_check_branch
      %11790 = sbr.rel (0) target = $region57
    $region56: #{multi_task_cnn_forward.1} parent=1 // pred_region
      _
    $region57: #{multi_task_cnn_forward.1} parent=1 // pred_fallthru
      _
    // Predicated region
    $region58: #{multi_task_cnn_forward.1} parent=1 // pred_check
      _
    $region59: #{multi_task_cnn_forward.1} parent=1 // pred_check_branch
      %11792 = sbr.rel (0) target = $region61
    $region60: #{multi_task_cnn_forward.1} parent=1 // pred_region
      _
    $region61: #{multi_task_cnn_forward.1} parent=1 // pred_fallthru
      _
    %11793 = vsyncpa [#allocation5], 1
    %11794 = vsyncpa [#allocation7], 1

</llo_original>
